<compile_context>
chip_gen: v5e
topology: v5e:2x2
jax: 0.10.0
libtpu: 0.0.40
codegen_flags: <defaults>
</compile_context>

<pallas_src>
import numpy as np
import jax
import jax.numpy as jnp
from jax.experimental import pallas as pl
from jax.experimental.pallas import tpu as pltpu

# ---------------------------------------------------------------------------
# Problem constants.
# ---------------------------------------------------------------------------
N = 2            # batch
C_IN = 16        # in_channels
C_OUT = 16       # out_channels per branch; concat -> 4*C_OUT
H = W = 16
HW = H * W
L = N * HW       # 512 lanes -> 4 full vregs per channel row
BN_EPS = 1e-5


# ---------------------------------------------------------------------------
# Fused kernel: all 4 branches + concat + batch-norm in one invocation.
#   x_ref    : (C_IN, L)            activations, batch folded onto lanes
#   wAP_ref  : (4*C_OUT, C_IN)      [w1; w3a; w5a; wp] stacked 1x1 weights
#   wS_ref   : (25, 2*C_OUT, 2*C_OUT) per-shift block-diag [w3b | w5b] weights
#   colp_ref : (4*C_OUT, 4)         col0=[b1;b3a;b5a;bp], col1=[b3b;b5b;0],
#                                   col2=gamma, col3=beta
#   mask_ref : (25, L)              0/1 validity mask per (dh,dw) shift
#   out_ref  : (4*C_OUT, L)
# ---------------------------------------------------------------------------
def _inception_kernel(x_ref, wAP_ref, wS_ref, colp_ref, mask_ref, out_ref):
    f32 = jnp.float32
    x = x_ref[...]                                   # (C_IN, L)

    bias_a = colp_ref[:, 0:1]                        # (64,1) 1x1-stage biases
    bias_c = colp_ref[0:2 * C_OUT, 1:2]              # (32,1) post-conv biases
    gamma = colp_ref[:, 2:3]                         # (64,1)
    beta = colp_ref[:, 3:4]                          # (64,1)

    def rolled(v, dh, dw):
        """out[:, p] = v[:, p + dh*W + dw] (cyclic; masks kill wrapped lanes).

        Assumes pltpu.roll matches jnp.roll: out[i] = in[i - shift]."""
        s = dh * W + dw
        if s == 0:
            return v
        return pltpu.roll(v, (-s) % L, axis=1)

    # ---- stage A: the three shared-input 1x1 convs as ONE stacked matmul ----
    yA = jnp.dot(wAP_ref[0:3 * C_OUT, :], x,
                 preferred_element_type=f32) + bias_a[0:3 * C_OUT]
    br1 = yA[0:C_OUT]                                # 1x1 branch      (16, L)
    m35 = yA[C_OUT:3 * C_OUT]                        # [b3h; b5h]      (32, L)

    # ---- pool branch: 3x3 / stride 1 / pad 1 max pool, then 1x1 proj -------
    pooled = x                                       # center tap always valid
    for dh in (-1, 0, 1):
        for dw in (-1, 0, 1):
            if dh == 0 and dw == 0:
                continue
            kk = (dh + 2) * 5 + (dw + 2)
            cand = jnp.where(mask_ref[kk:kk + 1] > 0.5, rolled(x, dh, dw), -1e30)
            pooled = jnp.maximum(pooled, cand)
    brp = jnp.dot(wAP_ref[3 * C_OUT:4 * C_OUT, :], pooled,
                  preferred_element_type=f32) + bias_a[3 * C_OUT:4 * C_OUT]

    # ---- fused 3x3 + 5x5 convs: 25 shifted (32,32)@(32,L) MXU matmuls -------
    # acc rows 0:16 = 3x3-branch output, rows 16:32 = 5x5-branch output.
    acc = jnp.broadcast_to(bias_c, (2 * C_OUT, L)).astype(f32)
    for kk in range(25):
        dh, dw = kk // 5 - 2, kk % 5 - 2
        win = rolled(m35, dh, dw) * mask_ref[kk:kk + 1]          # (32, L)
        acc = acc + jnp.dot(wS_ref[kk], win, preferred_element_type=f32)

    # ---- fused BatchNorm2d (training-mode forward, biased stats over N*H*W) --
    # Single-pass E[x^2]-mean^2 in f32 on the live branch values.
    inv = 1.0 / float(L)
    s1 = jnp.sum(br1, axis=1, keepdims=True)
    q1 = jnp.sum(br1 * br1, axis=1, keepdims=True)
    s35 = jnp.sum(acc, axis=1, keepdims=True)
    q35 = jnp.sum(acc * acc, axis=1, keepdims=True)
    sp = jnp.sum(brp, axis=1, keepdims=True)
    qp = jnp.sum(brp * brp, axis=1, keepdims=True)
    mean = jnp.concatenate([s1, s35, sp], axis=0) * inv          # (64,1)
    ex2 = jnp.concatenate([q1, q35, qp], axis=0) * inv
    var = ex2 - mean * mean
    scale = gamma * jax.lax.rsqrt(var + BN_EPS)
    shift = beta - mean * scale

    # single lane-dense write of the normalized, channel-concatenated output
    out_ref[0:C_OUT, :] = br1 * scale[0:C_OUT] + shift[0:C_OUT]
    out_ref[C_OUT:3 * C_OUT, :] = acc * scale[C_OUT:3 * C_OUT] + shift[C_OUT:3 * C_OUT]
    out_ref[3 * C_OUT:4 * C_OUT, :] = brp * scale[3 * C_OUT:4 * C_OUT] + shift[3 * C_OUT:4 * C_OUT]
    # TODO(synk): BatchNorm2d running-mean/var buffer updates (training-time
    # module state) are not modeled; only the forward output is produced.


# ---------------------------------------------------------------------------
# Wrapper: parameter packing + layout plumbing + the single pallas_call.
# ---------------------------------------------------------------------------
def _pack_params(prm):
    f32 = jnp.float32
    # stacked 1x1 weights: [w1; w3a; w5a; wp] -> (64, C_IN)
    wAP = jnp.concatenate([prm["w1"], prm["w3a"], prm["w5a"], prm["wp"]],
                          axis=0).astype(f32)

    # per-shift block-diagonal weights for the fused 3x3 + 5x5 conv
    w3b = prm["w3b"].astype(f32)                     # (16,16,3,3)
    w5b = prm["w5b"].astype(f32)                     # (16,16,5,5)
    z = jnp.zeros((C_OUT, C_OUT), f32)
    blocks = []
    for kk in range(25):
        kh, kw = divmod(kk, 5)
        dh, dw = kh - 2, kw - 2
        top_l = w3b[:, :, dh + 1, dw + 1] if (abs(dh) <= 1 and abs(dw) <= 1) else z
        top = jnp.concatenate([top_l, z], axis=1)                # (16, 32)
        bot = jnp.concatenate([z, w5b[:, :, kh, kw]], axis=1)    # (16, 32)
        blocks.append(jnp.concatenate([top, bot], axis=0))       # (32, 32)
    wS = jnp.stack(blocks, axis=0)                               # (25, 32, 32)

    # packed column params: biases + BN affine
    col0 = jnp.concatenate([prm["b1"], prm["b3a"], prm["b5a"], prm["bp"]])
    col1 = jnp.concatenate([prm["b3b"], prm["b5b"], jnp.zeros((2 * C_OUT,), f32)])
    colp = jnp.stack([col0, col1, prm["gamma"], prm["beta"]], axis=1).astype(f32)

    # shift-validity masks (host-side constants), (25, N*HW)
    hh, ww = np.mgrid[0:H, 0:W]
    mlist = []
    for kk in range(25):
        dh, dw = kk // 5 - 2, kk % 5 - 2
        v = ((hh + dh >= 0) & (hh + dh < H) &
             (ww + dw >= 0) & (ww + dw < W)).astype(np.float32)  # (H, W)
        mlist.append(np.tile(v[None], (N, 1, 1)).reshape(-1))
    masks = jnp.asarray(np.stack(mlist, axis=0))                 # (25, L)
    return wAP, wS, colp, masks


def inception_forward(x_nchw, prm):
    # fold batch onto the lane axis: (N,C,H,W) -> (C, N*H*W); 32 KiB transpose
    x_f = (x_nchw.astype(jnp.float32)
           .transpose(1, 0, 2, 3)
           .reshape(C_IN, L))
    wAP, wS, colp, masks = _pack_params(prm)

    vmem = pl.BlockSpec(memory_space=pltpu.MemorySpace.VMEM)
    out = pl.pallas_call(
        _inception_kernel,
        out_shape=jax.ShapeDtypeStruct((4 * C_OUT, L), jnp.float32),
        in_specs=[vmem] * 5,
        out_specs=vmem,
    )(x_f, wAP, wS, colp, masks)
    # (4*C_OUT, N*H*W) -> (N, 4*C_OUT, H, W)
    return out.reshape(4 * C_OUT, N, H, W).transpose(1, 0, 2, 3)


# ---------------------------------------------------------------------------
# Pure-JAX reference (matches the PyTorch forward semantics) for validation.
# ---------------------------------------------------------------------------
def inception_ref(x, prm):
    hi = jax.lax.Precision.HIGHEST

    def c1(t, w, b):
        return jnp.einsum("oi,nihw->nohw", w, t, precision=hi) + b[None, :, None, None]

    def ck(t, w, b, pad):
        y = jax.lax.conv_general_dilated(
            t, w, (1, 1), [(pad, pad), (pad, pad)],
            dimension_numbers=("NCHW", "OIHW", "NCHW"), precision=hi)
        return y + b[None, :, None, None]

    br1 = c1(x, prm["w1"], prm["b1"])
    br3 = ck(c1(x, prm["w3a"], prm["b3a"]), prm["w3b"], prm["b3b"], 1)
    br5 = ck(c1(x, prm["w5a"], prm["b5a"]), prm["w5b"], prm["b5b"], 2)
    pooled = jax.lax.reduce_window(x, -jnp.inf, jax.lax.max,
                                   (1, 1, 3, 3), (1, 1, 1, 1),
                                   [(0, 0), (0, 0), (1, 1), (1, 1)])
    brp = c1(pooled, prm["wp"], prm["bp"])
    y = jnp.concatenate([br1, br3, br5, brp], axis=1)
    mean = jnp.mean(y, axis=(0, 2, 3), keepdims=True)
    var = jnp.mean((y - mean) ** 2, axis=(0, 2, 3), keepdims=True)
    return (prm["gamma"][None, :, None, None] * (y - mean)
            / jnp.sqrt(var + BN_EPS) + prm["beta"][None, :, None, None])


if __name__ == "__main__":
    key = jax.random.PRNGKey(0)
    ks = jax.random.split(key, 16)
    x = jax.random.normal(ks[0], (N, C_IN, H, W), jnp.float32)

    def rnd(k, shape, fan_in):
        return jax.random.normal(k, shape, jnp.float32) / jnp.sqrt(float(fan_in))

    # Weights in PyTorch Conv2d layouts (1x1 weights stored squeezed to (C_out, C_in)).
    prm = dict(
        w1=rnd(ks[1], (C_OUT, C_IN), C_IN),              b1=rnd(ks[2], (C_OUT,), C_IN),
        w3a=rnd(ks[3], (C_OUT, C_IN), C_IN),             b3a=rnd(ks[4], (C_OUT,), C_IN),
        w3b=rnd(ks[5], (C_OUT, C_OUT, 3, 3), 9 * C_OUT), b3b=rnd(ks[6], (C_OUT,), 9 * C_OUT),
        w5a=rnd(ks[7], (C_OUT, C_IN), C_IN),             b5a=rnd(ks[8], (C_OUT,), C_IN),
        w5b=rnd(ks[9], (C_OUT, C_OUT, 5, 5), 25 * C_OUT), b5b=rnd(ks[10], (C_OUT,), 25 * C_OUT),
        wp=rnd(ks[11], (C_OUT, C_IN), C_IN),             bp=rnd(ks[12], (C_OUT,), C_IN),
        gamma=1.0 + 0.1 * jax.random.normal(ks[13], (4 * C_OUT,), jnp.float32),
        beta=0.1 * jax.random.normal(ks[14], (4 * C_OUT,), jnp.float32),
    )

    out = jax.block_until_ready(inception_forward(x, prm))
    ref = jax.block_until_ready(inception_ref(x, prm))

    assert out.shape == (N, 4 * C_OUT, H, W), out.shape
    max_err = float(jnp.max(jnp.abs(out - ref)))
    assert max_err < 2e-3, f"mismatch vs reference, max abs err = {max_err}"
    print("KERNEL_OK")
</pallas_src>

<mosaic_0001>
module attributes {stable_mosaic.version = 11 : i64} {
  func.func @_inception_kernel(%arg0: memref<16x512xf32, #tpu.memory_space<vmem>>, %arg1: memref<64x16xf32, #tpu.memory_space<vmem>>, %arg2: memref<25x32x32xf32, #tpu.memory_space<vmem>>, %arg3: memref<64x4xf32, #tpu.memory_space<vmem>>, %arg4: memref<25x512xf32, #tpu.memory_space<vmem>>, %arg5: memref<64x512xf32, #tpu.memory_space<vmem>>) attributes {dimension_semantics = [], scalar_prefetch = 0 : i64, scratch_operands = 0 : i64, tpu.core_type = #tpu.core_type<tc>} {
    %c0 = arith.constant 0 : index
    %c0_0 = arith.constant 0 : index
    %0 = vector.load %arg0[%c0, %c0_0] : memref<16x512xf32, #tpu.memory_space<vmem>>, vector<16x512xf32>
    %c0_1 = arith.constant 0 : index
    %c0_2 = arith.constant 0 : index
    %1 = vector.load %arg3[%c0_1, %c0_2] : memref<64x4xf32, #tpu.memory_space<vmem>>, vector<64x1xf32>
    %c0_3 = arith.constant 0 : index
    %c1 = arith.constant 1 : index
    %2 = vector.load %arg3[%c0_3, %c1] : memref<64x4xf32, #tpu.memory_space<vmem>>, vector<32x1xf32>
    %c0_4 = arith.constant 0 : index
    %c2 = arith.constant 2 : index
    %3 = vector.load %arg3[%c0_4, %c2] : memref<64x4xf32, #tpu.memory_space<vmem>>, vector<64x1xf32>
    %c0_5 = arith.constant 0 : index
    %c3 = arith.constant 3 : index
    %4 = vector.load %arg3[%c0_5, %c3] : memref<64x4xf32, #tpu.memory_space<vmem>>, vector<64x1xf32>
    %c0_6 = arith.constant 0 : index
    %c0_7 = arith.constant 0 : index
    %5 = vector.load %arg1[%c0_6, %c0_7] : memref<64x16xf32, #tpu.memory_space<vmem>>, vector<48x16xf32>
    %cst = arith.constant dense<0.000000e+00> : vector<48x512xf32>
    %6 = tpu.matmul %5, %0, %cst {dimension_numbers = #tpu.dot_dimension_numbers<[1], [0], [0], [1], [0, 0, 1, 1], [], []>} : vector<48x16xf32>, vector<16x512xf32>, vector<48x512xf32> -> vector<48x512xf32>
    %7 = vector.extract_strided_slice %1 {offsets = [0, 0], sizes = [48, 1], strides = [1, 1]} : vector<64x1xf32> to vector<48x1xf32>
    %8 = vector.broadcast %7 : vector<48x1xf32> to vector<48x512xf32>
    %9 = arith.addf %6, %8 : vector<48x512xf32>
    %10 = vector.extract_strided_slice %9 {offsets = [0, 0], sizes = [16, 512], strides = [1, 1]} : vector<48x512xf32> to vector<16x512xf32>
    %11 = vector.extract_strided_slice %9 {offsets = [16, 0], sizes = [32, 512], strides = [1, 1]} : vector<48x512xf32> to vector<32x512xf32>
    %c6 = arith.constant 6 : index
    %c0_8 = arith.constant 0 : index
    %12 = vector.load %arg4[%c6, %c0_8] : memref<25x512xf32, #tpu.memory_space<vmem>>, vector<1x512xf32>
    %cst_9 = arith.constant 5.000000e-01 : f32
    %13 = vector.broadcast %cst_9 : f32 to vector<1x512xf32>
    %14 = arith.cmpf ogt, %12, %13 : vector<1x512xf32>
    %c17_i32 = arith.constant 17 : i32
    %15 = tpu.dynamic_rotate %0 by %c17_i32 dim 1 : vector<16x512xf32>, i32 -> vector<16x512xf32>
    %cst_10 = arith.constant -1.000000e+30 : f32
    %16 = vector.shape_cast %14 : vector<1x512xi1> to vector<1x512xi1>
    %17 = vector.broadcast %16 : vector<1x512xi1> to vector<16x512xi1>
    %18 = vector.broadcast %cst_10 : f32 to vector<16x512xf32>
    %19 = arith.select %17, %15, %18 : vector<16x512xi1>, vector<16x512xf32>
    %20 = arith.maximumf %0, %19 : vector<16x512xf32>
    %c7 = arith.constant 7 : index
    %c0_11 = arith.constant 0 : index
    %21 = vector.load %arg4[%c7, %c0_11] : memref<25x512xf32, #tpu.memory_space<vmem>>, vector<1x512xf32>
    %cst_12 = arith.constant 5.000000e-01 : f32
    %22 = vector.broadcast %cst_12 : f32 to vector<1x512xf32>
    %23 = arith.cmpf ogt, %21, %22 : vector<1x512xf32>
    %c16_i32 = arith.constant 16 : i32
    %24 = tpu.dynamic_rotate %0 by %c16_i32 dim 1 : vector<16x512xf32>, i32 -> vector<16x512xf32>
    %cst_13 = arith.constant -1.000000e+30 : f32
    %25 = vector.shape_cast %23 : vector<1x512xi1> to vector<1x512xi1>
    %26 = vector.broadcast %25 : vector<1x512xi1> to vector<16x512xi1>
    %27 = vector.broadcast %cst_13 : f32 to vector<16x512xf32>
    %28 = arith.select %26, %24, %27 : vector<16x512xi1>, vector<16x512xf32>
    %29 = arith.maximumf %20, %28 : vector<16x512xf32>
    %c8 = arith.constant 8 : index
    %c0_14 = arith.constant 0 : index
    %30 = vector.load %arg4[%c8, %c0_14] : memref<25x512xf32, #tpu.memory_space<vmem>>, vector<1x512xf32>
    %cst_15 = arith.constant 5.000000e-01 : f32
    %31 = vector.broadcast %cst_15 : f32 to vector<1x512xf32>
    %32 = arith.cmpf ogt, %30, %31 : vector<1x512xf32>
    %c15_i32 = arith.constant 15 : i32
    %33 = tpu.dynamic_rotate %0 by %c15_i32 dim 1 : vector<16x512xf32>, i32 -> vector<16x512xf32>
    %cst_16 = arith.constant -1.000000e+30 : f32
    %34 = vector.shape_cast %32 : vector<1x512xi1> to vector<1x512xi1>
    %35 = vector.broadcast %34 : vector<1x512xi1> to vector<16x512xi1>
    %36 = vector.broadcast %cst_16 : f32 to vector<16x512xf32>
    %37 = arith.select %35, %33, %36 : vector<16x512xi1>, vector<16x512xf32>
    %38 = arith.maximumf %29, %37 : vector<16x512xf32>
    %c11 = arith.constant 11 : index
    %c0_17 = arith.constant 0 : index
    %39 = vector.load %arg4[%c11, %c0_17] : memref<25x512xf32, #tpu.memory_space<vmem>>, vector<1x512xf32>
    %cst_18 = arith.constant 5.000000e-01 : f32
    %40 = vector.broadcast %cst_18 : f32 to vector<1x512xf32>
    %41 = arith.cmpf ogt, %39, %40 : vector<1x512xf32>
    %c1_i32 = arith.constant 1 : i32
    %42 = tpu.dynamic_rotate %0 by %c1_i32 dim 1 : vector<16x512xf32>, i32 -> vector<16x512xf32>
    %cst_19 = arith.constant -1.000000e+30 : f32
    %43 = vector.shape_cast %41 : vector<1x512xi1> to vector<1x512xi1>
    %44 = vector.broadcast %43 : vector<1x512xi1> to vector<16x512xi1>
    %45 = vector.broadcast %cst_19 : f32 to vector<16x512xf32>
    %46 = arith.select %44, %42, %45 : vector<16x512xi1>, vector<16x512xf32>
    %47 = arith.maximumf %38, %46 : vector<16x512xf32>
    %c13 = arith.constant 13 : index
    %c0_20 = arith.constant 0 : index
    %48 = vector.load %arg4[%c13, %c0_20] : memref<25x512xf32, #tpu.memory_space<vmem>>, vector<1x512xf32>
    %cst_21 = arith.constant 5.000000e-01 : f32
    %49 = vector.broadcast %cst_21 : f32 to vector<1x512xf32>
    %50 = arith.cmpf ogt, %48, %49 : vector<1x512xf32>
    %c511_i32 = arith.constant 511 : i32
    %51 = tpu.dynamic_rotate %0 by %c511_i32 dim 1 : vector<16x512xf32>, i32 -> vector<16x512xf32>
    %cst_22 = arith.constant -1.000000e+30 : f32
    %52 = vector.shape_cast %50 : vector<1x512xi1> to vector<1x512xi1>
    %53 = vector.broadcast %52 : vector<1x512xi1> to vector<16x512xi1>
    %54 = vector.broadcast %cst_22 : f32 to vector<16x512xf32>
    %55 = arith.select %53, %51, %54 : vector<16x512xi1>, vector<16x512xf32>
    %56 = arith.maximumf %47, %55 : vector<16x512xf32>
    %c16 = arith.constant 16 : index
    %c0_23 = arith.constant 0 : index
    %57 = vector.load %arg4[%c16, %c0_23] : memref<25x512xf32, #tpu.memory_space<vmem>>, vector<1x512xf32>
    %cst_24 = arith.constant 5.000000e-01 : f32
    %58 = vector.broadcast %cst_24 : f32 to vector<1x512xf32>
    %59 = arith.cmpf ogt, %57, %58 : vector<1x512xf32>
    %c497_i32 = arith.constant 497 : i32
    %60 = tpu.dynamic_rotate %0 by %c497_i32 dim 1 : vector<16x512xf32>, i32 -> vector<16x512xf32>
    %cst_25 = arith.constant -1.000000e+30 : f32
    %61 = vector.shape_cast %59 : vector<1x512xi1> to vector<1x512xi1>
    %62 = vector.broadcast %61 : vector<1x512xi1> to vector<16x512xi1>
    %63 = vector.broadcast %cst_25 : f32 to vector<16x512xf32>
    %64 = arith.select %62, %60, %63 : vector<16x512xi1>, vector<16x512xf32>
    %65 = arith.maximumf %56, %64 : vector<16x512xf32>
    %c17 = arith.constant 17 : index
    %c0_26 = arith.constant 0 : index
    %66 = vector.load %arg4[%c17, %c0_26] : memref<25x512xf32, #tpu.memory_space<vmem>>, vector<1x512xf32>
    %cst_27 = arith.constant 5.000000e-01 : f32
    %67 = vector.broadcast %cst_27 : f32 to vector<1x512xf32>
    %68 = arith.cmpf ogt, %66, %67 : vector<1x512xf32>
    %c496_i32 = arith.constant 496 : i32
    %69 = tpu.dynamic_rotate %0 by %c496_i32 dim 1 : vector<16x512xf32>, i32 -> vector<16x512xf32>
    %cst_28 = arith.constant -1.000000e+30 : f32
    %70 = vector.shape_cast %68 : vector<1x512xi1> to vector<1x512xi1>
    %71 = vector.broadcast %70 : vector<1x512xi1> to vector<16x512xi1>
    %72 = vector.broadcast %cst_28 : f32 to vector<16x512xf32>
    %73 = arith.select %71, %69, %72 : vector<16x512xi1>, vector<16x512xf32>
    %74 = arith.maximumf %65, %73 : vector<16x512xf32>
    %c18 = arith.constant 18 : index
    %c0_29 = arith.constant 0 : index
    %75 = vector.load %arg4[%c18, %c0_29] : memref<25x512xf32, #tpu.memory_space<vmem>>, vector<1x512xf32>
    %cst_30 = arith.constant 5.000000e-01 : f32
    %76 = vector.broadcast %cst_30 : f32 to vector<1x512xf32>
    %77 = arith.cmpf ogt, %75, %76 : vector<1x512xf32>
    %c495_i32 = arith.constant 495 : i32
    %78 = tpu.dynamic_rotate %0 by %c495_i32 dim 1 : vector<16x512xf32>, i32 -> vector<16x512xf32>
    %cst_31 = arith.constant -1.000000e+30 : f32
    %79 = vector.shape_cast %77 : vector<1x512xi1> to vector<1x512xi1>
    %80 = vector.broadcast %79 : vector<1x512xi1> to vector<16x512xi1>
    %81 = vector.broadcast %cst_31 : f32 to vector<16x512xf32>
    %82 = arith.select %80, %78, %81 : vector<16x512xi1>, vector<16x512xf32>
    %83 = arith.maximumf %74, %82 : vector<16x512xf32>
    %c48 = arith.constant 48 : index
    %c0_32 = arith.constant 0 : index
    %84 = vector.load %arg1[%c48, %c0_32] : memref<64x16xf32, #tpu.memory_space<vmem>>, vector<16x16xf32>
    %cst_33 = arith.constant dense<0.000000e+00> : vector<16x512xf32>
    %85 = tpu.matmul %84, %83, %cst_33 {dimension_numbers = #tpu.dot_dimension_numbers<[1], [0], [0], [1], [0, 0, 1, 1], [], []>} : vector<16x16xf32>, vector<16x512xf32>, vector<16x512xf32> -> vector<16x512xf32>
    %86 = vector.extract_strided_slice %1 {offsets = [48, 0], sizes = [16, 1], strides = [1, 1]} : vector<64x1xf32> to vector<16x1xf32>
    %87 = vector.broadcast %86 : vector<16x1xf32> to vector<16x512xf32>
    %88 = arith.addf %85, %87 : vector<16x512xf32>
    %89 = vector.shape_cast %2 : vector<32x1xf32> to vector<32x1xf32>
    %90 = vector.broadcast %89 : vector<32x1xf32> to vector<32x512xf32>
    %c34_i32 = arith.constant 34 : i32
    %91 = tpu.dynamic_rotate %11 by %c34_i32 dim 1 : vector<32x512xf32>, i32 -> vector<32x512xf32>
    %c0_34 = arith.constant 0 : index
    %c0_35 = arith.constant 0 : index
    %92 = vector.load %arg4[%c0_34, %c0_35] : memref<25x512xf32, #tpu.memory_space<vmem>>, vector<1x512xf32>
    %93 = vector.broadcast %92 : vector<1x512xf32> to vector<32x512xf32>
    %94 = arith.mulf %91, %93 : vector<32x512xf32>
    %c0_36 = arith.constant 0 : index
    %c0_37 = arith.constant 0 : index
    %c0_38 = arith.constant 0 : index
    %95 = vector.load %arg2[%c0_36, %c0_37, %c0_38] : memref<25x32x32xf32, #tpu.memory_space<vmem>>, vector<1x32x32xf32>
    %96 = vector.shape_cast %95 : vector<1x32x32xf32> to vector<32x32xf32>
    %cst_39 = arith.constant dense<0.000000e+00> : vector<32x512xf32>
    %97 = tpu.matmul %96, %94, %cst_39 {dimension_numbers = #tpu.dot_dimension_numbers<[1], [0], [0], [1], [0, 0, 1, 1], [], []>} : vector<32x32xf32>, vector<32x512xf32>, vector<32x512xf32> -> vector<32x512xf32>
    %98 = arith.addf %90, %97 : vector<32x512xf32>
    %c33_i32 = arith.constant 33 : i32
    %99 = tpu.dynamic_rotate %11 by %c33_i32 dim 1 : vector<32x512xf32>, i32 -> vector<32x512xf32>
    %c1_40 = arith.constant 1 : index
    %c0_41 = arith.constant 0 : index
    %100 = vector.load %arg4[%c1_40, %c0_41] : memref<25x512xf32, #tpu.memory_space<vmem>>, vector<1x512xf32>
    %101 = vector.broadcast %100 : vector<1x512xf32> to vector<32x512xf32>
    %102 = arith.mulf %99, %101 : vector<32x512xf32>
    %c1_42 = arith.constant 1 : index
    %c0_43 = arith.constant 0 : index
    %c0_44 = arith.constant 0 : index
    %103 = vector.load %arg2[%c1_42, %c0_43, %c0_44] : memref<25x32x32xf32, #tpu.memory_space<vmem>>, vector<1x32x32xf32>
    %104 = vector.shape_cast %103 : vector<1x32x32xf32> to vector<32x32xf32>
    %cst_45 = arith.constant dense<0.000000e+00> : vector<32x512xf32>
    %105 = tpu.matmul %104, %102, %cst_45 {dimension_numbers = #tpu.dot_dimension_numbers<[1], [0], [0], [1], [0, 0, 1, 1], [], []>} : vector<32x32xf32>, vector<32x512xf32>, vector<32x512xf32> -> vector<32x512xf32>
    %106 = arith.addf %98, %105 : vector<32x512xf32>
    %c32_i32 = arith.constant 32 : i32
    %107 = tpu.dynamic_rotate %11 by %c32_i32 dim 1 : vector<32x512xf32>, i32 -> vector<32x512xf32>
    %c2_46 = arith.constant 2 : index
    %c0_47 = arith.constant 0 : index
    %108 = vector.load %arg4[%c2_46, %c0_47] : memref<25x512xf32, #tpu.memory_space<vmem>>, vector<1x512xf32>
    %109 = vector.broadcast %108 : vector<1x512xf32> to vector<32x512xf32>
    %110 = arith.mulf %107, %109 : vector<32x512xf32>
    %c2_48 = arith.constant 2 : index
    %c0_49 = arith.constant 0 : index
    %c0_50 = arith.constant 0 : index
    %111 = vector.load %arg2[%c2_48, %c0_49, %c0_50] : memref<25x32x32xf32, #tpu.memory_space<vmem>>, vector<1x32x32xf32>
    %112 = vector.shape_cast %111 : vector<1x32x32xf32> to vector<32x32xf32>
    %cst_51 = arith.constant dense<0.000000e+00> : vector<32x512xf32>
    %113 = tpu.matmul %112, %110, %cst_51 {dimension_numbers = #tpu.dot_dimension_numbers<[1], [0], [0], [1], [0, 0, 1, 1], [], []>} : vector<32x32xf32>, vector<32x512xf32>, vector<32x512xf32> -> vector<32x512xf32>
    %114 = arith.addf %106, %113 : vector<32x512xf32>
    %c31_i32 = arith.constant 31 : i32
    %115 = tpu.dynamic_rotate %11 by %c31_i32 dim 1 : vector<32x512xf32>, i32 -> vector<32x512xf32>
    %c3_52 = arith.constant 3 : index
    %c0_53 = arith.constant 0 : index
    %116 = vector.load %arg4[%c3_52, %c0_53] : memref<25x512xf32, #tpu.memory_space<vmem>>, vector<1x512xf32>
    %117 = vector.broadcast %116 : vector<1x512xf32> to vector<32x512xf32>
    %118 = arith.mulf %115, %117 : vector<32x512xf32>
    %c3_54 = arith.constant 3 : index
    %c0_55 = arith.constant 0 : index
    %c0_56 = arith.constant 0 : index
    %119 = vector.load %arg2[%c3_54, %c0_55, %c0_56] : memref<25x32x32xf32, #tpu.memory_space<vmem>>, vector<1x32x32xf32>
    %120 = vector.shape_cast %119 : vector<1x32x32xf32> to vector<32x32xf32>
    %cst_57 = arith.constant dense<0.000000e+00> : vector<32x512xf32>
    %121 = tpu.matmul %120, %118, %cst_57 {dimension_numbers = #tpu.dot_dimension_numbers<[1], [0], [0], [1], [0, 0, 1, 1], [], []>} : vector<32x32xf32>, vector<32x512xf32>, vector<32x512xf32> -> vector<32x512xf32>
    %122 = arith.addf %114, %121 : vector<32x512xf32>
    %c30_i32 = arith.constant 30 : i32
    %123 = tpu.dynamic_rotate %11 by %c30_i32 dim 1 : vector<32x512xf32>, i32 -> vector<32x512xf32>
    %c4 = arith.constant 4 : index
    %c0_58 = arith.constant 0 : index
    %124 = vector.load %arg4[%c4, %c0_58] : memref<25x512xf32, #tpu.memory_space<vmem>>, vector<1x512xf32>
    %125 = vector.broadcast %124 : vector<1x512xf32> to vector<32x512xf32>
    %126 = arith.mulf %123, %125 : vector<32x512xf32>
    %c4_59 = arith.constant 4 : index
    %c0_60 = arith.constant 0 : index
    %c0_61 = arith.constant 0 : index
    %127 = vector.load %arg2[%c4_59, %c0_60, %c0_61] : memref<25x32x32xf32, #tpu.memory_space<vmem>>, vector<1x32x32xf32>
    %128 = vector.shape_cast %127 : vector<1x32x32xf32> to vector<32x32xf32>
    %cst_62 = arith.constant dense<0.000000e+00> : vector<32x512xf32>
    %129 = tpu.matmul %128, %126, %cst_62 {dimension_numbers = #tpu.dot_dimension_numbers<[1], [0], [0], [1], [0, 0, 1, 1], [], []>} : vector<32x32xf32>, vector<32x512xf32>, vector<32x512xf32> -> vector<32x512xf32>
    %130 = arith.addf %122, %129 : vector<32x512xf32>
    %c18_i32 = arith.constant 18 : i32
    %131 = tpu.dynamic_rotate %11 by %c18_i32 dim 1 : vector<32x512xf32>, i32 -> vector<32x512xf32>
    %c5 = arith.constant 5 : index
    %c0_63 = arith.constant 0 : index
    %132 = vector.load %arg4[%c5, %c0_63] : memref<25x512xf32, #tpu.memory_space<vmem>>, vector<1x512xf32>
    %133 = vector.broadcast %132 : vector<1x512xf32> to vector<32x512xf32>
    %134 = arith.mulf %131, %133 : vector<32x512xf32>
    %c5_64 = arith.constant 5 : index
    %c0_65 = arith.constant 0 : index
    %c0_66 = arith.constant 0 : index
    %135 = vector.load %arg2[%c5_64, %c0_65, %c0_66] : memref<25x32x32xf32, #tpu.memory_space<vmem>>, vector<1x32x32xf32>
    %136 = vector.shape_cast %135 : vector<1x32x32xf32> to vector<32x32xf32>
    %cst_67 = arith.constant dense<0.000000e+00> : vector<32x512xf32>
    %137 = tpu.matmul %136, %134, %cst_67 {dimension_numbers = #tpu.dot_dimension_numbers<[1], [0], [0], [1], [0, 0, 1, 1], [], []>} : vector<32x32xf32>, vector<32x512xf32>, vector<32x512xf32> -> vector<32x512xf32>
    %138 = arith.addf %130, %137 : vector<32x512xf32>
    %c17_i32_68 = arith.constant 17 : i32
    %139 = tpu.dynamic_rotate %11 by %c17_i32_68 dim 1 : vector<32x512xf32>, i32 -> vector<32x512xf32>
    %c6_69 = arith.constant 6 : index
    %c0_70 = arith.constant 0 : index
    %140 = vector.load %arg4[%c6_69, %c0_70] : memref<25x512xf32, #tpu.memory_space<vmem>>, vector<1x512xf32>
    %141 = vector.broadcast %140 : vector<1x512xf32> to vector<32x512xf32>
    %142 = arith.mulf %139, %141 : vector<32x512xf32>
    %c6_71 = arith.constant 6 : index
    %c0_72 = arith.constant 0 : index
    %c0_73 = arith.constant 0 : index
    %143 = vector.load %arg2[%c6_71, %c0_72, %c0_73] : memref<25x32x32xf32, #tpu.memory_space<vmem>>, vector<1x32x32xf32>
    %144 = vector.shape_cast %143 : vector<1x32x32xf32> to vector<32x32xf32>
    %cst_74 = arith.constant dense<0.000000e+00> : vector<32x512xf32>
    %145 = tpu.matmul %144, %142, %cst_74 {dimension_numbers = #tpu.dot_dimension_numbers<[1], [0], [0], [1], [0, 0, 1, 1], [], []>} : vector<32x32xf32>, vector<32x512xf32>, vector<32x512xf32> -> vector<32x512xf32>
    %146 = arith.addf %138, %145 : vector<32x512xf32>
    %c16_i32_75 = arith.constant 16 : i32
    %147 = tpu.dynamic_rotate %11 by %c16_i32_75 dim 1 : vector<32x512xf32>, i32 -> vector<32x512xf32>
    %c7_76 = arith.constant 7 : index
    %c0_77 = arith.constant 0 : index
    %148 = vector.load %arg4[%c7_76, %c0_77] : memref<25x512xf32, #tpu.memory_space<vmem>>, vector<1x512xf32>
    %149 = vector.broadcast %148 : vector<1x512xf32> to vector<32x512xf32>
    %150 = arith.mulf %147, %149 : vector<32x512xf32>
    %c7_78 = arith.constant 7 : index
    %c0_79 = arith.constant 0 : index
    %c0_80 = arith.constant 0 : index
    %151 = vector.load %arg2[%c7_78, %c0_79, %c0_80] : memref<25x32x32xf32, #tpu.memory_space<vmem>>, vector<1x32x32xf32>
    %152 = vector.shape_cast %151 : vector<1x32x32xf32> to vector<32x32xf32>
    %cst_81 = arith.constant dense<0.000000e+00> : vector<32x512xf32>
    %153 = tpu.matmul %152, %150, %cst_81 {dimension_numbers = #tpu.dot_dimension_numbers<[1], [0], [0], [1], [0, 0, 1, 1], [], []>} : vector<32x32xf32>, vector<32x512xf32>, vector<32x512xf32> -> vector<32x512xf32>
    %154 = arith.addf %146, %153 : vector<32x512xf32>
    %c15_i32_82 = arith.constant 15 : i32
    %155 = tpu.dynamic_rotate %11 by %c15_i32_82 dim 1 : vector<32x512xf32>, i32 -> vector<32x512xf32>
    %c8_83 = arith.constant 8 : index
    %c0_84 = arith.constant 0 : index
    %156 = vector.load %arg4[%c8_83, %c0_84] : memref<25x512xf32, #tpu.memory_space<vmem>>, vector<1x512xf32>
    %157 = vector.broadcast %156 : vector<1x512xf32> to vector<32x512xf32>
    %158 = arith.mulf %155, %157 : vector<32x512xf32>
    %c8_85 = arith.constant 8 : index
    %c0_86 = arith.constant 0 : index
    %c0_87 = arith.constant 0 : index
    %159 = vector.load %arg2[%c8_85, %c0_86, %c0_87] : memref<25x32x32xf32, #tpu.memory_space<vmem>>, vector<1x32x32xf32>
    %160 = vector.shape_cast %159 : vector<1x32x32xf32> to vector<32x32xf32>
    %cst_88 = arith.constant dense<0.000000e+00> : vector<32x512xf32>
    %161 = tpu.matmul %160, %158, %cst_88 {dimension_numbers = #tpu.dot_dimension_numbers<[1], [0], [0], [1], [0, 0, 1, 1], [], []>} : vector<32x32xf32>, vector<32x512xf32>, vector<32x512xf32> -> vector<32x512xf32>
    %162 = arith.addf %154, %161 : vector<32x512xf32>
    %c14_i32 = arith.constant 14 : i32
    %163 = tpu.dynamic_rotate %11 by %c14_i32 dim 1 : vector<32x512xf32>, i32 -> vector<32x512xf32>
    %c9 = arith.constant 9 : index
    %c0_89 = arith.constant 0 : index
    %164 = vector.load %arg4[%c9, %c0_89] : memref<25x512xf32, #tpu.memory_space<vmem>>, vector<1x512xf32>
    %165 = vector.broadcast %164 : vector<1x512xf32> to vector<32x512xf32>
    %166 = arith.mulf %163, %165 : vector<32x512xf32>
    %c9_90 = arith.constant 9 : index
    %c0_91 = arith.constant 0 : index
    %c0_92 = arith.constant 0 : index
    %167 = vector.load %arg2[%c9_90, %c0_91, %c0_92] : memref<25x32x32xf32, #tpu.memory_space<vmem>>, vector<1x32x32xf32>
    %168 = vector.shape_cast %167 : vector<1x32x32xf32> to vector<32x32xf32>
    %cst_93 = arith.constant dense<0.000000e+00> : vector<32x512xf32>
    %169 = tpu.matmul %168, %166, %cst_93 {dimension_numbers = #tpu.dot_dimension_numbers<[1], [0], [0], [1], [0, 0, 1, 1], [], []>} : vector<32x32xf32>, vector<32x512xf32>, vector<32x512xf32> -> vector<32x512xf32>
    %170 = arith.addf %162, %169 : vector<32x512xf32>
    %c2_i32 = arith.constant 2 : i32
    %171 = tpu.dynamic_rotate %11 by %c2_i32 dim 1 : vector<32x512xf32>, i32 -> vector<32x512xf32>
    %c10 = arith.constant 10 : index
    %c0_94 = arith.constant 0 : index
    %172 = vector.load %arg4[%c10, %c0_94] : memref<25x512xf32, #tpu.memory_space<vmem>>, vector<1x512xf32>
    %173 = vector.broadcast %172 : vector<1x512xf32> to vector<32x512xf32>
    %174 = arith.mulf %171, %173 : vector<32x512xf32>
    %c10_95 = arith.constant 10 : index
    %c0_96 = arith.constant 0 : index
    %c0_97 = arith.constant 0 : index
    %175 = vector.load %arg2[%c10_95, %c0_96, %c0_97] : memref<25x32x32xf32, #tpu.memory_space<vmem>>, vector<1x32x32xf32>
    %176 = vector.shape_cast %175 : vector<1x32x32xf32> to vector<32x32xf32>
    %cst_98 = arith.constant dense<0.000000e+00> : vector<32x512xf32>
    %177 = tpu.matmul %176, %174, %cst_98 {dimension_numbers = #tpu.dot_dimension_numbers<[1], [0], [0], [1], [0, 0, 1, 1], [], []>} : vector<32x32xf32>, vector<32x512xf32>, vector<32x512xf32> -> vector<32x512xf32>
    %178 = arith.addf %170, %177 : vector<32x512xf32>
    %c1_i32_99 = arith.constant 1 : i32
    %179 = tpu.dynamic_rotate %11 by %c1_i32_99 dim 1 : vector<32x512xf32>, i32 -> vector<32x512xf32>
    %c11_100 = arith.constant 11 : index
    %c0_101 = arith.constant 0 : index
    %180 = vector.load %arg4[%c11_100, %c0_101] : memref<25x512xf32, #tpu.memory_space<vmem>>, vector<1x512xf32>
    %181 = vector.broadcast %180 : vector<1x512xf32> to vector<32x512xf32>
    %182 = arith.mulf %179, %181 : vector<32x512xf32>
    %c11_102 = arith.constant 11 : index
    %c0_103 = arith.constant 0 : index
    %c0_104 = arith.constant 0 : index
    %183 = vector.load %arg2[%c11_102, %c0_103, %c0_104] : memref<25x32x32xf32, #tpu.memory_space<vmem>>, vector<1x32x32xf32>
    %184 = vector.shape_cast %183 : vector<1x32x32xf32> to vector<32x32xf32>
    %cst_105 = arith.constant dense<0.000000e+00> : vector<32x512xf32>
    %185 = tpu.matmul %184, %182, %cst_105 {dimension_numbers = #tpu.dot_dimension_numbers<[1], [0], [0], [1], [0, 0, 1, 1], [], []>} : vector<32x32xf32>, vector<32x512xf32>, vector<32x512xf32> -> vector<32x512xf32>
    %186 = arith.addf %178, %185 : vector<32x512xf32>
    %c12 = arith.constant 12 : index
    %c0_106 = arith.constant 0 : index
    %187 = vector.load %arg4[%c12, %c0_106] : memref<25x512xf32, #tpu.memory_space<vmem>>, vector<1x512xf32>
    %188 = vector.broadcast %187 : vector<1x512xf32> to vector<32x512xf32>
    %189 = arith.mulf %11, %188 : vector<32x512xf32>
    %c12_107 = arith.constant 12 : index
    %c0_108 = arith.constant 0 : index
    %c0_109 = arith.constant 0 : index
    %190 = vector.load %arg2[%c12_107, %c0_108, %c0_109] : memref<25x32x32xf32, #tpu.memory_space<vmem>>, vector<1x32x32xf32>
    %191 = vector.shape_cast %190 : vector<1x32x32xf32> to vector<32x32xf32>
    %cst_110 = arith.constant dense<0.000000e+00> : vector<32x512xf32>
    %192 = tpu.matmul %191, %189, %cst_110 {dimension_numbers = #tpu.dot_dimension_numbers<[1], [0], [0], [1], [0, 0, 1, 1], [], []>} : vector<32x32xf32>, vector<32x512xf32>, vector<32x512xf32> -> vector<32x512xf32>
    %193 = arith.addf %186, %192 : vector<32x512xf32>
    %c511_i32_111 = arith.constant 511 : i32
    %194 = tpu.dynamic_rotate %11 by %c511_i32_111 dim 1 : vector<32x512xf32>, i32 -> vector<32x512xf32>
    %c13_112 = arith.constant 13 : index
    %c0_113 = arith.constant 0 : index
    %195 = vector.load %arg4[%c13_112, %c0_113] : memref<25x512xf32, #tpu.memory_space<vmem>>, vector<1x512xf32>
    %196 = vector.broadcast %195 : vector<1x512xf32> to vector<32x512xf32>
    %197 = arith.mulf %194, %196 : vector<32x512xf32>
    %c13_114 = arith.constant 13 : index
    %c0_115 = arith.constant 0 : index
    %c0_116 = arith.constant 0 : index
    %198 = vector.load %arg2[%c13_114, %c0_115, %c0_116] : memref<25x32x32xf32, #tpu.memory_space<vmem>>, vector<1x32x32xf32>
    %199 = vector.shape_cast %198 : vector<1x32x32xf32> to vector<32x32xf32>
    %cst_117 = arith.constant dense<0.000000e+00> : vector<32x512xf32>
    %200 = tpu.matmul %199, %197, %cst_117 {dimension_numbers = #tpu.dot_dimension_numbers<[1], [0], [0], [1], [0, 0, 1, 1], [], []>} : vector<32x32xf32>, vector<32x512xf32>, vector<32x512xf32> -> vector<32x512xf32>
    %201 = arith.addf %193, %200 : vector<32x512xf32>
    %c510_i32 = arith.constant 510 : i32
    %202 = tpu.dynamic_rotate %11 by %c510_i32 dim 1 : vector<32x512xf32>, i32 -> vector<32x512xf32>
    %c14 = arith.constant 14 : index
    %c0_118 = arith.constant 0 : index
    %203 = vector.load %arg4[%c14, %c0_118] : memref<25x512xf32, #tpu.memory_space<vmem>>, vector<1x512xf32>
    %204 = vector.broadcast %203 : vector<1x512xf32> to vector<32x512xf32>
    %205 = arith.mulf %202, %204 : vector<32x512xf32>
    %c14_119 = arith.constant 14 : index
    %c0_120 = arith.constant 0 : index
    %c0_121 = arith.constant 0 : index
    %206 = vector.load %arg2[%c14_119, %c0_120, %c0_121] : memref<25x32x32xf32, #tpu.memory_space<vmem>>, vector<1x32x32xf32>
    %207 = vector.shape_cast %206 : vector<1x32x32xf32> to vector<32x32xf32>
    %cst_122 = arith.constant dense<0.000000e+00> : vector<32x512xf32>
    %208 = tpu.matmul %207, %205, %cst_122 {dimension_numbers = #tpu.dot_dimension_numbers<[1], [0], [0], [1], [0, 0, 1, 1], [], []>} : vector<32x32xf32>, vector<32x512xf32>, vector<32x512xf32> -> vector<32x512xf32>
    %209 = arith.addf %201, %208 : vector<32x512xf32>
    %c498_i32 = arith.constant 498 : i32
    %210 = tpu.dynamic_rotate %11 by %c498_i32 dim 1 : vector<32x512xf32>, i32 -> vector<32x512xf32>
    %c15 = arith.constant 15 : index
    %c0_123 = arith.constant 0 : index
    %211 = vector.load %arg4[%c15, %c0_123] : memref<25x512xf32, #tpu.memory_space<vmem>>, vector<1x512xf32>
    %212 = vector.broadcast %211 : vector<1x512xf32> to vector<32x512xf32>
    %213 = arith.mulf %210, %212 : vector<32x512xf32>
    %c15_124 = arith.constant 15 : index
    %c0_125 = arith.constant 0 : index
    %c0_126 = arith.constant 0 : index
    %214 = vector.load %arg2[%c15_124, %c0_125, %c0_126] : memref<25x32x32xf32, #tpu.memory_space<vmem>>, vector<1x32x32xf32>
    %215 = vector.shape_cast %214 : vector<1x32x32xf32> to vector<32x32xf32>
    %cst_127 = arith.constant dense<0.000000e+00> : vector<32x512xf32>
    %216 = tpu.matmul %215, %213, %cst_127 {dimension_numbers = #tpu.dot_dimension_numbers<[1], [0], [0], [1], [0, 0, 1, 1], [], []>} : vector<32x32xf32>, vector<32x512xf32>, vector<32x512xf32> -> vector<32x512xf32>
    %217 = arith.addf %209, %216 : vector<32x512xf32>
    %c497_i32_128 = arith.constant 497 : i32
    %218 = tpu.dynamic_rotate %11 by %c497_i32_128 dim 1 : vector<32x512xf32>, i32 -> vector<32x512xf32>
    %c16_129 = arith.constant 16 : index
    %c0_130 = arith.constant 0 : index
    %219 = vector.load %arg4[%c16_129, %c0_130] : memref<25x512xf32, #tpu.memory_space<vmem>>, vector<1x512xf32>
    %220 = vector.broadcast %219 : vector<1x512xf32> to vector<32x512xf32>
    %221 = arith.mulf %218, %220 : vector<32x512xf32>
    %c16_131 = arith.constant 16 : index
    %c0_132 = arith.constant 0 : index
    %c0_133 = arith.constant 0 : index
    %222 = vector.load %arg2[%c16_131, %c0_132, %c0_133] : memref<25x32x32xf32, #tpu.memory_space<vmem>>, vector<1x32x32xf32>
    %223 = vector.shape_cast %222 : vector<1x32x32xf32> to vector<32x32xf32>
    %cst_134 = arith.constant dense<0.000000e+00> : vector<32x512xf32>
    %224 = tpu.matmul %223, %221, %cst_134 {dimension_numbers = #tpu.dot_dimension_numbers<[1], [0], [0], [1], [0, 0, 1, 1], [], []>} : vector<32x32xf32>, vector<32x512xf32>, vector<32x512xf32> -> vector<32x512xf32>
    %225 = arith.addf %217, %224 : vector<32x512xf32>
    %c496_i32_135 = arith.constant 496 : i32
    %226 = tpu.dynamic_rotate %11 by %c496_i32_135 dim 1 : vector<32x512xf32>, i32 -> vector<32x512xf32>
    %c17_136 = arith.constant 17 : index
    %c0_137 = arith.constant 0 : index
    %227 = vector.load %arg4[%c17_136, %c0_137] : memref<25x512xf32, #tpu.memory_space<vmem>>, vector<1x512xf32>
    %228 = vector.broadcast %227 : vector<1x512xf32> to vector<32x512xf32>
    %229 = arith.mulf %226, %228 : vector<32x512xf32>
    %c17_138 = arith.constant 17 : index
    %c0_139 = arith.constant 0 : index
    %c0_140 = arith.constant 0 : index
    %230 = vector.load %arg2[%c17_138, %c0_139, %c0_140] : memref<25x32x32xf32, #tpu.memory_space<vmem>>, vector<1x32x32xf32>
    %231 = vector.shape_cast %230 : vector<1x32x32xf32> to vector<32x32xf32>
    %cst_141 = arith.constant dense<0.000000e+00> : vector<32x512xf32>
    %232 = tpu.matmul %231, %229, %cst_141 {dimension_numbers = #tpu.dot_dimension_numbers<[1], [0], [0], [1], [0, 0, 1, 1], [], []>} : vector<32x32xf32>, vector<32x512xf32>, vector<32x512xf32> -> vector<32x512xf32>
    %233 = arith.addf %225, %232 : vector<32x512xf32>
    %c495_i32_142 = arith.constant 495 : i32
    %234 = tpu.dynamic_rotate %11 by %c495_i32_142 dim 1 : vector<32x512xf32>, i32 -> vector<32x512xf32>
    %c18_143 = arith.constant 18 : index
    %c0_144 = arith.constant 0 : index
    %235 = vector.load %arg4[%c18_143, %c0_144] : memref<25x512xf32, #tpu.memory_space<vmem>>, vector<1x512xf32>
    %236 = vector.broadcast %235 : vector<1x512xf32> to vector<32x512xf32>
    %237 = arith.mulf %234, %236 : vector<32x512xf32>
    %c18_145 = arith.constant 18 : index
    %c0_146 = arith.constant 0 : index
    %c0_147 = arith.constant 0 : index
    %238 = vector.load %arg2[%c18_145, %c0_146, %c0_147] : memref<25x32x32xf32, #tpu.memory_space<vmem>>, vector<1x32x32xf32>
    %239 = vector.shape_cast %238 : vector<1x32x32xf32> to vector<32x32xf32>
    %cst_148 = arith.constant dense<0.000000e+00> : vector<32x512xf32>
    %240 = tpu.matmul %239, %237, %cst_148 {dimension_numbers = #tpu.dot_dimension_numbers<[1], [0], [0], [1], [0, 0, 1, 1], [], []>} : vector<32x32xf32>, vector<32x512xf32>, vector<32x512xf32> -> vector<32x512xf32>
    %241 = arith.addf %233, %240 : vector<32x512xf32>
    %c494_i32 = arith.constant 494 : i32
    %242 = tpu.dynamic_rotate %11 by %c494_i32 dim 1 : vector<32x512xf32>, i32 -> vector<32x512xf32>
    %c19 = arith.constant 19 : index
    %c0_149 = arith.constant 0 : index
    %243 = vector.load %arg4[%c19, %c0_149] : memref<25x512xf32, #tpu.memory_space<vmem>>, vector<1x512xf32>
    %244 = vector.broadcast %243 : vector<1x512xf32> to vector<32x512xf32>
    %245 = arith.mulf %242, %244 : vector<32x512xf32>
    %c19_150 = arith.constant 19 : index
    %c0_151 = arith.constant 0 : index
    %c0_152 = arith.constant 0 : index
    %246 = vector.load %arg2[%c19_150, %c0_151, %c0_152] : memref<25x32x32xf32, #tpu.memory_space<vmem>>, vector<1x32x32xf32>
    %247 = vector.shape_cast %246 : vector<1x32x32xf32> to vector<32x32xf32>
    %cst_153 = arith.constant dense<0.000000e+00> : vector<32x512xf32>
    %248 = tpu.matmul %247, %245, %cst_153 {dimension_numbers = #tpu.dot_dimension_numbers<[1], [0], [0], [1], [0, 0, 1, 1], [], []>} : vector<32x32xf32>, vector<32x512xf32>, vector<32x512xf32> -> vector<32x512xf32>
    %249 = arith.addf %241, %248 : vector<32x512xf32>
    %c482_i32 = arith.constant 482 : i32
    %250 = tpu.dynamic_rotate %11 by %c482_i32 dim 1 : vector<32x512xf32>, i32 -> vector<32x512xf32>
    %c20 = arith.constant 20 : index
    %c0_154 = arith.constant 0 : index
    %251 = vector.load %arg4[%c20, %c0_154] : memref<25x512xf32, #tpu.memory_space<vmem>>, vector<1x512xf32>
    %252 = vector.broadcast %251 : vector<1x512xf32> to vector<32x512xf32>
    %253 = arith.mulf %250, %252 : vector<32x512xf32>
    %c20_155 = arith.constant 20 : index
    %c0_156 = arith.constant 0 : index
    %c0_157 = arith.constant 0 : index
    %254 = vector.load %arg2[%c20_155, %c0_156, %c0_157] : memref<25x32x32xf32, #tpu.memory_space<vmem>>, vector<1x32x32xf32>
    %255 = vector.shape_cast %254 : vector<1x32x32xf32> to vector<32x32xf32>
    %cst_158 = arith.constant dense<0.000000e+00> : vector<32x512xf32>
    %256 = tpu.matmul %255, %253, %cst_158 {dimension_numbers = #tpu.dot_dimension_numbers<[1], [0], [0], [1], [0, 0, 1, 1], [], []>} : vector<32x32xf32>, vector<32x512xf32>, vector<32x512xf32> -> vector<32x512xf32>
    %257 = arith.addf %249, %256 : vector<32x512xf32>
    %c481_i32 = arith.constant 481 : i32
    %258 = tpu.dynamic_rotate %11 by %c481_i32 dim 1 : vector<32x512xf32>, i32 -> vector<32x512xf32>
    %c21 = arith.constant 21 : index
    %c0_159 = arith.constant 0 : index
    %259 = vector.load %arg4[%c21, %c0_159] : memref<25x512xf32, #tpu.memory_space<vmem>>, vector<1x512xf32>
    %260 = vector.broadcast %259 : vector<1x512xf32> to vector<32x512xf32>
    %261 = arith.mulf %258, %260 : vector<32x512xf32>
    %c21_160 = arith.constant 21 : index
    %c0_161 = arith.constant 0 : index
    %c0_162 = arith.constant 0 : index
    %262 = vector.load %arg2[%c21_160, %c0_161, %c0_162] : memref<25x32x32xf32, #tpu.memory_space<vmem>>, vector<1x32x32xf32>
    %263 = vector.shape_cast %262 : vector<1x32x32xf32> to vector<32x32xf32>
    %cst_163 = arith.constant dense<0.000000e+00> : vector<32x512xf32>
    %264 = tpu.matmul %263, %261, %cst_163 {dimension_numbers = #tpu.dot_dimension_numbers<[1], [0], [0], [1], [0, 0, 1, 1], [], []>} : vector<32x32xf32>, vector<32x512xf32>, vector<32x512xf32> -> vector<32x512xf32>
    %265 = arith.addf %257, %264 : vector<32x512xf32>
    %c480_i32 = arith.constant 480 : i32
    %266 = tpu.dynamic_rotate %11 by %c480_i32 dim 1 : vector<32x512xf32>, i32 -> vector<32x512xf32>
    %c22 = arith.constant 22 : index
    %c0_164 = arith.constant 0 : index
    %267 = vector.load %arg4[%c22, %c0_164] : memref<25x512xf32, #tpu.memory_space<vmem>>, vector<1x512xf32>
    %268 = vector.broadcast %267 : vector<1x512xf32> to vector<32x512xf32>
    %269 = arith.mulf %266, %268 : vector<32x512xf32>
    %c22_165 = arith.constant 22 : index
    %c0_166 = arith.constant 0 : index
    %c0_167 = arith.constant 0 : index
    %270 = vector.load %arg2[%c22_165, %c0_166, %c0_167] : memref<25x32x32xf32, #tpu.memory_space<vmem>>, vector<1x32x32xf32>
    %271 = vector.shape_cast %270 : vector<1x32x32xf32> to vector<32x32xf32>
    %cst_168 = arith.constant dense<0.000000e+00> : vector<32x512xf32>
    %272 = tpu.matmul %271, %269, %cst_168 {dimension_numbers = #tpu.dot_dimension_numbers<[1], [0], [0], [1], [0, 0, 1, 1], [], []>} : vector<32x32xf32>, vector<32x512xf32>, vector<32x512xf32> -> vector<32x512xf32>
    %273 = arith.addf %265, %272 : vector<32x512xf32>
    %c479_i32 = arith.constant 479 : i32
    %274 = tpu.dynamic_rotate %11 by %c479_i32 dim 1 : vector<32x512xf32>, i32 -> vector<32x512xf32>
    %c23 = arith.constant 23 : index
    %c0_169 = arith.constant 0 : index
    %275 = vector.load %arg4[%c23, %c0_169] : memref<25x512xf32, #tpu.memory_space<vmem>>, vector<1x512xf32>
    %276 = vector.broadcast %275 : vector<1x512xf32> to vector<32x512xf32>
    %277 = arith.mulf %274, %276 : vector<32x512xf32>
    %c23_170 = arith.constant 23 : index
    %c0_171 = arith.constant 0 : index
    %c0_172 = arith.constant 0 : index
    %278 = vector.load %arg2[%c23_170, %c0_171, %c0_172] : memref<25x32x32xf32, #tpu.memory_space<vmem>>, vector<1x32x32xf32>
    %279 = vector.shape_cast %278 : vector<1x32x32xf32> to vector<32x32xf32>
    %cst_173 = arith.constant dense<0.000000e+00> : vector<32x512xf32>
    %280 = tpu.matmul %279, %277, %cst_173 {dimension_numbers = #tpu.dot_dimension_numbers<[1], [0], [0], [1], [0, 0, 1, 1], [], []>} : vector<32x32xf32>, vector<32x512xf32>, vector<32x512xf32> -> vector<32x512xf32>
    %281 = arith.addf %273, %280 : vector<32x512xf32>
    %c478_i32 = arith.constant 478 : i32
    %282 = tpu.dynamic_rotate %11 by %c478_i32 dim 1 : vector<32x512xf32>, i32 -> vector<32x512xf32>
    %c24 = arith.constant 24 : index
    %c0_174 = arith.constant 0 : index
    %283 = vector.load %arg4[%c24, %c0_174] : memref<25x512xf32, #tpu.memory_space<vmem>>, vector<1x512xf32>
    %284 = vector.broadcast %283 : vector<1x512xf32> to vector<32x512xf32>
    %285 = arith.mulf %282, %284 : vector<32x512xf32>
    %c24_175 = arith.constant 24 : index
    %c0_176 = arith.constant 0 : index
    %c0_177 = arith.constant 0 : index
    %286 = vector.load %arg2[%c24_175, %c0_176, %c0_177] : memref<25x32x32xf32, #tpu.memory_space<vmem>>, vector<1x32x32xf32>
    %287 = vector.shape_cast %286 : vector<1x32x32xf32> to vector<32x32xf32>
    %cst_178 = arith.constant dense<0.000000e+00> : vector<32x512xf32>
    %288 = tpu.matmul %287, %285, %cst_178 {dimension_numbers = #tpu.dot_dimension_numbers<[1], [0], [0], [1], [0, 0, 1, 1], [], []>} : vector<32x32xf32>, vector<32x512xf32>, vector<32x512xf32> -> vector<32x512xf32>
    %289 = arith.addf %281, %288 : vector<32x512xf32>
    %cst_179 = arith.constant dense<0.000000e+00> : vector<16xf32>
    %290 = vector.multi_reduction <add>, %10, %cst_179 [1] : vector<16x512xf32> to vector<16xf32>
    %291 = vector.shape_cast %290 : vector<16xf32> to vector<16x1xf32>
    %292 = arith.mulf %10, %10 : vector<16x512xf32>
    %cst_180 = arith.constant dense<0.000000e+00> : vector<16xf32>
    %293 = vector.multi_reduction <add>, %292, %cst_180 [1] : vector<16x512xf32> to vector<16xf32>
    %294 = vector.shape_cast %293 : vector<16xf32> to vector<16x1xf32>
    %cst_181 = arith.constant dense<0.000000e+00> : vector<32xf32>
    %295 = vector.multi_reduction <add>, %289, %cst_181 [1] : vector<32x512xf32> to vector<32xf32>
    %296 = vector.shape_cast %295 : vector<32xf32> to vector<32x1xf32>
    %297 = arith.mulf %289, %289 : vector<32x512xf32>
    %cst_182 = arith.constant dense<0.000000e+00> : vector<32xf32>
    %298 = vector.multi_reduction <add>, %297, %cst_182 [1] : vector<32x512xf32> to vector<32xf32>
    %299 = vector.shape_cast %298 : vector<32xf32> to vector<32x1xf32>
    %cst_183 = arith.constant dense<0.000000e+00> : vector<16xf32>
    %300 = vector.multi_reduction <add>, %88, %cst_183 [1] : vector<16x512xf32> to vector<16xf32>
    %301 = vector.shape_cast %300 : vector<16xf32> to vector<16x1xf32>
    %302 = arith.mulf %88, %88 : vector<16x512xf32>
    %cst_184 = arith.constant dense<0.000000e+00> : vector<16xf32>
    %303 = vector.multi_reduction <add>, %302, %cst_184 [1] : vector<16x512xf32> to vector<16xf32>
    %304 = vector.shape_cast %303 : vector<16xf32> to vector<16x1xf32>
    %305 = tpu.concatenate %291, %296, %301 in 0 : vector<16x1xf32>, vector<32x1xf32>, vector<16x1xf32> -> vector<64x1xf32>
    %cst_185 = arith.constant 0.001953125 : f32
    %306 = vector.broadcast %cst_185 : f32 to vector<64x1xf32>
    %307 = arith.mulf %305, %306 : vector<64x1xf32>
    %308 = tpu.concatenate %294, %299, %304 in 0 : vector<16x1xf32>, vector<32x1xf32>, vector<16x1xf32> -> vector<64x1xf32>
    %cst_186 = arith.constant 0.001953125 : f32
    %309 = vector.broadcast %cst_186 : f32 to vector<64x1xf32>
    %310 = arith.mulf %308, %309 : vector<64x1xf32>
    %311 = arith.mulf %307, %307 : vector<64x1xf32>
    %312 = arith.subf %310, %311 : vector<64x1xf32>
    %cst_187 = arith.constant 9.99999974E-6 : f32
    %313 = vector.broadcast %cst_187 : f32 to vector<64x1xf32>
    %314 = arith.addf %312, %313 : vector<64x1xf32>
    %315 = math.rsqrt %314 : vector<64x1xf32>
    %316 = arith.mulf %3, %315 : vector<64x1xf32>
    %317 = arith.mulf %307, %316 : vector<64x1xf32>
    %318 = arith.subf %4, %317 : vector<64x1xf32>
    %319 = vector.extract_strided_slice %316 {offsets = [0, 0], sizes = [16, 1], strides = [1, 1]} : vector<64x1xf32> to vector<16x1xf32>
    %320 = vector.broadcast %319 : vector<16x1xf32> to vector<16x512xf32>
    %321 = arith.mulf %10, %320 : vector<16x512xf32>
    %322 = vector.extract_strided_slice %318 {offsets = [0, 0], sizes = [16, 1], strides = [1, 1]} : vector<64x1xf32> to vector<16x1xf32>
    %323 = vector.broadcast %322 : vector<16x1xf32> to vector<16x512xf32>
    %324 = arith.addf %321, %323 : vector<16x512xf32>
    %c0_188 = arith.constant 0 : index
    %c0_189 = arith.constant 0 : index
    %325 = vector.load %arg5[%c0_188, %c0_189] : memref<64x512xf32, #tpu.memory_space<vmem>>, vector<16x512xf32>
    tpu.vector_store %arg5[%c0_188, %c0_189], %324 {strides = array<i32>} : memref<64x512xf32, #tpu.memory_space<vmem>>, vector<16x512xf32>,
    %326 = vector.extract_strided_slice %316 {offsets = [16, 0], sizes = [32, 1], strides = [1, 1]} : vector<64x1xf32> to vector<32x1xf32>
    %327 = vector.broadcast %326 : vector<32x1xf32> to vector<32x512xf32>
    %328 = arith.mulf %289, %327 : vector<32x512xf32>
    %329 = vector.extract_strided_slice %318 {offsets = [16, 0], sizes = [32, 1], strides = [1, 1]} : vector<64x1xf32> to vector<32x1xf32>
    %330 = vector.broadcast %329 : vector<32x1xf32> to vector<32x512xf32>
    %331 = arith.addf %328, %330 : vector<32x512xf32>
    %c16_190 = arith.constant 16 : index
    %c0_191 = arith.constant 0 : index
    %332 = vector.load %arg5[%c16_190, %c0_191] : memref<64x512xf32, #tpu.memory_space<vmem>>, vector<32x512xf32>
    tpu.vector_store %arg5[%c16_190, %c0_191], %331 {strides = array<i32>} : memref<64x512xf32, #tpu.memory_space<vmem>>, vector<32x512xf32>,
    %333 = vector.extract_strided_slice %316 {offsets = [48, 0], sizes = [16, 1], strides = [1, 1]} : vector<64x1xf32> to vector<16x1xf32>
    %334 = vector.broadcast %333 : vector<16x1xf32> to vector<16x512xf32>
    %335 = arith.mulf %88, %334 : vector<16x512xf32>
    %336 = vector.extract_strided_slice %318 {offsets = [48, 0], sizes = [16, 1], strides = [1, 1]} : vector<64x1xf32> to vector<16x1xf32>
    %337 = vector.broadcast %336 : vector<16x1xf32> to vector<16x512xf32>
    %338 = arith.addf %335, %337 : vector<16x512xf32>
    %c48_192 = arith.constant 48 : index
    %c0_193 = arith.constant 0 : index
    %339 = vector.load %arg5[%c48_192, %c0_193] : memref<64x512xf32, #tpu.memory_space<vmem>>, vector<16x512xf32>
    tpu.vector_store %arg5[%c48_192, %c0_193], %338 {strides = array<i32>} : memref<64x512xf32, #tpu.memory_space<vmem>>, vector<16x512xf32>,
    return
  }
}

</mosaic_0001>

<llo_original>
// kernel: tpu_custom_call.1
$region0: #{tpu_custom_call.1}
  #allocation0 [shape = 'u32[]', space=smem, size = 0x4, offset = 0x4, fixed_abs, tag = 'smem constant byte address 0x4 - core index']
  #allocation1 [shape = 'u32[72,128]{1,0:T(1,128)}', space=vmem, size = 0x9000, scoped, tag = 'internal scratch']
  %s0 = inlined_call_operand.hbm [shape: f32[16,512], index: 0, kind: input, shape index: {}]
  %s1 = inlined_call_operand.vmem [shape: f32[64,16], index: 1, kind: input, shape index: {}]
  %s2 = inlined_call_operand.hbm [shape: f32[25,32,32], index: 2, kind: input, shape index: {}]
  %s3 = inlined_call_operand.vmem [shape: f32[64,4], index: 3, kind: input, shape index: {}]
  %s4 = inlined_call_operand.vmem [shape: f32[25,512], index: 4, kind: input, shape index: {}]
  %s5 = inlined_call_operand.hbm [shape: f32[64,512], index: 5, kind: output, shape index: {}]
  %s6 = sld [smem:[#allocation0]]
  $region38: #{tpu_custom_call.1} parent=0
    _
  %s8 = ssub.s32 1, %s6
  %s9 = scalar_select 0, %s8, %s6
  $region1: #{tpu_custom_call.1} parent=0
    #allocation2 [shape = 'u8[32768]{0}', space=vmem, size = 0x8000, scoped, tag = 'input window, operand 0, single buffered']
    #allocation3 [shape = 's32[1]{0}', space=sflag, size = 0x4, scoped, tag = 'scoped memory for tpu_custom_call.1']
    #allocation4 [shape = 's32[1]{0}', space=sflag, size = 0x4, scoped, tag = 'scoped memory for tpu_custom_call.1']
    #allocation5 [shape = 'u8[409600]{0}', space=vmem, size = 0x64000, scoped, tag = 'input window, operand 2, single buffered']
    #allocation6 [shape = 's32[1]{0}', space=sflag, size = 0x4, scoped, tag = 'scoped memory for tpu_custom_call.1']
    #allocation7 [shape = 'u8[131072]{0}', space=vmem, size = 0x20000, scoped, tag = 'output window, operand 0, single buffered']
    %10 = vsyncpa [#allocation3], 0
    %11 = vsyncpa [#allocation6], 0
    %12 = vsyncpa [#allocation4], 0
    // Predicated region
    $region2: #{tpu_custom_call.1} parent=1 // pred_check
      _
    $region3: #{tpu_custom_call.1} parent=1 // pred_check_branch
      %14 = sbr.rel (0) target = $region5
    $region4: #{tpu_custom_call.1} parent=1 // pred_region
      %16 = vsyncadd [#allocation3], 0
      %s17 = sshll.u32 %s0, 4
      %s18 = int_to_ptr.hbm [resolvable:$true] %s17
      %s19 = sshll.u32 [#allocation2], 4
      %s20 = int_to_ptr.vmem [resolvable:$true] %s19
      %25 = dma.hbm_to_vmem [thread:$0]  %s18, 1024, %s20, [#allocation3], 512, 512, 32
    $region5: #{tpu_custom_call.1} parent=1 // pred_fallthru
      _
    // Predicated region
    $region6: #{tpu_custom_call.1} parent=1 // pred_check
      _
    $region7: #{tpu_custom_call.1} parent=1 // pred_check_branch
      %27 = sbr.rel (0) target = $region9
    $region8: #{tpu_custom_call.1} parent=1 // pred_region
      _
    $region9: #{tpu_custom_call.1} parent=1 // pred_fallthru
      _
    // Predicated region
    $region10: #{tpu_custom_call.1} parent=1 // pred_check
      _
    $region11: #{tpu_custom_call.1} parent=1 // pred_check_branch
      %29 = sbr.rel (0) target = $region13
    $region12: #{tpu_custom_call.1} parent=1 // pred_region
      %31 = vsyncadd [#allocation6], 0
      %s32 = sshll.u32 %s2, 4
      %s33 = int_to_ptr.hbm [resolvable:$true] %s32
      %s34 = sshll.u32 [#allocation5], 4
      %s35 = int_to_ptr.vmem [resolvable:$true] %s34
      %40 = dma.hbm_to_vmem [thread:$0]  %s33, 12800, %s35, [#allocation6], 128, 128, 8
    $region13: #{tpu_custom_call.1} parent=1 // pred_fallthru
      _
    // Predicated region
    $region14: #{tpu_custom_call.1} parent=1 // pred_check
      _
    $region15: #{tpu_custom_call.1} parent=1 // pred_check_branch
      %42 = sbr.rel (0) target = $region17
    $region16: #{tpu_custom_call.1} parent=1 // pred_region
      _
    $region17: #{tpu_custom_call.1} parent=1 // pred_fallthru
      _
    // Predicated region
    $region18: #{tpu_custom_call.1} parent=1 // pred_check
      _
    $region19: #{tpu_custom_call.1} parent=1 // pred_check_branch
      %44 = sbr.rel (0) target = $region21
    $region20: #{tpu_custom_call.1} parent=1 // pred_region
      _
    $region21: #{tpu_custom_call.1} parent=1 // pred_fallthru
      _
    // Predicated region
    $region22: #{tpu_custom_call.1} parent=1 // pred_check
      _
    $region23: #{tpu_custom_call.1} parent=1 // pred_check_branch
      %46 = sbr.rel (0) target = $region25
    $region24: #{tpu_custom_call.1} parent=1 // pred_region
      %48 = dma.done [#allocation3], 1024
    $region25: #{tpu_custom_call.1} parent=1 // pred_fallthru
      _
    // Predicated region
    $region26: #{tpu_custom_call.1} parent=1 // pred_check
      _
    $region27: #{tpu_custom_call.1} parent=1 // pred_check_branch
      %50 = sbr.rel (0) target = $region29
    $region28: #{tpu_custom_call.1} parent=1 // pred_region
      %52 = dma.done [#allocation6], 12800
    $region29: #{tpu_custom_call.1} parent=1 // pred_fallthru
      _
    %v53 = vld [vmem:[#allocation2] sm:$0xff]
    %v54 = vld [vmem:[#allocation2 + $0x8] sm:$0xff]
    %v55 = vld [vmem:[#allocation2 + $0x10] sm:$0xff]
    %v56 = vld [vmem:[#allocation2 + $0x18] sm:$0xff]
    %v57 = vld [vmem:[#allocation2 + $0x20] sm:$0xff]
    %v58 = vld [vmem:[#allocation2 + $0x28] sm:$0xff]
    %v59 = vld [vmem:[#allocation2 + $0x30] sm:$0xff]
    %v60 = vld [vmem:[#allocation2 + $0x38] sm:$0xff]
    %v61 = vld [vmem:[%s3] sm:$0xff]
    %v62 = vld [vmem:[%s3 + $0x8] sm:$0xff]
    %v63 = vld [vmem:[%s3 + $0x10] sm:$0xff]
    %v64 = vld [vmem:[%s3 + $0x18] sm:$0xff]
    %v65 = vld [vmem:[%s3 + $0x20] sm:$0xff]
    %v66 = vld [vmem:[%s3 + $0x28] sm:$0xff]
    %v67 = vld [vmem:[%s3 + $0x30] sm:$0xff]
    %v68 = vld [vmem:[%s3 + $0x38] sm:$0xff]
    %v69 = vld [vmem:[%s1] sm:$0xff]
    %v70 = vld [vmem:[%s1 + $0x8] sm:$0xff]
    %v71 = vld [vmem:[%s1 + $0x10] sm:$0xff]
    %v72 = vld [vmem:[%s1 + $0x18] sm:$0xff]
    %v73 = vld [vmem:[%s1 + $0x20] sm:$0xff]
    %v74 = vld [vmem:[%s1 + $0x28] sm:$0xff]
    %76 = vset.pattern.permute.xlu0 0
    %77 = vperm.xlu0 %76, %v61
    %v78 = vpop.permute.xlu0 %77
    %81 = vset.pattern.permute.xlu0 0
    %82 = vperm.xlu0 %81, %v62
    %v83 = vpop.permute.xlu0 %82
    %86 = vset.pattern.permute.xlu0 0
    %87 = vperm.xlu0 %86, %v63
    %v88 = vpop.permute.xlu0 %87
    %91 = vset.pattern.permute.xlu0 0
    %92 = vperm.xlu0 %91, %v64
    %v93 = vpop.permute.xlu0 %92
    %96 = vset.pattern.permute.xlu0 0
    %97 = vperm.xlu0 %96, %v65
    %v98 = vpop.permute.xlu0 %97
    %101 = vset.pattern.permute.xlu0 0
    %102 = vperm.xlu0 %101, %v66
    %v103 = vpop.permute.xlu0 %102
    %vm105 = vcmask 130048
    %v107 = vsel %vm105, %v69, 0
    %v110 = vsel %vm105, %v70, 0
    %v113 = vsel %vm105, %v71, 0
    %v116 = vsel %vm105, %v72, 0
    %v119 = vsel %vm105, %v73, 0
    %v122 = vsel %vm105, %v74, 0
    %124 = vmatpush.msra.mxu0 0.0
    %125 = vmatpush.msra.mxu0 0.0
    %126 = vmatpush.msra.mxu0 0.0
    %127 = vmatpush.msra.mxu0 0.0
    %128 = vmatpush.msra.mxu0 0.0
    %129 = vmatpush.msra.mxu0 0.0
    %130 = vmatpush.msra.mxu0 0.0
    %131 = vmatpush.msra.mxu0 0.0
    %132 = vmatpush.msra.mxu0 0.0
    %133 = vmatpush.msra.mxu0 0.0
    %134 = vmatpush.msra.mxu0 0.0
    %135 = vmatpush.msra.mxu0 0.0
    %136 = vmatpush.msra.mxu0 0.0
    %137 = vmatpush.msra.mxu0 0.0
    %138 = vmatpush.msra.mxu0 %v57
    %139 = vmatpush.msra.mxu0 %v53
    %140 = vmatmul.f32.gmra.mxu0 %v107
    %v141 = vpop.f32.mrf.mxu0
    %v142 = vadd.f32 %v78, %v141
    %143 = vmatmul.f32.gmra.mxu0 %v110
    %v144 = vpop.f32.mrf.mxu0
    %v145 = vadd.f32 %v83, %v144
    %146 = vmatmul.f32.gmra.mxu0 %v113
    %v147 = vpop.f32.mrf.mxu0
    %v148 = vadd.f32 %v88, %v147
    %149 = vmatmul.f32.gmra.mxu0 %v116
    %v150 = vpop.f32.mrf.mxu0
    %v151 = vadd.f32 %v93, %v150
    %152 = vmatmul.f32.gmra.mxu0 %v119
    %v153 = vpop.f32.mrf.mxu0
    %v154 = vadd.f32 %v98, %v153
    %155 = vmatmul.f32.gmra.mxu0 %v122
    %v156 = vpop.f32.mrf.mxu0
    %v157 = vadd.f32 %v103, %v156
    %158 = vdwg.mxu0
    %159 = vmatpush.msra.mxu0 0.0
    %160 = vmatpush.msra.mxu0 0.0
    %161 = vmatpush.msra.mxu0 0.0
    %162 = vmatpush.msra.mxu0 0.0
    %163 = vmatpush.msra.mxu0 0.0
    %164 = vmatpush.msra.mxu0 0.0
    %165 = vmatpush.msra.mxu0 0.0
    %166 = vmatpush.msra.mxu0 0.0
    %167 = vmatpush.msra.mxu0 0.0
    %168 = vmatpush.msra.mxu0 0.0
    %169 = vmatpush.msra.mxu0 0.0
    %170 = vmatpush.msra.mxu0 0.0
    %171 = vmatpush.msra.mxu0 0.0
    %172 = vmatpush.msra.mxu0 0.0
    %173 = vmatpush.msra.mxu0 %v58
    %174 = vmatpush.msra.mxu0 %v54
    %175 = vmatmul.f32.gmra.mxu0 %v107
    %v176 = vpop.f32.mrf.mxu0
    %v177 = vadd.f32 %v78, %v176
    %178 = vmatmul.f32.gmra.mxu0 %v110
    %v179 = vpop.f32.mrf.mxu0
    %v180 = vadd.f32 %v83, %v179
    %181 = vmatmul.f32.gmra.mxu0 %v113
    %v182 = vpop.f32.mrf.mxu0
    %v183 = vadd.f32 %v88, %v182
    %184 = vmatmul.f32.gmra.mxu0 %v116
    %v185 = vpop.f32.mrf.mxu0
    %v186 = vadd.f32 %v93, %v185
    %187 = vmatmul.f32.gmra.mxu0 %v119
    %v188 = vpop.f32.mrf.mxu0
    %v189 = vadd.f32 %v98, %v188
    %190 = vmatmul.f32.gmra.mxu0 %v122
    %v191 = vpop.f32.mrf.mxu0
    %v192 = vadd.f32 %v103, %v191
    %193 = vdwg.mxu0
    %194 = vmatpush.msra.mxu0 0.0
    %195 = vmatpush.msra.mxu0 0.0
    %196 = vmatpush.msra.mxu0 0.0
    %197 = vmatpush.msra.mxu0 0.0
    %198 = vmatpush.msra.mxu0 0.0
    %199 = vmatpush.msra.mxu0 0.0
    %200 = vmatpush.msra.mxu0 0.0
    %201 = vmatpush.msra.mxu0 0.0
    %202 = vmatpush.msra.mxu0 0.0
    %203 = vmatpush.msra.mxu0 0.0
    %204 = vmatpush.msra.mxu0 0.0
    %205 = vmatpush.msra.mxu0 0.0
    %206 = vmatpush.msra.mxu0 0.0
    %207 = vmatpush.msra.mxu0 0.0
    %208 = vmatpush.msra.mxu0 %v59
    %209 = vmatpush.msra.mxu0 %v55
    %210 = vmatmul.f32.gmra.mxu0 %v107
    %v211 = vpop.f32.mrf.mxu0
    %v212 = vadd.f32 %v78, %v211
    %213 = vmatmul.f32.gmra.mxu0 %v110
    %v214 = vpop.f32.mrf.mxu0
    %v215 = vadd.f32 %v83, %v214
    %216 = vmatmul.f32.gmra.mxu0 %v113
    %v217 = vpop.f32.mrf.mxu0
    %v218 = vadd.f32 %v88, %v217
    %219 = vmatmul.f32.gmra.mxu0 %v116
    %v220 = vpop.f32.mrf.mxu0
    %v221 = vadd.f32 %v93, %v220
    %222 = vmatmul.f32.gmra.mxu0 %v119
    %v223 = vpop.f32.mrf.mxu0
    %v224 = vadd.f32 %v98, %v223
    %225 = vmatmul.f32.gmra.mxu0 %v122
    %v226 = vpop.f32.mrf.mxu0
    %v227 = vadd.f32 %v103, %v226
    %228 = vdwg.mxu0
    %229 = vmatpush.msra.mxu0 0.0
    %230 = vmatpush.msra.mxu0 0.0
    %231 = vmatpush.msra.mxu0 0.0
    %232 = vmatpush.msra.mxu0 0.0
    %233 = vmatpush.msra.mxu0 0.0
    %234 = vmatpush.msra.mxu0 0.0
    %235 = vmatpush.msra.mxu0 0.0
    %236 = vmatpush.msra.mxu0 0.0
    %237 = vmatpush.msra.mxu0 0.0
    %238 = vmatpush.msra.mxu0 0.0
    %239 = vmatpush.msra.mxu0 0.0
    %240 = vmatpush.msra.mxu0 0.0
    %241 = vmatpush.msra.mxu0 0.0
    %242 = vmatpush.msra.mxu0 0.0
    %243 = vmatpush.msra.mxu0 %v60
    %244 = vmatpush.msra.mxu0 %v56
    %245 = vmatmul.f32.gmra.mxu0 %v107
    %v246 = vpop.f32.mrf.mxu0
    %v247 = vadd.f32 %v78, %v246
    %248 = vmatmul.f32.gmra.mxu0 %v110
    %v249 = vpop.f32.mrf.mxu0
    %v250 = vadd.f32 %v83, %v249
    %251 = vmatmul.f32.gmra.mxu0 %v113
    %v252 = vpop.f32.mrf.mxu0
    %v253 = vadd.f32 %v88, %v252
    %254 = vmatmul.f32.gmra.mxu0 %v116
    %v255 = vpop.f32.mrf.mxu0
    %v256 = vadd.f32 %v93, %v255
    %257 = vmatmul.f32.gmra.mxu0 %v119
    %v258 = vpop.f32.mrf.mxu0
    %v259 = vadd.f32 %v98, %v258
    %260 = vmatmul.f32.gmra.mxu0 %v122
    %v261 = vpop.f32.mrf.mxu0
    %v262 = vadd.f32 %v103, %v261
    %263 = vdwg.mxu0
    %s264 = scalar_lea.vmem %s4, 6
    %v265 = vld [vmem:[%s264] ss:$8 sm:$0xf]
    %vm266 = vcmp.gt.f32.partialorder %v265, 0.5
    %267 = vrot.lane.b32.xlu0 %v53, 17
    %v268 = vpop.permute.xlu0 %267
    %269 = vrot.lane.b32.xlu0 %v57, 17
    %v270 = vpop.permute.xlu0 %269
    %271 = vrot.lane.b32.xlu0 %v54, 17
    %v272 = vpop.permute.xlu0 %271
    %273 = vrot.lane.b32.xlu0 %v58, 17
    %v274 = vpop.permute.xlu0 %273
    %275 = vrot.lane.b32.xlu0 %v55, 17
    %v276 = vpop.permute.xlu0 %275
    %277 = vrot.lane.b32.xlu0 %v59, 17
    %v278 = vpop.permute.xlu0 %277
    %279 = vrot.lane.b32.xlu0 %v56, 17
    %v280 = vpop.permute.xlu0 %279
    %281 = vrot.lane.b32.xlu0 %v60, 17
    %v282 = vpop.permute.xlu0 %281
    %v283 = vlaneseq
    %v284 = vand.u32 %v283, 127
    %vm285 = vcmp.lt.s32.totalorder %v284, 17
    %v286 = vsel %vm285, %v276, %v280
    %v287 = vsel %vm285, %v278, %v282
    %v288 = vsel %vm285, %v272, %v276
    %v289 = vsel %vm285, %v274, %v278
    %v290 = vsel %vm285, %v268, %v272
    %v291 = vsel %vm285, %v270, %v274
    %v292 = vsel %vm285, %v280, %v268
    %v293 = vsel %vm285, %v282, %v270
    %v294 = vsel %vm266, 1, 0
    %v295 = vperm.slane %v294, 0
    %v296 = vperm.slane %v294, 1
    %v297 = vperm.slane %v294, 2
    %v298 = vperm.slane %v294, 3
    %vm299 = vcmp.eq.s32.totalorder %v295, 1
    %vm300 = vcmp.eq.s32.totalorder %v296, 1
    %vm301 = vcmp.eq.s32.totalorder %v297, 1
    %vm302 = vcmp.eq.s32.totalorder %v298, 1
    %v303 = vsel %vm299, %v292, -1e+30
    %v304 = vsel %vm300, %v290, -1e+30
    %v305 = vsel %vm301, %v288, -1e+30
    %v306 = vsel %vm302, %v286, -1e+30
    %v307 = vsel %vm299, %v293, -1e+30
    %v308 = vsel %vm300, %v291, -1e+30
    %v309 = vsel %vm301, %v289, -1e+30
    %v310 = vsel %vm302, %v287, -1e+30
    %v311 = vmax.f32 %v53, %v303
    %v312 = vmax.f32 %v54, %v304
    %v313 = vmax.f32 %v55, %v305
    %v314 = vmax.f32 %v56, %v306
    %v315 = vmax.f32 %v57, %v307
    %v316 = vmax.f32 %v58, %v308
    %v317 = vmax.f32 %v59, %v309
    %v318 = vmax.f32 %v60, %v310
    %s319 = scalar_lea.vmem %s4, 7
    %v320 = vld [vmem:[%s319] ss:$8 sm:$0xf]
    %vm321 = vcmp.gt.f32.partialorder %v320, 0.5
    %322 = vrot.lane.b32.xlu0 %v53, 16
    %v323 = vpop.permute.xlu0 %322
    %324 = vrot.lane.b32.xlu0 %v57, 16
    %v325 = vpop.permute.xlu0 %324
    %326 = vrot.lane.b32.xlu0 %v54, 16
    %v327 = vpop.permute.xlu0 %326
    %328 = vrot.lane.b32.xlu0 %v58, 16
    %v329 = vpop.permute.xlu0 %328
    %330 = vrot.lane.b32.xlu0 %v55, 16
    %v331 = vpop.permute.xlu0 %330
    %332 = vrot.lane.b32.xlu0 %v59, 16
    %v333 = vpop.permute.xlu0 %332
    %334 = vrot.lane.b32.xlu0 %v56, 16
    %v335 = vpop.permute.xlu0 %334
    %336 = vrot.lane.b32.xlu0 %v60, 16
    %v337 = vpop.permute.xlu0 %336
    %vm338 = vcmp.lt.s32.totalorder %v284, 16
    %v339 = vsel %vm338, %v331, %v335
    %v340 = vsel %vm338, %v333, %v337
    %v341 = vsel %vm338, %v327, %v331
    %v342 = vsel %vm338, %v329, %v333
    %v343 = vsel %vm338, %v323, %v327
    %v344 = vsel %vm338, %v325, %v329
    %v345 = vsel %vm338, %v335, %v323
    %v346 = vsel %vm338, %v337, %v325
    %v347 = vsel %vm321, 1, 0
    %v348 = vperm.slane %v347, 0
    %v349 = vperm.slane %v347, 1
    %v350 = vperm.slane %v347, 2
    %v351 = vperm.slane %v347, 3
    %vm352 = vcmp.eq.s32.totalorder %v348, 1
    %vm353 = vcmp.eq.s32.totalorder %v349, 1
    %vm354 = vcmp.eq.s32.totalorder %v350, 1
    %vm355 = vcmp.eq.s32.totalorder %v351, 1
    %v356 = vsel %vm352, %v345, -1e+30
    %v357 = vsel %vm353, %v343, -1e+30
    %v358 = vsel %vm354, %v341, -1e+30
    %v359 = vsel %vm355, %v339, -1e+30
    %v360 = vsel %vm352, %v346, -1e+30
    %v361 = vsel %vm353, %v344, -1e+30
    %v362 = vsel %vm354, %v342, -1e+30
    %v363 = vsel %vm355, %v340, -1e+30
    %v364 = vmax.f32 %v311, %v356
    %v365 = vmax.f32 %v312, %v357
    %v366 = vmax.f32 %v313, %v358
    %v367 = vmax.f32 %v314, %v359
    %v368 = vmax.f32 %v315, %v360
    %v369 = vmax.f32 %v316, %v361
    %v370 = vmax.f32 %v317, %v362
    %v371 = vmax.f32 %v318, %v363
    %s372 = scalar_lea.vmem %s4, 32
    %v373 = vld [vmem:[%s372] ss:$8 sm:$0xf]
    %vm374 = vcmp.gt.f32.partialorder %v373, 0.5
    %375 = vrot.lane.b32.xlu0 %v53, 15
    %v376 = vpop.permute.xlu0 %375
    %377 = vrot.lane.b32.xlu0 %v57, 15
    %v378 = vpop.permute.xlu0 %377
    %379 = vrot.lane.b32.xlu0 %v54, 15
    %v380 = vpop.permute.xlu0 %379
    %381 = vrot.lane.b32.xlu0 %v58, 15
    %v382 = vpop.permute.xlu0 %381
    %383 = vrot.lane.b32.xlu0 %v55, 15
    %v384 = vpop.permute.xlu0 %383
    %385 = vrot.lane.b32.xlu0 %v59, 15
    %v386 = vpop.permute.xlu0 %385
    %387 = vrot.lane.b32.xlu0 %v56, 15
    %v388 = vpop.permute.xlu0 %387
    %389 = vrot.lane.b32.xlu0 %v60, 15
    %v390 = vpop.permute.xlu0 %389
    %vm391 = vcmp.lt.s32.totalorder %v284, 15
    %v392 = vsel %vm391, %v384, %v388
    %v393 = vsel %vm391, %v386, %v390
    %v394 = vsel %vm391, %v380, %v384
    %v395 = vsel %vm391, %v382, %v386
    %v396 = vsel %vm391, %v376, %v380
    %v397 = vsel %vm391, %v378, %v382
    %v398 = vsel %vm391, %v388, %v376
    %v399 = vsel %vm391, %v390, %v378
    %v400 = vsel %vm374, 1, 0
    %v401 = vperm.slane %v400, 0
    %v402 = vperm.slane %v400, 1
    %v403 = vperm.slane %v400, 2
    %v404 = vperm.slane %v400, 3
    %vm405 = vcmp.eq.s32.totalorder %v401, 1
    %vm406 = vcmp.eq.s32.totalorder %v402, 1
    %vm407 = vcmp.eq.s32.totalorder %v403, 1
    %vm408 = vcmp.eq.s32.totalorder %v404, 1
    %v409 = vsel %vm405, %v398, -1e+30
    %v410 = vsel %vm406, %v396, -1e+30
    %v411 = vsel %vm407, %v394, -1e+30
    %v412 = vsel %vm408, %v392, -1e+30
    %v413 = vsel %vm405, %v399, -1e+30
    %v414 = vsel %vm406, %v397, -1e+30
    %v415 = vsel %vm407, %v395, -1e+30
    %v416 = vsel %vm408, %v393, -1e+30
    %v417 = vmax.f32 %v364, %v409
    %v418 = vmax.f32 %v365, %v410
    %v419 = vmax.f32 %v366, %v411
    %v420 = vmax.f32 %v367, %v412
    %v421 = vmax.f32 %v368, %v413
    %v422 = vmax.f32 %v369, %v414
    %v423 = vmax.f32 %v370, %v415
    %v424 = vmax.f32 %v371, %v416
    %s425 = scalar_lea.vmem %s4, 35
    %v426 = vld [vmem:[%s425] ss:$8 sm:$0xf]
    %vm427 = vcmp.gt.f32.partialorder %v426, 0.5
    %428 = vrot.lane.b32.xlu0 %v53, 1
    %v429 = vpop.permute.xlu0 %428
    %430 = vrot.lane.b32.xlu0 %v57, 1
    %v431 = vpop.permute.xlu0 %430
    %432 = vrot.lane.b32.xlu0 %v54, 1
    %v433 = vpop.permute.xlu0 %432
    %434 = vrot.lane.b32.xlu0 %v58, 1
    %v435 = vpop.permute.xlu0 %434
    %436 = vrot.lane.b32.xlu0 %v55, 1
    %v437 = vpop.permute.xlu0 %436
    %438 = vrot.lane.b32.xlu0 %v59, 1
    %v439 = vpop.permute.xlu0 %438
    %440 = vrot.lane.b32.xlu0 %v56, 1
    %v441 = vpop.permute.xlu0 %440
    %442 = vrot.lane.b32.xlu0 %v60, 1
    %v443 = vpop.permute.xlu0 %442
    %vm444 = vcmp.lt.s32.totalorder %v284, 1
    %v445 = vsel %vm444, %v437, %v441
    %v446 = vsel %vm444, %v439, %v443
    %v447 = vsel %vm444, %v433, %v437
    %v448 = vsel %vm444, %v435, %v439
    %v449 = vsel %vm444, %v429, %v433
    %v450 = vsel %vm444, %v431, %v435
    %v451 = vsel %vm444, %v441, %v429
    %v452 = vsel %vm444, %v443, %v431
    %v453 = vsel %vm427, 1, 0
    %v454 = vperm.slane %v453, 0
    %v455 = vperm.slane %v453, 1
    %v456 = vperm.slane %v453, 2
    %v457 = vperm.slane %v453, 3
    %vm458 = vcmp.eq.s32.totalorder %v454, 1
    %vm459 = vcmp.eq.s32.totalorder %v455, 1
    %vm460 = vcmp.eq.s32.totalorder %v456, 1
    %vm461 = vcmp.eq.s32.totalorder %v457, 1
    %v462 = vsel %vm458, %v451, -1e+30
    %v463 = vsel %vm459, %v449, -1e+30
    %v464 = vsel %vm460, %v447, -1e+30
    %v465 = vsel %vm461, %v445, -1e+30
    %v466 = vsel %vm458, %v452, -1e+30
    %v467 = vsel %vm459, %v450, -1e+30
    %v468 = vsel %vm460, %v448, -1e+30
    %v469 = vsel %vm461, %v446, -1e+30
    %v470 = vmax.f32 %v417, %v462
    %v471 = vmax.f32 %v418, %v463
    %v472 = vmax.f32 %v419, %v464
    %v473 = vmax.f32 %v420, %v465
    %v474 = vmax.f32 %v421, %v466
    %v475 = vmax.f32 %v422, %v467
    %v476 = vmax.f32 %v423, %v468
    %v477 = vmax.f32 %v424, %v469
    %s478 = scalar_lea.vmem %s4, 37
    %v479 = vld [vmem:[%s478] ss:$8 sm:$0xf]
    %vm480 = vcmp.gt.f32.partialorder %v479, 0.5
    %481 = vrot.lane.b32.xlu0 %v53, 127
    %v482 = vpop.permute.xlu0 %481
    %483 = vrot.lane.b32.xlu0 %v57, 127
    %v484 = vpop.permute.xlu0 %483
    %485 = vrot.lane.b32.xlu0 %v54, 127
    %v486 = vpop.permute.xlu0 %485
    %487 = vrot.lane.b32.xlu0 %v58, 127
    %v488 = vpop.permute.xlu0 %487
    %489 = vrot.lane.b32.xlu0 %v55, 127
    %v490 = vpop.permute.xlu0 %489
    %491 = vrot.lane.b32.xlu0 %v59, 127
    %v492 = vpop.permute.xlu0 %491
    %493 = vrot.lane.b32.xlu0 %v56, 127
    %v494 = vpop.permute.xlu0 %493
    %495 = vrot.lane.b32.xlu0 %v60, 127
    %v496 = vpop.permute.xlu0 %495
    %vm497 = vcmp.lt.s32.totalorder %v284, 127
    %v498 = vsel %vm497, %v490, %v494
    %v499 = vsel %vm497, %v492, %v496
    %v500 = vsel %vm497, %v486, %v490
    %v501 = vsel %vm497, %v488, %v492
    %v502 = vsel %vm497, %v482, %v486
    %v503 = vsel %vm497, %v484, %v488
    %v504 = vsel %vm497, %v494, %v482
    %v505 = vsel %vm497, %v496, %v484
    %v506 = vsel %vm480, 1, 0
    %v507 = vperm.slane %v506, 0
    %v508 = vperm.slane %v506, 1
    %v509 = vperm.slane %v506, 2
    %v510 = vperm.slane %v506, 3
    %vm511 = vcmp.eq.s32.totalorder %v507, 1
    %vm512 = vcmp.eq.s32.totalorder %v508, 1
    %vm513 = vcmp.eq.s32.totalorder %v509, 1
    %vm514 = vcmp.eq.s32.totalorder %v510, 1
    %v515 = vsel %vm511, %v502, -1e+30
    %v516 = vsel %vm512, %v500, -1e+30
    %v517 = vsel %vm513, %v498, -1e+30
    %v518 = vsel %vm514, %v504, -1e+30
    %v519 = vsel %vm511, %v503, -1e+30
    %v520 = vsel %vm512, %v501, -1e+30
    %v521 = vsel %vm513, %v499, -1e+30
    %v522 = vsel %vm514, %v505, -1e+30
    %v523 = vmax.f32 %v470, %v515
    %v524 = vmax.f32 %v471, %v516
    %v525 = vmax.f32 %v472, %v517
    %v526 = vmax.f32 %v473, %v518
    %v527 = vmax.f32 %v474, %v519
    %v528 = vmax.f32 %v475, %v520
    %v529 = vmax.f32 %v476, %v521
    %v530 = vmax.f32 %v477, %v522
    %s531 = scalar_lea.vmem %s4, 64
    %v532 = vld [vmem:[%s531] ss:$8 sm:$0xf]
    %vm533 = vcmp.gt.f32.partialorder %v532, 0.5
    %534 = vrot.lane.b32.xlu0 %v53, 113
    %v535 = vpop.permute.xlu0 %534
    %536 = vrot.lane.b32.xlu0 %v57, 113
    %v537 = vpop.permute.xlu0 %536
    %538 = vrot.lane.b32.xlu0 %v54, 113
    %v539 = vpop.permute.xlu0 %538
    %540 = vrot.lane.b32.xlu0 %v58, 113
    %v541 = vpop.permute.xlu0 %540
    %542 = vrot.lane.b32.xlu0 %v55, 113
    %v543 = vpop.permute.xlu0 %542
    %544 = vrot.lane.b32.xlu0 %v59, 113
    %v545 = vpop.permute.xlu0 %544
    %546 = vrot.lane.b32.xlu0 %v56, 113
    %v547 = vpop.permute.xlu0 %546
    %548 = vrot.lane.b32.xlu0 %v60, 113
    %v549 = vpop.permute.xlu0 %548
    %vm550 = vcmp.lt.s32.totalorder %v284, 113
    %v551 = vsel %vm550, %v543, %v547
    %v552 = vsel %vm550, %v545, %v549
    %v553 = vsel %vm550, %v539, %v543
    %v554 = vsel %vm550, %v541, %v545
    %v555 = vsel %vm550, %v535, %v539
    %v556 = vsel %vm550, %v537, %v541
    %v557 = vsel %vm550, %v547, %v535
    %v558 = vsel %vm550, %v549, %v537
    %v559 = vsel %vm533, 1, 0
    %v560 = vperm.slane %v559, 0
    %v561 = vperm.slane %v559, 1
    %v562 = vperm.slane %v559, 2
    %v563 = vperm.slane %v559, 3
    %vm564 = vcmp.eq.s32.totalorder %v560, 1
    %vm565 = vcmp.eq.s32.totalorder %v561, 1
    %vm566 = vcmp.eq.s32.totalorder %v562, 1
    %vm567 = vcmp.eq.s32.totalorder %v563, 1
    %v568 = vsel %vm564, %v555, -1e+30
    %v569 = vsel %vm565, %v553, -1e+30
    %v570 = vsel %vm566, %v551, -1e+30
    %v571 = vsel %vm567, %v557, -1e+30
    %v572 = vsel %vm564, %v556, -1e+30
    %v573 = vsel %vm565, %v554, -1e+30
    %v574 = vsel %vm566, %v552, -1e+30
    %v575 = vsel %vm567, %v558, -1e+30
    %v576 = vmax.f32 %v523, %v568
    %v577 = vmax.f32 %v524, %v569
    %v578 = vmax.f32 %v525, %v570
    %v579 = vmax.f32 %v526, %v571
    %v580 = vmax.f32 %v527, %v572
    %v581 = vmax.f32 %v528, %v573
    %v582 = vmax.f32 %v529, %v574
    %v583 = vmax.f32 %v530, %v575
    %s584 = scalar_lea.vmem %s4, 65
    %v585 = vld [vmem:[%s584] ss:$8 sm:$0xf]
    %vm586 = vcmp.gt.f32.partialorder %v585, 0.5
    %587 = vrot.lane.b32.xlu0 %v53, 112
    %v588 = vpop.permute.xlu0 %587
    %589 = vrot.lane.b32.xlu0 %v57, 112
    %v590 = vpop.permute.xlu0 %589
    %591 = vrot.lane.b32.xlu0 %v54, 112
    %v592 = vpop.permute.xlu0 %591
    %593 = vrot.lane.b32.xlu0 %v58, 112
    %v594 = vpop.permute.xlu0 %593
    %595 = vrot.lane.b32.xlu0 %v55, 112
    %v596 = vpop.permute.xlu0 %595
    %597 = vrot.lane.b32.xlu0 %v59, 112
    %v598 = vpop.permute.xlu0 %597
    %599 = vrot.lane.b32.xlu0 %v56, 112
    %v600 = vpop.permute.xlu0 %599
    %601 = vrot.lane.b32.xlu0 %v60, 112
    %v602 = vpop.permute.xlu0 %601
    %vm603 = vcmp.lt.s32.totalorder %v284, 112
    %v604 = vsel %vm603, %v596, %v600
    %v605 = vsel %vm603, %v598, %v602
    %v606 = vsel %vm603, %v592, %v596
    %v607 = vsel %vm603, %v594, %v598
    %v608 = vsel %vm603, %v588, %v592
    %v609 = vsel %vm603, %v590, %v594
    %v610 = vsel %vm603, %v600, %v588
    %v611 = vsel %vm603, %v602, %v590
    %v612 = vsel %vm586, 1, 0
    %v613 = vperm.slane %v612, 0
    %v614 = vperm.slane %v612, 1
    %v615 = vperm.slane %v612, 2
    %v616 = vperm.slane %v612, 3
    %vm617 = vcmp.eq.s32.totalorder %v613, 1
    %vm618 = vcmp.eq.s32.totalorder %v614, 1
    %vm619 = vcmp.eq.s32.totalorder %v615, 1
    %vm620 = vcmp.eq.s32.totalorder %v616, 1
    %v621 = vsel %vm617, %v608, -1e+30
    %v622 = vsel %vm618, %v606, -1e+30
    %v623 = vsel %vm619, %v604, -1e+30
    %v624 = vsel %vm620, %v610, -1e+30
    %v625 = vsel %vm617, %v609, -1e+30
    %v626 = vsel %vm618, %v607, -1e+30
    %v627 = vsel %vm619, %v605, -1e+30
    %v628 = vsel %vm620, %v611, -1e+30
    %v629 = vmax.f32 %v576, %v621
    %v630 = vmax.f32 %v577, %v622
    %v631 = vmax.f32 %v578, %v623
    %v632 = vmax.f32 %v579, %v624
    %v633 = vmax.f32 %v580, %v625
    %v634 = vmax.f32 %v581, %v626
    %v635 = vmax.f32 %v582, %v627
    %v636 = vmax.f32 %v583, %v628
    %s637 = scalar_lea.vmem %s4, 66
    %v638 = vld [vmem:[%s637] ss:$8 sm:$0xf]
    %vm639 = vcmp.gt.f32.partialorder %v638, 0.5
    %640 = vrot.lane.b32.xlu0 %v53, 111
    %v641 = vpop.permute.xlu0 %640
    %642 = vrot.lane.b32.xlu0 %v57, 111
    %v643 = vpop.permute.xlu0 %642
    %644 = vrot.lane.b32.xlu0 %v54, 111
    %v645 = vpop.permute.xlu0 %644
    %646 = vrot.lane.b32.xlu0 %v58, 111
    %v647 = vpop.permute.xlu0 %646
    %648 = vrot.lane.b32.xlu0 %v55, 111
    %v649 = vpop.permute.xlu0 %648
    %650 = vrot.lane.b32.xlu0 %v59, 111
    %v651 = vpop.permute.xlu0 %650
    %652 = vrot.lane.b32.xlu0 %v56, 111
    %v653 = vpop.permute.xlu0 %652
    %654 = vrot.lane.b32.xlu0 %v60, 111
    %v655 = vpop.permute.xlu0 %654
    %vm656 = vcmp.lt.s32.totalorder %v284, 111
    %v657 = vsel %vm656, %v649, %v653
    %v658 = vsel %vm656, %v651, %v655
    %v659 = vsel %vm656, %v645, %v649
    %v660 = vsel %vm656, %v647, %v651
    %v661 = vsel %vm656, %v641, %v645
    %v662 = vsel %vm656, %v643, %v647
    %v663 = vsel %vm656, %v653, %v641
    %v664 = vsel %vm656, %v655, %v643
    %v665 = vsel %vm639, 1, 0
    %v666 = vperm.slane %v665, 0
    %v667 = vperm.slane %v665, 1
    %v668 = vperm.slane %v665, 2
    %v669 = vperm.slane %v665, 3
    %vm670 = vcmp.eq.s32.totalorder %v666, 1
    %vm671 = vcmp.eq.s32.totalorder %v667, 1
    %vm672 = vcmp.eq.s32.totalorder %v668, 1
    %vm673 = vcmp.eq.s32.totalorder %v669, 1
    %v674 = vsel %vm670, %v661, -1e+30
    %v675 = vsel %vm671, %v659, -1e+30
    %v676 = vsel %vm672, %v657, -1e+30
    %v677 = vsel %vm673, %v663, -1e+30
    %v678 = vsel %vm670, %v662, -1e+30
    %v679 = vsel %vm671, %v660, -1e+30
    %v680 = vsel %vm672, %v658, -1e+30
    %v681 = vsel %vm673, %v664, -1e+30
    %v682 = vmax.f32 %v629, %v674
    %v683 = vmax.f32 %v630, %v675
    %v684 = vmax.f32 %v631, %v676
    %v685 = vmax.f32 %v632, %v677
    %v686 = vmax.f32 %v633, %v678
    %v687 = vmax.f32 %v634, %v679
    %v688 = vmax.f32 %v635, %v680
    %v689 = vmax.f32 %v636, %v681
    %v690 = vld [vmem:[%s1 + $0x30] sm:$0xff]
    %v691 = vld [vmem:[%s1 + $0x38] sm:$0xff]
    %693 = vset.pattern.permute.xlu0 0
    %694 = vperm.xlu0 %693, %v67
    %v695 = vpop.permute.xlu0 %694
    %698 = vset.pattern.permute.xlu0 0
    %699 = vperm.xlu0 %698, %v68
    %v700 = vpop.permute.xlu0 %699
    %v703 = vsel %vm105, %v690, 0
    %v706 = vsel %vm105, %v691, 0
    %708 = vmatpush.msra.mxu0 0.0
    %709 = vmatpush.msra.mxu0 0.0
    %710 = vmatpush.msra.mxu0 0.0
    %711 = vmatpush.msra.mxu0 0.0
    %712 = vmatpush.msra.mxu0 0.0
    %713 = vmatpush.msra.mxu0 0.0
    %714 = vmatpush.msra.mxu0 0.0
    %715 = vmatpush.msra.mxu0 0.0
    %716 = vmatpush.msra.mxu0 0.0
    %717 = vmatpush.msra.mxu0 0.0
    %718 = vmatpush.msra.mxu0 0.0
    %719 = vmatpush.msra.mxu0 0.0
    %720 = vmatpush.msra.mxu0 0.0
    %721 = vmatpush.msra.mxu0 0.0
    %722 = vmatpush.msra.mxu0 %v686
    %723 = vmatpush.msra.mxu0 %v682
    %724 = vmatmul.f32.gmra.mxu0 %v703
    %v725 = vpop.f32.mrf.mxu0
    %v726 = vadd.f32 %v695, %v725
    %727 = vmatmul.f32.gmra.mxu0 %v706
    %v728 = vpop.f32.mrf.mxu0
    %v729 = vadd.f32 %v700, %v728
    %730 = vdwg.mxu0
    %731 = vmatpush.msra.mxu0 0.0
    %732 = vmatpush.msra.mxu0 0.0
    %733 = vmatpush.msra.mxu0 0.0
    %734 = vmatpush.msra.mxu0 0.0
    %735 = vmatpush.msra.mxu0 0.0
    %736 = vmatpush.msra.mxu0 0.0
    %737 = vmatpush.msra.mxu0 0.0
    %738 = vmatpush.msra.mxu0 0.0
    %739 = vmatpush.msra.mxu0 0.0
    %740 = vmatpush.msra.mxu0 0.0
    %741 = vmatpush.msra.mxu0 0.0
    %742 = vmatpush.msra.mxu0 0.0
    %743 = vmatpush.msra.mxu0 0.0
    %744 = vmatpush.msra.mxu0 0.0
    %745 = vmatpush.msra.mxu0 %v687
    %746 = vmatpush.msra.mxu0 %v683
    %747 = vmatmul.f32.gmra.mxu0 %v703
    %v748 = vpop.f32.mrf.mxu0
    %v749 = vadd.f32 %v695, %v748
    %750 = vmatmul.f32.gmra.mxu0 %v706
    %v751 = vpop.f32.mrf.mxu0
    %v752 = vadd.f32 %v700, %v751
    %753 = vdwg.mxu0
    %754 = vmatpush.msra.mxu0 0.0
    %755 = vmatpush.msra.mxu0 0.0
    %756 = vmatpush.msra.mxu0 0.0
    %757 = vmatpush.msra.mxu0 0.0
    %758 = vmatpush.msra.mxu0 0.0
    %759 = vmatpush.msra.mxu0 0.0
    %760 = vmatpush.msra.mxu0 0.0
    %761 = vmatpush.msra.mxu0 0.0
    %762 = vmatpush.msra.mxu0 0.0
    %763 = vmatpush.msra.mxu0 0.0
    %764 = vmatpush.msra.mxu0 0.0
    %765 = vmatpush.msra.mxu0 0.0
    %766 = vmatpush.msra.mxu0 0.0
    %767 = vmatpush.msra.mxu0 0.0
    %768 = vmatpush.msra.mxu0 %v688
    %769 = vmatpush.msra.mxu0 %v684
    %770 = vmatmul.f32.gmra.mxu0 %v703
    %v771 = vpop.f32.mrf.mxu0
    %v772 = vadd.f32 %v695, %v771
    %773 = vmatmul.f32.gmra.mxu0 %v706
    %v774 = vpop.f32.mrf.mxu0
    %v775 = vadd.f32 %v700, %v774
    %776 = vdwg.mxu0
    %777 = vmatpush.msra.mxu0 0.0
    %778 = vmatpush.msra.mxu0 0.0
    %779 = vmatpush.msra.mxu0 0.0
    %780 = vmatpush.msra.mxu0 0.0
    %781 = vmatpush.msra.mxu0 0.0
    %782 = vmatpush.msra.mxu0 0.0
    %783 = vmatpush.msra.mxu0 0.0
    %784 = vmatpush.msra.mxu0 0.0
    %785 = vmatpush.msra.mxu0 0.0
    %786 = vmatpush.msra.mxu0 0.0
    %787 = vmatpush.msra.mxu0 0.0
    %788 = vmatpush.msra.mxu0 0.0
    %789 = vmatpush.msra.mxu0 0.0
    %790 = vmatpush.msra.mxu0 0.0
    %791 = vmatpush.msra.mxu0 %v689
    %792 = vmatpush.msra.mxu0 %v685
    %793 = vmatmul.f32.gmra.mxu0 %v703
    %v794 = vpop.f32.mrf.mxu0
    %v795 = vadd.f32 %v695, %v794
    %796 = vmatmul.f32.gmra.mxu0 %v706
    %v797 = vpop.f32.mrf.mxu0
    %v798 = vadd.f32 %v700, %v797
    %799 = vdwg.mxu0
    %800 = vset.pattern.permute.xlu0 1
    %801 = vperm.xlu0 %800, %v61
    %v802 = vpop.permute.xlu0 %801
    %804 = vset.pattern.permute.xlu0 1
    %805 = vperm.xlu0 %804, %v62
    %v806 = vpop.permute.xlu0 %805
    %808 = vset.pattern.permute.xlu0 1
    %809 = vperm.xlu0 %808, %v63
    %v810 = vpop.permute.xlu0 %809
    %812 = vset.pattern.permute.xlu0 1
    %813 = vperm.xlu0 %812, %v64
    %v814 = vpop.permute.xlu0 %813
    %816 = vrot.lane.b32.xlu0 %v148, 34
    %v817 = vpop.permute.xlu0 %816
    %818 = vrot.lane.b32.xlu0 %v151, 34
    %v819 = vpop.permute.xlu0 %818
    %820 = vrot.lane.b32.xlu0 %v154, 34
    %v821 = vpop.permute.xlu0 %820
    %822 = vrot.lane.b32.xlu0 %v157, 34
    %v823 = vpop.permute.xlu0 %822
    %824 = vrot.lane.b32.xlu0 %v183, 34
    %v825 = vpop.permute.xlu0 %824
    %826 = vrot.lane.b32.xlu0 %v186, 34
    %v827 = vpop.permute.xlu0 %826
    %828 = vrot.lane.b32.xlu0 %v189, 34
    %v829 = vpop.permute.xlu0 %828
    %830 = vrot.lane.b32.xlu0 %v192, 34
    %v831 = vpop.permute.xlu0 %830
    %832 = vrot.lane.b32.xlu0 %v218, 34
    %v833 = vpop.permute.xlu0 %832
    %834 = vrot.lane.b32.xlu0 %v221, 34
    %v835 = vpop.permute.xlu0 %834
    %836 = vrot.lane.b32.xlu0 %v224, 34
    %v837 = vpop.permute.xlu0 %836
    %838 = vrot.lane.b32.xlu0 %v227, 34
    %v839 = vpop.permute.xlu0 %838
    %840 = vrot.lane.b32.xlu0 %v253, 34
    %v841 = vpop.permute.xlu0 %840
    %842 = vrot.lane.b32.xlu0 %v256, 34
    %v843 = vpop.permute.xlu0 %842
    %844 = vrot.lane.b32.xlu0 %v259, 34
    %v845 = vpop.permute.xlu0 %844
    %846 = vrot.lane.b32.xlu0 %v262, 34
    %v847 = vpop.permute.xlu0 %846
    %vm848 = vcmp.lt.s32.totalorder %v284, 34
    %v849 = vsel %vm848, %v833, %v841
    %v850 = vsel %vm848, %v835, %v843
    %v851 = vsel %vm848, %v837, %v845
    %v852 = vsel %vm848, %v839, %v847
    %v853 = vsel %vm848, %v825, %v833
    %v854 = vsel %vm848, %v827, %v835
    %v855 = vsel %vm848, %v829, %v837
    %v856 = vsel %vm848, %v831, %v839
    %v857 = vsel %vm848, %v817, %v825
    %v858 = vsel %vm848, %v819, %v827
    %v859 = vsel %vm848, %v821, %v829
    %v860 = vsel %vm848, %v823, %v831
    %v861 = vsel %vm848, %v841, %v817
    %v862 = vsel %vm848, %v843, %v819
    %v863 = vsel %vm848, %v845, %v821
    %v864 = vsel %vm848, %v847, %v823
    %v865 = vld [vmem:[%s4] ss:$8 sm:$0xf]
    %v867 = vperm.slane %v865, 0
    %v868 = vperm.slane %v865, 1
    %v869 = vperm.slane %v865, 2
    %v870 = vperm.slane %v865, 3
    %v875 = vmul.f32 %v861, %v867
    %v876 = vmul.f32 %v857, %v868
    %v877 = vmul.f32 %v853, %v869
    %v878 = vmul.f32 %v849, %v870
    %v879 = vmul.f32 %v862, %v867
    %v880 = vmul.f32 %v858, %v868
    %v881 = vmul.f32 %v854, %v869
    %v882 = vmul.f32 %v850, %v870
    %v883 = vmul.f32 %v863, %v867
    %v884 = vmul.f32 %v859, %v868
    %v885 = vmul.f32 %v855, %v869
    %v886 = vmul.f32 %v851, %v870
    %v887 = vmul.f32 %v864, %v867
    %v888 = vmul.f32 %v860, %v868
    %v889 = vmul.f32 %v856, %v869
    %v890 = vmul.f32 %v852, %v870
    %v891 = vld [vmem:[#allocation5] sm:$0xff]
    %v892 = vld [vmem:[#allocation5 + $0x8] sm:$0xff]
    %v893 = vld [vmem:[#allocation5 + $0x10] sm:$0xff]
    %v894 = vld [vmem:[#allocation5 + $0x18] sm:$0xff]
    %vm895 = vcmask 261120
    %v897 = vsel %vm895, %v891, 0
    %v900 = vsel %vm895, %v892, 0
    %v903 = vsel %vm895, %v893, 0
    %v906 = vsel %vm895, %v894, 0
    %908 = vmatpush.msra.mxu0 0.0
    %909 = vmatpush.msra.mxu0 0.0
    %910 = vmatpush.msra.mxu0 0.0
    %911 = vmatpush.msra.mxu0 0.0
    %912 = vmatpush.msra.mxu0 0.0
    %913 = vmatpush.msra.mxu0 0.0
    %914 = vmatpush.msra.mxu0 0.0
    %915 = vmatpush.msra.mxu0 0.0
    %916 = vmatpush.msra.mxu0 0.0
    %917 = vmatpush.msra.mxu0 0.0
    %918 = vmatpush.msra.mxu0 0.0
    %919 = vmatpush.msra.mxu0 0.0
    %920 = vmatpush.msra.mxu0 %v887
    %921 = vmatpush.msra.mxu0 %v883
    %922 = vmatpush.msra.mxu0 %v879
    %923 = vmatpush.msra.mxu0 %v875
    %924 = vmatmul.f32.gmra.mxu0 %v897
    %v925 = vpop.f32.mrf.mxu0
    %v926 = vadd.f32 0.0, %v925
    %927 = vmatmul.f32.gmra.mxu0 %v900
    %v928 = vpop.f32.mrf.mxu0
    %v929 = vadd.f32 0.0, %v928
    %930 = vmatmul.f32.gmra.mxu0 %v903
    %v931 = vpop.f32.mrf.mxu0
    %v932 = vadd.f32 0.0, %v931
    %933 = vmatmul.f32.gmra.mxu0 %v906
    %v934 = vpop.f32.mrf.mxu0
    %v935 = vadd.f32 0.0, %v934
    %936 = vdwg.mxu0
    %937 = vmatpush.msra.mxu0 0.0
    %938 = vmatpush.msra.mxu0 0.0
    %939 = vmatpush.msra.mxu0 0.0
    %940 = vmatpush.msra.mxu0 0.0
    %941 = vmatpush.msra.mxu0 0.0
    %942 = vmatpush.msra.mxu0 0.0
    %943 = vmatpush.msra.mxu0 0.0
    %944 = vmatpush.msra.mxu0 0.0
    %945 = vmatpush.msra.mxu0 0.0
    %946 = vmatpush.msra.mxu0 0.0
    %947 = vmatpush.msra.mxu0 0.0
    %948 = vmatpush.msra.mxu0 0.0
    %949 = vmatpush.msra.mxu0 %v888
    %950 = vmatpush.msra.mxu0 %v884
    %951 = vmatpush.msra.mxu0 %v880
    %952 = vmatpush.msra.mxu0 %v876
    %953 = vmatmul.f32.gmra.mxu0 %v897
    %v954 = vpop.f32.mrf.mxu0
    %v955 = vadd.f32 0.0, %v954
    %956 = vmatmul.f32.gmra.mxu0 %v900
    %v957 = vpop.f32.mrf.mxu0
    %v958 = vadd.f32 0.0, %v957
    %959 = vmatmul.f32.gmra.mxu0 %v903
    %v960 = vpop.f32.mrf.mxu0
    %v961 = vadd.f32 0.0, %v960
    %962 = vmatmul.f32.gmra.mxu0 %v906
    %v963 = vpop.f32.mrf.mxu0
    %v964 = vadd.f32 0.0, %v963
    %965 = vdwg.mxu0
    %966 = vmatpush.msra.mxu0 0.0
    %967 = vmatpush.msra.mxu0 0.0
    %968 = vmatpush.msra.mxu0 0.0
    %969 = vmatpush.msra.mxu0 0.0
    %970 = vmatpush.msra.mxu0 0.0
    %971 = vmatpush.msra.mxu0 0.0
    %972 = vmatpush.msra.mxu0 0.0
    %973 = vmatpush.msra.mxu0 0.0
    %974 = vmatpush.msra.mxu0 0.0
    %975 = vmatpush.msra.mxu0 0.0
    %976 = vmatpush.msra.mxu0 0.0
    %977 = vmatpush.msra.mxu0 0.0
    %978 = vmatpush.msra.mxu0 %v889
    %979 = vmatpush.msra.mxu0 %v885
    %980 = vmatpush.msra.mxu0 %v881
    %981 = vmatpush.msra.mxu0 %v877
    %982 = vmatmul.f32.gmra.mxu0 %v897
    %v983 = vpop.f32.mrf.mxu0
    %v984 = vadd.f32 0.0, %v983
    %985 = vmatmul.f32.gmra.mxu0 %v900
    %v986 = vpop.f32.mrf.mxu0
    %v987 = vadd.f32 0.0, %v986
    %988 = vmatmul.f32.gmra.mxu0 %v903
    %v989 = vpop.f32.mrf.mxu0
    %v990 = vadd.f32 0.0, %v989
    %991 = vmatmul.f32.gmra.mxu0 %v906
    %v992 = vpop.f32.mrf.mxu0
    %v993 = vadd.f32 0.0, %v992
    %994 = vdwg.mxu0
    %995 = vmatpush.msra.mxu0 0.0
    %996 = vmatpush.msra.mxu0 0.0
    %997 = vmatpush.msra.mxu0 0.0
    %998 = vmatpush.msra.mxu0 0.0
    %999 = vmatpush.msra.mxu0 0.0
    %1000 = vmatpush.msra.mxu0 0.0
    %1001 = vmatpush.msra.mxu0 0.0
    %1002 = vmatpush.msra.mxu0 0.0
    %1003 = vmatpush.msra.mxu0 0.0
    %1004 = vmatpush.msra.mxu0 0.0
    %1005 = vmatpush.msra.mxu0 0.0
    %1006 = vmatpush.msra.mxu0 0.0
    %1007 = vmatpush.msra.mxu0 %v890
    %1008 = vmatpush.msra.mxu0 %v886
    %1009 = vmatpush.msra.mxu0 %v882
    %1010 = vmatpush.msra.mxu0 %v878
    %1011 = vmatmul.f32.gmra.mxu0 %v897
    %v1012 = vpop.f32.mrf.mxu0
    %v1013 = vadd.f32 0.0, %v1012
    %1014 = vmatmul.f32.gmra.mxu0 %v900
    %v1015 = vpop.f32.mrf.mxu0
    %v1016 = vadd.f32 0.0, %v1015
    %1017 = vmatmul.f32.gmra.mxu0 %v903
    %v1018 = vpop.f32.mrf.mxu0
    %v1019 = vadd.f32 0.0, %v1018
    %1020 = vmatmul.f32.gmra.mxu0 %v906
    %v1021 = vpop.f32.mrf.mxu0
    %v1022 = vadd.f32 0.0, %v1021
    %1023 = vdwg.mxu0
    %v1024 = vadd.f32 %v802, %v926
    %v1025 = vadd.f32 %v802, %v955
    %v1026 = vadd.f32 %v802, %v984
    %v1027 = vadd.f32 %v802, %v1013
    %v1028 = vadd.f32 %v806, %v929
    %v1029 = vadd.f32 %v806, %v958
    %v1030 = vadd.f32 %v806, %v987
    %v1031 = vadd.f32 %v806, %v1016
    %v1032 = vadd.f32 %v810, %v932
    %v1033 = vadd.f32 %v810, %v961
    %v1034 = vadd.f32 %v810, %v990
    %v1035 = vadd.f32 %v810, %v1019
    %v1036 = vadd.f32 %v814, %v935
    %v1037 = vadd.f32 %v814, %v964
    %v1038 = vadd.f32 %v814, %v993
    %v1039 = vadd.f32 %v814, %v1022
    %1040 = vrot.lane.b32.xlu0 %v148, 33
    %v1041 = vpop.permute.xlu0 %1040
    %1042 = vrot.lane.b32.xlu0 %v151, 33
    %v1043 = vpop.permute.xlu0 %1042
    %1044 = vrot.lane.b32.xlu0 %v154, 33
    %v1045 = vpop.permute.xlu0 %1044
    %1046 = vrot.lane.b32.xlu0 %v157, 33
    %v1047 = vpop.permute.xlu0 %1046
    %1048 = vrot.lane.b32.xlu0 %v183, 33
    %v1049 = vpop.permute.xlu0 %1048
    %1050 = vrot.lane.b32.xlu0 %v186, 33
    %v1051 = vpop.permute.xlu0 %1050
    %1052 = vrot.lane.b32.xlu0 %v189, 33
    %v1053 = vpop.permute.xlu0 %1052
    %1054 = vrot.lane.b32.xlu0 %v192, 33
    %v1055 = vpop.permute.xlu0 %1054
    %1056 = vrot.lane.b32.xlu0 %v218, 33
    %v1057 = vpop.permute.xlu0 %1056
    %1058 = vrot.lane.b32.xlu0 %v221, 33
    %v1059 = vpop.permute.xlu0 %1058
    %1060 = vrot.lane.b32.xlu0 %v224, 33
    %v1061 = vpop.permute.xlu0 %1060
    %1062 = vrot.lane.b32.xlu0 %v227, 33
    %v1063 = vpop.permute.xlu0 %1062
    %1064 = vrot.lane.b32.xlu0 %v253, 33
    %v1065 = vpop.permute.xlu0 %1064
    %1066 = vrot.lane.b32.xlu0 %v256, 33
    %v1067 = vpop.permute.xlu0 %1066
    %1068 = vrot.lane.b32.xlu0 %v259, 33
    %v1069 = vpop.permute.xlu0 %1068
    %1070 = vrot.lane.b32.xlu0 %v262, 33
    %v1071 = vpop.permute.xlu0 %1070
    %vm1072 = vcmp.lt.s32.totalorder %v284, 33
    %v1073 = vsel %vm1072, %v1057, %v1065
    %v1074 = vsel %vm1072, %v1059, %v1067
    %v1075 = vsel %vm1072, %v1061, %v1069
    %v1076 = vsel %vm1072, %v1063, %v1071
    %v1077 = vsel %vm1072, %v1049, %v1057
    %v1078 = vsel %vm1072, %v1051, %v1059
    %v1079 = vsel %vm1072, %v1053, %v1061
    %v1080 = vsel %vm1072, %v1055, %v1063
    %v1081 = vsel %vm1072, %v1041, %v1049
    %v1082 = vsel %vm1072, %v1043, %v1051
    %v1083 = vsel %vm1072, %v1045, %v1053
    %v1084 = vsel %vm1072, %v1047, %v1055
    %v1085 = vsel %vm1072, %v1065, %v1041
    %v1086 = vsel %vm1072, %v1067, %v1043
    %v1087 = vsel %vm1072, %v1069, %v1045
    %v1088 = vsel %vm1072, %v1071, %v1047
    %s1089 = scalar_lea.vmem %s4, 1
    %v1090 = vld [vmem:[%s1089] ss:$8 sm:$0xf]
    %v1092 = vperm.slane %v1090, 0
    %v1093 = vperm.slane %v1090, 1
    %v1094 = vperm.slane %v1090, 2
    %v1095 = vperm.slane %v1090, 3
    %v1100 = vmul.f32 %v1085, %v1092
    %v1101 = vmul.f32 %v1081, %v1093
    %v1102 = vmul.f32 %v1077, %v1094
    %v1103 = vmul.f32 %v1073, %v1095
    %v1104 = vmul.f32 %v1086, %v1092
    %v1105 = vmul.f32 %v1082, %v1093
    %v1106 = vmul.f32 %v1078, %v1094
    %v1107 = vmul.f32 %v1074, %v1095
    %v1108 = vmul.f32 %v1087, %v1092
    %v1109 = vmul.f32 %v1083, %v1093
    %v1110 = vmul.f32 %v1079, %v1094
    %v1111 = vmul.f32 %v1075, %v1095
    %v1112 = vmul.f32 %v1088, %v1092
    %v1113 = vmul.f32 %v1084, %v1093
    %v1114 = vmul.f32 %v1080, %v1094
    %v1115 = vmul.f32 %v1076, %v1095
    %s1116 = scalar_lea.vmem [#allocation5], 32
    %v1117 = vld [vmem:[%s1116] sm:$0xff]
    %v1118 = vld [vmem:[%s1116 + $0x8] sm:$0xff]
    %v1119 = vld [vmem:[%s1116 + $0x10] sm:$0xff]
    %v1120 = vld [vmem:[%s1116 + $0x18] sm:$0xff]
    %v1122 = vsel %vm895, %v1117, 0
    %v1125 = vsel %vm895, %v1118, 0
    %v1128 = vsel %vm895, %v1119, 0
    %v1131 = vsel %vm895, %v1120, 0
    %1133 = vmatpush.msra.mxu0 0.0
    %1134 = vmatpush.msra.mxu0 0.0
    %1135 = vmatpush.msra.mxu0 0.0
    %1136 = vmatpush.msra.mxu0 0.0
    %1137 = vmatpush.msra.mxu0 0.0
    %1138 = vmatpush.msra.mxu0 0.0
    %1139 = vmatpush.msra.mxu0 0.0
    %1140 = vmatpush.msra.mxu0 0.0
    %1141 = vmatpush.msra.mxu0 0.0
    %1142 = vmatpush.msra.mxu0 0.0
    %1143 = vmatpush.msra.mxu0 0.0
    %1144 = vmatpush.msra.mxu0 0.0
    %1145 = vmatpush.msra.mxu0 %v1112
    %1146 = vmatpush.msra.mxu0 %v1108
    %1147 = vmatpush.msra.mxu0 %v1104
    %1148 = vmatpush.msra.mxu0 %v1100
    %1149 = vmatmul.f32.gmra.mxu0 %v1122
    %v1150 = vpop.f32.mrf.mxu0
    %v1151 = vadd.f32 0.0, %v1150
    %1152 = vmatmul.f32.gmra.mxu0 %v1125
    %v1153 = vpop.f32.mrf.mxu0
    %v1154 = vadd.f32 0.0, %v1153
    %1155 = vmatmul.f32.gmra.mxu0 %v1128
    %v1156 = vpop.f32.mrf.mxu0
    %v1157 = vadd.f32 0.0, %v1156
    %1158 = vmatmul.f32.gmra.mxu0 %v1131
    %v1159 = vpop.f32.mrf.mxu0
    %v1160 = vadd.f32 0.0, %v1159
    %1161 = vdwg.mxu0
    %1162 = vmatpush.msra.mxu0 0.0
    %1163 = vmatpush.msra.mxu0 0.0
    %1164 = vmatpush.msra.mxu0 0.0
    %1165 = vmatpush.msra.mxu0 0.0
    %1166 = vmatpush.msra.mxu0 0.0
    %1167 = vmatpush.msra.mxu0 0.0
    %1168 = vmatpush.msra.mxu0 0.0
    %1169 = vmatpush.msra.mxu0 0.0
    %1170 = vmatpush.msra.mxu0 0.0
    %1171 = vmatpush.msra.mxu0 0.0
    %1172 = vmatpush.msra.mxu0 0.0
    %1173 = vmatpush.msra.mxu0 0.0
    %1174 = vmatpush.msra.mxu0 %v1113
    %1175 = vmatpush.msra.mxu0 %v1109
    %1176 = vmatpush.msra.mxu0 %v1105
    %1177 = vmatpush.msra.mxu0 %v1101
    %1178 = vmatmul.f32.gmra.mxu0 %v1122
    %v1179 = vpop.f32.mrf.mxu0
    %v1180 = vadd.f32 0.0, %v1179
    %1181 = vmatmul.f32.gmra.mxu0 %v1125
    %v1182 = vpop.f32.mrf.mxu0
    %v1183 = vadd.f32 0.0, %v1182
    %1184 = vmatmul.f32.gmra.mxu0 %v1128
    %v1185 = vpop.f32.mrf.mxu0
    %v1186 = vadd.f32 0.0, %v1185
    %1187 = vmatmul.f32.gmra.mxu0 %v1131
    %v1188 = vpop.f32.mrf.mxu0
    %v1189 = vadd.f32 0.0, %v1188
    %1190 = vdwg.mxu0
    %1191 = vmatpush.msra.mxu0 0.0
    %1192 = vmatpush.msra.mxu0 0.0
    %1193 = vmatpush.msra.mxu0 0.0
    %1194 = vmatpush.msra.mxu0 0.0
    %1195 = vmatpush.msra.mxu0 0.0
    %1196 = vmatpush.msra.mxu0 0.0
    %1197 = vmatpush.msra.mxu0 0.0
    %1198 = vmatpush.msra.mxu0 0.0
    %1199 = vmatpush.msra.mxu0 0.0
    %1200 = vmatpush.msra.mxu0 0.0
    %1201 = vmatpush.msra.mxu0 0.0
    %1202 = vmatpush.msra.mxu0 0.0
    %1203 = vmatpush.msra.mxu0 %v1114
    %1204 = vmatpush.msra.mxu0 %v1110
    %1205 = vmatpush.msra.mxu0 %v1106
    %1206 = vmatpush.msra.mxu0 %v1102
    %1207 = vmatmul.f32.gmra.mxu0 %v1122
    %v1208 = vpop.f32.mrf.mxu0
    %v1209 = vadd.f32 0.0, %v1208
    %1210 = vmatmul.f32.gmra.mxu0 %v1125
    %v1211 = vpop.f32.mrf.mxu0
    %v1212 = vadd.f32 0.0, %v1211
    %1213 = vmatmul.f32.gmra.mxu0 %v1128
    %v1214 = vpop.f32.mrf.mxu0
    %v1215 = vadd.f32 0.0, %v1214
    %1216 = vmatmul.f32.gmra.mxu0 %v1131
    %v1217 = vpop.f32.mrf.mxu0
    %v1218 = vadd.f32 0.0, %v1217
    %1219 = vdwg.mxu0
    %1220 = vmatpush.msra.mxu0 0.0
    %1221 = vmatpush.msra.mxu0 0.0
    %1222 = vmatpush.msra.mxu0 0.0
    %1223 = vmatpush.msra.mxu0 0.0
    %1224 = vmatpush.msra.mxu0 0.0
    %1225 = vmatpush.msra.mxu0 0.0
    %1226 = vmatpush.msra.mxu0 0.0
    %1227 = vmatpush.msra.mxu0 0.0
    %1228 = vmatpush.msra.mxu0 0.0
    %1229 = vmatpush.msra.mxu0 0.0
    %1230 = vmatpush.msra.mxu0 0.0
    %1231 = vmatpush.msra.mxu0 0.0
    %1232 = vmatpush.msra.mxu0 %v1115
    %1233 = vmatpush.msra.mxu0 %v1111
    %1234 = vmatpush.msra.mxu0 %v1107
    %1235 = vmatpush.msra.mxu0 %v1103
    %1236 = vmatmul.f32.gmra.mxu0 %v1122
    %v1237 = vpop.f32.mrf.mxu0
    %v1238 = vadd.f32 0.0, %v1237
    %1239 = vmatmul.f32.gmra.mxu0 %v1125
    %v1240 = vpop.f32.mrf.mxu0
    %v1241 = vadd.f32 0.0, %v1240
    %1242 = vmatmul.f32.gmra.mxu0 %v1128
    %v1243 = vpop.f32.mrf.mxu0
    %v1244 = vadd.f32 0.0, %v1243
    %1245 = vmatmul.f32.gmra.mxu0 %v1131
    %v1246 = vpop.f32.mrf.mxu0
    %v1247 = vadd.f32 0.0, %v1246
    %1248 = vdwg.mxu0
    %v1249 = vadd.f32 %v1024, %v1151
    %v1250 = vadd.f32 %v1025, %v1180
    %v1251 = vadd.f32 %v1026, %v1209
    %v1252 = vadd.f32 %v1027, %v1238
    %v1253 = vadd.f32 %v1028, %v1154
    %v1254 = vadd.f32 %v1029, %v1183
    %v1255 = vadd.f32 %v1030, %v1212
    %v1256 = vadd.f32 %v1031, %v1241
    %v1257 = vadd.f32 %v1032, %v1157
    %v1258 = vadd.f32 %v1033, %v1186
    %v1259 = vadd.f32 %v1034, %v1215
    %v1260 = vadd.f32 %v1035, %v1244
    %v1261 = vadd.f32 %v1036, %v1160
    %v1262 = vadd.f32 %v1037, %v1189
    %v1263 = vadd.f32 %v1038, %v1218
    %v1264 = vadd.f32 %v1039, %v1247
    %1265 = vrot.lane.b32.xlu0 %v148, 32
    %v1266 = vpop.permute.xlu0 %1265
    %1267 = vrot.lane.b32.xlu0 %v151, 32
    %v1268 = vpop.permute.xlu0 %1267
    %1269 = vrot.lane.b32.xlu0 %v154, 32
    %v1270 = vpop.permute.xlu0 %1269
    %1271 = vrot.lane.b32.xlu0 %v157, 32
    %v1272 = vpop.permute.xlu0 %1271
    %1273 = vrot.lane.b32.xlu0 %v183, 32
    %v1274 = vpop.permute.xlu0 %1273
    %1275 = vrot.lane.b32.xlu0 %v186, 32
    %v1276 = vpop.permute.xlu0 %1275
    %1277 = vrot.lane.b32.xlu0 %v189, 32
    %v1278 = vpop.permute.xlu0 %1277
    %1279 = vrot.lane.b32.xlu0 %v192, 32
    %v1280 = vpop.permute.xlu0 %1279
    %1281 = vrot.lane.b32.xlu0 %v218, 32
    %v1282 = vpop.permute.xlu0 %1281
    %1283 = vrot.lane.b32.xlu0 %v221, 32
    %v1284 = vpop.permute.xlu0 %1283
    %1285 = vrot.lane.b32.xlu0 %v224, 32
    %v1286 = vpop.permute.xlu0 %1285
    %1287 = vrot.lane.b32.xlu0 %v227, 32
    %v1288 = vpop.permute.xlu0 %1287
    %1289 = vrot.lane.b32.xlu0 %v253, 32
    %v1290 = vpop.permute.xlu0 %1289
    %1291 = vrot.lane.b32.xlu0 %v256, 32
    %v1292 = vpop.permute.xlu0 %1291
    %1293 = vrot.lane.b32.xlu0 %v259, 32
    %v1294 = vpop.permute.xlu0 %1293
    %1295 = vrot.lane.b32.xlu0 %v262, 32
    %v1296 = vpop.permute.xlu0 %1295
    %vm1297 = vcmp.lt.s32.totalorder %v284, 32
    %v1298 = vsel %vm1297, %v1282, %v1290
    %v1299 = vsel %vm1297, %v1284, %v1292
    %v1300 = vsel %vm1297, %v1286, %v1294
    %v1301 = vsel %vm1297, %v1288, %v1296
    %v1302 = vsel %vm1297, %v1274, %v1282
    %v1303 = vsel %vm1297, %v1276, %v1284
    %v1304 = vsel %vm1297, %v1278, %v1286
    %v1305 = vsel %vm1297, %v1280, %v1288
    %v1306 = vsel %vm1297, %v1266, %v1274
    %v1307 = vsel %vm1297, %v1268, %v1276
    %v1308 = vsel %vm1297, %v1270, %v1278
    %v1309 = vsel %vm1297, %v1272, %v1280
    %v1310 = vsel %vm1297, %v1290, %v1266
    %v1311 = vsel %vm1297, %v1292, %v1268
    %v1312 = vsel %vm1297, %v1294, %v1270
    %v1313 = vsel %vm1297, %v1296, %v1272
    %s1314 = scalar_lea.vmem %s4, 2
    %v1315 = vld [vmem:[%s1314] ss:$8 sm:$0xf]
    %v1317 = vperm.slane %v1315, 0
    %v1318 = vperm.slane %v1315, 1
    %v1319 = vperm.slane %v1315, 2
    %v1320 = vperm.slane %v1315, 3
    %v1325 = vmul.f32 %v1310, %v1317
    %v1326 = vmul.f32 %v1306, %v1318
    %v1327 = vmul.f32 %v1302, %v1319
    %v1328 = vmul.f32 %v1298, %v1320
    %v1329 = vmul.f32 %v1311, %v1317
    %v1330 = vmul.f32 %v1307, %v1318
    %v1331 = vmul.f32 %v1303, %v1319
    %v1332 = vmul.f32 %v1299, %v1320
    %v1333 = vmul.f32 %v1312, %v1317
    %v1334 = vmul.f32 %v1308, %v1318
    %v1335 = vmul.f32 %v1304, %v1319
    %v1336 = vmul.f32 %v1300, %v1320
    %v1337 = vmul.f32 %v1313, %v1317
    %v1338 = vmul.f32 %v1309, %v1318
    %v1339 = vmul.f32 %v1305, %v1319
    %v1340 = vmul.f32 %v1301, %v1320
    %s1341 = scalar_lea.vmem [#allocation5], 64
    %v1342 = vld [vmem:[%s1341] sm:$0xff]
    %v1343 = vld [vmem:[%s1341 + $0x8] sm:$0xff]
    %v1344 = vld [vmem:[%s1341 + $0x10] sm:$0xff]
    %v1345 = vld [vmem:[%s1341 + $0x18] sm:$0xff]
    %v1347 = vsel %vm895, %v1342, 0
    %v1350 = vsel %vm895, %v1343, 0
    %v1353 = vsel %vm895, %v1344, 0
    %v1356 = vsel %vm895, %v1345, 0
    %1358 = vmatpush.msra.mxu0 0.0
    %1359 = vmatpush.msra.mxu0 0.0
    %1360 = vmatpush.msra.mxu0 0.0
    %1361 = vmatpush.msra.mxu0 0.0
    %1362 = vmatpush.msra.mxu0 0.0
    %1363 = vmatpush.msra.mxu0 0.0
    %1364 = vmatpush.msra.mxu0 0.0
    %1365 = vmatpush.msra.mxu0 0.0
    %1366 = vmatpush.msra.mxu0 0.0
    %1367 = vmatpush.msra.mxu0 0.0
    %1368 = vmatpush.msra.mxu0 0.0
    %1369 = vmatpush.msra.mxu0 0.0
    %1370 = vmatpush.msra.mxu0 %v1337
    %1371 = vmatpush.msra.mxu0 %v1333
    %1372 = vmatpush.msra.mxu0 %v1329
    %1373 = vmatpush.msra.mxu0 %v1325
    %1374 = vmatmul.f32.gmra.mxu0 %v1347
    %v1375 = vpop.f32.mrf.mxu0
    %v1376 = vadd.f32 0.0, %v1375
    %1377 = vmatmul.f32.gmra.mxu0 %v1350
    %v1378 = vpop.f32.mrf.mxu0
    %v1379 = vadd.f32 0.0, %v1378
    %1380 = vmatmul.f32.gmra.mxu0 %v1353
    %v1381 = vpop.f32.mrf.mxu0
    %v1382 = vadd.f32 0.0, %v1381
    %1383 = vmatmul.f32.gmra.mxu0 %v1356
    %v1384 = vpop.f32.mrf.mxu0
    %v1385 = vadd.f32 0.0, %v1384
    %1386 = vdwg.mxu0
    %1387 = vmatpush.msra.mxu0 0.0
    %1388 = vmatpush.msra.mxu0 0.0
    %1389 = vmatpush.msra.mxu0 0.0
    %1390 = vmatpush.msra.mxu0 0.0
    %1391 = vmatpush.msra.mxu0 0.0
    %1392 = vmatpush.msra.mxu0 0.0
    %1393 = vmatpush.msra.mxu0 0.0
    %1394 = vmatpush.msra.mxu0 0.0
    %1395 = vmatpush.msra.mxu0 0.0
    %1396 = vmatpush.msra.mxu0 0.0
    %1397 = vmatpush.msra.mxu0 0.0
    %1398 = vmatpush.msra.mxu0 0.0
    %1399 = vmatpush.msra.mxu0 %v1338
    %1400 = vmatpush.msra.mxu0 %v1334
    %1401 = vmatpush.msra.mxu0 %v1330
    %1402 = vmatpush.msra.mxu0 %v1326
    %1403 = vmatmul.f32.gmra.mxu0 %v1347
    %v1404 = vpop.f32.mrf.mxu0
    %v1405 = vadd.f32 0.0, %v1404
    %1406 = vmatmul.f32.gmra.mxu0 %v1350
    %v1407 = vpop.f32.mrf.mxu0
    %v1408 = vadd.f32 0.0, %v1407
    %1409 = vmatmul.f32.gmra.mxu0 %v1353
    %v1410 = vpop.f32.mrf.mxu0
    %v1411 = vadd.f32 0.0, %v1410
    %1412 = vmatmul.f32.gmra.mxu0 %v1356
    %v1413 = vpop.f32.mrf.mxu0
    %v1414 = vadd.f32 0.0, %v1413
    %1415 = vdwg.mxu0
    %1416 = vmatpush.msra.mxu0 0.0
    %1417 = vmatpush.msra.mxu0 0.0
    %1418 = vmatpush.msra.mxu0 0.0
    %1419 = vmatpush.msra.mxu0 0.0
    %1420 = vmatpush.msra.mxu0 0.0
    %1421 = vmatpush.msra.mxu0 0.0
    %1422 = vmatpush.msra.mxu0 0.0
    %1423 = vmatpush.msra.mxu0 0.0
    %1424 = vmatpush.msra.mxu0 0.0
    %1425 = vmatpush.msra.mxu0 0.0
    %1426 = vmatpush.msra.mxu0 0.0
    %1427 = vmatpush.msra.mxu0 0.0
    %1428 = vmatpush.msra.mxu0 %v1339
    %1429 = vmatpush.msra.mxu0 %v1335
    %1430 = vmatpush.msra.mxu0 %v1331
    %1431 = vmatpush.msra.mxu0 %v1327
    %1432 = vmatmul.f32.gmra.mxu0 %v1347
    %v1433 = vpop.f32.mrf.mxu0
    %v1434 = vadd.f32 0.0, %v1433
    %1435 = vmatmul.f32.gmra.mxu0 %v1350
    %v1436 = vpop.f32.mrf.mxu0
    %v1437 = vadd.f32 0.0, %v1436
    %1438 = vmatmul.f32.gmra.mxu0 %v1353
    %v1439 = vpop.f32.mrf.mxu0
    %v1440 = vadd.f32 0.0, %v1439
    %1441 = vmatmul.f32.gmra.mxu0 %v1356
    %v1442 = vpop.f32.mrf.mxu0
    %v1443 = vadd.f32 0.0, %v1442
    %1444 = vdwg.mxu0
    %1445 = vmatpush.msra.mxu0 0.0
    %1446 = vmatpush.msra.mxu0 0.0
    %1447 = vmatpush.msra.mxu0 0.0
    %1448 = vmatpush.msra.mxu0 0.0
    %1449 = vmatpush.msra.mxu0 0.0
    %1450 = vmatpush.msra.mxu0 0.0
    %1451 = vmatpush.msra.mxu0 0.0
    %1452 = vmatpush.msra.mxu0 0.0
    %1453 = vmatpush.msra.mxu0 0.0
    %1454 = vmatpush.msra.mxu0 0.0
    %1455 = vmatpush.msra.mxu0 0.0
    %1456 = vmatpush.msra.mxu0 0.0
    %1457 = vmatpush.msra.mxu0 %v1340
    %1458 = vmatpush.msra.mxu0 %v1336
    %1459 = vmatpush.msra.mxu0 %v1332
    %1460 = vmatpush.msra.mxu0 %v1328
    %1461 = vmatmul.f32.gmra.mxu0 %v1347
    %v1462 = vpop.f32.mrf.mxu0
    %v1463 = vadd.f32 0.0, %v1462
    %1464 = vmatmul.f32.gmra.mxu0 %v1350
    %v1465 = vpop.f32.mrf.mxu0
    %v1466 = vadd.f32 0.0, %v1465
    %1467 = vmatmul.f32.gmra.mxu0 %v1353
    %v1468 = vpop.f32.mrf.mxu0
    %v1469 = vadd.f32 0.0, %v1468
    %1470 = vmatmul.f32.gmra.mxu0 %v1356
    %v1471 = vpop.f32.mrf.mxu0
    %v1472 = vadd.f32 0.0, %v1471
    %1473 = vdwg.mxu0
    %v1474 = vadd.f32 %v1249, %v1376
    %v1475 = vadd.f32 %v1250, %v1405
    %v1476 = vadd.f32 %v1251, %v1434
    %v1477 = vadd.f32 %v1252, %v1463
    %v1478 = vadd.f32 %v1253, %v1379
    %v1479 = vadd.f32 %v1254, %v1408
    %v1480 = vadd.f32 %v1255, %v1437
    %v1481 = vadd.f32 %v1256, %v1466
    %v1482 = vadd.f32 %v1257, %v1382
    %v1483 = vadd.f32 %v1258, %v1411
    %v1484 = vadd.f32 %v1259, %v1440
    %v1485 = vadd.f32 %v1260, %v1469
    %v1486 = vadd.f32 %v1261, %v1385
    %v1487 = vadd.f32 %v1262, %v1414
    %v1488 = vadd.f32 %v1263, %v1443
    %v1489 = vadd.f32 %v1264, %v1472
    %1490 = vrot.lane.b32.xlu0 %v148, 31
    %v1491 = vpop.permute.xlu0 %1490
    %1492 = vrot.lane.b32.xlu0 %v151, 31
    %v1493 = vpop.permute.xlu0 %1492
    %1494 = vrot.lane.b32.xlu0 %v154, 31
    %v1495 = vpop.permute.xlu0 %1494
    %1496 = vrot.lane.b32.xlu0 %v157, 31
    %v1497 = vpop.permute.xlu0 %1496
    %1498 = vrot.lane.b32.xlu0 %v183, 31
    %v1499 = vpop.permute.xlu0 %1498
    %1500 = vrot.lane.b32.xlu0 %v186, 31
    %v1501 = vpop.permute.xlu0 %1500
    %1502 = vrot.lane.b32.xlu0 %v189, 31
    %v1503 = vpop.permute.xlu0 %1502
    %1504 = vrot.lane.b32.xlu0 %v192, 31
    %v1505 = vpop.permute.xlu0 %1504
    %1506 = vrot.lane.b32.xlu0 %v218, 31
    %v1507 = vpop.permute.xlu0 %1506
    %1508 = vrot.lane.b32.xlu0 %v221, 31
    %v1509 = vpop.permute.xlu0 %1508
    %1510 = vrot.lane.b32.xlu0 %v224, 31
    %v1511 = vpop.permute.xlu0 %1510
    %1512 = vrot.lane.b32.xlu0 %v227, 31
    %v1513 = vpop.permute.xlu0 %1512
    %1514 = vrot.lane.b32.xlu0 %v253, 31
    %v1515 = vpop.permute.xlu0 %1514
    %1516 = vrot.lane.b32.xlu0 %v256, 31
    %v1517 = vpop.permute.xlu0 %1516
    %1518 = vrot.lane.b32.xlu0 %v259, 31
    %v1519 = vpop.permute.xlu0 %1518
    %1520 = vrot.lane.b32.xlu0 %v262, 31
    %v1521 = vpop.permute.xlu0 %1520
    %vm1522 = vcmp.lt.s32.totalorder %v284, 31
    %v1523 = vsel %vm1522, %v1507, %v1515
    %v1524 = vsel %vm1522, %v1509, %v1517
    %v1525 = vsel %vm1522, %v1511, %v1519
    %v1526 = vsel %vm1522, %v1513, %v1521
    %v1527 = vsel %vm1522, %v1499, %v1507
    %v1528 = vsel %vm1522, %v1501, %v1509
    %v1529 = vsel %vm1522, %v1503, %v1511
    %v1530 = vsel %vm1522, %v1505, %v1513
    %v1531 = vsel %vm1522, %v1491, %v1499
    %v1532 = vsel %vm1522, %v1493, %v1501
    %v1533 = vsel %vm1522, %v1495, %v1503
    %v1534 = vsel %vm1522, %v1497, %v1505
    %v1535 = vsel %vm1522, %v1515, %v1491
    %v1536 = vsel %vm1522, %v1517, %v1493
    %v1537 = vsel %vm1522, %v1519, %v1495
    %v1538 = vsel %vm1522, %v1521, %v1497
    %s1539 = scalar_lea.vmem %s4, 3
    %v1540 = vld [vmem:[%s1539] ss:$8 sm:$0xf]
    %v1542 = vperm.slane %v1540, 0
    %v1543 = vperm.slane %v1540, 1
    %v1544 = vperm.slane %v1540, 2
    %v1545 = vperm.slane %v1540, 3
    %v1550 = vmul.f32 %v1535, %v1542
    %v1551 = vmul.f32 %v1531, %v1543
    %v1552 = vmul.f32 %v1527, %v1544
    %v1553 = vmul.f32 %v1523, %v1545
    %v1554 = vmul.f32 %v1536, %v1542
    %v1555 = vmul.f32 %v1532, %v1543
    %v1556 = vmul.f32 %v1528, %v1544
    %v1557 = vmul.f32 %v1524, %v1545
    %v1558 = vmul.f32 %v1537, %v1542
    %v1559 = vmul.f32 %v1533, %v1543
    %v1560 = vmul.f32 %v1529, %v1544
    %v1561 = vmul.f32 %v1525, %v1545
    %v1562 = vmul.f32 %v1538, %v1542
    %v1563 = vmul.f32 %v1534, %v1543
    %v1564 = vmul.f32 %v1530, %v1544
    %v1565 = vmul.f32 %v1526, %v1545
    %s1566 = scalar_lea.vmem [#allocation5], 96
    %v1567 = vld [vmem:[%s1566] sm:$0xff]
    %v1568 = vld [vmem:[%s1566 + $0x8] sm:$0xff]
    %v1569 = vld [vmem:[%s1566 + $0x10] sm:$0xff]
    %v1570 = vld [vmem:[%s1566 + $0x18] sm:$0xff]
    %v1572 = vsel %vm895, %v1567, 0
    %v1575 = vsel %vm895, %v1568, 0
    %v1578 = vsel %vm895, %v1569, 0
    %v1581 = vsel %vm895, %v1570, 0
    %1583 = vmatpush.msra.mxu0 0.0
    %1584 = vmatpush.msra.mxu0 0.0
    %1585 = vmatpush.msra.mxu0 0.0
    %1586 = vmatpush.msra.mxu0 0.0
    %1587 = vmatpush.msra.mxu0 0.0
    %1588 = vmatpush.msra.mxu0 0.0
    %1589 = vmatpush.msra.mxu0 0.0
    %1590 = vmatpush.msra.mxu0 0.0
    %1591 = vmatpush.msra.mxu0 0.0
    %1592 = vmatpush.msra.mxu0 0.0
    %1593 = vmatpush.msra.mxu0 0.0
    %1594 = vmatpush.msra.mxu0 0.0
    %1595 = vmatpush.msra.mxu0 %v1562
    %1596 = vmatpush.msra.mxu0 %v1558
    %1597 = vmatpush.msra.mxu0 %v1554
    %1598 = vmatpush.msra.mxu0 %v1550
    %1599 = vmatmul.f32.gmra.mxu0 %v1572
    %v1600 = vpop.f32.mrf.mxu0
    %v1601 = vadd.f32 0.0, %v1600
    %1602 = vmatmul.f32.gmra.mxu0 %v1575
    %v1603 = vpop.f32.mrf.mxu0
    %v1604 = vadd.f32 0.0, %v1603
    %1605 = vmatmul.f32.gmra.mxu0 %v1578
    %v1606 = vpop.f32.mrf.mxu0
    %v1607 = vadd.f32 0.0, %v1606
    %1608 = vmatmul.f32.gmra.mxu0 %v1581
    %v1609 = vpop.f32.mrf.mxu0
    %v1610 = vadd.f32 0.0, %v1609
    %1611 = vdwg.mxu0
    %1612 = vmatpush.msra.mxu0 0.0
    %1613 = vmatpush.msra.mxu0 0.0
    %1614 = vmatpush.msra.mxu0 0.0
    %1615 = vmatpush.msra.mxu0 0.0
    %1616 = vmatpush.msra.mxu0 0.0
    %1617 = vmatpush.msra.mxu0 0.0
    %1618 = vmatpush.msra.mxu0 0.0
    %1619 = vmatpush.msra.mxu0 0.0
    %1620 = vmatpush.msra.mxu0 0.0
    %1621 = vmatpush.msra.mxu0 0.0
    %1622 = vmatpush.msra.mxu0 0.0
    %1623 = vmatpush.msra.mxu0 0.0
    %1624 = vmatpush.msra.mxu0 %v1563
    %1625 = vmatpush.msra.mxu0 %v1559
    %1626 = vmatpush.msra.mxu0 %v1555
    %1627 = vmatpush.msra.mxu0 %v1551
    %1628 = vmatmul.f32.gmra.mxu0 %v1572
    %v1629 = vpop.f32.mrf.mxu0
    %v1630 = vadd.f32 0.0, %v1629
    %1631 = vmatmul.f32.gmra.mxu0 %v1575
    %v1632 = vpop.f32.mrf.mxu0
    %v1633 = vadd.f32 0.0, %v1632
    %1634 = vmatmul.f32.gmra.mxu0 %v1578
    %v1635 = vpop.f32.mrf.mxu0
    %v1636 = vadd.f32 0.0, %v1635
    %1637 = vmatmul.f32.gmra.mxu0 %v1581
    %v1638 = vpop.f32.mrf.mxu0
    %v1639 = vadd.f32 0.0, %v1638
    %1640 = vdwg.mxu0
    %1641 = vmatpush.msra.mxu0 0.0
    %1642 = vmatpush.msra.mxu0 0.0
    %1643 = vmatpush.msra.mxu0 0.0
    %1644 = vmatpush.msra.mxu0 0.0
    %1645 = vmatpush.msra.mxu0 0.0
    %1646 = vmatpush.msra.mxu0 0.0
    %1647 = vmatpush.msra.mxu0 0.0
    %1648 = vmatpush.msra.mxu0 0.0
    %1649 = vmatpush.msra.mxu0 0.0
    %1650 = vmatpush.msra.mxu0 0.0
    %1651 = vmatpush.msra.mxu0 0.0
    %1652 = vmatpush.msra.mxu0 0.0
    %1653 = vmatpush.msra.mxu0 %v1564
    %1654 = vmatpush.msra.mxu0 %v1560
    %1655 = vmatpush.msra.mxu0 %v1556
    %1656 = vmatpush.msra.mxu0 %v1552
    %1657 = vmatmul.f32.gmra.mxu0 %v1572
    %v1658 = vpop.f32.mrf.mxu0
    %v1659 = vadd.f32 0.0, %v1658
    %1660 = vmatmul.f32.gmra.mxu0 %v1575
    %v1661 = vpop.f32.mrf.mxu0
    %v1662 = vadd.f32 0.0, %v1661
    %1663 = vmatmul.f32.gmra.mxu0 %v1578
    %v1664 = vpop.f32.mrf.mxu0
    %v1665 = vadd.f32 0.0, %v1664
    %1666 = vmatmul.f32.gmra.mxu0 %v1581
    %v1667 = vpop.f32.mrf.mxu0
    %v1668 = vadd.f32 0.0, %v1667
    %1669 = vdwg.mxu0
    %1670 = vmatpush.msra.mxu0 0.0
    %1671 = vmatpush.msra.mxu0 0.0
    %1672 = vmatpush.msra.mxu0 0.0
    %1673 = vmatpush.msra.mxu0 0.0
    %1674 = vmatpush.msra.mxu0 0.0
    %1675 = vmatpush.msra.mxu0 0.0
    %1676 = vmatpush.msra.mxu0 0.0
    %1677 = vmatpush.msra.mxu0 0.0
    %1678 = vmatpush.msra.mxu0 0.0
    %1679 = vmatpush.msra.mxu0 0.0
    %1680 = vmatpush.msra.mxu0 0.0
    %1681 = vmatpush.msra.mxu0 0.0
    %1682 = vmatpush.msra.mxu0 %v1565
    %1683 = vmatpush.msra.mxu0 %v1561
    %1684 = vmatpush.msra.mxu0 %v1557
    %1685 = vmatpush.msra.mxu0 %v1553
    %1686 = vmatmul.f32.gmra.mxu0 %v1572
    %v1687 = vpop.f32.mrf.mxu0
    %v1688 = vadd.f32 0.0, %v1687
    %1689 = vmatmul.f32.gmra.mxu0 %v1575
    %v1690 = vpop.f32.mrf.mxu0
    %v1691 = vadd.f32 0.0, %v1690
    %1692 = vmatmul.f32.gmra.mxu0 %v1578
    %v1693 = vpop.f32.mrf.mxu0
    %v1694 = vadd.f32 0.0, %v1693
    %1695 = vmatmul.f32.gmra.mxu0 %v1581
    %v1696 = vpop.f32.mrf.mxu0
    %v1697 = vadd.f32 0.0, %v1696
    %1698 = vdwg.mxu0
    %v1699 = vadd.f32 %v1474, %v1601
    %v1700 = vadd.f32 %v1475, %v1630
    %v1701 = vadd.f32 %v1476, %v1659
    %v1702 = vadd.f32 %v1477, %v1688
    %v1703 = vadd.f32 %v1478, %v1604
    %v1704 = vadd.f32 %v1479, %v1633
    %v1705 = vadd.f32 %v1480, %v1662
    %v1706 = vadd.f32 %v1481, %v1691
    %v1707 = vadd.f32 %v1482, %v1607
    %v1708 = vadd.f32 %v1483, %v1636
    %v1709 = vadd.f32 %v1484, %v1665
    %v1710 = vadd.f32 %v1485, %v1694
    %v1711 = vadd.f32 %v1486, %v1610
    %v1712 = vadd.f32 %v1487, %v1639
    %v1713 = vadd.f32 %v1488, %v1668
    %v1714 = vadd.f32 %v1489, %v1697
    %1715 = vrot.lane.b32.xlu0 %v148, 30
    %v1716 = vpop.permute.xlu0 %1715
    %1717 = vrot.lane.b32.xlu0 %v151, 30
    %v1718 = vpop.permute.xlu0 %1717
    %1719 = vrot.lane.b32.xlu0 %v154, 30
    %v1720 = vpop.permute.xlu0 %1719
    %1721 = vrot.lane.b32.xlu0 %v157, 30
    %v1722 = vpop.permute.xlu0 %1721
    %1723 = vrot.lane.b32.xlu0 %v183, 30
    %v1724 = vpop.permute.xlu0 %1723
    %1725 = vrot.lane.b32.xlu0 %v186, 30
    %v1726 = vpop.permute.xlu0 %1725
    %1727 = vrot.lane.b32.xlu0 %v189, 30
    %v1728 = vpop.permute.xlu0 %1727
    %1729 = vrot.lane.b32.xlu0 %v192, 30
    %v1730 = vpop.permute.xlu0 %1729
    %1731 = vrot.lane.b32.xlu0 %v218, 30
    %v1732 = vpop.permute.xlu0 %1731
    %1733 = vrot.lane.b32.xlu0 %v221, 30
    %v1734 = vpop.permute.xlu0 %1733
    %1735 = vrot.lane.b32.xlu0 %v224, 30
    %v1736 = vpop.permute.xlu0 %1735
    %1737 = vrot.lane.b32.xlu0 %v227, 30
    %v1738 = vpop.permute.xlu0 %1737
    %1739 = vrot.lane.b32.xlu0 %v253, 30
    %v1740 = vpop.permute.xlu0 %1739
    %1741 = vrot.lane.b32.xlu0 %v256, 30
    %v1742 = vpop.permute.xlu0 %1741
    %1743 = vrot.lane.b32.xlu0 %v259, 30
    %v1744 = vpop.permute.xlu0 %1743
    %1745 = vrot.lane.b32.xlu0 %v262, 30
    %v1746 = vpop.permute.xlu0 %1745
    %vm1747 = vcmp.lt.s32.totalorder %v284, 30
    %v1748 = vsel %vm1747, %v1732, %v1740
    %v1749 = vsel %vm1747, %v1734, %v1742
    %v1750 = vsel %vm1747, %v1736, %v1744
    %v1751 = vsel %vm1747, %v1738, %v1746
    %v1752 = vsel %vm1747, %v1724, %v1732
    %v1753 = vsel %vm1747, %v1726, %v1734
    %v1754 = vsel %vm1747, %v1728, %v1736
    %v1755 = vsel %vm1747, %v1730, %v1738
    %v1756 = vsel %vm1747, %v1716, %v1724
    %v1757 = vsel %vm1747, %v1718, %v1726
    %v1758 = vsel %vm1747, %v1720, %v1728
    %v1759 = vsel %vm1747, %v1722, %v1730
    %v1760 = vsel %vm1747, %v1740, %v1716
    %v1761 = vsel %vm1747, %v1742, %v1718
    %v1762 = vsel %vm1747, %v1744, %v1720
    %v1763 = vsel %vm1747, %v1746, %v1722
    %s1764 = scalar_lea.vmem %s4, 4
    %v1765 = vld [vmem:[%s1764] ss:$8 sm:$0xf]
    %v1767 = vperm.slane %v1765, 0
    %v1768 = vperm.slane %v1765, 1
    %v1769 = vperm.slane %v1765, 2
    %v1770 = vperm.slane %v1765, 3
    %v1775 = vmul.f32 %v1760, %v1767
    %v1776 = vmul.f32 %v1756, %v1768
    %v1777 = vmul.f32 %v1752, %v1769
    %v1778 = vmul.f32 %v1748, %v1770
    %v1779 = vmul.f32 %v1761, %v1767
    %v1780 = vmul.f32 %v1757, %v1768
    %v1781 = vmul.f32 %v1753, %v1769
    %v1782 = vmul.f32 %v1749, %v1770
    %v1783 = vmul.f32 %v1762, %v1767
    %v1784 = vmul.f32 %v1758, %v1768
    %v1785 = vmul.f32 %v1754, %v1769
    %v1786 = vmul.f32 %v1750, %v1770
    %v1787 = vmul.f32 %v1763, %v1767
    %v1788 = vmul.f32 %v1759, %v1768
    %v1789 = vmul.f32 %v1755, %v1769
    %v1790 = vmul.f32 %v1751, %v1770
    %s1791 = scalar_lea.vmem [#allocation5], 128
    %v1792 = vld [vmem:[%s1791] sm:$0xff]
    %v1793 = vld [vmem:[%s1791 + $0x8] sm:$0xff]
    %v1794 = vld [vmem:[%s1791 + $0x10] sm:$0xff]
    %v1795 = vld [vmem:[%s1791 + $0x18] sm:$0xff]
    %v1797 = vsel %vm895, %v1792, 0
    %v1800 = vsel %vm895, %v1793, 0
    %v1803 = vsel %vm895, %v1794, 0
    %v1806 = vsel %vm895, %v1795, 0
    %1808 = vmatpush.msra.mxu0 0.0
    %1809 = vmatpush.msra.mxu0 0.0
    %1810 = vmatpush.msra.mxu0 0.0
    %1811 = vmatpush.msra.mxu0 0.0
    %1812 = vmatpush.msra.mxu0 0.0
    %1813 = vmatpush.msra.mxu0 0.0
    %1814 = vmatpush.msra.mxu0 0.0
    %1815 = vmatpush.msra.mxu0 0.0
    %1816 = vmatpush.msra.mxu0 0.0
    %1817 = vmatpush.msra.mxu0 0.0
    %1818 = vmatpush.msra.mxu0 0.0
    %1819 = vmatpush.msra.mxu0 0.0
    %1820 = vmatpush.msra.mxu0 %v1787
    %1821 = vmatpush.msra.mxu0 %v1783
    %1822 = vmatpush.msra.mxu0 %v1779
    %1823 = vmatpush.msra.mxu0 %v1775
    %1824 = vmatmul.f32.gmra.mxu0 %v1797
    %v1825 = vpop.f32.mrf.mxu0
    %v1826 = vadd.f32 0.0, %v1825
    %1827 = vmatmul.f32.gmra.mxu0 %v1800
    %v1828 = vpop.f32.mrf.mxu0
    %v1829 = vadd.f32 0.0, %v1828
    %1830 = vmatmul.f32.gmra.mxu0 %v1803
    %v1831 = vpop.f32.mrf.mxu0
    %v1832 = vadd.f32 0.0, %v1831
    %1833 = vmatmul.f32.gmra.mxu0 %v1806
    %v1834 = vpop.f32.mrf.mxu0
    %v1835 = vadd.f32 0.0, %v1834
    %1836 = vdwg.mxu0
    %1837 = vmatpush.msra.mxu0 0.0
    %1838 = vmatpush.msra.mxu0 0.0
    %1839 = vmatpush.msra.mxu0 0.0
    %1840 = vmatpush.msra.mxu0 0.0
    %1841 = vmatpush.msra.mxu0 0.0
    %1842 = vmatpush.msra.mxu0 0.0
    %1843 = vmatpush.msra.mxu0 0.0
    %1844 = vmatpush.msra.mxu0 0.0
    %1845 = vmatpush.msra.mxu0 0.0
    %1846 = vmatpush.msra.mxu0 0.0
    %1847 = vmatpush.msra.mxu0 0.0
    %1848 = vmatpush.msra.mxu0 0.0
    %1849 = vmatpush.msra.mxu0 %v1788
    %1850 = vmatpush.msra.mxu0 %v1784
    %1851 = vmatpush.msra.mxu0 %v1780
    %1852 = vmatpush.msra.mxu0 %v1776
    %1853 = vmatmul.f32.gmra.mxu0 %v1797
    %v1854 = vpop.f32.mrf.mxu0
    %v1855 = vadd.f32 0.0, %v1854
    %1856 = vmatmul.f32.gmra.mxu0 %v1800
    %v1857 = vpop.f32.mrf.mxu0
    %v1858 = vadd.f32 0.0, %v1857
    %1859 = vmatmul.f32.gmra.mxu0 %v1803
    %v1860 = vpop.f32.mrf.mxu0
    %v1861 = vadd.f32 0.0, %v1860
    %1862 = vmatmul.f32.gmra.mxu0 %v1806
    %v1863 = vpop.f32.mrf.mxu0
    %v1864 = vadd.f32 0.0, %v1863
    %1865 = vdwg.mxu0
    %1866 = vmatpush.msra.mxu0 0.0
    %1867 = vmatpush.msra.mxu0 0.0
    %1868 = vmatpush.msra.mxu0 0.0
    %1869 = vmatpush.msra.mxu0 0.0
    %1870 = vmatpush.msra.mxu0 0.0
    %1871 = vmatpush.msra.mxu0 0.0
    %1872 = vmatpush.msra.mxu0 0.0
    %1873 = vmatpush.msra.mxu0 0.0
    %1874 = vmatpush.msra.mxu0 0.0
    %1875 = vmatpush.msra.mxu0 0.0
    %1876 = vmatpush.msra.mxu0 0.0
    %1877 = vmatpush.msra.mxu0 0.0
    %1878 = vmatpush.msra.mxu0 %v1789
    %1879 = vmatpush.msra.mxu0 %v1785
    %1880 = vmatpush.msra.mxu0 %v1781
    %1881 = vmatpush.msra.mxu0 %v1777
    %1882 = vmatmul.f32.gmra.mxu0 %v1797
    %v1883 = vpop.f32.mrf.mxu0
    %v1884 = vadd.f32 0.0, %v1883
    %1885 = vmatmul.f32.gmra.mxu0 %v1800
    %v1886 = vpop.f32.mrf.mxu0
    %v1887 = vadd.f32 0.0, %v1886
    %1888 = vmatmul.f32.gmra.mxu0 %v1803
    %v1889 = vpop.f32.mrf.mxu0
    %v1890 = vadd.f32 0.0, %v1889
    %1891 = vmatmul.f32.gmra.mxu0 %v1806
    %v1892 = vpop.f32.mrf.mxu0
    %v1893 = vadd.f32 0.0, %v1892
    %1894 = vdwg.mxu0
    %1895 = vmatpush.msra.mxu0 0.0
    %1896 = vmatpush.msra.mxu0 0.0
    %1897 = vmatpush.msra.mxu0 0.0
    %1898 = vmatpush.msra.mxu0 0.0
    %1899 = vmatpush.msra.mxu0 0.0
    %1900 = vmatpush.msra.mxu0 0.0
    %1901 = vmatpush.msra.mxu0 0.0
    %1902 = vmatpush.msra.mxu0 0.0
    %1903 = vmatpush.msra.mxu0 0.0
    %1904 = vmatpush.msra.mxu0 0.0
    %1905 = vmatpush.msra.mxu0 0.0
    %1906 = vmatpush.msra.mxu0 0.0
    %1907 = vmatpush.msra.mxu0 %v1790
    %1908 = vmatpush.msra.mxu0 %v1786
    %1909 = vmatpush.msra.mxu0 %v1782
    %1910 = vmatpush.msra.mxu0 %v1778
    %1911 = vmatmul.f32.gmra.mxu0 %v1797
    %v1912 = vpop.f32.mrf.mxu0
    %v1913 = vadd.f32 0.0, %v1912
    %1914 = vmatmul.f32.gmra.mxu0 %v1800
    %v1915 = vpop.f32.mrf.mxu0
    %v1916 = vadd.f32 0.0, %v1915
    %1917 = vmatmul.f32.gmra.mxu0 %v1803
    %v1918 = vpop.f32.mrf.mxu0
    %v1919 = vadd.f32 0.0, %v1918
    %1920 = vmatmul.f32.gmra.mxu0 %v1806
    %v1921 = vpop.f32.mrf.mxu0
    %v1922 = vadd.f32 0.0, %v1921
    %1923 = vdwg.mxu0
    %v1924 = vadd.f32 %v1699, %v1826
    %v1925 = vadd.f32 %v1700, %v1855
    %v1926 = vadd.f32 %v1701, %v1884
    %v1927 = vadd.f32 %v1702, %v1913
    %v1928 = vadd.f32 %v1703, %v1829
    %v1929 = vadd.f32 %v1704, %v1858
    %v1930 = vadd.f32 %v1705, %v1887
    %v1931 = vadd.f32 %v1706, %v1916
    %v1932 = vadd.f32 %v1707, %v1832
    %v1933 = vadd.f32 %v1708, %v1861
    %v1934 = vadd.f32 %v1709, %v1890
    %v1935 = vadd.f32 %v1710, %v1919
    %v1936 = vadd.f32 %v1711, %v1835
    %v1937 = vadd.f32 %v1712, %v1864
    %v1938 = vadd.f32 %v1713, %v1893
    %v1939 = vadd.f32 %v1714, %v1922
    %1940 = vrot.lane.b32.xlu0 %v148, 18
    %v1941 = vpop.permute.xlu0 %1940
    %1942 = vrot.lane.b32.xlu0 %v151, 18
    %v1943 = vpop.permute.xlu0 %1942
    %1944 = vrot.lane.b32.xlu0 %v154, 18
    %v1945 = vpop.permute.xlu0 %1944
    %1946 = vrot.lane.b32.xlu0 %v157, 18
    %v1947 = vpop.permute.xlu0 %1946
    %1948 = vrot.lane.b32.xlu0 %v183, 18
    %v1949 = vpop.permute.xlu0 %1948
    %1950 = vrot.lane.b32.xlu0 %v186, 18
    %v1951 = vpop.permute.xlu0 %1950
    %1952 = vrot.lane.b32.xlu0 %v189, 18
    %v1953 = vpop.permute.xlu0 %1952
    %1954 = vrot.lane.b32.xlu0 %v192, 18
    %v1955 = vpop.permute.xlu0 %1954
    %1956 = vrot.lane.b32.xlu0 %v218, 18
    %v1957 = vpop.permute.xlu0 %1956
    %1958 = vrot.lane.b32.xlu0 %v221, 18
    %v1959 = vpop.permute.xlu0 %1958
    %1960 = vrot.lane.b32.xlu0 %v224, 18
    %v1961 = vpop.permute.xlu0 %1960
    %1962 = vrot.lane.b32.xlu0 %v227, 18
    %v1963 = vpop.permute.xlu0 %1962
    %1964 = vrot.lane.b32.xlu0 %v253, 18
    %v1965 = vpop.permute.xlu0 %1964
    %1966 = vrot.lane.b32.xlu0 %v256, 18
    %v1967 = vpop.permute.xlu0 %1966
    %1968 = vrot.lane.b32.xlu0 %v259, 18
    %v1969 = vpop.permute.xlu0 %1968
    %1970 = vrot.lane.b32.xlu0 %v262, 18
    %v1971 = vpop.permute.xlu0 %1970
    %vm1972 = vcmp.lt.s32.totalorder %v284, 18
    %v1973 = vsel %vm1972, %v1957, %v1965
    %v1974 = vsel %vm1972, %v1959, %v1967
    %v1975 = vsel %vm1972, %v1961, %v1969
    %v1976 = vsel %vm1972, %v1963, %v1971
    %v1977 = vsel %vm1972, %v1949, %v1957
    %v1978 = vsel %vm1972, %v1951, %v1959
    %v1979 = vsel %vm1972, %v1953, %v1961
    %v1980 = vsel %vm1972, %v1955, %v1963
    %v1981 = vsel %vm1972, %v1941, %v1949
    %v1982 = vsel %vm1972, %v1943, %v1951
    %v1983 = vsel %vm1972, %v1945, %v1953
    %v1984 = vsel %vm1972, %v1947, %v1955
    %v1985 = vsel %vm1972, %v1965, %v1941
    %v1986 = vsel %vm1972, %v1967, %v1943
    %v1987 = vsel %vm1972, %v1969, %v1945
    %v1988 = vsel %vm1972, %v1971, %v1947
    %s1989 = scalar_lea.vmem %s4, 5
    %v1990 = vld [vmem:[%s1989] ss:$8 sm:$0xf]
    %v1992 = vperm.slane %v1990, 0
    %v1993 = vperm.slane %v1990, 1
    %v1994 = vperm.slane %v1990, 2
    %v1995 = vperm.slane %v1990, 3
    %v2000 = vmul.f32 %v1985, %v1992
    %v2001 = vmul.f32 %v1981, %v1993
    %v2002 = vmul.f32 %v1977, %v1994
    %v2003 = vmul.f32 %v1973, %v1995
    %v2004 = vmul.f32 %v1986, %v1992
    %v2005 = vmul.f32 %v1982, %v1993
    %v2006 = vmul.f32 %v1978, %v1994
    %v2007 = vmul.f32 %v1974, %v1995
    %v2008 = vmul.f32 %v1987, %v1992
    %v2009 = vmul.f32 %v1983, %v1993
    %v2010 = vmul.f32 %v1979, %v1994
    %v2011 = vmul.f32 %v1975, %v1995
    %v2012 = vmul.f32 %v1988, %v1992
    %v2013 = vmul.f32 %v1984, %v1993
    %v2014 = vmul.f32 %v1980, %v1994
    %v2015 = vmul.f32 %v1976, %v1995
    %s2016 = scalar_lea.vmem [#allocation5], 160
    %v2017 = vld [vmem:[%s2016] sm:$0xff]
    %v2018 = vld [vmem:[%s2016 + $0x8] sm:$0xff]
    %v2019 = vld [vmem:[%s2016 + $0x10] sm:$0xff]
    %v2020 = vld [vmem:[%s2016 + $0x18] sm:$0xff]
    %v2022 = vsel %vm895, %v2017, 0
    %v2025 = vsel %vm895, %v2018, 0
    %v2028 = vsel %vm895, %v2019, 0
    %v2031 = vsel %vm895, %v2020, 0
    %2033 = vmatpush.msra.mxu0 0.0
    %2034 = vmatpush.msra.mxu0 0.0
    %2035 = vmatpush.msra.mxu0 0.0
    %2036 = vmatpush.msra.mxu0 0.0
    %2037 = vmatpush.msra.mxu0 0.0
    %2038 = vmatpush.msra.mxu0 0.0
    %2039 = vmatpush.msra.mxu0 0.0
    %2040 = vmatpush.msra.mxu0 0.0
    %2041 = vmatpush.msra.mxu0 0.0
    %2042 = vmatpush.msra.mxu0 0.0
    %2043 = vmatpush.msra.mxu0 0.0
    %2044 = vmatpush.msra.mxu0 0.0
    %2045 = vmatpush.msra.mxu0 %v2012
    %2046 = vmatpush.msra.mxu0 %v2008
    %2047 = vmatpush.msra.mxu0 %v2004
    %2048 = vmatpush.msra.mxu0 %v2000
    %2049 = vmatmul.f32.gmra.mxu0 %v2022
    %v2050 = vpop.f32.mrf.mxu0
    %v2051 = vadd.f32 0.0, %v2050
    %2052 = vmatmul.f32.gmra.mxu0 %v2025
    %v2053 = vpop.f32.mrf.mxu0
    %v2054 = vadd.f32 0.0, %v2053
    %2055 = vmatmul.f32.gmra.mxu0 %v2028
    %v2056 = vpop.f32.mrf.mxu0
    %v2057 = vadd.f32 0.0, %v2056
    %2058 = vmatmul.f32.gmra.mxu0 %v2031
    %v2059 = vpop.f32.mrf.mxu0
    %v2060 = vadd.f32 0.0, %v2059
    %2061 = vdwg.mxu0
    %2062 = vmatpush.msra.mxu0 0.0
    %2063 = vmatpush.msra.mxu0 0.0
    %2064 = vmatpush.msra.mxu0 0.0
    %2065 = vmatpush.msra.mxu0 0.0
    %2066 = vmatpush.msra.mxu0 0.0
    %2067 = vmatpush.msra.mxu0 0.0
    %2068 = vmatpush.msra.mxu0 0.0
    %2069 = vmatpush.msra.mxu0 0.0
    %2070 = vmatpush.msra.mxu0 0.0
    %2071 = vmatpush.msra.mxu0 0.0
    %2072 = vmatpush.msra.mxu0 0.0
    %2073 = vmatpush.msra.mxu0 0.0
    %2074 = vmatpush.msra.mxu0 %v2013
    %2075 = vmatpush.msra.mxu0 %v2009
    %2076 = vmatpush.msra.mxu0 %v2005
    %2077 = vmatpush.msra.mxu0 %v2001
    %2078 = vmatmul.f32.gmra.mxu0 %v2022
    %v2079 = vpop.f32.mrf.mxu0
    %v2080 = vadd.f32 0.0, %v2079
    %2081 = vmatmul.f32.gmra.mxu0 %v2025
    %v2082 = vpop.f32.mrf.mxu0
    %v2083 = vadd.f32 0.0, %v2082
    %2084 = vmatmul.f32.gmra.mxu0 %v2028
    %v2085 = vpop.f32.mrf.mxu0
    %v2086 = vadd.f32 0.0, %v2085
    %2087 = vmatmul.f32.gmra.mxu0 %v2031
    %v2088 = vpop.f32.mrf.mxu0
    %v2089 = vadd.f32 0.0, %v2088
    %2090 = vdwg.mxu0
    %2091 = vmatpush.msra.mxu0 0.0
    %2092 = vmatpush.msra.mxu0 0.0
    %2093 = vmatpush.msra.mxu0 0.0
    %2094 = vmatpush.msra.mxu0 0.0
    %2095 = vmatpush.msra.mxu0 0.0
    %2096 = vmatpush.msra.mxu0 0.0
    %2097 = vmatpush.msra.mxu0 0.0
    %2098 = vmatpush.msra.mxu0 0.0
    %2099 = vmatpush.msra.mxu0 0.0
    %2100 = vmatpush.msra.mxu0 0.0
    %2101 = vmatpush.msra.mxu0 0.0
    %2102 = vmatpush.msra.mxu0 0.0
    %2103 = vmatpush.msra.mxu0 %v2014
    %2104 = vmatpush.msra.mxu0 %v2010
    %2105 = vmatpush.msra.mxu0 %v2006
    %2106 = vmatpush.msra.mxu0 %v2002
    %2107 = vmatmul.f32.gmra.mxu0 %v2022
    %v2108 = vpop.f32.mrf.mxu0
    %v2109 = vadd.f32 0.0, %v2108
    %2110 = vmatmul.f32.gmra.mxu0 %v2025
    %v2111 = vpop.f32.mrf.mxu0
    %v2112 = vadd.f32 0.0, %v2111
    %2113 = vmatmul.f32.gmra.mxu0 %v2028
    %v2114 = vpop.f32.mrf.mxu0
    %v2115 = vadd.f32 0.0, %v2114
    %2116 = vmatmul.f32.gmra.mxu0 %v2031
    %v2117 = vpop.f32.mrf.mxu0
    %v2118 = vadd.f32 0.0, %v2117
    %2119 = vdwg.mxu0
    %2120 = vmatpush.msra.mxu0 0.0
    %2121 = vmatpush.msra.mxu0 0.0
    %2122 = vmatpush.msra.mxu0 0.0
    %2123 = vmatpush.msra.mxu0 0.0
    %2124 = vmatpush.msra.mxu0 0.0
    %2125 = vmatpush.msra.mxu0 0.0
    %2126 = vmatpush.msra.mxu0 0.0
    %2127 = vmatpush.msra.mxu0 0.0
    %2128 = vmatpush.msra.mxu0 0.0
    %2129 = vmatpush.msra.mxu0 0.0
    %2130 = vmatpush.msra.mxu0 0.0
    %2131 = vmatpush.msra.mxu0 0.0
    %2132 = vmatpush.msra.mxu0 %v2015
    %2133 = vmatpush.msra.mxu0 %v2011
    %2134 = vmatpush.msra.mxu0 %v2007
    %2135 = vmatpush.msra.mxu0 %v2003
    %2136 = vmatmul.f32.gmra.mxu0 %v2022
    %v2137 = vpop.f32.mrf.mxu0
    %v2138 = vadd.f32 0.0, %v2137
    %2139 = vmatmul.f32.gmra.mxu0 %v2025
    %v2140 = vpop.f32.mrf.mxu0
    %v2141 = vadd.f32 0.0, %v2140
    %2142 = vmatmul.f32.gmra.mxu0 %v2028
    %v2143 = vpop.f32.mrf.mxu0
    %v2144 = vadd.f32 0.0, %v2143
    %2145 = vmatmul.f32.gmra.mxu0 %v2031
    %v2146 = vpop.f32.mrf.mxu0
    %v2147 = vadd.f32 0.0, %v2146
    %2148 = vdwg.mxu0
    %v2149 = vadd.f32 %v1924, %v2051
    %v2150 = vadd.f32 %v1925, %v2080
    %v2151 = vadd.f32 %v1926, %v2109
    %v2152 = vadd.f32 %v1927, %v2138
    %v2153 = vadd.f32 %v1928, %v2054
    %v2154 = vadd.f32 %v1929, %v2083
    %v2155 = vadd.f32 %v1930, %v2112
    %v2156 = vadd.f32 %v1931, %v2141
    %v2157 = vadd.f32 %v1932, %v2057
    %v2158 = vadd.f32 %v1933, %v2086
    %v2159 = vadd.f32 %v1934, %v2115
    %v2160 = vadd.f32 %v1935, %v2144
    %v2161 = vadd.f32 %v1936, %v2060
    %v2162 = vadd.f32 %v1937, %v2089
    %v2163 = vadd.f32 %v1938, %v2118
    %v2164 = vadd.f32 %v1939, %v2147
    %2165 = vrot.lane.b32.xlu0 %v148, 17
    %v2166 = vpop.permute.xlu0 %2165
    %2167 = vrot.lane.b32.xlu0 %v151, 17
    %v2168 = vpop.permute.xlu0 %2167
    %2169 = vrot.lane.b32.xlu0 %v154, 17
    %v2170 = vpop.permute.xlu0 %2169
    %2171 = vrot.lane.b32.xlu0 %v157, 17
    %v2172 = vpop.permute.xlu0 %2171
    %2173 = vrot.lane.b32.xlu0 %v183, 17
    %v2174 = vpop.permute.xlu0 %2173
    %2175 = vrot.lane.b32.xlu0 %v186, 17
    %v2176 = vpop.permute.xlu0 %2175
    %2177 = vrot.lane.b32.xlu0 %v189, 17
    %v2178 = vpop.permute.xlu0 %2177
    %2179 = vrot.lane.b32.xlu0 %v192, 17
    %v2180 = vpop.permute.xlu0 %2179
    %2181 = vrot.lane.b32.xlu0 %v218, 17
    %v2182 = vpop.permute.xlu0 %2181
    %2183 = vrot.lane.b32.xlu0 %v221, 17
    %v2184 = vpop.permute.xlu0 %2183
    %2185 = vrot.lane.b32.xlu0 %v224, 17
    %v2186 = vpop.permute.xlu0 %2185
    %2187 = vrot.lane.b32.xlu0 %v227, 17
    %v2188 = vpop.permute.xlu0 %2187
    %2189 = vrot.lane.b32.xlu0 %v253, 17
    %v2190 = vpop.permute.xlu0 %2189
    %2191 = vrot.lane.b32.xlu0 %v256, 17
    %v2192 = vpop.permute.xlu0 %2191
    %2193 = vrot.lane.b32.xlu0 %v259, 17
    %v2194 = vpop.permute.xlu0 %2193
    %2195 = vrot.lane.b32.xlu0 %v262, 17
    %v2196 = vpop.permute.xlu0 %2195
    %v2197 = vsel %vm285, %v2182, %v2190
    %v2198 = vsel %vm285, %v2184, %v2192
    %v2199 = vsel %vm285, %v2186, %v2194
    %v2200 = vsel %vm285, %v2188, %v2196
    %v2201 = vsel %vm285, %v2174, %v2182
    %v2202 = vsel %vm285, %v2176, %v2184
    %v2203 = vsel %vm285, %v2178, %v2186
    %v2204 = vsel %vm285, %v2180, %v2188
    %v2205 = vsel %vm285, %v2166, %v2174
    %v2206 = vsel %vm285, %v2168, %v2176
    %v2207 = vsel %vm285, %v2170, %v2178
    %v2208 = vsel %vm285, %v2172, %v2180
    %v2209 = vsel %vm285, %v2190, %v2166
    %v2210 = vsel %vm285, %v2192, %v2168
    %v2211 = vsel %vm285, %v2194, %v2170
    %v2212 = vsel %vm285, %v2196, %v2172
    %v2214 = vperm.slane %v265, 0
    %v2215 = vperm.slane %v265, 1
    %v2216 = vperm.slane %v265, 2
    %v2217 = vperm.slane %v265, 3
    %v2222 = vmul.f32 %v2209, %v2214
    %v2223 = vmul.f32 %v2205, %v2215
    %v2224 = vmul.f32 %v2201, %v2216
    %v2225 = vmul.f32 %v2197, %v2217
    %v2226 = vmul.f32 %v2210, %v2214
    %v2227 = vmul.f32 %v2206, %v2215
    %v2228 = vmul.f32 %v2202, %v2216
    %v2229 = vmul.f32 %v2198, %v2217
    %v2230 = vmul.f32 %v2211, %v2214
    %v2231 = vmul.f32 %v2207, %v2215
    %v2232 = vmul.f32 %v2203, %v2216
    %v2233 = vmul.f32 %v2199, %v2217
    %v2234 = vmul.f32 %v2212, %v2214
    %v2235 = vmul.f32 %v2208, %v2215
    %v2236 = vmul.f32 %v2204, %v2216
    %v2237 = vmul.f32 %v2200, %v2217
    %s2238 = scalar_lea.vmem [#allocation5], 192
    %v2239 = vld [vmem:[%s2238] sm:$0xff]
    %v2240 = vld [vmem:[%s2238 + $0x8] sm:$0xff]
    %v2241 = vld [vmem:[%s2238 + $0x10] sm:$0xff]
    %v2242 = vld [vmem:[%s2238 + $0x18] sm:$0xff]
    %v2244 = vsel %vm895, %v2239, 0
    %v2247 = vsel %vm895, %v2240, 0
    %v2250 = vsel %vm895, %v2241, 0
    %v2253 = vsel %vm895, %v2242, 0
    %2255 = vmatpush.msra.mxu0 0.0
    %2256 = vmatpush.msra.mxu0 0.0
    %2257 = vmatpush.msra.mxu0 0.0
    %2258 = vmatpush.msra.mxu0 0.0
    %2259 = vmatpush.msra.mxu0 0.0
    %2260 = vmatpush.msra.mxu0 0.0
    %2261 = vmatpush.msra.mxu0 0.0
    %2262 = vmatpush.msra.mxu0 0.0
    %2263 = vmatpush.msra.mxu0 0.0
    %2264 = vmatpush.msra.mxu0 0.0
    %2265 = vmatpush.msra.mxu0 0.0
    %2266 = vmatpush.msra.mxu0 0.0
    %2267 = vmatpush.msra.mxu0 %v2234
    %2268 = vmatpush.msra.mxu0 %v2230
    %2269 = vmatpush.msra.mxu0 %v2226
    %2270 = vmatpush.msra.mxu0 %v2222
    %2271 = vmatmul.f32.gmra.mxu0 %v2244
    %v2272 = vpop.f32.mrf.mxu0
    %v2273 = vadd.f32 0.0, %v2272
    %2274 = vmatmul.f32.gmra.mxu0 %v2247
    %v2275 = vpop.f32.mrf.mxu0
    %v2276 = vadd.f32 0.0, %v2275
    %2277 = vmatmul.f32.gmra.mxu0 %v2250
    %v2278 = vpop.f32.mrf.mxu0
    %v2279 = vadd.f32 0.0, %v2278
    %2280 = vmatmul.f32.gmra.mxu0 %v2253
    %v2281 = vpop.f32.mrf.mxu0
    %v2282 = vadd.f32 0.0, %v2281
    %2283 = vdwg.mxu0
    %2284 = vmatpush.msra.mxu0 0.0
    %2285 = vmatpush.msra.mxu0 0.0
    %2286 = vmatpush.msra.mxu0 0.0
    %2287 = vmatpush.msra.mxu0 0.0
    %2288 = vmatpush.msra.mxu0 0.0
    %2289 = vmatpush.msra.mxu0 0.0
    %2290 = vmatpush.msra.mxu0 0.0
    %2291 = vmatpush.msra.mxu0 0.0
    %2292 = vmatpush.msra.mxu0 0.0
    %2293 = vmatpush.msra.mxu0 0.0
    %2294 = vmatpush.msra.mxu0 0.0
    %2295 = vmatpush.msra.mxu0 0.0
    %2296 = vmatpush.msra.mxu0 %v2235
    %2297 = vmatpush.msra.mxu0 %v2231
    %2298 = vmatpush.msra.mxu0 %v2227
    %2299 = vmatpush.msra.mxu0 %v2223
    %2300 = vmatmul.f32.gmra.mxu0 %v2244
    %v2301 = vpop.f32.mrf.mxu0
    %v2302 = vadd.f32 0.0, %v2301
    %2303 = vmatmul.f32.gmra.mxu0 %v2247
    %v2304 = vpop.f32.mrf.mxu0
    %v2305 = vadd.f32 0.0, %v2304
    %2306 = vmatmul.f32.gmra.mxu0 %v2250
    %v2307 = vpop.f32.mrf.mxu0
    %v2308 = vadd.f32 0.0, %v2307
    %2309 = vmatmul.f32.gmra.mxu0 %v2253
    %v2310 = vpop.f32.mrf.mxu0
    %v2311 = vadd.f32 0.0, %v2310
    %2312 = vdwg.mxu0
    %2313 = vmatpush.msra.mxu0 0.0
    %2314 = vmatpush.msra.mxu0 0.0
    %2315 = vmatpush.msra.mxu0 0.0
    %2316 = vmatpush.msra.mxu0 0.0
    %2317 = vmatpush.msra.mxu0 0.0
    %2318 = vmatpush.msra.mxu0 0.0
    %2319 = vmatpush.msra.mxu0 0.0
    %2320 = vmatpush.msra.mxu0 0.0
    %2321 = vmatpush.msra.mxu0 0.0
    %2322 = vmatpush.msra.mxu0 0.0
    %2323 = vmatpush.msra.mxu0 0.0
    %2324 = vmatpush.msra.mxu0 0.0
    %2325 = vmatpush.msra.mxu0 %v2236
    %2326 = vmatpush.msra.mxu0 %v2232
    %2327 = vmatpush.msra.mxu0 %v2228
    %2328 = vmatpush.msra.mxu0 %v2224
    %2329 = vmatmul.f32.gmra.mxu0 %v2244
    %v2330 = vpop.f32.mrf.mxu0
    %v2331 = vadd.f32 0.0, %v2330
    %2332 = vmatmul.f32.gmra.mxu0 %v2247
    %v2333 = vpop.f32.mrf.mxu0
    %v2334 = vadd.f32 0.0, %v2333
    %2335 = vmatmul.f32.gmra.mxu0 %v2250
    %v2336 = vpop.f32.mrf.mxu0
    %v2337 = vadd.f32 0.0, %v2336
    %2338 = vmatmul.f32.gmra.mxu0 %v2253
    %v2339 = vpop.f32.mrf.mxu0
    %v2340 = vadd.f32 0.0, %v2339
    %2341 = vdwg.mxu0
    %2342 = vmatpush.msra.mxu0 0.0
    %2343 = vmatpush.msra.mxu0 0.0
    %2344 = vmatpush.msra.mxu0 0.0
    %2345 = vmatpush.msra.mxu0 0.0
    %2346 = vmatpush.msra.mxu0 0.0
    %2347 = vmatpush.msra.mxu0 0.0
    %2348 = vmatpush.msra.mxu0 0.0
    %2349 = vmatpush.msra.mxu0 0.0
    %2350 = vmatpush.msra.mxu0 0.0
    %2351 = vmatpush.msra.mxu0 0.0
    %2352 = vmatpush.msra.mxu0 0.0
    %2353 = vmatpush.msra.mxu0 0.0
    %2354 = vmatpush.msra.mxu0 %v2237
    %2355 = vmatpush.msra.mxu0 %v2233
    %2356 = vmatpush.msra.mxu0 %v2229
    %2357 = vmatpush.msra.mxu0 %v2225
    %2358 = vmatmul.f32.gmra.mxu0 %v2244
    %v2359 = vpop.f32.mrf.mxu0
    %v2360 = vadd.f32 0.0, %v2359
    %2361 = vmatmul.f32.gmra.mxu0 %v2247
    %v2362 = vpop.f32.mrf.mxu0
    %v2363 = vadd.f32 0.0, %v2362
    %2364 = vmatmul.f32.gmra.mxu0 %v2250
    %v2365 = vpop.f32.mrf.mxu0
    %v2366 = vadd.f32 0.0, %v2365
    %2367 = vmatmul.f32.gmra.mxu0 %v2253
    %v2368 = vpop.f32.mrf.mxu0
    %v2369 = vadd.f32 0.0, %v2368
    %2370 = vdwg.mxu0
    %v2371 = vadd.f32 %v2149, %v2273
    %v2372 = vadd.f32 %v2150, %v2302
    %v2373 = vadd.f32 %v2151, %v2331
    %v2374 = vadd.f32 %v2152, %v2360
    %v2375 = vadd.f32 %v2153, %v2276
    %v2376 = vadd.f32 %v2154, %v2305
    %v2377 = vadd.f32 %v2155, %v2334
    %v2378 = vadd.f32 %v2156, %v2363
    %v2379 = vadd.f32 %v2157, %v2279
    %v2380 = vadd.f32 %v2158, %v2308
    %v2381 = vadd.f32 %v2159, %v2337
    %v2382 = vadd.f32 %v2160, %v2366
    %v2383 = vadd.f32 %v2161, %v2282
    %v2384 = vadd.f32 %v2162, %v2311
    %v2385 = vadd.f32 %v2163, %v2340
    %v2386 = vadd.f32 %v2164, %v2369
    %2387 = vrot.lane.b32.xlu0 %v148, 16
    %v2388 = vpop.permute.xlu0 %2387
    %2389 = vrot.lane.b32.xlu0 %v151, 16
    %v2390 = vpop.permute.xlu0 %2389
    %2391 = vrot.lane.b32.xlu0 %v154, 16
    %v2392 = vpop.permute.xlu0 %2391
    %2393 = vrot.lane.b32.xlu0 %v157, 16
    %v2394 = vpop.permute.xlu0 %2393
    %2395 = vrot.lane.b32.xlu0 %v183, 16
    %v2396 = vpop.permute.xlu0 %2395
    %2397 = vrot.lane.b32.xlu0 %v186, 16
    %v2398 = vpop.permute.xlu0 %2397
    %2399 = vrot.lane.b32.xlu0 %v189, 16
    %v2400 = vpop.permute.xlu0 %2399
    %2401 = vrot.lane.b32.xlu0 %v192, 16
    %v2402 = vpop.permute.xlu0 %2401
    %2403 = vrot.lane.b32.xlu0 %v218, 16
    %v2404 = vpop.permute.xlu0 %2403
    %2405 = vrot.lane.b32.xlu0 %v221, 16
    %v2406 = vpop.permute.xlu0 %2405
    %2407 = vrot.lane.b32.xlu0 %v224, 16
    %v2408 = vpop.permute.xlu0 %2407
    %2409 = vrot.lane.b32.xlu0 %v227, 16
    %v2410 = vpop.permute.xlu0 %2409
    %2411 = vrot.lane.b32.xlu0 %v253, 16
    %v2412 = vpop.permute.xlu0 %2411
    %2413 = vrot.lane.b32.xlu0 %v256, 16
    %v2414 = vpop.permute.xlu0 %2413
    %2415 = vrot.lane.b32.xlu0 %v259, 16
    %v2416 = vpop.permute.xlu0 %2415
    %2417 = vrot.lane.b32.xlu0 %v262, 16
    %v2418 = vpop.permute.xlu0 %2417
    %v2419 = vsel %vm338, %v2404, %v2412
    %v2420 = vsel %vm338, %v2406, %v2414
    %v2421 = vsel %vm338, %v2408, %v2416
    %v2422 = vsel %vm338, %v2410, %v2418
    %v2423 = vsel %vm338, %v2396, %v2404
    %v2424 = vsel %vm338, %v2398, %v2406
    %v2425 = vsel %vm338, %v2400, %v2408
    %v2426 = vsel %vm338, %v2402, %v2410
    %v2427 = vsel %vm338, %v2388, %v2396
    %v2428 = vsel %vm338, %v2390, %v2398
    %v2429 = vsel %vm338, %v2392, %v2400
    %v2430 = vsel %vm338, %v2394, %v2402
    %v2431 = vsel %vm338, %v2412, %v2388
    %v2432 = vsel %vm338, %v2414, %v2390
    %v2433 = vsel %vm338, %v2416, %v2392
    %v2434 = vsel %vm338, %v2418, %v2394
    %v2436 = vperm.slane %v320, 0
    %v2437 = vperm.slane %v320, 1
    %v2438 = vperm.slane %v320, 2
    %v2439 = vperm.slane %v320, 3
    %v2444 = vmul.f32 %v2431, %v2436
    %v2445 = vmul.f32 %v2427, %v2437
    %v2446 = vmul.f32 %v2423, %v2438
    %v2447 = vmul.f32 %v2419, %v2439
    %v2448 = vmul.f32 %v2432, %v2436
    %v2449 = vmul.f32 %v2428, %v2437
    %v2450 = vmul.f32 %v2424, %v2438
    %v2451 = vmul.f32 %v2420, %v2439
    %v2452 = vmul.f32 %v2433, %v2436
    %v2453 = vmul.f32 %v2429, %v2437
    %v2454 = vmul.f32 %v2425, %v2438
    %v2455 = vmul.f32 %v2421, %v2439
    %v2456 = vmul.f32 %v2434, %v2436
    %v2457 = vmul.f32 %v2430, %v2437
    %v2458 = vmul.f32 %v2426, %v2438
    %v2459 = vmul.f32 %v2422, %v2439
    %s2460 = scalar_lea.vmem [#allocation5], 224
    %v2461 = vld [vmem:[%s2460] sm:$0xff]
    %v2462 = vld [vmem:[%s2460 + $0x8] sm:$0xff]
    %v2463 = vld [vmem:[%s2460 + $0x10] sm:$0xff]
    %v2464 = vld [vmem:[%s2460 + $0x18] sm:$0xff]
    %v2466 = vsel %vm895, %v2461, 0
    %v2469 = vsel %vm895, %v2462, 0
    %v2472 = vsel %vm895, %v2463, 0
    %v2475 = vsel %vm895, %v2464, 0
    %2477 = vmatpush.msra.mxu0 0.0
    %2478 = vmatpush.msra.mxu0 0.0
    %2479 = vmatpush.msra.mxu0 0.0
    %2480 = vmatpush.msra.mxu0 0.0
    %2481 = vmatpush.msra.mxu0 0.0
    %2482 = vmatpush.msra.mxu0 0.0
    %2483 = vmatpush.msra.mxu0 0.0
    %2484 = vmatpush.msra.mxu0 0.0
    %2485 = vmatpush.msra.mxu0 0.0
    %2486 = vmatpush.msra.mxu0 0.0
    %2487 = vmatpush.msra.mxu0 0.0
    %2488 = vmatpush.msra.mxu0 0.0
    %2489 = vmatpush.msra.mxu0 %v2456
    %2490 = vmatpush.msra.mxu0 %v2452
    %2491 = vmatpush.msra.mxu0 %v2448
    %2492 = vmatpush.msra.mxu0 %v2444
    %2493 = vmatmul.f32.gmra.mxu0 %v2466
    %v2494 = vpop.f32.mrf.mxu0
    %v2495 = vadd.f32 0.0, %v2494
    %2496 = vmatmul.f32.gmra.mxu0 %v2469
    %v2497 = vpop.f32.mrf.mxu0
    %v2498 = vadd.f32 0.0, %v2497
    %2499 = vmatmul.f32.gmra.mxu0 %v2472
    %v2500 = vpop.f32.mrf.mxu0
    %v2501 = vadd.f32 0.0, %v2500
    %2502 = vmatmul.f32.gmra.mxu0 %v2475
    %v2503 = vpop.f32.mrf.mxu0
    %v2504 = vadd.f32 0.0, %v2503
    %2505 = vdwg.mxu0
    %2506 = vmatpush.msra.mxu0 0.0
    %2507 = vmatpush.msra.mxu0 0.0
    %2508 = vmatpush.msra.mxu0 0.0
    %2509 = vmatpush.msra.mxu0 0.0
    %2510 = vmatpush.msra.mxu0 0.0
    %2511 = vmatpush.msra.mxu0 0.0
    %2512 = vmatpush.msra.mxu0 0.0
    %2513 = vmatpush.msra.mxu0 0.0
    %2514 = vmatpush.msra.mxu0 0.0
    %2515 = vmatpush.msra.mxu0 0.0
    %2516 = vmatpush.msra.mxu0 0.0
    %2517 = vmatpush.msra.mxu0 0.0
    %2518 = vmatpush.msra.mxu0 %v2457
    %2519 = vmatpush.msra.mxu0 %v2453
    %2520 = vmatpush.msra.mxu0 %v2449
    %2521 = vmatpush.msra.mxu0 %v2445
    %2522 = vmatmul.f32.gmra.mxu0 %v2466
    %v2523 = vpop.f32.mrf.mxu0
    %v2524 = vadd.f32 0.0, %v2523
    %2525 = vmatmul.f32.gmra.mxu0 %v2469
    %v2526 = vpop.f32.mrf.mxu0
    %v2527 = vadd.f32 0.0, %v2526
    %2528 = vmatmul.f32.gmra.mxu0 %v2472
    %v2529 = vpop.f32.mrf.mxu0
    %v2530 = vadd.f32 0.0, %v2529
    %2531 = vmatmul.f32.gmra.mxu0 %v2475
    %v2532 = vpop.f32.mrf.mxu0
    %v2533 = vadd.f32 0.0, %v2532
    %2534 = vdwg.mxu0
    %2535 = vmatpush.msra.mxu0 0.0
    %2536 = vmatpush.msra.mxu0 0.0
    %2537 = vmatpush.msra.mxu0 0.0
    %2538 = vmatpush.msra.mxu0 0.0
    %2539 = vmatpush.msra.mxu0 0.0
    %2540 = vmatpush.msra.mxu0 0.0
    %2541 = vmatpush.msra.mxu0 0.0
    %2542 = vmatpush.msra.mxu0 0.0
    %2543 = vmatpush.msra.mxu0 0.0
    %2544 = vmatpush.msra.mxu0 0.0
    %2545 = vmatpush.msra.mxu0 0.0
    %2546 = vmatpush.msra.mxu0 0.0
    %2547 = vmatpush.msra.mxu0 %v2458
    %2548 = vmatpush.msra.mxu0 %v2454
    %2549 = vmatpush.msra.mxu0 %v2450
    %2550 = vmatpush.msra.mxu0 %v2446
    %2551 = vmatmul.f32.gmra.mxu0 %v2466
    %v2552 = vpop.f32.mrf.mxu0
    %v2553 = vadd.f32 0.0, %v2552
    %2554 = vmatmul.f32.gmra.mxu0 %v2469
    %v2555 = vpop.f32.mrf.mxu0
    %v2556 = vadd.f32 0.0, %v2555
    %2557 = vmatmul.f32.gmra.mxu0 %v2472
    %v2558 = vpop.f32.mrf.mxu0
    %v2559 = vadd.f32 0.0, %v2558
    %2560 = vmatmul.f32.gmra.mxu0 %v2475
    %v2561 = vpop.f32.mrf.mxu0
    %v2562 = vadd.f32 0.0, %v2561
    %2563 = vdwg.mxu0
    %2564 = vmatpush.msra.mxu0 0.0
    %2565 = vmatpush.msra.mxu0 0.0
    %2566 = vmatpush.msra.mxu0 0.0
    %2567 = vmatpush.msra.mxu0 0.0
    %2568 = vmatpush.msra.mxu0 0.0
    %2569 = vmatpush.msra.mxu0 0.0
    %2570 = vmatpush.msra.mxu0 0.0
    %2571 = vmatpush.msra.mxu0 0.0
    %2572 = vmatpush.msra.mxu0 0.0
    %2573 = vmatpush.msra.mxu0 0.0
    %2574 = vmatpush.msra.mxu0 0.0
    %2575 = vmatpush.msra.mxu0 0.0
    %2576 = vmatpush.msra.mxu0 %v2459
    %2577 = vmatpush.msra.mxu0 %v2455
    %2578 = vmatpush.msra.mxu0 %v2451
    %2579 = vmatpush.msra.mxu0 %v2447
    %2580 = vmatmul.f32.gmra.mxu0 %v2466
    %v2581 = vpop.f32.mrf.mxu0
    %v2582 = vadd.f32 0.0, %v2581
    %2583 = vmatmul.f32.gmra.mxu0 %v2469
    %v2584 = vpop.f32.mrf.mxu0
    %v2585 = vadd.f32 0.0, %v2584
    %2586 = vmatmul.f32.gmra.mxu0 %v2472
    %v2587 = vpop.f32.mrf.mxu0
    %v2588 = vadd.f32 0.0, %v2587
    %2589 = vmatmul.f32.gmra.mxu0 %v2475
    %v2590 = vpop.f32.mrf.mxu0
    %v2591 = vadd.f32 0.0, %v2590
    %2592 = vdwg.mxu0
    %v2593 = vadd.f32 %v2371, %v2495
    %v2594 = vadd.f32 %v2372, %v2524
    %v2595 = vadd.f32 %v2373, %v2553
    %v2596 = vadd.f32 %v2374, %v2582
    %v2597 = vadd.f32 %v2375, %v2498
    %v2598 = vadd.f32 %v2376, %v2527
    %v2599 = vadd.f32 %v2377, %v2556
    %v2600 = vadd.f32 %v2378, %v2585
    %v2601 = vadd.f32 %v2379, %v2501
    %v2602 = vadd.f32 %v2380, %v2530
    %v2603 = vadd.f32 %v2381, %v2559
    %v2604 = vadd.f32 %v2382, %v2588
    %v2605 = vadd.f32 %v2383, %v2504
    %v2606 = vadd.f32 %v2384, %v2533
    %v2607 = vadd.f32 %v2385, %v2562
    %v2608 = vadd.f32 %v2386, %v2591
    %2609 = vrot.lane.b32.xlu0 %v148, 15
    %v2610 = vpop.permute.xlu0 %2609
    %2611 = vrot.lane.b32.xlu0 %v151, 15
    %v2612 = vpop.permute.xlu0 %2611
    %2613 = vrot.lane.b32.xlu0 %v154, 15
    %v2614 = vpop.permute.xlu0 %2613
    %2615 = vrot.lane.b32.xlu0 %v157, 15
    %v2616 = vpop.permute.xlu0 %2615
    %2617 = vrot.lane.b32.xlu0 %v183, 15
    %v2618 = vpop.permute.xlu0 %2617
    %2619 = vrot.lane.b32.xlu0 %v186, 15
    %v2620 = vpop.permute.xlu0 %2619
    %2621 = vrot.lane.b32.xlu0 %v189, 15
    %v2622 = vpop.permute.xlu0 %2621
    %2623 = vrot.lane.b32.xlu0 %v192, 15
    %v2624 = vpop.permute.xlu0 %2623
    %2625 = vrot.lane.b32.xlu0 %v218, 15
    %v2626 = vpop.permute.xlu0 %2625
    %2627 = vrot.lane.b32.xlu0 %v221, 15
    %v2628 = vpop.permute.xlu0 %2627
    %2629 = vrot.lane.b32.xlu0 %v224, 15
    %v2630 = vpop.permute.xlu0 %2629
    %2631 = vrot.lane.b32.xlu0 %v227, 15
    %v2632 = vpop.permute.xlu0 %2631
    %2633 = vrot.lane.b32.xlu0 %v253, 15
    %v2634 = vpop.permute.xlu0 %2633
    %2635 = vrot.lane.b32.xlu0 %v256, 15
    %v2636 = vpop.permute.xlu0 %2635
    %2637 = vrot.lane.b32.xlu0 %v259, 15
    %v2638 = vpop.permute.xlu0 %2637
    %2639 = vrot.lane.b32.xlu0 %v262, 15
    %v2640 = vpop.permute.xlu0 %2639
    %v2641 = vsel %vm391, %v2626, %v2634
    %v2642 = vsel %vm391, %v2628, %v2636
    %v2643 = vsel %vm391, %v2630, %v2638
    %v2644 = vsel %vm391, %v2632, %v2640
    %v2645 = vsel %vm391, %v2618, %v2626
    %v2646 = vsel %vm391, %v2620, %v2628
    %v2647 = vsel %vm391, %v2622, %v2630
    %v2648 = vsel %vm391, %v2624, %v2632
    %v2649 = vsel %vm391, %v2610, %v2618
    %v2650 = vsel %vm391, %v2612, %v2620
    %v2651 = vsel %vm391, %v2614, %v2622
    %v2652 = vsel %vm391, %v2616, %v2624
    %v2653 = vsel %vm391, %v2634, %v2610
    %v2654 = vsel %vm391, %v2636, %v2612
    %v2655 = vsel %vm391, %v2638, %v2614
    %v2656 = vsel %vm391, %v2640, %v2616
    %v2658 = vperm.slane %v373, 0
    %v2659 = vperm.slane %v373, 1
    %v2660 = vperm.slane %v373, 2
    %v2661 = vperm.slane %v373, 3
    %v2666 = vmul.f32 %v2653, %v2658
    %v2667 = vmul.f32 %v2649, %v2659
    %v2668 = vmul.f32 %v2645, %v2660
    %v2669 = vmul.f32 %v2641, %v2661
    %v2670 = vmul.f32 %v2654, %v2658
    %v2671 = vmul.f32 %v2650, %v2659
    %v2672 = vmul.f32 %v2646, %v2660
    %v2673 = vmul.f32 %v2642, %v2661
    %v2674 = vmul.f32 %v2655, %v2658
    %v2675 = vmul.f32 %v2651, %v2659
    %v2676 = vmul.f32 %v2647, %v2660
    %v2677 = vmul.f32 %v2643, %v2661
    %v2678 = vmul.f32 %v2656, %v2658
    %v2679 = vmul.f32 %v2652, %v2659
    %v2680 = vmul.f32 %v2648, %v2660
    %v2681 = vmul.f32 %v2644, %v2661
    %s2682 = scalar_lea.vmem [#allocation5], 256
    %v2683 = vld [vmem:[%s2682] sm:$0xff]
    %v2684 = vld [vmem:[%s2682 + $0x8] sm:$0xff]
    %v2685 = vld [vmem:[%s2682 + $0x10] sm:$0xff]
    %v2686 = vld [vmem:[%s2682 + $0x18] sm:$0xff]
    %v2688 = vsel %vm895, %v2683, 0
    %v2691 = vsel %vm895, %v2684, 0
    %v2694 = vsel %vm895, %v2685, 0
    %v2697 = vsel %vm895, %v2686, 0
    %2699 = vmatpush.msra.mxu0 0.0
    %2700 = vmatpush.msra.mxu0 0.0
    %2701 = vmatpush.msra.mxu0 0.0
    %2702 = vmatpush.msra.mxu0 0.0
    %2703 = vmatpush.msra.mxu0 0.0
    %2704 = vmatpush.msra.mxu0 0.0
    %2705 = vmatpush.msra.mxu0 0.0
    %2706 = vmatpush.msra.mxu0 0.0
    %2707 = vmatpush.msra.mxu0 0.0
    %2708 = vmatpush.msra.mxu0 0.0
    %2709 = vmatpush.msra.mxu0 0.0
    %2710 = vmatpush.msra.mxu0 0.0
    %2711 = vmatpush.msra.mxu0 %v2678
    %2712 = vmatpush.msra.mxu0 %v2674
    %2713 = vmatpush.msra.mxu0 %v2670
    %2714 = vmatpush.msra.mxu0 %v2666
    %2715 = vmatmul.f32.gmra.mxu0 %v2688
    %v2716 = vpop.f32.mrf.mxu0
    %v2717 = vadd.f32 0.0, %v2716
    %2718 = vmatmul.f32.gmra.mxu0 %v2691
    %v2719 = vpop.f32.mrf.mxu0
    %v2720 = vadd.f32 0.0, %v2719
    %2721 = vmatmul.f32.gmra.mxu0 %v2694
    %v2722 = vpop.f32.mrf.mxu0
    %v2723 = vadd.f32 0.0, %v2722
    %2724 = vmatmul.f32.gmra.mxu0 %v2697
    %v2725 = vpop.f32.mrf.mxu0
    %v2726 = vadd.f32 0.0, %v2725
    %2727 = vdwg.mxu0
    %2728 = vmatpush.msra.mxu0 0.0
    %2729 = vmatpush.msra.mxu0 0.0
    %2730 = vmatpush.msra.mxu0 0.0
    %2731 = vmatpush.msra.mxu0 0.0
    %2732 = vmatpush.msra.mxu0 0.0
    %2733 = vmatpush.msra.mxu0 0.0
    %2734 = vmatpush.msra.mxu0 0.0
    %2735 = vmatpush.msra.mxu0 0.0
    %2736 = vmatpush.msra.mxu0 0.0
    %2737 = vmatpush.msra.mxu0 0.0
    %2738 = vmatpush.msra.mxu0 0.0
    %2739 = vmatpush.msra.mxu0 0.0
    %2740 = vmatpush.msra.mxu0 %v2679
    %2741 = vmatpush.msra.mxu0 %v2675
    %2742 = vmatpush.msra.mxu0 %v2671
    %2743 = vmatpush.msra.mxu0 %v2667
    %2744 = vmatmul.f32.gmra.mxu0 %v2688
    %v2745 = vpop.f32.mrf.mxu0
    %v2746 = vadd.f32 0.0, %v2745
    %2747 = vmatmul.f32.gmra.mxu0 %v2691
    %v2748 = vpop.f32.mrf.mxu0
    %v2749 = vadd.f32 0.0, %v2748
    %2750 = vmatmul.f32.gmra.mxu0 %v2694
    %v2751 = vpop.f32.mrf.mxu0
    %v2752 = vadd.f32 0.0, %v2751
    %2753 = vmatmul.f32.gmra.mxu0 %v2697
    %v2754 = vpop.f32.mrf.mxu0
    %v2755 = vadd.f32 0.0, %v2754
    %2756 = vdwg.mxu0
    %2757 = vmatpush.msra.mxu0 0.0
    %2758 = vmatpush.msra.mxu0 0.0
    %2759 = vmatpush.msra.mxu0 0.0
    %2760 = vmatpush.msra.mxu0 0.0
    %2761 = vmatpush.msra.mxu0 0.0
    %2762 = vmatpush.msra.mxu0 0.0
    %2763 = vmatpush.msra.mxu0 0.0
    %2764 = vmatpush.msra.mxu0 0.0
    %2765 = vmatpush.msra.mxu0 0.0
    %2766 = vmatpush.msra.mxu0 0.0
    %2767 = vmatpush.msra.mxu0 0.0
    %2768 = vmatpush.msra.mxu0 0.0
    %2769 = vmatpush.msra.mxu0 %v2680
    %2770 = vmatpush.msra.mxu0 %v2676
    %2771 = vmatpush.msra.mxu0 %v2672
    %2772 = vmatpush.msra.mxu0 %v2668
    %2773 = vmatmul.f32.gmra.mxu0 %v2688
    %v2774 = vpop.f32.mrf.mxu0
    %v2775 = vadd.f32 0.0, %v2774
    %2776 = vmatmul.f32.gmra.mxu0 %v2691
    %v2777 = vpop.f32.mrf.mxu0
    %v2778 = vadd.f32 0.0, %v2777
    %2779 = vmatmul.f32.gmra.mxu0 %v2694
    %v2780 = vpop.f32.mrf.mxu0
    %v2781 = vadd.f32 0.0, %v2780
    %2782 = vmatmul.f32.gmra.mxu0 %v2697
    %v2783 = vpop.f32.mrf.mxu0
    %v2784 = vadd.f32 0.0, %v2783
    %2785 = vdwg.mxu0
    %2786 = vmatpush.msra.mxu0 0.0
    %2787 = vmatpush.msra.mxu0 0.0
    %2788 = vmatpush.msra.mxu0 0.0
    %2789 = vmatpush.msra.mxu0 0.0
    %2790 = vmatpush.msra.mxu0 0.0
    %2791 = vmatpush.msra.mxu0 0.0
    %2792 = vmatpush.msra.mxu0 0.0
    %2793 = vmatpush.msra.mxu0 0.0
    %2794 = vmatpush.msra.mxu0 0.0
    %2795 = vmatpush.msra.mxu0 0.0
    %2796 = vmatpush.msra.mxu0 0.0
    %2797 = vmatpush.msra.mxu0 0.0
    %2798 = vmatpush.msra.mxu0 %v2681
    %2799 = vmatpush.msra.mxu0 %v2677
    %2800 = vmatpush.msra.mxu0 %v2673
    %2801 = vmatpush.msra.mxu0 %v2669
    %2802 = vmatmul.f32.gmra.mxu0 %v2688
    %v2803 = vpop.f32.mrf.mxu0
    %v2804 = vadd.f32 0.0, %v2803
    %2805 = vmatmul.f32.gmra.mxu0 %v2691
    %v2806 = vpop.f32.mrf.mxu0
    %v2807 = vadd.f32 0.0, %v2806
    %2808 = vmatmul.f32.gmra.mxu0 %v2694
    %v2809 = vpop.f32.mrf.mxu0
    %v2810 = vadd.f32 0.0, %v2809
    %2811 = vmatmul.f32.gmra.mxu0 %v2697
    %v2812 = vpop.f32.mrf.mxu0
    %v2813 = vadd.f32 0.0, %v2812
    %2814 = vdwg.mxu0
    %v2815 = vadd.f32 %v2593, %v2717
    %v2816 = vadd.f32 %v2594, %v2746
    %v2817 = vadd.f32 %v2595, %v2775
    %v2818 = vadd.f32 %v2596, %v2804
    %v2819 = vadd.f32 %v2597, %v2720
    %v2820 = vadd.f32 %v2598, %v2749
    %v2821 = vadd.f32 %v2599, %v2778
    %v2822 = vadd.f32 %v2600, %v2807
    %v2823 = vadd.f32 %v2601, %v2723
    %v2824 = vadd.f32 %v2602, %v2752
    %v2825 = vadd.f32 %v2603, %v2781
    %v2826 = vadd.f32 %v2604, %v2810
    %v2827 = vadd.f32 %v2605, %v2726
    %v2828 = vadd.f32 %v2606, %v2755
    %v2829 = vadd.f32 %v2607, %v2784
    %v2830 = vadd.f32 %v2608, %v2813
    %2831 = vrot.lane.b32.xlu0 %v148, 14
    %v2832 = vpop.permute.xlu0 %2831
    %2833 = vrot.lane.b32.xlu0 %v151, 14
    %v2834 = vpop.permute.xlu0 %2833
    %2835 = vrot.lane.b32.xlu0 %v154, 14
    %v2836 = vpop.permute.xlu0 %2835
    %2837 = vrot.lane.b32.xlu0 %v157, 14
    %v2838 = vpop.permute.xlu0 %2837
    %2839 = vrot.lane.b32.xlu0 %v183, 14
    %v2840 = vpop.permute.xlu0 %2839
    %2841 = vrot.lane.b32.xlu0 %v186, 14
    %v2842 = vpop.permute.xlu0 %2841
    %2843 = vrot.lane.b32.xlu0 %v189, 14
    %v2844 = vpop.permute.xlu0 %2843
    %2845 = vrot.lane.b32.xlu0 %v192, 14
    %v2846 = vpop.permute.xlu0 %2845
    %2847 = vrot.lane.b32.xlu0 %v218, 14
    %v2848 = vpop.permute.xlu0 %2847
    %2849 = vrot.lane.b32.xlu0 %v221, 14
    %v2850 = vpop.permute.xlu0 %2849
    %2851 = vrot.lane.b32.xlu0 %v224, 14
    %v2852 = vpop.permute.xlu0 %2851
    %2853 = vrot.lane.b32.xlu0 %v227, 14
    %v2854 = vpop.permute.xlu0 %2853
    %2855 = vrot.lane.b32.xlu0 %v253, 14
    %v2856 = vpop.permute.xlu0 %2855
    %2857 = vrot.lane.b32.xlu0 %v256, 14
    %v2858 = vpop.permute.xlu0 %2857
    %2859 = vrot.lane.b32.xlu0 %v259, 14
    %v2860 = vpop.permute.xlu0 %2859
    %2861 = vrot.lane.b32.xlu0 %v262, 14
    %v2862 = vpop.permute.xlu0 %2861
    %vm2863 = vcmp.lt.s32.totalorder %v284, 14
    %v2864 = vsel %vm2863, %v2848, %v2856
    %v2865 = vsel %vm2863, %v2850, %v2858
    %v2866 = vsel %vm2863, %v2852, %v2860
    %v2867 = vsel %vm2863, %v2854, %v2862
    %v2868 = vsel %vm2863, %v2840, %v2848
    %v2869 = vsel %vm2863, %v2842, %v2850
    %v2870 = vsel %vm2863, %v2844, %v2852
    %v2871 = vsel %vm2863, %v2846, %v2854
    %v2872 = vsel %vm2863, %v2832, %v2840
    %v2873 = vsel %vm2863, %v2834, %v2842
    %v2874 = vsel %vm2863, %v2836, %v2844
    %v2875 = vsel %vm2863, %v2838, %v2846
    %v2876 = vsel %vm2863, %v2856, %v2832
    %v2877 = vsel %vm2863, %v2858, %v2834
    %v2878 = vsel %vm2863, %v2860, %v2836
    %v2879 = vsel %vm2863, %v2862, %v2838
    %s2880 = scalar_lea.vmem %s4, 33
    %v2881 = vld [vmem:[%s2880] ss:$8 sm:$0xf]
    %v2883 = vperm.slane %v2881, 0
    %v2884 = vperm.slane %v2881, 1
    %v2885 = vperm.slane %v2881, 2
    %v2886 = vperm.slane %v2881, 3
    %v2891 = vmul.f32 %v2876, %v2883
    %v2892 = vmul.f32 %v2872, %v2884
    %v2893 = vmul.f32 %v2868, %v2885
    %v2894 = vmul.f32 %v2864, %v2886
    %v2895 = vmul.f32 %v2877, %v2883
    %v2896 = vmul.f32 %v2873, %v2884
    %v2897 = vmul.f32 %v2869, %v2885
    %v2898 = vmul.f32 %v2865, %v2886
    %v2899 = vmul.f32 %v2878, %v2883
    %v2900 = vmul.f32 %v2874, %v2884
    %v2901 = vmul.f32 %v2870, %v2885
    %v2902 = vmul.f32 %v2866, %v2886
    %v2903 = vmul.f32 %v2879, %v2883
    %v2904 = vmul.f32 %v2875, %v2884
    %v2905 = vmul.f32 %v2871, %v2885
    %v2906 = vmul.f32 %v2867, %v2886
    %s2907 = scalar_lea.vmem [#allocation5], 288
    %v2908 = vld [vmem:[%s2907] sm:$0xff]
    %v2909 = vld [vmem:[%s2907 + $0x8] sm:$0xff]
    %v2910 = vld [vmem:[%s2907 + $0x10] sm:$0xff]
    %v2911 = vld [vmem:[%s2907 + $0x18] sm:$0xff]
    %v2913 = vsel %vm895, %v2908, 0
    %v2916 = vsel %vm895, %v2909, 0
    %v2919 = vsel %vm895, %v2910, 0
    %v2922 = vsel %vm895, %v2911, 0
    %2924 = vmatpush.msra.mxu0 0.0
    %2925 = vmatpush.msra.mxu0 0.0
    %2926 = vmatpush.msra.mxu0 0.0
    %2927 = vmatpush.msra.mxu0 0.0
    %2928 = vmatpush.msra.mxu0 0.0
    %2929 = vmatpush.msra.mxu0 0.0
    %2930 = vmatpush.msra.mxu0 0.0
    %2931 = vmatpush.msra.mxu0 0.0
    %2932 = vmatpush.msra.mxu0 0.0
    %2933 = vmatpush.msra.mxu0 0.0
    %2934 = vmatpush.msra.mxu0 0.0
    %2935 = vmatpush.msra.mxu0 0.0
    %2936 = vmatpush.msra.mxu0 %v2903
    %2937 = vmatpush.msra.mxu0 %v2899
    %2938 = vmatpush.msra.mxu0 %v2895
    %2939 = vmatpush.msra.mxu0 %v2891
    %2940 = vmatmul.f32.gmra.mxu0 %v2913
    %v2941 = vpop.f32.mrf.mxu0
    %v2942 = vadd.f32 0.0, %v2941
    %2943 = vmatmul.f32.gmra.mxu0 %v2916
    %v2944 = vpop.f32.mrf.mxu0
    %v2945 = vadd.f32 0.0, %v2944
    %2946 = vmatmul.f32.gmra.mxu0 %v2919
    %v2947 = vpop.f32.mrf.mxu0
    %v2948 = vadd.f32 0.0, %v2947
    %2949 = vmatmul.f32.gmra.mxu0 %v2922
    %v2950 = vpop.f32.mrf.mxu0
    %v2951 = vadd.f32 0.0, %v2950
    %2952 = vdwg.mxu0
    %2953 = vmatpush.msra.mxu0 0.0
    %2954 = vmatpush.msra.mxu0 0.0
    %2955 = vmatpush.msra.mxu0 0.0
    %2956 = vmatpush.msra.mxu0 0.0
    %2957 = vmatpush.msra.mxu0 0.0
    %2958 = vmatpush.msra.mxu0 0.0
    %2959 = vmatpush.msra.mxu0 0.0
    %2960 = vmatpush.msra.mxu0 0.0
    %2961 = vmatpush.msra.mxu0 0.0
    %2962 = vmatpush.msra.mxu0 0.0
    %2963 = vmatpush.msra.mxu0 0.0
    %2964 = vmatpush.msra.mxu0 0.0
    %2965 = vmatpush.msra.mxu0 %v2904
    %2966 = vmatpush.msra.mxu0 %v2900
    %2967 = vmatpush.msra.mxu0 %v2896
    %2968 = vmatpush.msra.mxu0 %v2892
    %2969 = vmatmul.f32.gmra.mxu0 %v2913
    %v2970 = vpop.f32.mrf.mxu0
    %v2971 = vadd.f32 0.0, %v2970
    %2972 = vmatmul.f32.gmra.mxu0 %v2916
    %v2973 = vpop.f32.mrf.mxu0
    %v2974 = vadd.f32 0.0, %v2973
    %2975 = vmatmul.f32.gmra.mxu0 %v2919
    %v2976 = vpop.f32.mrf.mxu0
    %v2977 = vadd.f32 0.0, %v2976
    %2978 = vmatmul.f32.gmra.mxu0 %v2922
    %v2979 = vpop.f32.mrf.mxu0
    %v2980 = vadd.f32 0.0, %v2979
    %2981 = vdwg.mxu0
    %2982 = vmatpush.msra.mxu0 0.0
    %2983 = vmatpush.msra.mxu0 0.0
    %2984 = vmatpush.msra.mxu0 0.0
    %2985 = vmatpush.msra.mxu0 0.0
    %2986 = vmatpush.msra.mxu0 0.0
    %2987 = vmatpush.msra.mxu0 0.0
    %2988 = vmatpush.msra.mxu0 0.0
    %2989 = vmatpush.msra.mxu0 0.0
    %2990 = vmatpush.msra.mxu0 0.0
    %2991 = vmatpush.msra.mxu0 0.0
    %2992 = vmatpush.msra.mxu0 0.0
    %2993 = vmatpush.msra.mxu0 0.0
    %2994 = vmatpush.msra.mxu0 %v2905
    %2995 = vmatpush.msra.mxu0 %v2901
    %2996 = vmatpush.msra.mxu0 %v2897
    %2997 = vmatpush.msra.mxu0 %v2893
    %2998 = vmatmul.f32.gmra.mxu0 %v2913
    %v2999 = vpop.f32.mrf.mxu0
    %v3000 = vadd.f32 0.0, %v2999
    %3001 = vmatmul.f32.gmra.mxu0 %v2916
    %v3002 = vpop.f32.mrf.mxu0
    %v3003 = vadd.f32 0.0, %v3002
    %3004 = vmatmul.f32.gmra.mxu0 %v2919
    %v3005 = vpop.f32.mrf.mxu0
    %v3006 = vadd.f32 0.0, %v3005
    %3007 = vmatmul.f32.gmra.mxu0 %v2922
    %v3008 = vpop.f32.mrf.mxu0
    %v3009 = vadd.f32 0.0, %v3008
    %3010 = vdwg.mxu0
    %3011 = vmatpush.msra.mxu0 0.0
    %3012 = vmatpush.msra.mxu0 0.0
    %3013 = vmatpush.msra.mxu0 0.0
    %3014 = vmatpush.msra.mxu0 0.0
    %3015 = vmatpush.msra.mxu0 0.0
    %3016 = vmatpush.msra.mxu0 0.0
    %3017 = vmatpush.msra.mxu0 0.0
    %3018 = vmatpush.msra.mxu0 0.0
    %3019 = vmatpush.msra.mxu0 0.0
    %3020 = vmatpush.msra.mxu0 0.0
    %3021 = vmatpush.msra.mxu0 0.0
    %3022 = vmatpush.msra.mxu0 0.0
    %3023 = vmatpush.msra.mxu0 %v2906
    %3024 = vmatpush.msra.mxu0 %v2902
    %3025 = vmatpush.msra.mxu0 %v2898
    %3026 = vmatpush.msra.mxu0 %v2894
    %3027 = vmatmul.f32.gmra.mxu0 %v2913
    %v3028 = vpop.f32.mrf.mxu0
    %v3029 = vadd.f32 0.0, %v3028
    %3030 = vmatmul.f32.gmra.mxu0 %v2916
    %v3031 = vpop.f32.mrf.mxu0
    %v3032 = vadd.f32 0.0, %v3031
    %3033 = vmatmul.f32.gmra.mxu0 %v2919
    %v3034 = vpop.f32.mrf.mxu0
    %v3035 = vadd.f32 0.0, %v3034
    %3036 = vmatmul.f32.gmra.mxu0 %v2922
    %v3037 = vpop.f32.mrf.mxu0
    %v3038 = vadd.f32 0.0, %v3037
    %3039 = vdwg.mxu0
    %v3040 = vadd.f32 %v2815, %v2942
    %v3041 = vadd.f32 %v2816, %v2971
    %v3042 = vadd.f32 %v2817, %v3000
    %v3043 = vadd.f32 %v2818, %v3029
    %v3044 = vadd.f32 %v2819, %v2945
    %v3045 = vadd.f32 %v2820, %v2974
    %v3046 = vadd.f32 %v2821, %v3003
    %v3047 = vadd.f32 %v2822, %v3032
    %v3048 = vadd.f32 %v2823, %v2948
    %v3049 = vadd.f32 %v2824, %v2977
    %v3050 = vadd.f32 %v2825, %v3006
    %v3051 = vadd.f32 %v2826, %v3035
    %v3052 = vadd.f32 %v2827, %v2951
    %v3053 = vadd.f32 %v2828, %v2980
    %v3054 = vadd.f32 %v2829, %v3009
    %v3055 = vadd.f32 %v2830, %v3038
    %3056 = vrot.lane.b32.xlu0 %v148, 2
    %v3057 = vpop.permute.xlu0 %3056
    %3058 = vrot.lane.b32.xlu0 %v151, 2
    %v3059 = vpop.permute.xlu0 %3058
    %3060 = vrot.lane.b32.xlu0 %v154, 2
    %v3061 = vpop.permute.xlu0 %3060
    %3062 = vrot.lane.b32.xlu0 %v157, 2
    %v3063 = vpop.permute.xlu0 %3062
    %3064 = vrot.lane.b32.xlu0 %v183, 2
    %v3065 = vpop.permute.xlu0 %3064
    %3066 = vrot.lane.b32.xlu0 %v186, 2
    %v3067 = vpop.permute.xlu0 %3066
    %3068 = vrot.lane.b32.xlu0 %v189, 2
    %v3069 = vpop.permute.xlu0 %3068
    %3070 = vrot.lane.b32.xlu0 %v192, 2
    %v3071 = vpop.permute.xlu0 %3070
    %3072 = vrot.lane.b32.xlu0 %v218, 2
    %v3073 = vpop.permute.xlu0 %3072
    %3074 = vrot.lane.b32.xlu0 %v221, 2
    %v3075 = vpop.permute.xlu0 %3074
    %3076 = vrot.lane.b32.xlu0 %v224, 2
    %v3077 = vpop.permute.xlu0 %3076
    %3078 = vrot.lane.b32.xlu0 %v227, 2
    %v3079 = vpop.permute.xlu0 %3078
    %3080 = vrot.lane.b32.xlu0 %v253, 2
    %v3081 = vpop.permute.xlu0 %3080
    %3082 = vrot.lane.b32.xlu0 %v256, 2
    %v3083 = vpop.permute.xlu0 %3082
    %3084 = vrot.lane.b32.xlu0 %v259, 2
    %v3085 = vpop.permute.xlu0 %3084
    %3086 = vrot.lane.b32.xlu0 %v262, 2
    %v3087 = vpop.permute.xlu0 %3086
    %vm3088 = vcmp.lt.s32.totalorder %v284, 2
    %v3089 = vsel %vm3088, %v3073, %v3081
    %v3090 = vsel %vm3088, %v3075, %v3083
    %v3091 = vsel %vm3088, %v3077, %v3085
    %v3092 = vsel %vm3088, %v3079, %v3087
    %v3093 = vsel %vm3088, %v3065, %v3073
    %v3094 = vsel %vm3088, %v3067, %v3075
    %v3095 = vsel %vm3088, %v3069, %v3077
    %v3096 = vsel %vm3088, %v3071, %v3079
    %v3097 = vsel %vm3088, %v3057, %v3065
    %v3098 = vsel %vm3088, %v3059, %v3067
    %v3099 = vsel %vm3088, %v3061, %v3069
    %v3100 = vsel %vm3088, %v3063, %v3071
    %v3101 = vsel %vm3088, %v3081, %v3057
    %v3102 = vsel %vm3088, %v3083, %v3059
    %v3103 = vsel %vm3088, %v3085, %v3061
    %v3104 = vsel %vm3088, %v3087, %v3063
    %s3105 = scalar_lea.vmem %s4, 34
    %v3106 = vld [vmem:[%s3105] ss:$8 sm:$0xf]
    %v3108 = vperm.slane %v3106, 0
    %v3109 = vperm.slane %v3106, 1
    %v3110 = vperm.slane %v3106, 2
    %v3111 = vperm.slane %v3106, 3
    %v3116 = vmul.f32 %v3101, %v3108
    %v3117 = vmul.f32 %v3097, %v3109
    %v3118 = vmul.f32 %v3093, %v3110
    %v3119 = vmul.f32 %v3089, %v3111
    %v3120 = vmul.f32 %v3102, %v3108
    %v3121 = vmul.f32 %v3098, %v3109
    %v3122 = vmul.f32 %v3094, %v3110
    %v3123 = vmul.f32 %v3090, %v3111
    %v3124 = vmul.f32 %v3103, %v3108
    %v3125 = vmul.f32 %v3099, %v3109
    %v3126 = vmul.f32 %v3095, %v3110
    %v3127 = vmul.f32 %v3091, %v3111
    %v3128 = vmul.f32 %v3104, %v3108
    %v3129 = vmul.f32 %v3100, %v3109
    %v3130 = vmul.f32 %v3096, %v3110
    %v3131 = vmul.f32 %v3092, %v3111
    %s3132 = scalar_lea.vmem [#allocation5], 320
    %v3133 = vld [vmem:[%s3132] sm:$0xff]
    %v3134 = vld [vmem:[%s3132 + $0x8] sm:$0xff]
    %v3135 = vld [vmem:[%s3132 + $0x10] sm:$0xff]
    %v3136 = vld [vmem:[%s3132 + $0x18] sm:$0xff]
    %v3138 = vsel %vm895, %v3133, 0
    %v3141 = vsel %vm895, %v3134, 0
    %v3144 = vsel %vm895, %v3135, 0
    %v3147 = vsel %vm895, %v3136, 0
    %3149 = vmatpush.msra.mxu0 0.0
    %3150 = vmatpush.msra.mxu0 0.0
    %3151 = vmatpush.msra.mxu0 0.0
    %3152 = vmatpush.msra.mxu0 0.0
    %3153 = vmatpush.msra.mxu0 0.0
    %3154 = vmatpush.msra.mxu0 0.0
    %3155 = vmatpush.msra.mxu0 0.0
    %3156 = vmatpush.msra.mxu0 0.0
    %3157 = vmatpush.msra.mxu0 0.0
    %3158 = vmatpush.msra.mxu0 0.0
    %3159 = vmatpush.msra.mxu0 0.0
    %3160 = vmatpush.msra.mxu0 0.0
    %3161 = vmatpush.msra.mxu0 %v3128
    %3162 = vmatpush.msra.mxu0 %v3124
    %3163 = vmatpush.msra.mxu0 %v3120
    %3164 = vmatpush.msra.mxu0 %v3116
    %3165 = vmatmul.f32.gmra.mxu0 %v3138
    %v3166 = vpop.f32.mrf.mxu0
    %v3167 = vadd.f32 0.0, %v3166
    %3168 = vmatmul.f32.gmra.mxu0 %v3141
    %v3169 = vpop.f32.mrf.mxu0
    %v3170 = vadd.f32 0.0, %v3169
    %3171 = vmatmul.f32.gmra.mxu0 %v3144
    %v3172 = vpop.f32.mrf.mxu0
    %v3173 = vadd.f32 0.0, %v3172
    %3174 = vmatmul.f32.gmra.mxu0 %v3147
    %v3175 = vpop.f32.mrf.mxu0
    %v3176 = vadd.f32 0.0, %v3175
    %3177 = vdwg.mxu0
    %3178 = vmatpush.msra.mxu0 0.0
    %3179 = vmatpush.msra.mxu0 0.0
    %3180 = vmatpush.msra.mxu0 0.0
    %3181 = vmatpush.msra.mxu0 0.0
    %3182 = vmatpush.msra.mxu0 0.0
    %3183 = vmatpush.msra.mxu0 0.0
    %3184 = vmatpush.msra.mxu0 0.0
    %3185 = vmatpush.msra.mxu0 0.0
    %3186 = vmatpush.msra.mxu0 0.0
    %3187 = vmatpush.msra.mxu0 0.0
    %3188 = vmatpush.msra.mxu0 0.0
    %3189 = vmatpush.msra.mxu0 0.0
    %3190 = vmatpush.msra.mxu0 %v3129
    %3191 = vmatpush.msra.mxu0 %v3125
    %3192 = vmatpush.msra.mxu0 %v3121
    %3193 = vmatpush.msra.mxu0 %v3117
    %3194 = vmatmul.f32.gmra.mxu0 %v3138
    %v3195 = vpop.f32.mrf.mxu0
    %v3196 = vadd.f32 0.0, %v3195
    %3197 = vmatmul.f32.gmra.mxu0 %v3141
    %v3198 = vpop.f32.mrf.mxu0
    %v3199 = vadd.f32 0.0, %v3198
    %3200 = vmatmul.f32.gmra.mxu0 %v3144
    %v3201 = vpop.f32.mrf.mxu0
    %v3202 = vadd.f32 0.0, %v3201
    %3203 = vmatmul.f32.gmra.mxu0 %v3147
    %v3204 = vpop.f32.mrf.mxu0
    %v3205 = vadd.f32 0.0, %v3204
    %3206 = vdwg.mxu0
    %3207 = vmatpush.msra.mxu0 0.0
    %3208 = vmatpush.msra.mxu0 0.0
    %3209 = vmatpush.msra.mxu0 0.0
    %3210 = vmatpush.msra.mxu0 0.0
    %3211 = vmatpush.msra.mxu0 0.0
    %3212 = vmatpush.msra.mxu0 0.0
    %3213 = vmatpush.msra.mxu0 0.0
    %3214 = vmatpush.msra.mxu0 0.0
    %3215 = vmatpush.msra.mxu0 0.0
    %3216 = vmatpush.msra.mxu0 0.0
    %3217 = vmatpush.msra.mxu0 0.0
    %3218 = vmatpush.msra.mxu0 0.0
    %3219 = vmatpush.msra.mxu0 %v3130
    %3220 = vmatpush.msra.mxu0 %v3126
    %3221 = vmatpush.msra.mxu0 %v3122
    %3222 = vmatpush.msra.mxu0 %v3118
    %3223 = vmatmul.f32.gmra.mxu0 %v3138
    %v3224 = vpop.f32.mrf.mxu0
    %v3225 = vadd.f32 0.0, %v3224
    %3226 = vmatmul.f32.gmra.mxu0 %v3141
    %v3227 = vpop.f32.mrf.mxu0
    %v3228 = vadd.f32 0.0, %v3227
    %3229 = vmatmul.f32.gmra.mxu0 %v3144
    %v3230 = vpop.f32.mrf.mxu0
    %v3231 = vadd.f32 0.0, %v3230
    %3232 = vmatmul.f32.gmra.mxu0 %v3147
    %v3233 = vpop.f32.mrf.mxu0
    %v3234 = vadd.f32 0.0, %v3233
    %3235 = vdwg.mxu0
    %3236 = vmatpush.msra.mxu0 0.0
    %3237 = vmatpush.msra.mxu0 0.0
    %3238 = vmatpush.msra.mxu0 0.0
    %3239 = vmatpush.msra.mxu0 0.0
    %3240 = vmatpush.msra.mxu0 0.0
    %3241 = vmatpush.msra.mxu0 0.0
    %3242 = vmatpush.msra.mxu0 0.0
    %3243 = vmatpush.msra.mxu0 0.0
    %3244 = vmatpush.msra.mxu0 0.0
    %3245 = vmatpush.msra.mxu0 0.0
    %3246 = vmatpush.msra.mxu0 0.0
    %3247 = vmatpush.msra.mxu0 0.0
    %3248 = vmatpush.msra.mxu0 %v3131
    %3249 = vmatpush.msra.mxu0 %v3127
    %3250 = vmatpush.msra.mxu0 %v3123
    %3251 = vmatpush.msra.mxu0 %v3119
    %3252 = vmatmul.f32.gmra.mxu0 %v3138
    %v3253 = vpop.f32.mrf.mxu0
    %v3254 = vadd.f32 0.0, %v3253
    %3255 = vmatmul.f32.gmra.mxu0 %v3141
    %v3256 = vpop.f32.mrf.mxu0
    %v3257 = vadd.f32 0.0, %v3256
    %3258 = vmatmul.f32.gmra.mxu0 %v3144
    %v3259 = vpop.f32.mrf.mxu0
    %v3260 = vadd.f32 0.0, %v3259
    %3261 = vmatmul.f32.gmra.mxu0 %v3147
    %v3262 = vpop.f32.mrf.mxu0
    %v3263 = vadd.f32 0.0, %v3262
    %3264 = vdwg.mxu0
    %v3265 = vadd.f32 %v3040, %v3167
    %v3266 = vadd.f32 %v3041, %v3196
    %v3267 = vadd.f32 %v3042, %v3225
    %v3268 = vadd.f32 %v3043, %v3254
    %v3269 = vadd.f32 %v3044, %v3170
    %v3270 = vadd.f32 %v3045, %v3199
    %v3271 = vadd.f32 %v3046, %v3228
    %v3272 = vadd.f32 %v3047, %v3257
    %v3273 = vadd.f32 %v3048, %v3173
    %v3274 = vadd.f32 %v3049, %v3202
    %v3275 = vadd.f32 %v3050, %v3231
    %v3276 = vadd.f32 %v3051, %v3260
    %v3277 = vadd.f32 %v3052, %v3176
    %v3278 = vadd.f32 %v3053, %v3205
    %v3279 = vadd.f32 %v3054, %v3234
    %v3280 = vadd.f32 %v3055, %v3263
    %3281 = vrot.lane.b32.xlu0 %v148, 1
    %v3282 = vpop.permute.xlu0 %3281
    %3283 = vrot.lane.b32.xlu0 %v151, 1
    %v3284 = vpop.permute.xlu0 %3283
    %3285 = vrot.lane.b32.xlu0 %v154, 1
    %v3286 = vpop.permute.xlu0 %3285
    %3287 = vrot.lane.b32.xlu0 %v157, 1
    %v3288 = vpop.permute.xlu0 %3287
    %3289 = vrot.lane.b32.xlu0 %v183, 1
    %v3290 = vpop.permute.xlu0 %3289
    %3291 = vrot.lane.b32.xlu0 %v186, 1
    %v3292 = vpop.permute.xlu0 %3291
    %3293 = vrot.lane.b32.xlu0 %v189, 1
    %v3294 = vpop.permute.xlu0 %3293
    %3295 = vrot.lane.b32.xlu0 %v192, 1
    %v3296 = vpop.permute.xlu0 %3295
    %3297 = vrot.lane.b32.xlu0 %v218, 1
    %v3298 = vpop.permute.xlu0 %3297
    %3299 = vrot.lane.b32.xlu0 %v221, 1
    %v3300 = vpop.permute.xlu0 %3299
    %3301 = vrot.lane.b32.xlu0 %v224, 1
    %v3302 = vpop.permute.xlu0 %3301
    %3303 = vrot.lane.b32.xlu0 %v227, 1
    %v3304 = vpop.permute.xlu0 %3303
    %3305 = vrot.lane.b32.xlu0 %v253, 1
    %v3306 = vpop.permute.xlu0 %3305
    %3307 = vrot.lane.b32.xlu0 %v256, 1
    %v3308 = vpop.permute.xlu0 %3307
    %3309 = vrot.lane.b32.xlu0 %v259, 1
    %v3310 = vpop.permute.xlu0 %3309
    %3311 = vrot.lane.b32.xlu0 %v262, 1
    %v3312 = vpop.permute.xlu0 %3311
    %v3313 = vsel %vm444, %v3298, %v3306
    %v3314 = vsel %vm444, %v3300, %v3308
    %v3315 = vsel %vm444, %v3302, %v3310
    %v3316 = vsel %vm444, %v3304, %v3312
    %v3317 = vsel %vm444, %v3290, %v3298
    %v3318 = vsel %vm444, %v3292, %v3300
    %v3319 = vsel %vm444, %v3294, %v3302
    %v3320 = vsel %vm444, %v3296, %v3304
    %v3321 = vsel %vm444, %v3282, %v3290
    %v3322 = vsel %vm444, %v3284, %v3292
    %v3323 = vsel %vm444, %v3286, %v3294
    %v3324 = vsel %vm444, %v3288, %v3296
    %v3325 = vsel %vm444, %v3306, %v3282
    %v3326 = vsel %vm444, %v3308, %v3284
    %v3327 = vsel %vm444, %v3310, %v3286
    %v3328 = vsel %vm444, %v3312, %v3288
    %v3330 = vperm.slane %v426, 0
    %v3331 = vperm.slane %v426, 1
    %v3332 = vperm.slane %v426, 2
    %v3333 = vperm.slane %v426, 3
    %v3338 = vmul.f32 %v3325, %v3330
    %v3339 = vmul.f32 %v3321, %v3331
    %v3340 = vmul.f32 %v3317, %v3332
    %v3341 = vmul.f32 %v3313, %v3333
    %v3342 = vmul.f32 %v3326, %v3330
    %v3343 = vmul.f32 %v3322, %v3331
    %v3344 = vmul.f32 %v3318, %v3332
    %v3345 = vmul.f32 %v3314, %v3333
    %v3346 = vmul.f32 %v3327, %v3330
    %v3347 = vmul.f32 %v3323, %v3331
    %v3348 = vmul.f32 %v3319, %v3332
    %v3349 = vmul.f32 %v3315, %v3333
    %v3350 = vmul.f32 %v3328, %v3330
    %v3351 = vmul.f32 %v3324, %v3331
    %v3352 = vmul.f32 %v3320, %v3332
    %v3353 = vmul.f32 %v3316, %v3333
    %s3354 = scalar_lea.vmem [#allocation5], 352
    %v3355 = vld [vmem:[%s3354] sm:$0xff]
    %v3356 = vld [vmem:[%s3354 + $0x8] sm:$0xff]
    %v3357 = vld [vmem:[%s3354 + $0x10] sm:$0xff]
    %v3358 = vld [vmem:[%s3354 + $0x18] sm:$0xff]
    %v3360 = vsel %vm895, %v3355, 0
    %v3363 = vsel %vm895, %v3356, 0
    %v3366 = vsel %vm895, %v3357, 0
    %v3369 = vsel %vm895, %v3358, 0
    %3371 = vmatpush.msra.mxu0 0.0
    %3372 = vmatpush.msra.mxu0 0.0
    %3373 = vmatpush.msra.mxu0 0.0
    %3374 = vmatpush.msra.mxu0 0.0
    %3375 = vmatpush.msra.mxu0 0.0
    %3376 = vmatpush.msra.mxu0 0.0
    %3377 = vmatpush.msra.mxu0 0.0
    %3378 = vmatpush.msra.mxu0 0.0
    %3379 = vmatpush.msra.mxu0 0.0
    %3380 = vmatpush.msra.mxu0 0.0
    %3381 = vmatpush.msra.mxu0 0.0
    %3382 = vmatpush.msra.mxu0 0.0
    %3383 = vmatpush.msra.mxu0 %v3350
    %3384 = vmatpush.msra.mxu0 %v3346
    %3385 = vmatpush.msra.mxu0 %v3342
    %3386 = vmatpush.msra.mxu0 %v3338
    %3387 = vmatmul.f32.gmra.mxu0 %v3360
    %v3388 = vpop.f32.mrf.mxu0
    %v3389 = vadd.f32 0.0, %v3388
    %3390 = vmatmul.f32.gmra.mxu0 %v3363
    %v3391 = vpop.f32.mrf.mxu0
    %v3392 = vadd.f32 0.0, %v3391
    %3393 = vmatmul.f32.gmra.mxu0 %v3366
    %v3394 = vpop.f32.mrf.mxu0
    %v3395 = vadd.f32 0.0, %v3394
    %3396 = vmatmul.f32.gmra.mxu0 %v3369
    %v3397 = vpop.f32.mrf.mxu0
    %v3398 = vadd.f32 0.0, %v3397
    %3399 = vdwg.mxu0
    %3400 = vmatpush.msra.mxu0 0.0
    %3401 = vmatpush.msra.mxu0 0.0
    %3402 = vmatpush.msra.mxu0 0.0
    %3403 = vmatpush.msra.mxu0 0.0
    %3404 = vmatpush.msra.mxu0 0.0
    %3405 = vmatpush.msra.mxu0 0.0
    %3406 = vmatpush.msra.mxu0 0.0
    %3407 = vmatpush.msra.mxu0 0.0
    %3408 = vmatpush.msra.mxu0 0.0
    %3409 = vmatpush.msra.mxu0 0.0
    %3410 = vmatpush.msra.mxu0 0.0
    %3411 = vmatpush.msra.mxu0 0.0
    %3412 = vmatpush.msra.mxu0 %v3351
    %3413 = vmatpush.msra.mxu0 %v3347
    %3414 = vmatpush.msra.mxu0 %v3343
    %3415 = vmatpush.msra.mxu0 %v3339
    %3416 = vmatmul.f32.gmra.mxu0 %v3360
    %v3417 = vpop.f32.mrf.mxu0
    %v3418 = vadd.f32 0.0, %v3417
    %3419 = vmatmul.f32.gmra.mxu0 %v3363
    %v3420 = vpop.f32.mrf.mxu0
    %v3421 = vadd.f32 0.0, %v3420
    %3422 = vmatmul.f32.gmra.mxu0 %v3366
    %v3423 = vpop.f32.mrf.mxu0
    %v3424 = vadd.f32 0.0, %v3423
    %3425 = vmatmul.f32.gmra.mxu0 %v3369
    %v3426 = vpop.f32.mrf.mxu0
    %v3427 = vadd.f32 0.0, %v3426
    %3428 = vdwg.mxu0
    %3429 = vmatpush.msra.mxu0 0.0
    %3430 = vmatpush.msra.mxu0 0.0
    %3431 = vmatpush.msra.mxu0 0.0
    %3432 = vmatpush.msra.mxu0 0.0
    %3433 = vmatpush.msra.mxu0 0.0
    %3434 = vmatpush.msra.mxu0 0.0
    %3435 = vmatpush.msra.mxu0 0.0
    %3436 = vmatpush.msra.mxu0 0.0
    %3437 = vmatpush.msra.mxu0 0.0
    %3438 = vmatpush.msra.mxu0 0.0
    %3439 = vmatpush.msra.mxu0 0.0
    %3440 = vmatpush.msra.mxu0 0.0
    %3441 = vmatpush.msra.mxu0 %v3352
    %3442 = vmatpush.msra.mxu0 %v3348
    %3443 = vmatpush.msra.mxu0 %v3344
    %3444 = vmatpush.msra.mxu0 %v3340
    %3445 = vmatmul.f32.gmra.mxu0 %v3360
    %v3446 = vpop.f32.mrf.mxu0
    %v3447 = vadd.f32 0.0, %v3446
    %3448 = vmatmul.f32.gmra.mxu0 %v3363
    %v3449 = vpop.f32.mrf.mxu0
    %v3450 = vadd.f32 0.0, %v3449
    %3451 = vmatmul.f32.gmra.mxu0 %v3366
    %v3452 = vpop.f32.mrf.mxu0
    %v3453 = vadd.f32 0.0, %v3452
    %3454 = vmatmul.f32.gmra.mxu0 %v3369
    %v3455 = vpop.f32.mrf.mxu0
    %v3456 = vadd.f32 0.0, %v3455
    %3457 = vdwg.mxu0
    %3458 = vmatpush.msra.mxu0 0.0
    %3459 = vmatpush.msra.mxu0 0.0
    %3460 = vmatpush.msra.mxu0 0.0
    %3461 = vmatpush.msra.mxu0 0.0
    %3462 = vmatpush.msra.mxu0 0.0
    %3463 = vmatpush.msra.mxu0 0.0
    %3464 = vmatpush.msra.mxu0 0.0
    %3465 = vmatpush.msra.mxu0 0.0
    %3466 = vmatpush.msra.mxu0 0.0
    %3467 = vmatpush.msra.mxu0 0.0
    %3468 = vmatpush.msra.mxu0 0.0
    %3469 = vmatpush.msra.mxu0 0.0
    %3470 = vmatpush.msra.mxu0 %v3353
    %3471 = vmatpush.msra.mxu0 %v3349
    %3472 = vmatpush.msra.mxu0 %v3345
    %3473 = vmatpush.msra.mxu0 %v3341
    %3474 = vmatmul.f32.gmra.mxu0 %v3360
    %v3475 = vpop.f32.mrf.mxu0
    %v3476 = vadd.f32 0.0, %v3475
    %3477 = vmatmul.f32.gmra.mxu0 %v3363
    %v3478 = vpop.f32.mrf.mxu0
    %v3479 = vadd.f32 0.0, %v3478
    %3480 = vmatmul.f32.gmra.mxu0 %v3366
    %v3481 = vpop.f32.mrf.mxu0
    %v3482 = vadd.f32 0.0, %v3481
    %3483 = vmatmul.f32.gmra.mxu0 %v3369
    %v3484 = vpop.f32.mrf.mxu0
    %v3485 = vadd.f32 0.0, %v3484
    %3486 = vdwg.mxu0
    %v3487 = vadd.f32 %v3265, %v3389
    %v3488 = vadd.f32 %v3266, %v3418
    %v3489 = vadd.f32 %v3267, %v3447
    %v3490 = vadd.f32 %v3268, %v3476
    %v3491 = vadd.f32 %v3269, %v3392
    %v3492 = vadd.f32 %v3270, %v3421
    %v3493 = vadd.f32 %v3271, %v3450
    %v3494 = vadd.f32 %v3272, %v3479
    %v3495 = vadd.f32 %v3273, %v3395
    %v3496 = vadd.f32 %v3274, %v3424
    %v3497 = vadd.f32 %v3275, %v3453
    %v3498 = vadd.f32 %v3276, %v3482
    %v3499 = vadd.f32 %v3277, %v3398
    %v3500 = vadd.f32 %v3278, %v3427
    %v3501 = vadd.f32 %v3279, %v3456
    %v3502 = vadd.f32 %v3280, %v3485
    %s3503 = scalar_lea.vmem %s4, 36
    %v3504 = vld [vmem:[%s3503] ss:$8 sm:$0xf]
    %v3506 = vperm.slane %v3504, 0
    %v3507 = vperm.slane %v3504, 1
    %v3508 = vperm.slane %v3504, 2
    %v3509 = vperm.slane %v3504, 3
    %v3514 = vmul.f32 %v148, %v3506
    %v3515 = vmul.f32 %v183, %v3507
    %v3516 = vmul.f32 %v218, %v3508
    %v3517 = vmul.f32 %v253, %v3509
    %v3518 = vmul.f32 %v151, %v3506
    %v3519 = vmul.f32 %v186, %v3507
    %v3520 = vmul.f32 %v221, %v3508
    %v3521 = vmul.f32 %v256, %v3509
    %v3522 = vmul.f32 %v154, %v3506
    %v3523 = vmul.f32 %v189, %v3507
    %v3524 = vmul.f32 %v224, %v3508
    %v3525 = vmul.f32 %v259, %v3509
    %v3526 = vmul.f32 %v157, %v3506
    %v3527 = vmul.f32 %v192, %v3507
    %v3528 = vmul.f32 %v227, %v3508
    %v3529 = vmul.f32 %v262, %v3509
    %s3530 = scalar_lea.vmem [#allocation5], 384
    %v3531 = vld [vmem:[%s3530] sm:$0xff]
    %v3532 = vld [vmem:[%s3530 + $0x8] sm:$0xff]
    %v3533 = vld [vmem:[%s3530 + $0x10] sm:$0xff]
    %v3534 = vld [vmem:[%s3530 + $0x18] sm:$0xff]
    %v3536 = vsel %vm895, %v3531, 0
    %v3539 = vsel %vm895, %v3532, 0
    %v3542 = vsel %vm895, %v3533, 0
    %v3545 = vsel %vm895, %v3534, 0
    %3547 = vmatpush.msra.mxu0 0.0
    %3548 = vmatpush.msra.mxu0 0.0
    %3549 = vmatpush.msra.mxu0 0.0
    %3550 = vmatpush.msra.mxu0 0.0
    %3551 = vmatpush.msra.mxu0 0.0
    %3552 = vmatpush.msra.mxu0 0.0
    %3553 = vmatpush.msra.mxu0 0.0
    %3554 = vmatpush.msra.mxu0 0.0
    %3555 = vmatpush.msra.mxu0 0.0
    %3556 = vmatpush.msra.mxu0 0.0
    %3557 = vmatpush.msra.mxu0 0.0
    %3558 = vmatpush.msra.mxu0 0.0
    %3559 = vmatpush.msra.mxu0 %v3526
    %3560 = vmatpush.msra.mxu0 %v3522
    %3561 = vmatpush.msra.mxu0 %v3518
    %3562 = vmatpush.msra.mxu0 %v3514
    %3563 = vmatmul.f32.gmra.mxu0 %v3536
    %v3564 = vpop.f32.mrf.mxu0
    %v3565 = vadd.f32 0.0, %v3564
    %3566 = vmatmul.f32.gmra.mxu0 %v3539
    %v3567 = vpop.f32.mrf.mxu0
    %v3568 = vadd.f32 0.0, %v3567
    %3569 = vmatmul.f32.gmra.mxu0 %v3542
    %v3570 = vpop.f32.mrf.mxu0
    %v3571 = vadd.f32 0.0, %v3570
    %3572 = vmatmul.f32.gmra.mxu0 %v3545
    %v3573 = vpop.f32.mrf.mxu0
    %v3574 = vadd.f32 0.0, %v3573
    %3575 = vdwg.mxu0
    %3576 = vmatpush.msra.mxu0 0.0
    %3577 = vmatpush.msra.mxu0 0.0
    %3578 = vmatpush.msra.mxu0 0.0
    %3579 = vmatpush.msra.mxu0 0.0
    %3580 = vmatpush.msra.mxu0 0.0
    %3581 = vmatpush.msra.mxu0 0.0
    %3582 = vmatpush.msra.mxu0 0.0
    %3583 = vmatpush.msra.mxu0 0.0
    %3584 = vmatpush.msra.mxu0 0.0
    %3585 = vmatpush.msra.mxu0 0.0
    %3586 = vmatpush.msra.mxu0 0.0
    %3587 = vmatpush.msra.mxu0 0.0
    %3588 = vmatpush.msra.mxu0 %v3527
    %3589 = vmatpush.msra.mxu0 %v3523
    %3590 = vmatpush.msra.mxu0 %v3519
    %3591 = vmatpush.msra.mxu0 %v3515
    %3592 = vmatmul.f32.gmra.mxu0 %v3536
    %v3593 = vpop.f32.mrf.mxu0
    %v3594 = vadd.f32 0.0, %v3593
    %3595 = vmatmul.f32.gmra.mxu0 %v3539
    %v3596 = vpop.f32.mrf.mxu0
    %v3597 = vadd.f32 0.0, %v3596
    %3598 = vmatmul.f32.gmra.mxu0 %v3542
    %v3599 = vpop.f32.mrf.mxu0
    %v3600 = vadd.f32 0.0, %v3599
    %3601 = vmatmul.f32.gmra.mxu0 %v3545
    %v3602 = vpop.f32.mrf.mxu0
    %v3603 = vadd.f32 0.0, %v3602
    %3604 = vdwg.mxu0
    %3605 = vmatpush.msra.mxu0 0.0
    %3606 = vmatpush.msra.mxu0 0.0
    %3607 = vmatpush.msra.mxu0 0.0
    %3608 = vmatpush.msra.mxu0 0.0
    %3609 = vmatpush.msra.mxu0 0.0
    %3610 = vmatpush.msra.mxu0 0.0
    %3611 = vmatpush.msra.mxu0 0.0
    %3612 = vmatpush.msra.mxu0 0.0
    %3613 = vmatpush.msra.mxu0 0.0
    %3614 = vmatpush.msra.mxu0 0.0
    %3615 = vmatpush.msra.mxu0 0.0
    %3616 = vmatpush.msra.mxu0 0.0
    %3617 = vmatpush.msra.mxu0 %v3528
    %3618 = vmatpush.msra.mxu0 %v3524
    %3619 = vmatpush.msra.mxu0 %v3520
    %3620 = vmatpush.msra.mxu0 %v3516
    %3621 = vmatmul.f32.gmra.mxu0 %v3536
    %v3622 = vpop.f32.mrf.mxu0
    %v3623 = vadd.f32 0.0, %v3622
    %3624 = vmatmul.f32.gmra.mxu0 %v3539
    %v3625 = vpop.f32.mrf.mxu0
    %v3626 = vadd.f32 0.0, %v3625
    %3627 = vmatmul.f32.gmra.mxu0 %v3542
    %v3628 = vpop.f32.mrf.mxu0
    %v3629 = vadd.f32 0.0, %v3628
    %3630 = vmatmul.f32.gmra.mxu0 %v3545
    %v3631 = vpop.f32.mrf.mxu0
    %v3632 = vadd.f32 0.0, %v3631
    %3633 = vdwg.mxu0
    %3634 = vmatpush.msra.mxu0 0.0
    %3635 = vmatpush.msra.mxu0 0.0
    %3636 = vmatpush.msra.mxu0 0.0
    %3637 = vmatpush.msra.mxu0 0.0
    %3638 = vmatpush.msra.mxu0 0.0
    %3639 = vmatpush.msra.mxu0 0.0
    %3640 = vmatpush.msra.mxu0 0.0
    %3641 = vmatpush.msra.mxu0 0.0
    %3642 = vmatpush.msra.mxu0 0.0
    %3643 = vmatpush.msra.mxu0 0.0
    %3644 = vmatpush.msra.mxu0 0.0
    %3645 = vmatpush.msra.mxu0 0.0
    %3646 = vmatpush.msra.mxu0 %v3529
    %3647 = vmatpush.msra.mxu0 %v3525
    %3648 = vmatpush.msra.mxu0 %v3521
    %3649 = vmatpush.msra.mxu0 %v3517
    %3650 = vmatmul.f32.gmra.mxu0 %v3536
    %v3651 = vpop.f32.mrf.mxu0
    %v3652 = vadd.f32 0.0, %v3651
    %3653 = vmatmul.f32.gmra.mxu0 %v3539
    %v3654 = vpop.f32.mrf.mxu0
    %v3655 = vadd.f32 0.0, %v3654
    %3656 = vmatmul.f32.gmra.mxu0 %v3542
    %v3657 = vpop.f32.mrf.mxu0
    %v3658 = vadd.f32 0.0, %v3657
    %3659 = vmatmul.f32.gmra.mxu0 %v3545
    %v3660 = vpop.f32.mrf.mxu0
    %v3661 = vadd.f32 0.0, %v3660
    %3662 = vdwg.mxu0
    %v3663 = vadd.f32 %v3487, %v3565
    %v3664 = vadd.f32 %v3488, %v3594
    %v3665 = vadd.f32 %v3489, %v3623
    %v3666 = vadd.f32 %v3490, %v3652
    %v3667 = vadd.f32 %v3491, %v3568
    %v3668 = vadd.f32 %v3492, %v3597
    %v3669 = vadd.f32 %v3493, %v3626
    %v3670 = vadd.f32 %v3494, %v3655
    %v3671 = vadd.f32 %v3495, %v3571
    %v3672 = vadd.f32 %v3496, %v3600
    %v3673 = vadd.f32 %v3497, %v3629
    %v3674 = vadd.f32 %v3498, %v3658
    %v3675 = vadd.f32 %v3499, %v3574
    %v3676 = vadd.f32 %v3500, %v3603
    %v3677 = vadd.f32 %v3501, %v3632
    %v3678 = vadd.f32 %v3502, %v3661
    %3679 = vrot.lane.b32.xlu0 %v148, 127
    %v3680 = vpop.permute.xlu0 %3679
    %3681 = vrot.lane.b32.xlu0 %v151, 127
    %v3682 = vpop.permute.xlu0 %3681
    %3683 = vrot.lane.b32.xlu0 %v154, 127
    %v3684 = vpop.permute.xlu0 %3683
    %3685 = vrot.lane.b32.xlu0 %v157, 127
    %v3686 = vpop.permute.xlu0 %3685
    %3687 = vrot.lane.b32.xlu0 %v183, 127
    %v3688 = vpop.permute.xlu0 %3687
    %3689 = vrot.lane.b32.xlu0 %v186, 127
    %v3690 = vpop.permute.xlu0 %3689
    %3691 = vrot.lane.b32.xlu0 %v189, 127
    %v3692 = vpop.permute.xlu0 %3691
    %3693 = vrot.lane.b32.xlu0 %v192, 127
    %v3694 = vpop.permute.xlu0 %3693
    %3695 = vrot.lane.b32.xlu0 %v218, 127
    %v3696 = vpop.permute.xlu0 %3695
    %3697 = vrot.lane.b32.xlu0 %v221, 127
    %v3698 = vpop.permute.xlu0 %3697
    %3699 = vrot.lane.b32.xlu0 %v224, 127
    %v3700 = vpop.permute.xlu0 %3699
    %3701 = vrot.lane.b32.xlu0 %v227, 127
    %v3702 = vpop.permute.xlu0 %3701
    %3703 = vrot.lane.b32.xlu0 %v253, 127
    %v3704 = vpop.permute.xlu0 %3703
    %3705 = vrot.lane.b32.xlu0 %v256, 127
    %v3706 = vpop.permute.xlu0 %3705
    %3707 = vrot.lane.b32.xlu0 %v259, 127
    %v3708 = vpop.permute.xlu0 %3707
    %3709 = vrot.lane.b32.xlu0 %v262, 127
    %v3710 = vpop.permute.xlu0 %3709
    %v3711 = vsel %vm497, %v3696, %v3704
    %v3712 = vsel %vm497, %v3698, %v3706
    %v3713 = vsel %vm497, %v3700, %v3708
    %v3714 = vsel %vm497, %v3702, %v3710
    %v3715 = vsel %vm497, %v3688, %v3696
    %v3716 = vsel %vm497, %v3690, %v3698
    %v3717 = vsel %vm497, %v3692, %v3700
    %v3718 = vsel %vm497, %v3694, %v3702
    %v3719 = vsel %vm497, %v3680, %v3688
    %v3720 = vsel %vm497, %v3682, %v3690
    %v3721 = vsel %vm497, %v3684, %v3692
    %v3722 = vsel %vm497, %v3686, %v3694
    %v3723 = vsel %vm497, %v3704, %v3680
    %v3724 = vsel %vm497, %v3706, %v3682
    %v3725 = vsel %vm497, %v3708, %v3684
    %v3726 = vsel %vm497, %v3710, %v3686
    %v3728 = vperm.slane %v479, 0
    %v3729 = vperm.slane %v479, 1
    %v3730 = vperm.slane %v479, 2
    %v3731 = vperm.slane %v479, 3
    %v3736 = vmul.f32 %v3719, %v3728
    %v3737 = vmul.f32 %v3715, %v3729
    %v3738 = vmul.f32 %v3711, %v3730
    %v3739 = vmul.f32 %v3723, %v3731
    %v3740 = vmul.f32 %v3720, %v3728
    %v3741 = vmul.f32 %v3716, %v3729
    %v3742 = vmul.f32 %v3712, %v3730
    %v3743 = vmul.f32 %v3724, %v3731
    %v3744 = vmul.f32 %v3721, %v3728
    %v3745 = vmul.f32 %v3717, %v3729
    %v3746 = vmul.f32 %v3713, %v3730
    %v3747 = vmul.f32 %v3725, %v3731
    %v3748 = vmul.f32 %v3722, %v3728
    %v3749 = vmul.f32 %v3718, %v3729
    %v3750 = vmul.f32 %v3714, %v3730
    %v3751 = vmul.f32 %v3726, %v3731
    %s3752 = scalar_lea.vmem [#allocation5], 416
    %v3753 = vld [vmem:[%s3752] sm:$0xff]
    %v3754 = vld [vmem:[%s3752 + $0x8] sm:$0xff]
    %v3755 = vld [vmem:[%s3752 + $0x10] sm:$0xff]
    %v3756 = vld [vmem:[%s3752 + $0x18] sm:$0xff]
    %v3758 = vsel %vm895, %v3753, 0
    %v3761 = vsel %vm895, %v3754, 0
    %v3764 = vsel %vm895, %v3755, 0
    %v3767 = vsel %vm895, %v3756, 0
    %3769 = vmatpush.msra.mxu0 0.0
    %3770 = vmatpush.msra.mxu0 0.0
    %3771 = vmatpush.msra.mxu0 0.0
    %3772 = vmatpush.msra.mxu0 0.0
    %3773 = vmatpush.msra.mxu0 0.0
    %3774 = vmatpush.msra.mxu0 0.0
    %3775 = vmatpush.msra.mxu0 0.0
    %3776 = vmatpush.msra.mxu0 0.0
    %3777 = vmatpush.msra.mxu0 0.0
    %3778 = vmatpush.msra.mxu0 0.0
    %3779 = vmatpush.msra.mxu0 0.0
    %3780 = vmatpush.msra.mxu0 0.0
    %3781 = vmatpush.msra.mxu0 %v3748
    %3782 = vmatpush.msra.mxu0 %v3744
    %3783 = vmatpush.msra.mxu0 %v3740
    %3784 = vmatpush.msra.mxu0 %v3736
    %3785 = vmatmul.f32.gmra.mxu0 %v3758
    %v3786 = vpop.f32.mrf.mxu0
    %v3787 = vadd.f32 0.0, %v3786
    %3788 = vmatmul.f32.gmra.mxu0 %v3761
    %v3789 = vpop.f32.mrf.mxu0
    %v3790 = vadd.f32 0.0, %v3789
    %3791 = vmatmul.f32.gmra.mxu0 %v3764
    %v3792 = vpop.f32.mrf.mxu0
    %v3793 = vadd.f32 0.0, %v3792
    %3794 = vmatmul.f32.gmra.mxu0 %v3767
    %v3795 = vpop.f32.mrf.mxu0
    %v3796 = vadd.f32 0.0, %v3795
    %3797 = vdwg.mxu0
    %3798 = vmatpush.msra.mxu0 0.0
    %3799 = vmatpush.msra.mxu0 0.0
    %3800 = vmatpush.msra.mxu0 0.0
    %3801 = vmatpush.msra.mxu0 0.0
    %3802 = vmatpush.msra.mxu0 0.0
    %3803 = vmatpush.msra.mxu0 0.0
    %3804 = vmatpush.msra.mxu0 0.0
    %3805 = vmatpush.msra.mxu0 0.0
    %3806 = vmatpush.msra.mxu0 0.0
    %3807 = vmatpush.msra.mxu0 0.0
    %3808 = vmatpush.msra.mxu0 0.0
    %3809 = vmatpush.msra.mxu0 0.0
    %3810 = vmatpush.msra.mxu0 %v3749
    %3811 = vmatpush.msra.mxu0 %v3745
    %3812 = vmatpush.msra.mxu0 %v3741
    %3813 = vmatpush.msra.mxu0 %v3737
    %3814 = vmatmul.f32.gmra.mxu0 %v3758
    %v3815 = vpop.f32.mrf.mxu0
    %v3816 = vadd.f32 0.0, %v3815
    %3817 = vmatmul.f32.gmra.mxu0 %v3761
    %v3818 = vpop.f32.mrf.mxu0
    %v3819 = vadd.f32 0.0, %v3818
    %3820 = vmatmul.f32.gmra.mxu0 %v3764
    %v3821 = vpop.f32.mrf.mxu0
    %v3822 = vadd.f32 0.0, %v3821
    %3823 = vmatmul.f32.gmra.mxu0 %v3767
    %v3824 = vpop.f32.mrf.mxu0
    %v3825 = vadd.f32 0.0, %v3824
    %3826 = vdwg.mxu0
    %3827 = vmatpush.msra.mxu0 0.0
    %3828 = vmatpush.msra.mxu0 0.0
    %3829 = vmatpush.msra.mxu0 0.0
    %3830 = vmatpush.msra.mxu0 0.0
    %3831 = vmatpush.msra.mxu0 0.0
    %3832 = vmatpush.msra.mxu0 0.0
    %3833 = vmatpush.msra.mxu0 0.0
    %3834 = vmatpush.msra.mxu0 0.0
    %3835 = vmatpush.msra.mxu0 0.0
    %3836 = vmatpush.msra.mxu0 0.0
    %3837 = vmatpush.msra.mxu0 0.0
    %3838 = vmatpush.msra.mxu0 0.0
    %3839 = vmatpush.msra.mxu0 %v3750
    %3840 = vmatpush.msra.mxu0 %v3746
    %3841 = vmatpush.msra.mxu0 %v3742
    %3842 = vmatpush.msra.mxu0 %v3738
    %3843 = vmatmul.f32.gmra.mxu0 %v3758
    %v3844 = vpop.f32.mrf.mxu0
    %v3845 = vadd.f32 0.0, %v3844
    %3846 = vmatmul.f32.gmra.mxu0 %v3761
    %v3847 = vpop.f32.mrf.mxu0
    %v3848 = vadd.f32 0.0, %v3847
    %3849 = vmatmul.f32.gmra.mxu0 %v3764
    %v3850 = vpop.f32.mrf.mxu0
    %v3851 = vadd.f32 0.0, %v3850
    %3852 = vmatmul.f32.gmra.mxu0 %v3767
    %v3853 = vpop.f32.mrf.mxu0
    %v3854 = vadd.f32 0.0, %v3853
    %3855 = vdwg.mxu0
    %3856 = vmatpush.msra.mxu0 0.0
    %3857 = vmatpush.msra.mxu0 0.0
    %3858 = vmatpush.msra.mxu0 0.0
    %3859 = vmatpush.msra.mxu0 0.0
    %3860 = vmatpush.msra.mxu0 0.0
    %3861 = vmatpush.msra.mxu0 0.0
    %3862 = vmatpush.msra.mxu0 0.0
    %3863 = vmatpush.msra.mxu0 0.0
    %3864 = vmatpush.msra.mxu0 0.0
    %3865 = vmatpush.msra.mxu0 0.0
    %3866 = vmatpush.msra.mxu0 0.0
    %3867 = vmatpush.msra.mxu0 0.0
    %3868 = vmatpush.msra.mxu0 %v3751
    %3869 = vmatpush.msra.mxu0 %v3747
    %3870 = vmatpush.msra.mxu0 %v3743
    %3871 = vmatpush.msra.mxu0 %v3739
    %3872 = vmatmul.f32.gmra.mxu0 %v3758
    %v3873 = vpop.f32.mrf.mxu0
    %v3874 = vadd.f32 0.0, %v3873
    %3875 = vmatmul.f32.gmra.mxu0 %v3761
    %v3876 = vpop.f32.mrf.mxu0
    %v3877 = vadd.f32 0.0, %v3876
    %3878 = vmatmul.f32.gmra.mxu0 %v3764
    %v3879 = vpop.f32.mrf.mxu0
    %v3880 = vadd.f32 0.0, %v3879
    %3881 = vmatmul.f32.gmra.mxu0 %v3767
    %v3882 = vpop.f32.mrf.mxu0
    %v3883 = vadd.f32 0.0, %v3882
    %3884 = vdwg.mxu0
    %v3885 = vadd.f32 %v3663, %v3787
    %v3886 = vadd.f32 %v3664, %v3816
    %v3887 = vadd.f32 %v3665, %v3845
    %v3888 = vadd.f32 %v3666, %v3874
    %v3889 = vadd.f32 %v3667, %v3790
    %v3890 = vadd.f32 %v3668, %v3819
    %v3891 = vadd.f32 %v3669, %v3848
    %v3892 = vadd.f32 %v3670, %v3877
    %v3893 = vadd.f32 %v3671, %v3793
    %v3894 = vadd.f32 %v3672, %v3822
    %v3895 = vadd.f32 %v3673, %v3851
    %v3896 = vadd.f32 %v3674, %v3880
    %v3897 = vadd.f32 %v3675, %v3796
    %v3898 = vadd.f32 %v3676, %v3825
    %v3899 = vadd.f32 %v3677, %v3854
    %v3900 = vadd.f32 %v3678, %v3883
    %3901 = vrot.lane.b32.xlu0 %v148, 126
    %v3902 = vpop.permute.xlu0 %3901
    %3903 = vrot.lane.b32.xlu0 %v151, 126
    %v3904 = vpop.permute.xlu0 %3903
    %3905 = vrot.lane.b32.xlu0 %v154, 126
    %v3906 = vpop.permute.xlu0 %3905
    %3907 = vrot.lane.b32.xlu0 %v157, 126
    %v3908 = vpop.permute.xlu0 %3907
    %3909 = vrot.lane.b32.xlu0 %v183, 126
    %v3910 = vpop.permute.xlu0 %3909
    %3911 = vrot.lane.b32.xlu0 %v186, 126
    %v3912 = vpop.permute.xlu0 %3911
    %3913 = vrot.lane.b32.xlu0 %v189, 126
    %v3914 = vpop.permute.xlu0 %3913
    %3915 = vrot.lane.b32.xlu0 %v192, 126
    %v3916 = vpop.permute.xlu0 %3915
    %3917 = vrot.lane.b32.xlu0 %v218, 126
    %v3918 = vpop.permute.xlu0 %3917
    %3919 = vrot.lane.b32.xlu0 %v221, 126
    %v3920 = vpop.permute.xlu0 %3919
    %3921 = vrot.lane.b32.xlu0 %v224, 126
    %v3922 = vpop.permute.xlu0 %3921
    %3923 = vrot.lane.b32.xlu0 %v227, 126
    %v3924 = vpop.permute.xlu0 %3923
    %3925 = vrot.lane.b32.xlu0 %v253, 126
    %v3926 = vpop.permute.xlu0 %3925
    %3927 = vrot.lane.b32.xlu0 %v256, 126
    %v3928 = vpop.permute.xlu0 %3927
    %3929 = vrot.lane.b32.xlu0 %v259, 126
    %v3930 = vpop.permute.xlu0 %3929
    %3931 = vrot.lane.b32.xlu0 %v262, 126
    %v3932 = vpop.permute.xlu0 %3931
    %vm3933 = vcmp.lt.s32.totalorder %v284, 126
    %v3934 = vsel %vm3933, %v3918, %v3926
    %v3935 = vsel %vm3933, %v3920, %v3928
    %v3936 = vsel %vm3933, %v3922, %v3930
    %v3937 = vsel %vm3933, %v3924, %v3932
    %v3938 = vsel %vm3933, %v3910, %v3918
    %v3939 = vsel %vm3933, %v3912, %v3920
    %v3940 = vsel %vm3933, %v3914, %v3922
    %v3941 = vsel %vm3933, %v3916, %v3924
    %v3942 = vsel %vm3933, %v3902, %v3910
    %v3943 = vsel %vm3933, %v3904, %v3912
    %v3944 = vsel %vm3933, %v3906, %v3914
    %v3945 = vsel %vm3933, %v3908, %v3916
    %v3946 = vsel %vm3933, %v3926, %v3902
    %v3947 = vsel %vm3933, %v3928, %v3904
    %v3948 = vsel %vm3933, %v3930, %v3906
    %v3949 = vsel %vm3933, %v3932, %v3908
    %s3950 = scalar_lea.vmem %s4, 38
    %v3951 = vld [vmem:[%s3950] ss:$8 sm:$0xf]
    %v3953 = vperm.slane %v3951, 0
    %v3954 = vperm.slane %v3951, 1
    %v3955 = vperm.slane %v3951, 2
    %v3956 = vperm.slane %v3951, 3
    %v3961 = vmul.f32 %v3942, %v3953
    %v3962 = vmul.f32 %v3938, %v3954
    %v3963 = vmul.f32 %v3934, %v3955
    %v3964 = vmul.f32 %v3946, %v3956
    %v3965 = vmul.f32 %v3943, %v3953
    %v3966 = vmul.f32 %v3939, %v3954
    %v3967 = vmul.f32 %v3935, %v3955
    %v3968 = vmul.f32 %v3947, %v3956
    %v3969 = vmul.f32 %v3944, %v3953
    %v3970 = vmul.f32 %v3940, %v3954
    %v3971 = vmul.f32 %v3936, %v3955
    %v3972 = vmul.f32 %v3948, %v3956
    %v3973 = vmul.f32 %v3945, %v3953
    %v3974 = vmul.f32 %v3941, %v3954
    %v3975 = vmul.f32 %v3937, %v3955
    %v3976 = vmul.f32 %v3949, %v3956
    %s3977 = scalar_lea.vmem [#allocation5], 448
    %v3978 = vld [vmem:[%s3977] sm:$0xff]
    %v3979 = vld [vmem:[%s3977 + $0x8] sm:$0xff]
    %v3980 = vld [vmem:[%s3977 + $0x10] sm:$0xff]
    %v3981 = vld [vmem:[%s3977 + $0x18] sm:$0xff]
    %v3983 = vsel %vm895, %v3978, 0
    %v3986 = vsel %vm895, %v3979, 0
    %v3989 = vsel %vm895, %v3980, 0
    %v3992 = vsel %vm895, %v3981, 0
    %3994 = vmatpush.msra.mxu0 0.0
    %3995 = vmatpush.msra.mxu0 0.0
    %3996 = vmatpush.msra.mxu0 0.0
    %3997 = vmatpush.msra.mxu0 0.0
    %3998 = vmatpush.msra.mxu0 0.0
    %3999 = vmatpush.msra.mxu0 0.0
    %4000 = vmatpush.msra.mxu0 0.0
    %4001 = vmatpush.msra.mxu0 0.0
    %4002 = vmatpush.msra.mxu0 0.0
    %4003 = vmatpush.msra.mxu0 0.0
    %4004 = vmatpush.msra.mxu0 0.0
    %4005 = vmatpush.msra.mxu0 0.0
    %4006 = vmatpush.msra.mxu0 %v3973
    %4007 = vmatpush.msra.mxu0 %v3969
    %4008 = vmatpush.msra.mxu0 %v3965
    %4009 = vmatpush.msra.mxu0 %v3961
    %4010 = vmatmul.f32.gmra.mxu0 %v3983
    %v4011 = vpop.f32.mrf.mxu0
    %v4012 = vadd.f32 0.0, %v4011
    %4013 = vmatmul.f32.gmra.mxu0 %v3986
    %v4014 = vpop.f32.mrf.mxu0
    %v4015 = vadd.f32 0.0, %v4014
    %4016 = vmatmul.f32.gmra.mxu0 %v3989
    %v4017 = vpop.f32.mrf.mxu0
    %v4018 = vadd.f32 0.0, %v4017
    %4019 = vmatmul.f32.gmra.mxu0 %v3992
    %v4020 = vpop.f32.mrf.mxu0
    %v4021 = vadd.f32 0.0, %v4020
    %4022 = vdwg.mxu0
    %4023 = vmatpush.msra.mxu0 0.0
    %4024 = vmatpush.msra.mxu0 0.0
    %4025 = vmatpush.msra.mxu0 0.0
    %4026 = vmatpush.msra.mxu0 0.0
    %4027 = vmatpush.msra.mxu0 0.0
    %4028 = vmatpush.msra.mxu0 0.0
    %4029 = vmatpush.msra.mxu0 0.0
    %4030 = vmatpush.msra.mxu0 0.0
    %4031 = vmatpush.msra.mxu0 0.0
    %4032 = vmatpush.msra.mxu0 0.0
    %4033 = vmatpush.msra.mxu0 0.0
    %4034 = vmatpush.msra.mxu0 0.0
    %4035 = vmatpush.msra.mxu0 %v3974
    %4036 = vmatpush.msra.mxu0 %v3970
    %4037 = vmatpush.msra.mxu0 %v3966
    %4038 = vmatpush.msra.mxu0 %v3962
    %4039 = vmatmul.f32.gmra.mxu0 %v3983
    %v4040 = vpop.f32.mrf.mxu0
    %v4041 = vadd.f32 0.0, %v4040
    %4042 = vmatmul.f32.gmra.mxu0 %v3986
    %v4043 = vpop.f32.mrf.mxu0
    %v4044 = vadd.f32 0.0, %v4043
    %4045 = vmatmul.f32.gmra.mxu0 %v3989
    %v4046 = vpop.f32.mrf.mxu0
    %v4047 = vadd.f32 0.0, %v4046
    %4048 = vmatmul.f32.gmra.mxu0 %v3992
    %v4049 = vpop.f32.mrf.mxu0
    %v4050 = vadd.f32 0.0, %v4049
    %4051 = vdwg.mxu0
    %4052 = vmatpush.msra.mxu0 0.0
    %4053 = vmatpush.msra.mxu0 0.0
    %4054 = vmatpush.msra.mxu0 0.0
    %4055 = vmatpush.msra.mxu0 0.0
    %4056 = vmatpush.msra.mxu0 0.0
    %4057 = vmatpush.msra.mxu0 0.0
    %4058 = vmatpush.msra.mxu0 0.0
    %4059 = vmatpush.msra.mxu0 0.0
    %4060 = vmatpush.msra.mxu0 0.0
    %4061 = vmatpush.msra.mxu0 0.0
    %4062 = vmatpush.msra.mxu0 0.0
    %4063 = vmatpush.msra.mxu0 0.0
    %4064 = vmatpush.msra.mxu0 %v3975
    %4065 = vmatpush.msra.mxu0 %v3971
    %4066 = vmatpush.msra.mxu0 %v3967
    %4067 = vmatpush.msra.mxu0 %v3963
    %4068 = vmatmul.f32.gmra.mxu0 %v3983
    %v4069 = vpop.f32.mrf.mxu0
    %v4070 = vadd.f32 0.0, %v4069
    %4071 = vmatmul.f32.gmra.mxu0 %v3986
    %v4072 = vpop.f32.mrf.mxu0
    %v4073 = vadd.f32 0.0, %v4072
    %4074 = vmatmul.f32.gmra.mxu0 %v3989
    %v4075 = vpop.f32.mrf.mxu0
    %v4076 = vadd.f32 0.0, %v4075
    %4077 = vmatmul.f32.gmra.mxu0 %v3992
    %v4078 = vpop.f32.mrf.mxu0
    %v4079 = vadd.f32 0.0, %v4078
    %4080 = vdwg.mxu0
    %4081 = vmatpush.msra.mxu0 0.0
    %4082 = vmatpush.msra.mxu0 0.0
    %4083 = vmatpush.msra.mxu0 0.0
    %4084 = vmatpush.msra.mxu0 0.0
    %4085 = vmatpush.msra.mxu0 0.0
    %4086 = vmatpush.msra.mxu0 0.0
    %4087 = vmatpush.msra.mxu0 0.0
    %4088 = vmatpush.msra.mxu0 0.0
    %4089 = vmatpush.msra.mxu0 0.0
    %4090 = vmatpush.msra.mxu0 0.0
    %4091 = vmatpush.msra.mxu0 0.0
    %4092 = vmatpush.msra.mxu0 0.0
    %4093 = vmatpush.msra.mxu0 %v3976
    %4094 = vmatpush.msra.mxu0 %v3972
    %4095 = vmatpush.msra.mxu0 %v3968
    %4096 = vmatpush.msra.mxu0 %v3964
    %4097 = vmatmul.f32.gmra.mxu0 %v3983
    %v4098 = vpop.f32.mrf.mxu0
    %v4099 = vadd.f32 0.0, %v4098
    %4100 = vmatmul.f32.gmra.mxu0 %v3986
    %v4101 = vpop.f32.mrf.mxu0
    %v4102 = vadd.f32 0.0, %v4101
    %4103 = vmatmul.f32.gmra.mxu0 %v3989
    %v4104 = vpop.f32.mrf.mxu0
    %v4105 = vadd.f32 0.0, %v4104
    %4106 = vmatmul.f32.gmra.mxu0 %v3992
    %v4107 = vpop.f32.mrf.mxu0
    %v4108 = vadd.f32 0.0, %v4107
    %4109 = vdwg.mxu0
    %v4110 = vadd.f32 %v3885, %v4012
    %v4111 = vadd.f32 %v3886, %v4041
    %v4112 = vadd.f32 %v3887, %v4070
    %v4113 = vadd.f32 %v3888, %v4099
    %v4114 = vadd.f32 %v3889, %v4015
    %v4115 = vadd.f32 %v3890, %v4044
    %v4116 = vadd.f32 %v3891, %v4073
    %v4117 = vadd.f32 %v3892, %v4102
    %v4118 = vadd.f32 %v3893, %v4018
    %v4119 = vadd.f32 %v3894, %v4047
    %v4120 = vadd.f32 %v3895, %v4076
    %v4121 = vadd.f32 %v3896, %v4105
    %v4122 = vadd.f32 %v3897, %v4021
    %v4123 = vadd.f32 %v3898, %v4050
    %v4124 = vadd.f32 %v3899, %v4079
    %v4125 = vadd.f32 %v3900, %v4108
    %4126 = vrot.lane.b32.xlu0 %v148, 114
    %v4127 = vpop.permute.xlu0 %4126
    %4128 = vrot.lane.b32.xlu0 %v151, 114
    %v4129 = vpop.permute.xlu0 %4128
    %4130 = vrot.lane.b32.xlu0 %v154, 114
    %v4131 = vpop.permute.xlu0 %4130
    %4132 = vrot.lane.b32.xlu0 %v157, 114
    %v4133 = vpop.permute.xlu0 %4132
    %4134 = vrot.lane.b32.xlu0 %v183, 114
    %v4135 = vpop.permute.xlu0 %4134
    %4136 = vrot.lane.b32.xlu0 %v186, 114
    %v4137 = vpop.permute.xlu0 %4136
    %4138 = vrot.lane.b32.xlu0 %v189, 114
    %v4139 = vpop.permute.xlu0 %4138
    %4140 = vrot.lane.b32.xlu0 %v192, 114
    %v4141 = vpop.permute.xlu0 %4140
    %4142 = vrot.lane.b32.xlu0 %v218, 114
    %v4143 = vpop.permute.xlu0 %4142
    %4144 = vrot.lane.b32.xlu0 %v221, 114
    %v4145 = vpop.permute.xlu0 %4144
    %4146 = vrot.lane.b32.xlu0 %v224, 114
    %v4147 = vpop.permute.xlu0 %4146
    %4148 = vrot.lane.b32.xlu0 %v227, 114
    %v4149 = vpop.permute.xlu0 %4148
    %4150 = vrot.lane.b32.xlu0 %v253, 114
    %v4151 = vpop.permute.xlu0 %4150
    %4152 = vrot.lane.b32.xlu0 %v256, 114
    %v4153 = vpop.permute.xlu0 %4152
    %4154 = vrot.lane.b32.xlu0 %v259, 114
    %v4155 = vpop.permute.xlu0 %4154
    %4156 = vrot.lane.b32.xlu0 %v262, 114
    %v4157 = vpop.permute.xlu0 %4156
    %vm4158 = vcmp.lt.s32.totalorder %v284, 114
    %v4159 = vsel %vm4158, %v4143, %v4151
    %v4160 = vsel %vm4158, %v4145, %v4153
    %v4161 = vsel %vm4158, %v4147, %v4155
    %v4162 = vsel %vm4158, %v4149, %v4157
    %v4163 = vsel %vm4158, %v4135, %v4143
    %v4164 = vsel %vm4158, %v4137, %v4145
    %v4165 = vsel %vm4158, %v4139, %v4147
    %v4166 = vsel %vm4158, %v4141, %v4149
    %v4167 = vsel %vm4158, %v4127, %v4135
    %v4168 = vsel %vm4158, %v4129, %v4137
    %v4169 = vsel %vm4158, %v4131, %v4139
    %v4170 = vsel %vm4158, %v4133, %v4141
    %v4171 = vsel %vm4158, %v4151, %v4127
    %v4172 = vsel %vm4158, %v4153, %v4129
    %v4173 = vsel %vm4158, %v4155, %v4131
    %v4174 = vsel %vm4158, %v4157, %v4133
    %s4175 = scalar_lea.vmem %s4, 39
    %v4176 = vld [vmem:[%s4175] ss:$8 sm:$0xf]
    %v4178 = vperm.slane %v4176, 0
    %v4179 = vperm.slane %v4176, 1
    %v4180 = vperm.slane %v4176, 2
    %v4181 = vperm.slane %v4176, 3
    %v4186 = vmul.f32 %v4167, %v4178
    %v4187 = vmul.f32 %v4163, %v4179
    %v4188 = vmul.f32 %v4159, %v4180
    %v4189 = vmul.f32 %v4171, %v4181
    %v4190 = vmul.f32 %v4168, %v4178
    %v4191 = vmul.f32 %v4164, %v4179
    %v4192 = vmul.f32 %v4160, %v4180
    %v4193 = vmul.f32 %v4172, %v4181
    %v4194 = vmul.f32 %v4169, %v4178
    %v4195 = vmul.f32 %v4165, %v4179
    %v4196 = vmul.f32 %v4161, %v4180
    %v4197 = vmul.f32 %v4173, %v4181
    %v4198 = vmul.f32 %v4170, %v4178
    %v4199 = vmul.f32 %v4166, %v4179
    %v4200 = vmul.f32 %v4162, %v4180
    %v4201 = vmul.f32 %v4174, %v4181
    %s4202 = scalar_lea.vmem [#allocation5], 480
    %v4203 = vld [vmem:[%s4202] sm:$0xff]
    %v4204 = vld [vmem:[%s4202 + $0x8] sm:$0xff]
    %v4205 = vld [vmem:[%s4202 + $0x10] sm:$0xff]
    %v4206 = vld [vmem:[%s4202 + $0x18] sm:$0xff]
    %v4208 = vsel %vm895, %v4203, 0
    %v4211 = vsel %vm895, %v4204, 0
    %v4214 = vsel %vm895, %v4205, 0
    %v4217 = vsel %vm895, %v4206, 0
    %4219 = vmatpush.msra.mxu0 0.0
    %4220 = vmatpush.msra.mxu0 0.0
    %4221 = vmatpush.msra.mxu0 0.0
    %4222 = vmatpush.msra.mxu0 0.0
    %4223 = vmatpush.msra.mxu0 0.0
    %4224 = vmatpush.msra.mxu0 0.0
    %4225 = vmatpush.msra.mxu0 0.0
    %4226 = vmatpush.msra.mxu0 0.0
    %4227 = vmatpush.msra.mxu0 0.0
    %4228 = vmatpush.msra.mxu0 0.0
    %4229 = vmatpush.msra.mxu0 0.0
    %4230 = vmatpush.msra.mxu0 0.0
    %4231 = vmatpush.msra.mxu0 %v4198
    %4232 = vmatpush.msra.mxu0 %v4194
    %4233 = vmatpush.msra.mxu0 %v4190
    %4234 = vmatpush.msra.mxu0 %v4186
    %4235 = vmatmul.f32.gmra.mxu0 %v4208
    %v4236 = vpop.f32.mrf.mxu0
    %v4237 = vadd.f32 0.0, %v4236
    %4238 = vmatmul.f32.gmra.mxu0 %v4211
    %v4239 = vpop.f32.mrf.mxu0
    %v4240 = vadd.f32 0.0, %v4239
    %4241 = vmatmul.f32.gmra.mxu0 %v4214
    %v4242 = vpop.f32.mrf.mxu0
    %v4243 = vadd.f32 0.0, %v4242
    %4244 = vmatmul.f32.gmra.mxu0 %v4217
    %v4245 = vpop.f32.mrf.mxu0
    %v4246 = vadd.f32 0.0, %v4245
    %4247 = vdwg.mxu0
    %4248 = vmatpush.msra.mxu0 0.0
    %4249 = vmatpush.msra.mxu0 0.0
    %4250 = vmatpush.msra.mxu0 0.0
    %4251 = vmatpush.msra.mxu0 0.0
    %4252 = vmatpush.msra.mxu0 0.0
    %4253 = vmatpush.msra.mxu0 0.0
    %4254 = vmatpush.msra.mxu0 0.0
    %4255 = vmatpush.msra.mxu0 0.0
    %4256 = vmatpush.msra.mxu0 0.0
    %4257 = vmatpush.msra.mxu0 0.0
    %4258 = vmatpush.msra.mxu0 0.0
    %4259 = vmatpush.msra.mxu0 0.0
    %4260 = vmatpush.msra.mxu0 %v4199
    %4261 = vmatpush.msra.mxu0 %v4195
    %4262 = vmatpush.msra.mxu0 %v4191
    %4263 = vmatpush.msra.mxu0 %v4187
    %4264 = vmatmul.f32.gmra.mxu0 %v4208
    %v4265 = vpop.f32.mrf.mxu0
    %v4266 = vadd.f32 0.0, %v4265
    %4267 = vmatmul.f32.gmra.mxu0 %v4211
    %v4268 = vpop.f32.mrf.mxu0
    %v4269 = vadd.f32 0.0, %v4268
    %4270 = vmatmul.f32.gmra.mxu0 %v4214
    %v4271 = vpop.f32.mrf.mxu0
    %v4272 = vadd.f32 0.0, %v4271
    %4273 = vmatmul.f32.gmra.mxu0 %v4217
    %v4274 = vpop.f32.mrf.mxu0
    %v4275 = vadd.f32 0.0, %v4274
    %4276 = vdwg.mxu0
    %4277 = vmatpush.msra.mxu0 0.0
    %4278 = vmatpush.msra.mxu0 0.0
    %4279 = vmatpush.msra.mxu0 0.0
    %4280 = vmatpush.msra.mxu0 0.0
    %4281 = vmatpush.msra.mxu0 0.0
    %4282 = vmatpush.msra.mxu0 0.0
    %4283 = vmatpush.msra.mxu0 0.0
    %4284 = vmatpush.msra.mxu0 0.0
    %4285 = vmatpush.msra.mxu0 0.0
    %4286 = vmatpush.msra.mxu0 0.0
    %4287 = vmatpush.msra.mxu0 0.0
    %4288 = vmatpush.msra.mxu0 0.0
    %4289 = vmatpush.msra.mxu0 %v4200
    %4290 = vmatpush.msra.mxu0 %v4196
    %4291 = vmatpush.msra.mxu0 %v4192
    %4292 = vmatpush.msra.mxu0 %v4188
    %4293 = vmatmul.f32.gmra.mxu0 %v4208
    %v4294 = vpop.f32.mrf.mxu0
    %v4295 = vadd.f32 0.0, %v4294
    %4296 = vmatmul.f32.gmra.mxu0 %v4211
    %v4297 = vpop.f32.mrf.mxu0
    %v4298 = vadd.f32 0.0, %v4297
    %4299 = vmatmul.f32.gmra.mxu0 %v4214
    %v4300 = vpop.f32.mrf.mxu0
    %v4301 = vadd.f32 0.0, %v4300
    %4302 = vmatmul.f32.gmra.mxu0 %v4217
    %v4303 = vpop.f32.mrf.mxu0
    %v4304 = vadd.f32 0.0, %v4303
    %4305 = vdwg.mxu0
    %4306 = vmatpush.msra.mxu0 0.0
    %4307 = vmatpush.msra.mxu0 0.0
    %4308 = vmatpush.msra.mxu0 0.0
    %4309 = vmatpush.msra.mxu0 0.0
    %4310 = vmatpush.msra.mxu0 0.0
    %4311 = vmatpush.msra.mxu0 0.0
    %4312 = vmatpush.msra.mxu0 0.0
    %4313 = vmatpush.msra.mxu0 0.0
    %4314 = vmatpush.msra.mxu0 0.0
    %4315 = vmatpush.msra.mxu0 0.0
    %4316 = vmatpush.msra.mxu0 0.0
    %4317 = vmatpush.msra.mxu0 0.0
    %4318 = vmatpush.msra.mxu0 %v4201
    %4319 = vmatpush.msra.mxu0 %v4197
    %4320 = vmatpush.msra.mxu0 %v4193
    %4321 = vmatpush.msra.mxu0 %v4189
    %4322 = vmatmul.f32.gmra.mxu0 %v4208
    %v4323 = vpop.f32.mrf.mxu0
    %v4324 = vadd.f32 0.0, %v4323
    %4325 = vmatmul.f32.gmra.mxu0 %v4211
    %v4326 = vpop.f32.mrf.mxu0
    %v4327 = vadd.f32 0.0, %v4326
    %4328 = vmatmul.f32.gmra.mxu0 %v4214
    %v4329 = vpop.f32.mrf.mxu0
    %v4330 = vadd.f32 0.0, %v4329
    %4331 = vmatmul.f32.gmra.mxu0 %v4217
    %v4332 = vpop.f32.mrf.mxu0
    %v4333 = vadd.f32 0.0, %v4332
    %4334 = vdwg.mxu0
    %v4335 = vadd.f32 %v4110, %v4237
    %v4336 = vadd.f32 %v4111, %v4266
    %v4337 = vadd.f32 %v4112, %v4295
    %v4338 = vadd.f32 %v4113, %v4324
    %v4339 = vadd.f32 %v4114, %v4240
    %v4340 = vadd.f32 %v4115, %v4269
    %v4341 = vadd.f32 %v4116, %v4298
    %v4342 = vadd.f32 %v4117, %v4327
    %v4343 = vadd.f32 %v4118, %v4243
    %v4344 = vadd.f32 %v4119, %v4272
    %v4345 = vadd.f32 %v4120, %v4301
    %v4346 = vadd.f32 %v4121, %v4330
    %v4347 = vadd.f32 %v4122, %v4246
    %v4348 = vadd.f32 %v4123, %v4275
    %v4349 = vadd.f32 %v4124, %v4304
    %v4350 = vadd.f32 %v4125, %v4333
    %4351 = vrot.lane.b32.xlu0 %v148, 113
    %v4352 = vpop.permute.xlu0 %4351
    %4353 = vrot.lane.b32.xlu0 %v151, 113
    %v4354 = vpop.permute.xlu0 %4353
    %4355 = vrot.lane.b32.xlu0 %v154, 113
    %v4356 = vpop.permute.xlu0 %4355
    %4357 = vrot.lane.b32.xlu0 %v157, 113
    %v4358 = vpop.permute.xlu0 %4357
    %4359 = vrot.lane.b32.xlu0 %v183, 113
    %v4360 = vpop.permute.xlu0 %4359
    %4361 = vrot.lane.b32.xlu0 %v186, 113
    %v4362 = vpop.permute.xlu0 %4361
    %4363 = vrot.lane.b32.xlu0 %v189, 113
    %v4364 = vpop.permute.xlu0 %4363
    %4365 = vrot.lane.b32.xlu0 %v192, 113
    %v4366 = vpop.permute.xlu0 %4365
    %4367 = vrot.lane.b32.xlu0 %v218, 113
    %v4368 = vpop.permute.xlu0 %4367
    %4369 = vrot.lane.b32.xlu0 %v221, 113
    %v4370 = vpop.permute.xlu0 %4369
    %4371 = vrot.lane.b32.xlu0 %v224, 113
    %v4372 = vpop.permute.xlu0 %4371
    %4373 = vrot.lane.b32.xlu0 %v227, 113
    %v4374 = vpop.permute.xlu0 %4373
    %4375 = vrot.lane.b32.xlu0 %v253, 113
    %v4376 = vpop.permute.xlu0 %4375
    %4377 = vrot.lane.b32.xlu0 %v256, 113
    %v4378 = vpop.permute.xlu0 %4377
    %4379 = vrot.lane.b32.xlu0 %v259, 113
    %v4380 = vpop.permute.xlu0 %4379
    %4381 = vrot.lane.b32.xlu0 %v262, 113
    %v4382 = vpop.permute.xlu0 %4381
    %v4383 = vsel %vm550, %v4368, %v4376
    %v4384 = vsel %vm550, %v4370, %v4378
    %v4385 = vsel %vm550, %v4372, %v4380
    %v4386 = vsel %vm550, %v4374, %v4382
    %v4387 = vsel %vm550, %v4360, %v4368
    %v4388 = vsel %vm550, %v4362, %v4370
    %v4389 = vsel %vm550, %v4364, %v4372
    %v4390 = vsel %vm550, %v4366, %v4374
    %v4391 = vsel %vm550, %v4352, %v4360
    %v4392 = vsel %vm550, %v4354, %v4362
    %v4393 = vsel %vm550, %v4356, %v4364
    %v4394 = vsel %vm550, %v4358, %v4366
    %v4395 = vsel %vm550, %v4376, %v4352
    %v4396 = vsel %vm550, %v4378, %v4354
    %v4397 = vsel %vm550, %v4380, %v4356
    %v4398 = vsel %vm550, %v4382, %v4358
    %v4400 = vperm.slane %v532, 0
    %v4401 = vperm.slane %v532, 1
    %v4402 = vperm.slane %v532, 2
    %v4403 = vperm.slane %v532, 3
    %v4408 = vmul.f32 %v4391, %v4400
    %v4409 = vmul.f32 %v4387, %v4401
    %v4410 = vmul.f32 %v4383, %v4402
    %v4411 = vmul.f32 %v4395, %v4403
    %v4412 = vmul.f32 %v4392, %v4400
    %v4413 = vmul.f32 %v4388, %v4401
    %v4414 = vmul.f32 %v4384, %v4402
    %v4415 = vmul.f32 %v4396, %v4403
    %v4416 = vmul.f32 %v4393, %v4400
    %v4417 = vmul.f32 %v4389, %v4401
    %v4418 = vmul.f32 %v4385, %v4402
    %v4419 = vmul.f32 %v4397, %v4403
    %v4420 = vmul.f32 %v4394, %v4400
    %v4421 = vmul.f32 %v4390, %v4401
    %v4422 = vmul.f32 %v4386, %v4402
    %v4423 = vmul.f32 %v4398, %v4403
    %s4424 = scalar_lea.vmem [#allocation5], 512
    %v4425 = vld [vmem:[%s4424] sm:$0xff]
    %v4426 = vld [vmem:[%s4424 + $0x8] sm:$0xff]
    %v4427 = vld [vmem:[%s4424 + $0x10] sm:$0xff]
    %v4428 = vld [vmem:[%s4424 + $0x18] sm:$0xff]
    %v4430 = vsel %vm895, %v4425, 0
    %v4433 = vsel %vm895, %v4426, 0
    %v4436 = vsel %vm895, %v4427, 0
    %v4439 = vsel %vm895, %v4428, 0
    %4441 = vmatpush.msra.mxu0 0.0
    %4442 = vmatpush.msra.mxu0 0.0
    %4443 = vmatpush.msra.mxu0 0.0
    %4444 = vmatpush.msra.mxu0 0.0
    %4445 = vmatpush.msra.mxu0 0.0
    %4446 = vmatpush.msra.mxu0 0.0
    %4447 = vmatpush.msra.mxu0 0.0
    %4448 = vmatpush.msra.mxu0 0.0
    %4449 = vmatpush.msra.mxu0 0.0
    %4450 = vmatpush.msra.mxu0 0.0
    %4451 = vmatpush.msra.mxu0 0.0
    %4452 = vmatpush.msra.mxu0 0.0
    %4453 = vmatpush.msra.mxu0 %v4420
    %4454 = vmatpush.msra.mxu0 %v4416
    %4455 = vmatpush.msra.mxu0 %v4412
    %4456 = vmatpush.msra.mxu0 %v4408
    %4457 = vmatmul.f32.gmra.mxu0 %v4430
    %v4458 = vpop.f32.mrf.mxu0
    %v4459 = vadd.f32 0.0, %v4458
    %4460 = vmatmul.f32.gmra.mxu0 %v4433
    %v4461 = vpop.f32.mrf.mxu0
    %v4462 = vadd.f32 0.0, %v4461
    %4463 = vmatmul.f32.gmra.mxu0 %v4436
    %v4464 = vpop.f32.mrf.mxu0
    %v4465 = vadd.f32 0.0, %v4464
    %4466 = vmatmul.f32.gmra.mxu0 %v4439
    %v4467 = vpop.f32.mrf.mxu0
    %v4468 = vadd.f32 0.0, %v4467
    %4469 = vdwg.mxu0
    %4470 = vmatpush.msra.mxu0 0.0
    %4471 = vmatpush.msra.mxu0 0.0
    %4472 = vmatpush.msra.mxu0 0.0
    %4473 = vmatpush.msra.mxu0 0.0
    %4474 = vmatpush.msra.mxu0 0.0
    %4475 = vmatpush.msra.mxu0 0.0
    %4476 = vmatpush.msra.mxu0 0.0
    %4477 = vmatpush.msra.mxu0 0.0
    %4478 = vmatpush.msra.mxu0 0.0
    %4479 = vmatpush.msra.mxu0 0.0
    %4480 = vmatpush.msra.mxu0 0.0
    %4481 = vmatpush.msra.mxu0 0.0
    %4482 = vmatpush.msra.mxu0 %v4421
    %4483 = vmatpush.msra.mxu0 %v4417
    %4484 = vmatpush.msra.mxu0 %v4413
    %4485 = vmatpush.msra.mxu0 %v4409
    %4486 = vmatmul.f32.gmra.mxu0 %v4430
    %v4487 = vpop.f32.mrf.mxu0
    %v4488 = vadd.f32 0.0, %v4487
    %4489 = vmatmul.f32.gmra.mxu0 %v4433
    %v4490 = vpop.f32.mrf.mxu0
    %v4491 = vadd.f32 0.0, %v4490
    %4492 = vmatmul.f32.gmra.mxu0 %v4436
    %v4493 = vpop.f32.mrf.mxu0
    %v4494 = vadd.f32 0.0, %v4493
    %4495 = vmatmul.f32.gmra.mxu0 %v4439
    %v4496 = vpop.f32.mrf.mxu0
    %v4497 = vadd.f32 0.0, %v4496
    %4498 = vdwg.mxu0
    %4499 = vmatpush.msra.mxu0 0.0
    %4500 = vmatpush.msra.mxu0 0.0
    %4501 = vmatpush.msra.mxu0 0.0
    %4502 = vmatpush.msra.mxu0 0.0
    %4503 = vmatpush.msra.mxu0 0.0
    %4504 = vmatpush.msra.mxu0 0.0
    %4505 = vmatpush.msra.mxu0 0.0
    %4506 = vmatpush.msra.mxu0 0.0
    %4507 = vmatpush.msra.mxu0 0.0
    %4508 = vmatpush.msra.mxu0 0.0
    %4509 = vmatpush.msra.mxu0 0.0
    %4510 = vmatpush.msra.mxu0 0.0
    %4511 = vmatpush.msra.mxu0 %v4422
    %4512 = vmatpush.msra.mxu0 %v4418
    %4513 = vmatpush.msra.mxu0 %v4414
    %4514 = vmatpush.msra.mxu0 %v4410
    %4515 = vmatmul.f32.gmra.mxu0 %v4430
    %v4516 = vpop.f32.mrf.mxu0
    %v4517 = vadd.f32 0.0, %v4516
    %4518 = vmatmul.f32.gmra.mxu0 %v4433
    %v4519 = vpop.f32.mrf.mxu0
    %v4520 = vadd.f32 0.0, %v4519
    %4521 = vmatmul.f32.gmra.mxu0 %v4436
    %v4522 = vpop.f32.mrf.mxu0
    %v4523 = vadd.f32 0.0, %v4522
    %4524 = vmatmul.f32.gmra.mxu0 %v4439
    %v4525 = vpop.f32.mrf.mxu0
    %v4526 = vadd.f32 0.0, %v4525
    %4527 = vdwg.mxu0
    %4528 = vmatpush.msra.mxu0 0.0
    %4529 = vmatpush.msra.mxu0 0.0
    %4530 = vmatpush.msra.mxu0 0.0
    %4531 = vmatpush.msra.mxu0 0.0
    %4532 = vmatpush.msra.mxu0 0.0
    %4533 = vmatpush.msra.mxu0 0.0
    %4534 = vmatpush.msra.mxu0 0.0
    %4535 = vmatpush.msra.mxu0 0.0
    %4536 = vmatpush.msra.mxu0 0.0
    %4537 = vmatpush.msra.mxu0 0.0
    %4538 = vmatpush.msra.mxu0 0.0
    %4539 = vmatpush.msra.mxu0 0.0
    %4540 = vmatpush.msra.mxu0 %v4423
    %4541 = vmatpush.msra.mxu0 %v4419
    %4542 = vmatpush.msra.mxu0 %v4415
    %4543 = vmatpush.msra.mxu0 %v4411
    %4544 = vmatmul.f32.gmra.mxu0 %v4430
    %v4545 = vpop.f32.mrf.mxu0
    %v4546 = vadd.f32 0.0, %v4545
    %4547 = vmatmul.f32.gmra.mxu0 %v4433
    %v4548 = vpop.f32.mrf.mxu0
    %v4549 = vadd.f32 0.0, %v4548
    %4550 = vmatmul.f32.gmra.mxu0 %v4436
    %v4551 = vpop.f32.mrf.mxu0
    %v4552 = vadd.f32 0.0, %v4551
    %4553 = vmatmul.f32.gmra.mxu0 %v4439
    %v4554 = vpop.f32.mrf.mxu0
    %v4555 = vadd.f32 0.0, %v4554
    %4556 = vdwg.mxu0
    %v4557 = vadd.f32 %v4335, %v4459
    %v4558 = vadd.f32 %v4336, %v4488
    %v4559 = vadd.f32 %v4337, %v4517
    %v4560 = vadd.f32 %v4338, %v4546
    %v4561 = vadd.f32 %v4339, %v4462
    %v4562 = vadd.f32 %v4340, %v4491
    %v4563 = vadd.f32 %v4341, %v4520
    %v4564 = vadd.f32 %v4342, %v4549
    %v4565 = vadd.f32 %v4343, %v4465
    %v4566 = vadd.f32 %v4344, %v4494
    %v4567 = vadd.f32 %v4345, %v4523
    %v4568 = vadd.f32 %v4346, %v4552
    %v4569 = vadd.f32 %v4347, %v4468
    %v4570 = vadd.f32 %v4348, %v4497
    %v4571 = vadd.f32 %v4349, %v4526
    %v4572 = vadd.f32 %v4350, %v4555
    %4573 = vrot.lane.b32.xlu0 %v148, 112
    %v4574 = vpop.permute.xlu0 %4573
    %4575 = vrot.lane.b32.xlu0 %v151, 112
    %v4576 = vpop.permute.xlu0 %4575
    %4577 = vrot.lane.b32.xlu0 %v154, 112
    %v4578 = vpop.permute.xlu0 %4577
    %4579 = vrot.lane.b32.xlu0 %v157, 112
    %v4580 = vpop.permute.xlu0 %4579
    %4581 = vrot.lane.b32.xlu0 %v183, 112
    %v4582 = vpop.permute.xlu0 %4581
    %4583 = vrot.lane.b32.xlu0 %v186, 112
    %v4584 = vpop.permute.xlu0 %4583
    %4585 = vrot.lane.b32.xlu0 %v189, 112
    %v4586 = vpop.permute.xlu0 %4585
    %4587 = vrot.lane.b32.xlu0 %v192, 112
    %v4588 = vpop.permute.xlu0 %4587
    %4589 = vrot.lane.b32.xlu0 %v218, 112
    %v4590 = vpop.permute.xlu0 %4589
    %4591 = vrot.lane.b32.xlu0 %v221, 112
    %v4592 = vpop.permute.xlu0 %4591
    %4593 = vrot.lane.b32.xlu0 %v224, 112
    %v4594 = vpop.permute.xlu0 %4593
    %4595 = vrot.lane.b32.xlu0 %v227, 112
    %v4596 = vpop.permute.xlu0 %4595
    %4597 = vrot.lane.b32.xlu0 %v253, 112
    %v4598 = vpop.permute.xlu0 %4597
    %4599 = vrot.lane.b32.xlu0 %v256, 112
    %v4600 = vpop.permute.xlu0 %4599
    %4601 = vrot.lane.b32.xlu0 %v259, 112
    %v4602 = vpop.permute.xlu0 %4601
    %4603 = vrot.lane.b32.xlu0 %v262, 112
    %v4604 = vpop.permute.xlu0 %4603
    %v4605 = vsel %vm603, %v4590, %v4598
    %v4606 = vsel %vm603, %v4592, %v4600
    %v4607 = vsel %vm603, %v4594, %v4602
    %v4608 = vsel %vm603, %v4596, %v4604
    %v4609 = vsel %vm603, %v4582, %v4590
    %v4610 = vsel %vm603, %v4584, %v4592
    %v4611 = vsel %vm603, %v4586, %v4594
    %v4612 = vsel %vm603, %v4588, %v4596
    %v4613 = vsel %vm603, %v4574, %v4582
    %v4614 = vsel %vm603, %v4576, %v4584
    %v4615 = vsel %vm603, %v4578, %v4586
    %v4616 = vsel %vm603, %v4580, %v4588
    %v4617 = vsel %vm603, %v4598, %v4574
    %v4618 = vsel %vm603, %v4600, %v4576
    %v4619 = vsel %vm603, %v4602, %v4578
    %v4620 = vsel %vm603, %v4604, %v4580
    %v4622 = vperm.slane %v585, 0
    %v4623 = vperm.slane %v585, 1
    %v4624 = vperm.slane %v585, 2
    %v4625 = vperm.slane %v585, 3
    %v4630 = vmul.f32 %v4613, %v4622
    %v4631 = vmul.f32 %v4609, %v4623
    %v4632 = vmul.f32 %v4605, %v4624
    %v4633 = vmul.f32 %v4617, %v4625
    %v4634 = vmul.f32 %v4614, %v4622
    %v4635 = vmul.f32 %v4610, %v4623
    %v4636 = vmul.f32 %v4606, %v4624
    %v4637 = vmul.f32 %v4618, %v4625
    %v4638 = vmul.f32 %v4615, %v4622
    %v4639 = vmul.f32 %v4611, %v4623
    %v4640 = vmul.f32 %v4607, %v4624
    %v4641 = vmul.f32 %v4619, %v4625
    %v4642 = vmul.f32 %v4616, %v4622
    %v4643 = vmul.f32 %v4612, %v4623
    %v4644 = vmul.f32 %v4608, %v4624
    %v4645 = vmul.f32 %v4620, %v4625
    %s4646 = scalar_lea.vmem [#allocation5], 544
    %v4647 = vld [vmem:[%s4646] sm:$0xff]
    %v4648 = vld [vmem:[%s4646 + $0x8] sm:$0xff]
    %v4649 = vld [vmem:[%s4646 + $0x10] sm:$0xff]
    %v4650 = vld [vmem:[%s4646 + $0x18] sm:$0xff]
    %v4652 = vsel %vm895, %v4647, 0
    %v4655 = vsel %vm895, %v4648, 0
    %v4658 = vsel %vm895, %v4649, 0
    %v4661 = vsel %vm895, %v4650, 0
    %4663 = vmatpush.msra.mxu0 0.0
    %4664 = vmatpush.msra.mxu0 0.0
    %4665 = vmatpush.msra.mxu0 0.0
    %4666 = vmatpush.msra.mxu0 0.0
    %4667 = vmatpush.msra.mxu0 0.0
    %4668 = vmatpush.msra.mxu0 0.0
    %4669 = vmatpush.msra.mxu0 0.0
    %4670 = vmatpush.msra.mxu0 0.0
    %4671 = vmatpush.msra.mxu0 0.0
    %4672 = vmatpush.msra.mxu0 0.0
    %4673 = vmatpush.msra.mxu0 0.0
    %4674 = vmatpush.msra.mxu0 0.0
    %4675 = vmatpush.msra.mxu0 %v4642
    %4676 = vmatpush.msra.mxu0 %v4638
    %4677 = vmatpush.msra.mxu0 %v4634
    %4678 = vmatpush.msra.mxu0 %v4630
    %4679 = vmatmul.f32.gmra.mxu0 %v4652
    %v4680 = vpop.f32.mrf.mxu0
    %v4681 = vadd.f32 0.0, %v4680
    %4682 = vmatmul.f32.gmra.mxu0 %v4655
    %v4683 = vpop.f32.mrf.mxu0
    %v4684 = vadd.f32 0.0, %v4683
    %4685 = vmatmul.f32.gmra.mxu0 %v4658
    %v4686 = vpop.f32.mrf.mxu0
    %v4687 = vadd.f32 0.0, %v4686
    %4688 = vmatmul.f32.gmra.mxu0 %v4661
    %v4689 = vpop.f32.mrf.mxu0
    %v4690 = vadd.f32 0.0, %v4689
    %4691 = vdwg.mxu0
    %4692 = vmatpush.msra.mxu0 0.0
    %4693 = vmatpush.msra.mxu0 0.0
    %4694 = vmatpush.msra.mxu0 0.0
    %4695 = vmatpush.msra.mxu0 0.0
    %4696 = vmatpush.msra.mxu0 0.0
    %4697 = vmatpush.msra.mxu0 0.0
    %4698 = vmatpush.msra.mxu0 0.0
    %4699 = vmatpush.msra.mxu0 0.0
    %4700 = vmatpush.msra.mxu0 0.0
    %4701 = vmatpush.msra.mxu0 0.0
    %4702 = vmatpush.msra.mxu0 0.0
    %4703 = vmatpush.msra.mxu0 0.0
    %4704 = vmatpush.msra.mxu0 %v4643
    %4705 = vmatpush.msra.mxu0 %v4639
    %4706 = vmatpush.msra.mxu0 %v4635
    %4707 = vmatpush.msra.mxu0 %v4631
    %4708 = vmatmul.f32.gmra.mxu0 %v4652
    %v4709 = vpop.f32.mrf.mxu0
    %v4710 = vadd.f32 0.0, %v4709
    %4711 = vmatmul.f32.gmra.mxu0 %v4655
    %v4712 = vpop.f32.mrf.mxu0
    %v4713 = vadd.f32 0.0, %v4712
    %4714 = vmatmul.f32.gmra.mxu0 %v4658
    %v4715 = vpop.f32.mrf.mxu0
    %v4716 = vadd.f32 0.0, %v4715
    %4717 = vmatmul.f32.gmra.mxu0 %v4661
    %v4718 = vpop.f32.mrf.mxu0
    %v4719 = vadd.f32 0.0, %v4718
    %4720 = vdwg.mxu0
    %4721 = vmatpush.msra.mxu0 0.0
    %4722 = vmatpush.msra.mxu0 0.0
    %4723 = vmatpush.msra.mxu0 0.0
    %4724 = vmatpush.msra.mxu0 0.0
    %4725 = vmatpush.msra.mxu0 0.0
    %4726 = vmatpush.msra.mxu0 0.0
    %4727 = vmatpush.msra.mxu0 0.0
    %4728 = vmatpush.msra.mxu0 0.0
    %4729 = vmatpush.msra.mxu0 0.0
    %4730 = vmatpush.msra.mxu0 0.0
    %4731 = vmatpush.msra.mxu0 0.0
    %4732 = vmatpush.msra.mxu0 0.0
    %4733 = vmatpush.msra.mxu0 %v4644
    %4734 = vmatpush.msra.mxu0 %v4640
    %4735 = vmatpush.msra.mxu0 %v4636
    %4736 = vmatpush.msra.mxu0 %v4632
    %4737 = vmatmul.f32.gmra.mxu0 %v4652
    %v4738 = vpop.f32.mrf.mxu0
    %v4739 = vadd.f32 0.0, %v4738
    %4740 = vmatmul.f32.gmra.mxu0 %v4655
    %v4741 = vpop.f32.mrf.mxu0
    %v4742 = vadd.f32 0.0, %v4741
    %4743 = vmatmul.f32.gmra.mxu0 %v4658
    %v4744 = vpop.f32.mrf.mxu0
    %v4745 = vadd.f32 0.0, %v4744
    %4746 = vmatmul.f32.gmra.mxu0 %v4661
    %v4747 = vpop.f32.mrf.mxu0
    %v4748 = vadd.f32 0.0, %v4747
    %4749 = vdwg.mxu0
    %4750 = vmatpush.msra.mxu0 0.0
    %4751 = vmatpush.msra.mxu0 0.0
    %4752 = vmatpush.msra.mxu0 0.0
    %4753 = vmatpush.msra.mxu0 0.0
    %4754 = vmatpush.msra.mxu0 0.0
    %4755 = vmatpush.msra.mxu0 0.0
    %4756 = vmatpush.msra.mxu0 0.0
    %4757 = vmatpush.msra.mxu0 0.0
    %4758 = vmatpush.msra.mxu0 0.0
    %4759 = vmatpush.msra.mxu0 0.0
    %4760 = vmatpush.msra.mxu0 0.0
    %4761 = vmatpush.msra.mxu0 0.0
    %4762 = vmatpush.msra.mxu0 %v4645
    %4763 = vmatpush.msra.mxu0 %v4641
    %4764 = vmatpush.msra.mxu0 %v4637
    %4765 = vmatpush.msra.mxu0 %v4633
    %4766 = vmatmul.f32.gmra.mxu0 %v4652
    %v4767 = vpop.f32.mrf.mxu0
    %v4768 = vadd.f32 0.0, %v4767
    %4769 = vmatmul.f32.gmra.mxu0 %v4655
    %v4770 = vpop.f32.mrf.mxu0
    %v4771 = vadd.f32 0.0, %v4770
    %4772 = vmatmul.f32.gmra.mxu0 %v4658
    %v4773 = vpop.f32.mrf.mxu0
    %v4774 = vadd.f32 0.0, %v4773
    %4775 = vmatmul.f32.gmra.mxu0 %v4661
    %v4776 = vpop.f32.mrf.mxu0
    %v4777 = vadd.f32 0.0, %v4776
    %4778 = vdwg.mxu0
    %v4779 = vadd.f32 %v4557, %v4681
    %v4780 = vadd.f32 %v4558, %v4710
    %v4781 = vadd.f32 %v4559, %v4739
    %v4782 = vadd.f32 %v4560, %v4768
    %v4783 = vadd.f32 %v4561, %v4684
    %v4784 = vadd.f32 %v4562, %v4713
    %v4785 = vadd.f32 %v4563, %v4742
    %v4786 = vadd.f32 %v4564, %v4771
    %v4787 = vadd.f32 %v4565, %v4687
    %v4788 = vadd.f32 %v4566, %v4716
    %v4789 = vadd.f32 %v4567, %v4745
    %v4790 = vadd.f32 %v4568, %v4774
    %v4791 = vadd.f32 %v4569, %v4690
    %v4792 = vadd.f32 %v4570, %v4719
    %v4793 = vadd.f32 %v4571, %v4748
    %v4794 = vadd.f32 %v4572, %v4777
    %4795 = vrot.lane.b32.xlu0 %v148, 111
    %v4796 = vpop.permute.xlu0 %4795
    %4797 = vrot.lane.b32.xlu0 %v151, 111
    %v4798 = vpop.permute.xlu0 %4797
    %4799 = vrot.lane.b32.xlu0 %v154, 111
    %v4800 = vpop.permute.xlu0 %4799
    %4801 = vrot.lane.b32.xlu0 %v157, 111
    %v4802 = vpop.permute.xlu0 %4801
    %4803 = vrot.lane.b32.xlu0 %v183, 111
    %v4804 = vpop.permute.xlu0 %4803
    %4805 = vrot.lane.b32.xlu0 %v186, 111
    %v4806 = vpop.permute.xlu0 %4805
    %4807 = vrot.lane.b32.xlu0 %v189, 111
    %v4808 = vpop.permute.xlu0 %4807
    %4809 = vrot.lane.b32.xlu0 %v192, 111
    %v4810 = vpop.permute.xlu0 %4809
    %4811 = vrot.lane.b32.xlu0 %v218, 111
    %v4812 = vpop.permute.xlu0 %4811
    %4813 = vrot.lane.b32.xlu0 %v221, 111
    %v4814 = vpop.permute.xlu0 %4813
    %4815 = vrot.lane.b32.xlu0 %v224, 111
    %v4816 = vpop.permute.xlu0 %4815
    %4817 = vrot.lane.b32.xlu0 %v227, 111
    %v4818 = vpop.permute.xlu0 %4817
    %4819 = vrot.lane.b32.xlu0 %v253, 111
    %v4820 = vpop.permute.xlu0 %4819
    %4821 = vrot.lane.b32.xlu0 %v256, 111
    %v4822 = vpop.permute.xlu0 %4821
    %4823 = vrot.lane.b32.xlu0 %v259, 111
    %v4824 = vpop.permute.xlu0 %4823
    %4825 = vrot.lane.b32.xlu0 %v262, 111
    %v4826 = vpop.permute.xlu0 %4825
    %v4827 = vsel %vm656, %v4812, %v4820
    %v4828 = vsel %vm656, %v4814, %v4822
    %v4829 = vsel %vm656, %v4816, %v4824
    %v4830 = vsel %vm656, %v4818, %v4826
    %v4831 = vsel %vm656, %v4804, %v4812
    %v4832 = vsel %vm656, %v4806, %v4814
    %v4833 = vsel %vm656, %v4808, %v4816
    %v4834 = vsel %vm656, %v4810, %v4818
    %v4835 = vsel %vm656, %v4796, %v4804
    %v4836 = vsel %vm656, %v4798, %v4806
    %v4837 = vsel %vm656, %v4800, %v4808
    %v4838 = vsel %vm656, %v4802, %v4810
    %v4839 = vsel %vm656, %v4820, %v4796
    %v4840 = vsel %vm656, %v4822, %v4798
    %v4841 = vsel %vm656, %v4824, %v4800
    %v4842 = vsel %vm656, %v4826, %v4802
    %v4844 = vperm.slane %v638, 0
    %v4845 = vperm.slane %v638, 1
    %v4846 = vperm.slane %v638, 2
    %v4847 = vperm.slane %v638, 3
    %v4852 = vmul.f32 %v4835, %v4844
    %v4853 = vmul.f32 %v4831, %v4845
    %v4854 = vmul.f32 %v4827, %v4846
    %v4855 = vmul.f32 %v4839, %v4847
    %v4856 = vmul.f32 %v4836, %v4844
    %v4857 = vmul.f32 %v4832, %v4845
    %v4858 = vmul.f32 %v4828, %v4846
    %v4859 = vmul.f32 %v4840, %v4847
    %v4860 = vmul.f32 %v4837, %v4844
    %v4861 = vmul.f32 %v4833, %v4845
    %v4862 = vmul.f32 %v4829, %v4846
    %v4863 = vmul.f32 %v4841, %v4847
    %v4864 = vmul.f32 %v4838, %v4844
    %v4865 = vmul.f32 %v4834, %v4845
    %v4866 = vmul.f32 %v4830, %v4846
    %v4867 = vmul.f32 %v4842, %v4847
    %s4868 = scalar_lea.vmem [#allocation5], 576
    %v4869 = vld [vmem:[%s4868] sm:$0xff]
    %v4870 = vld [vmem:[%s4868 + $0x8] sm:$0xff]
    %v4871 = vld [vmem:[%s4868 + $0x10] sm:$0xff]
    %v4872 = vld [vmem:[%s4868 + $0x18] sm:$0xff]
    %v4874 = vsel %vm895, %v4869, 0
    %v4877 = vsel %vm895, %v4870, 0
    %v4880 = vsel %vm895, %v4871, 0
    %v4883 = vsel %vm895, %v4872, 0
    %4885 = vmatpush.msra.mxu0 0.0
    %4886 = vmatpush.msra.mxu0 0.0
    %4887 = vmatpush.msra.mxu0 0.0
    %4888 = vmatpush.msra.mxu0 0.0
    %4889 = vmatpush.msra.mxu0 0.0
    %4890 = vmatpush.msra.mxu0 0.0
    %4891 = vmatpush.msra.mxu0 0.0
    %4892 = vmatpush.msra.mxu0 0.0
    %4893 = vmatpush.msra.mxu0 0.0
    %4894 = vmatpush.msra.mxu0 0.0
    %4895 = vmatpush.msra.mxu0 0.0
    %4896 = vmatpush.msra.mxu0 0.0
    %4897 = vmatpush.msra.mxu0 %v4864
    %4898 = vmatpush.msra.mxu0 %v4860
    %4899 = vmatpush.msra.mxu0 %v4856
    %4900 = vmatpush.msra.mxu0 %v4852
    %4901 = vmatmul.f32.gmra.mxu0 %v4874
    %v4902 = vpop.f32.mrf.mxu0
    %v4903 = vadd.f32 0.0, %v4902
    %4904 = vmatmul.f32.gmra.mxu0 %v4877
    %v4905 = vpop.f32.mrf.mxu0
    %v4906 = vadd.f32 0.0, %v4905
    %4907 = vmatmul.f32.gmra.mxu0 %v4880
    %v4908 = vpop.f32.mrf.mxu0
    %v4909 = vadd.f32 0.0, %v4908
    %4910 = vmatmul.f32.gmra.mxu0 %v4883
    %v4911 = vpop.f32.mrf.mxu0
    %v4912 = vadd.f32 0.0, %v4911
    %4913 = vdwg.mxu0
    %4914 = vmatpush.msra.mxu0 0.0
    %4915 = vmatpush.msra.mxu0 0.0
    %4916 = vmatpush.msra.mxu0 0.0
    %4917 = vmatpush.msra.mxu0 0.0
    %4918 = vmatpush.msra.mxu0 0.0
    %4919 = vmatpush.msra.mxu0 0.0
    %4920 = vmatpush.msra.mxu0 0.0
    %4921 = vmatpush.msra.mxu0 0.0
    %4922 = vmatpush.msra.mxu0 0.0
    %4923 = vmatpush.msra.mxu0 0.0
    %4924 = vmatpush.msra.mxu0 0.0
    %4925 = vmatpush.msra.mxu0 0.0
    %4926 = vmatpush.msra.mxu0 %v4865
    %4927 = vmatpush.msra.mxu0 %v4861
    %4928 = vmatpush.msra.mxu0 %v4857
    %4929 = vmatpush.msra.mxu0 %v4853
    %4930 = vmatmul.f32.gmra.mxu0 %v4874
    %v4931 = vpop.f32.mrf.mxu0
    %v4932 = vadd.f32 0.0, %v4931
    %4933 = vmatmul.f32.gmra.mxu0 %v4877
    %v4934 = vpop.f32.mrf.mxu0
    %v4935 = vadd.f32 0.0, %v4934
    %4936 = vmatmul.f32.gmra.mxu0 %v4880
    %v4937 = vpop.f32.mrf.mxu0
    %v4938 = vadd.f32 0.0, %v4937
    %4939 = vmatmul.f32.gmra.mxu0 %v4883
    %v4940 = vpop.f32.mrf.mxu0
    %v4941 = vadd.f32 0.0, %v4940
    %4942 = vdwg.mxu0
    %4943 = vmatpush.msra.mxu0 0.0
    %4944 = vmatpush.msra.mxu0 0.0
    %4945 = vmatpush.msra.mxu0 0.0
    %4946 = vmatpush.msra.mxu0 0.0
    %4947 = vmatpush.msra.mxu0 0.0
    %4948 = vmatpush.msra.mxu0 0.0
    %4949 = vmatpush.msra.mxu0 0.0
    %4950 = vmatpush.msra.mxu0 0.0
    %4951 = vmatpush.msra.mxu0 0.0
    %4952 = vmatpush.msra.mxu0 0.0
    %4953 = vmatpush.msra.mxu0 0.0
    %4954 = vmatpush.msra.mxu0 0.0
    %4955 = vmatpush.msra.mxu0 %v4866
    %4956 = vmatpush.msra.mxu0 %v4862
    %4957 = vmatpush.msra.mxu0 %v4858
    %4958 = vmatpush.msra.mxu0 %v4854
    %4959 = vmatmul.f32.gmra.mxu0 %v4874
    %v4960 = vpop.f32.mrf.mxu0
    %v4961 = vadd.f32 0.0, %v4960
    %4962 = vmatmul.f32.gmra.mxu0 %v4877
    %v4963 = vpop.f32.mrf.mxu0
    %v4964 = vadd.f32 0.0, %v4963
    %4965 = vmatmul.f32.gmra.mxu0 %v4880
    %v4966 = vpop.f32.mrf.mxu0
    %v4967 = vadd.f32 0.0, %v4966
    %4968 = vmatmul.f32.gmra.mxu0 %v4883
    %v4969 = vpop.f32.mrf.mxu0
    %v4970 = vadd.f32 0.0, %v4969
    %4971 = vdwg.mxu0
    %4972 = vmatpush.msra.mxu0 0.0
    %4973 = vmatpush.msra.mxu0 0.0
    %4974 = vmatpush.msra.mxu0 0.0
    %4975 = vmatpush.msra.mxu0 0.0
    %4976 = vmatpush.msra.mxu0 0.0
    %4977 = vmatpush.msra.mxu0 0.0
    %4978 = vmatpush.msra.mxu0 0.0
    %4979 = vmatpush.msra.mxu0 0.0
    %4980 = vmatpush.msra.mxu0 0.0
    %4981 = vmatpush.msra.mxu0 0.0
    %4982 = vmatpush.msra.mxu0 0.0
    %4983 = vmatpush.msra.mxu0 0.0
    %4984 = vmatpush.msra.mxu0 %v4867
    %4985 = vmatpush.msra.mxu0 %v4863
    %4986 = vmatpush.msra.mxu0 %v4859
    %4987 = vmatpush.msra.mxu0 %v4855
    %4988 = vmatmul.f32.gmra.mxu0 %v4874
    %v4989 = vpop.f32.mrf.mxu0
    %v4990 = vadd.f32 0.0, %v4989
    %4991 = vmatmul.f32.gmra.mxu0 %v4877
    %v4992 = vpop.f32.mrf.mxu0
    %v4993 = vadd.f32 0.0, %v4992
    %4994 = vmatmul.f32.gmra.mxu0 %v4880
    %v4995 = vpop.f32.mrf.mxu0
    %v4996 = vadd.f32 0.0, %v4995
    %4997 = vmatmul.f32.gmra.mxu0 %v4883
    %v4998 = vpop.f32.mrf.mxu0
    %v4999 = vadd.f32 0.0, %v4998
    %5000 = vdwg.mxu0
    %v5001 = vadd.f32 %v4779, %v4903
    %v5002 = vadd.f32 %v4780, %v4932
    %v5003 = vadd.f32 %v4781, %v4961
    %v5004 = vadd.f32 %v4782, %v4990
    %v5005 = vadd.f32 %v4783, %v4906
    %v5006 = vadd.f32 %v4784, %v4935
    %v5007 = vadd.f32 %v4785, %v4964
    %v5008 = vadd.f32 %v4786, %v4993
    %v5009 = vadd.f32 %v4787, %v4909
    %v5010 = vadd.f32 %v4788, %v4938
    %v5011 = vadd.f32 %v4789, %v4967
    %v5012 = vadd.f32 %v4790, %v4996
    %v5013 = vadd.f32 %v4791, %v4912
    %v5014 = vadd.f32 %v4792, %v4941
    %v5015 = vadd.f32 %v4793, %v4970
    %v5016 = vadd.f32 %v4794, %v4999
    %5017 = vrot.lane.b32.xlu0 %v148, 110
    %v5018 = vpop.permute.xlu0 %5017
    %5019 = vrot.lane.b32.xlu0 %v151, 110
    %v5020 = vpop.permute.xlu0 %5019
    %5021 = vrot.lane.b32.xlu0 %v154, 110
    %v5022 = vpop.permute.xlu0 %5021
    %5023 = vrot.lane.b32.xlu0 %v157, 110
    %v5024 = vpop.permute.xlu0 %5023
    %5025 = vrot.lane.b32.xlu0 %v183, 110
    %v5026 = vpop.permute.xlu0 %5025
    %5027 = vrot.lane.b32.xlu0 %v186, 110
    %v5028 = vpop.permute.xlu0 %5027
    %5029 = vrot.lane.b32.xlu0 %v189, 110
    %v5030 = vpop.permute.xlu0 %5029
    %5031 = vrot.lane.b32.xlu0 %v192, 110
    %v5032 = vpop.permute.xlu0 %5031
    %5033 = vrot.lane.b32.xlu0 %v218, 110
    %v5034 = vpop.permute.xlu0 %5033
    %5035 = vrot.lane.b32.xlu0 %v221, 110
    %v5036 = vpop.permute.xlu0 %5035
    %5037 = vrot.lane.b32.xlu0 %v224, 110
    %v5038 = vpop.permute.xlu0 %5037
    %5039 = vrot.lane.b32.xlu0 %v227, 110
    %v5040 = vpop.permute.xlu0 %5039
    %5041 = vrot.lane.b32.xlu0 %v253, 110
    %v5042 = vpop.permute.xlu0 %5041
    %5043 = vrot.lane.b32.xlu0 %v256, 110
    %v5044 = vpop.permute.xlu0 %5043
    %5045 = vrot.lane.b32.xlu0 %v259, 110
    %v5046 = vpop.permute.xlu0 %5045
    %5047 = vrot.lane.b32.xlu0 %v262, 110
    %v5048 = vpop.permute.xlu0 %5047
    %vm5049 = vcmp.lt.s32.totalorder %v284, 110
    %v5050 = vsel %vm5049, %v5034, %v5042
    %v5051 = vsel %vm5049, %v5036, %v5044
    %v5052 = vsel %vm5049, %v5038, %v5046
    %v5053 = vsel %vm5049, %v5040, %v5048
    %v5054 = vsel %vm5049, %v5026, %v5034
    %v5055 = vsel %vm5049, %v5028, %v5036
    %v5056 = vsel %vm5049, %v5030, %v5038
    %v5057 = vsel %vm5049, %v5032, %v5040
    %v5058 = vsel %vm5049, %v5018, %v5026
    %v5059 = vsel %vm5049, %v5020, %v5028
    %v5060 = vsel %vm5049, %v5022, %v5030
    %v5061 = vsel %vm5049, %v5024, %v5032
    %v5062 = vsel %vm5049, %v5042, %v5018
    %v5063 = vsel %vm5049, %v5044, %v5020
    %v5064 = vsel %vm5049, %v5046, %v5022
    %v5065 = vsel %vm5049, %v5048, %v5024
    %s5066 = scalar_lea.vmem %s4, 67
    %v5067 = vld [vmem:[%s5066] ss:$8 sm:$0xf]
    %v5069 = vperm.slane %v5067, 0
    %v5070 = vperm.slane %v5067, 1
    %v5071 = vperm.slane %v5067, 2
    %v5072 = vperm.slane %v5067, 3
    %v5077 = vmul.f32 %v5058, %v5069
    %v5078 = vmul.f32 %v5054, %v5070
    %v5079 = vmul.f32 %v5050, %v5071
    %v5080 = vmul.f32 %v5062, %v5072
    %v5081 = vmul.f32 %v5059, %v5069
    %v5082 = vmul.f32 %v5055, %v5070
    %v5083 = vmul.f32 %v5051, %v5071
    %v5084 = vmul.f32 %v5063, %v5072
    %v5085 = vmul.f32 %v5060, %v5069
    %v5086 = vmul.f32 %v5056, %v5070
    %v5087 = vmul.f32 %v5052, %v5071
    %v5088 = vmul.f32 %v5064, %v5072
    %v5089 = vmul.f32 %v5061, %v5069
    %v5090 = vmul.f32 %v5057, %v5070
    %v5091 = vmul.f32 %v5053, %v5071
    %v5092 = vmul.f32 %v5065, %v5072
    %s5093 = scalar_lea.vmem [#allocation5], 608
    %v5094 = vld [vmem:[%s5093] sm:$0xff]
    %v5095 = vld [vmem:[%s5093 + $0x8] sm:$0xff]
    %v5096 = vld [vmem:[%s5093 + $0x10] sm:$0xff]
    %v5097 = vld [vmem:[%s5093 + $0x18] sm:$0xff]
    %v5099 = vsel %vm895, %v5094, 0
    %v5102 = vsel %vm895, %v5095, 0
    %v5105 = vsel %vm895, %v5096, 0
    %v5108 = vsel %vm895, %v5097, 0
    %5110 = vmatpush.msra.mxu0 0.0
    %5111 = vmatpush.msra.mxu0 0.0
    %5112 = vmatpush.msra.mxu0 0.0
    %5113 = vmatpush.msra.mxu0 0.0
    %5114 = vmatpush.msra.mxu0 0.0
    %5115 = vmatpush.msra.mxu0 0.0
    %5116 = vmatpush.msra.mxu0 0.0
    %5117 = vmatpush.msra.mxu0 0.0
    %5118 = vmatpush.msra.mxu0 0.0
    %5119 = vmatpush.msra.mxu0 0.0
    %5120 = vmatpush.msra.mxu0 0.0
    %5121 = vmatpush.msra.mxu0 0.0
    %5122 = vmatpush.msra.mxu0 %v5089
    %5123 = vmatpush.msra.mxu0 %v5085
    %5124 = vmatpush.msra.mxu0 %v5081
    %5125 = vmatpush.msra.mxu0 %v5077
    %5126 = vmatmul.f32.gmra.mxu0 %v5099
    %v5127 = vpop.f32.mrf.mxu0
    %v5128 = vadd.f32 0.0, %v5127
    %5129 = vmatmul.f32.gmra.mxu0 %v5102
    %v5130 = vpop.f32.mrf.mxu0
    %v5131 = vadd.f32 0.0, %v5130
    %5132 = vmatmul.f32.gmra.mxu0 %v5105
    %v5133 = vpop.f32.mrf.mxu0
    %v5134 = vadd.f32 0.0, %v5133
    %5135 = vmatmul.f32.gmra.mxu0 %v5108
    %v5136 = vpop.f32.mrf.mxu0
    %v5137 = vadd.f32 0.0, %v5136
    %5138 = vdwg.mxu0
    %5139 = vmatpush.msra.mxu0 0.0
    %5140 = vmatpush.msra.mxu0 0.0
    %5141 = vmatpush.msra.mxu0 0.0
    %5142 = vmatpush.msra.mxu0 0.0
    %5143 = vmatpush.msra.mxu0 0.0
    %5144 = vmatpush.msra.mxu0 0.0
    %5145 = vmatpush.msra.mxu0 0.0
    %5146 = vmatpush.msra.mxu0 0.0
    %5147 = vmatpush.msra.mxu0 0.0
    %5148 = vmatpush.msra.mxu0 0.0
    %5149 = vmatpush.msra.mxu0 0.0
    %5150 = vmatpush.msra.mxu0 0.0
    %5151 = vmatpush.msra.mxu0 %v5090
    %5152 = vmatpush.msra.mxu0 %v5086
    %5153 = vmatpush.msra.mxu0 %v5082
    %5154 = vmatpush.msra.mxu0 %v5078
    %5155 = vmatmul.f32.gmra.mxu0 %v5099
    %v5156 = vpop.f32.mrf.mxu0
    %v5157 = vadd.f32 0.0, %v5156
    %5158 = vmatmul.f32.gmra.mxu0 %v5102
    %v5159 = vpop.f32.mrf.mxu0
    %v5160 = vadd.f32 0.0, %v5159
    %5161 = vmatmul.f32.gmra.mxu0 %v5105
    %v5162 = vpop.f32.mrf.mxu0
    %v5163 = vadd.f32 0.0, %v5162
    %5164 = vmatmul.f32.gmra.mxu0 %v5108
    %v5165 = vpop.f32.mrf.mxu0
    %v5166 = vadd.f32 0.0, %v5165
    %5167 = vdwg.mxu0
    %5168 = vmatpush.msra.mxu0 0.0
    %5169 = vmatpush.msra.mxu0 0.0
    %5170 = vmatpush.msra.mxu0 0.0
    %5171 = vmatpush.msra.mxu0 0.0
    %5172 = vmatpush.msra.mxu0 0.0
    %5173 = vmatpush.msra.mxu0 0.0
    %5174 = vmatpush.msra.mxu0 0.0
    %5175 = vmatpush.msra.mxu0 0.0
    %5176 = vmatpush.msra.mxu0 0.0
    %5177 = vmatpush.msra.mxu0 0.0
    %5178 = vmatpush.msra.mxu0 0.0
    %5179 = vmatpush.msra.mxu0 0.0
    %5180 = vmatpush.msra.mxu0 %v5091
    %5181 = vmatpush.msra.mxu0 %v5087
    %5182 = vmatpush.msra.mxu0 %v5083
    %5183 = vmatpush.msra.mxu0 %v5079
    %5184 = vmatmul.f32.gmra.mxu0 %v5099
    %v5185 = vpop.f32.mrf.mxu0
    %v5186 = vadd.f32 0.0, %v5185
    %5187 = vmatmul.f32.gmra.mxu0 %v5102
    %v5188 = vpop.f32.mrf.mxu0
    %v5189 = vadd.f32 0.0, %v5188
    %5190 = vmatmul.f32.gmra.mxu0 %v5105
    %v5191 = vpop.f32.mrf.mxu0
    %v5192 = vadd.f32 0.0, %v5191
    %5193 = vmatmul.f32.gmra.mxu0 %v5108
    %v5194 = vpop.f32.mrf.mxu0
    %v5195 = vadd.f32 0.0, %v5194
    %5196 = vdwg.mxu0
    %5197 = vmatpush.msra.mxu0 0.0
    %5198 = vmatpush.msra.mxu0 0.0
    %5199 = vmatpush.msra.mxu0 0.0
    %5200 = vmatpush.msra.mxu0 0.0
    %5201 = vmatpush.msra.mxu0 0.0
    %5202 = vmatpush.msra.mxu0 0.0
    %5203 = vmatpush.msra.mxu0 0.0
    %5204 = vmatpush.msra.mxu0 0.0
    %5205 = vmatpush.msra.mxu0 0.0
    %5206 = vmatpush.msra.mxu0 0.0
    %5207 = vmatpush.msra.mxu0 0.0
    %5208 = vmatpush.msra.mxu0 0.0
    %5209 = vmatpush.msra.mxu0 %v5092
    %5210 = vmatpush.msra.mxu0 %v5088
    %5211 = vmatpush.msra.mxu0 %v5084
    %5212 = vmatpush.msra.mxu0 %v5080
    %5213 = vmatmul.f32.gmra.mxu0 %v5099
    %v5214 = vpop.f32.mrf.mxu0
    %v5215 = vadd.f32 0.0, %v5214
    %5216 = vmatmul.f32.gmra.mxu0 %v5102
    %v5217 = vpop.f32.mrf.mxu0
    %v5218 = vadd.f32 0.0, %v5217
    %5219 = vmatmul.f32.gmra.mxu0 %v5105
    %v5220 = vpop.f32.mrf.mxu0
    %v5221 = vadd.f32 0.0, %v5220
    %5222 = vmatmul.f32.gmra.mxu0 %v5108
    %v5223 = vpop.f32.mrf.mxu0
    %v5224 = vadd.f32 0.0, %v5223
    %5225 = vdwg.mxu0
    %v5226 = vadd.f32 %v5001, %v5128
    %v5227 = vadd.f32 %v5002, %v5157
    %v5228 = vadd.f32 %v5003, %v5186
    %v5229 = vadd.f32 %v5004, %v5215
    %v5230 = vadd.f32 %v5005, %v5131
    %v5231 = vadd.f32 %v5006, %v5160
    %v5232 = vadd.f32 %v5007, %v5189
    %v5233 = vadd.f32 %v5008, %v5218
    %v5234 = vadd.f32 %v5009, %v5134
    %v5235 = vadd.f32 %v5010, %v5163
    %v5236 = vadd.f32 %v5011, %v5192
    %v5237 = vadd.f32 %v5012, %v5221
    %v5238 = vadd.f32 %v5013, %v5137
    %v5239 = vadd.f32 %v5014, %v5166
    %v5240 = vadd.f32 %v5015, %v5195
    %v5241 = vadd.f32 %v5016, %v5224
    %5242 = vrot.lane.b32.xlu0 %v148, 98
    %v5243 = vpop.permute.xlu0 %5242
    %5244 = vrot.lane.b32.xlu0 %v151, 98
    %v5245 = vpop.permute.xlu0 %5244
    %5246 = vrot.lane.b32.xlu0 %v154, 98
    %v5247 = vpop.permute.xlu0 %5246
    %5248 = vrot.lane.b32.xlu0 %v157, 98
    %v5249 = vpop.permute.xlu0 %5248
    %5250 = vrot.lane.b32.xlu0 %v183, 98
    %v5251 = vpop.permute.xlu0 %5250
    %5252 = vrot.lane.b32.xlu0 %v186, 98
    %v5253 = vpop.permute.xlu0 %5252
    %5254 = vrot.lane.b32.xlu0 %v189, 98
    %v5255 = vpop.permute.xlu0 %5254
    %5256 = vrot.lane.b32.xlu0 %v192, 98
    %v5257 = vpop.permute.xlu0 %5256
    %5258 = vrot.lane.b32.xlu0 %v218, 98
    %v5259 = vpop.permute.xlu0 %5258
    %5260 = vrot.lane.b32.xlu0 %v221, 98
    %v5261 = vpop.permute.xlu0 %5260
    %5262 = vrot.lane.b32.xlu0 %v224, 98
    %v5263 = vpop.permute.xlu0 %5262
    %5264 = vrot.lane.b32.xlu0 %v227, 98
    %v5265 = vpop.permute.xlu0 %5264
    %5266 = vrot.lane.b32.xlu0 %v253, 98
    %v5267 = vpop.permute.xlu0 %5266
    %5268 = vrot.lane.b32.xlu0 %v256, 98
    %v5269 = vpop.permute.xlu0 %5268
    %5270 = vrot.lane.b32.xlu0 %v259, 98
    %v5271 = vpop.permute.xlu0 %5270
    %5272 = vrot.lane.b32.xlu0 %v262, 98
    %v5273 = vpop.permute.xlu0 %5272
    %vm5274 = vcmp.lt.s32.totalorder %v284, 98
    %v5275 = vsel %vm5274, %v5259, %v5267
    %v5276 = vsel %vm5274, %v5261, %v5269
    %v5277 = vsel %vm5274, %v5263, %v5271
    %v5278 = vsel %vm5274, %v5265, %v5273
    %v5279 = vsel %vm5274, %v5251, %v5259
    %v5280 = vsel %vm5274, %v5253, %v5261
    %v5281 = vsel %vm5274, %v5255, %v5263
    %v5282 = vsel %vm5274, %v5257, %v5265
    %v5283 = vsel %vm5274, %v5243, %v5251
    %v5284 = vsel %vm5274, %v5245, %v5253
    %v5285 = vsel %vm5274, %v5247, %v5255
    %v5286 = vsel %vm5274, %v5249, %v5257
    %v5287 = vsel %vm5274, %v5267, %v5243
    %v5288 = vsel %vm5274, %v5269, %v5245
    %v5289 = vsel %vm5274, %v5271, %v5247
    %v5290 = vsel %vm5274, %v5273, %v5249
    %s5291 = scalar_lea.vmem %s4, 68
    %v5292 = vld [vmem:[%s5291] ss:$8 sm:$0xf]
    %v5294 = vperm.slane %v5292, 0
    %v5295 = vperm.slane %v5292, 1
    %v5296 = vperm.slane %v5292, 2
    %v5297 = vperm.slane %v5292, 3
    %v5302 = vmul.f32 %v5283, %v5294
    %v5303 = vmul.f32 %v5279, %v5295
    %v5304 = vmul.f32 %v5275, %v5296
    %v5305 = vmul.f32 %v5287, %v5297
    %v5306 = vmul.f32 %v5284, %v5294
    %v5307 = vmul.f32 %v5280, %v5295
    %v5308 = vmul.f32 %v5276, %v5296
    %v5309 = vmul.f32 %v5288, %v5297
    %v5310 = vmul.f32 %v5285, %v5294
    %v5311 = vmul.f32 %v5281, %v5295
    %v5312 = vmul.f32 %v5277, %v5296
    %v5313 = vmul.f32 %v5289, %v5297
    %v5314 = vmul.f32 %v5286, %v5294
    %v5315 = vmul.f32 %v5282, %v5295
    %v5316 = vmul.f32 %v5278, %v5296
    %v5317 = vmul.f32 %v5290, %v5297
    %s5318 = scalar_lea.vmem [#allocation5], 640
    %v5319 = vld [vmem:[%s5318] sm:$0xff]
    %v5320 = vld [vmem:[%s5318 + $0x8] sm:$0xff]
    %v5321 = vld [vmem:[%s5318 + $0x10] sm:$0xff]
    %v5322 = vld [vmem:[%s5318 + $0x18] sm:$0xff]
    %v5324 = vsel %vm895, %v5319, 0
    %v5327 = vsel %vm895, %v5320, 0
    %v5330 = vsel %vm895, %v5321, 0
    %v5333 = vsel %vm895, %v5322, 0
    %5335 = vmatpush.msra.mxu0 0.0
    %5336 = vmatpush.msra.mxu0 0.0
    %5337 = vmatpush.msra.mxu0 0.0
    %5338 = vmatpush.msra.mxu0 0.0
    %5339 = vmatpush.msra.mxu0 0.0
    %5340 = vmatpush.msra.mxu0 0.0
    %5341 = vmatpush.msra.mxu0 0.0
    %5342 = vmatpush.msra.mxu0 0.0
    %5343 = vmatpush.msra.mxu0 0.0
    %5344 = vmatpush.msra.mxu0 0.0
    %5345 = vmatpush.msra.mxu0 0.0
    %5346 = vmatpush.msra.mxu0 0.0
    %5347 = vmatpush.msra.mxu0 %v5314
    %5348 = vmatpush.msra.mxu0 %v5310
    %5349 = vmatpush.msra.mxu0 %v5306
    %5350 = vmatpush.msra.mxu0 %v5302
    %5351 = vmatmul.f32.gmra.mxu0 %v5324
    %v5352 = vpop.f32.mrf.mxu0
    %v5353 = vadd.f32 0.0, %v5352
    %5354 = vmatmul.f32.gmra.mxu0 %v5327
    %v5355 = vpop.f32.mrf.mxu0
    %v5356 = vadd.f32 0.0, %v5355
    %5357 = vmatmul.f32.gmra.mxu0 %v5330
    %v5358 = vpop.f32.mrf.mxu0
    %v5359 = vadd.f32 0.0, %v5358
    %5360 = vmatmul.f32.gmra.mxu0 %v5333
    %v5361 = vpop.f32.mrf.mxu0
    %v5362 = vadd.f32 0.0, %v5361
    %5363 = vdwg.mxu0
    %5364 = vmatpush.msra.mxu0 0.0
    %5365 = vmatpush.msra.mxu0 0.0
    %5366 = vmatpush.msra.mxu0 0.0
    %5367 = vmatpush.msra.mxu0 0.0
    %5368 = vmatpush.msra.mxu0 0.0
    %5369 = vmatpush.msra.mxu0 0.0
    %5370 = vmatpush.msra.mxu0 0.0
    %5371 = vmatpush.msra.mxu0 0.0
    %5372 = vmatpush.msra.mxu0 0.0
    %5373 = vmatpush.msra.mxu0 0.0
    %5374 = vmatpush.msra.mxu0 0.0
    %5375 = vmatpush.msra.mxu0 0.0
    %5376 = vmatpush.msra.mxu0 %v5315
    %5377 = vmatpush.msra.mxu0 %v5311
    %5378 = vmatpush.msra.mxu0 %v5307
    %5379 = vmatpush.msra.mxu0 %v5303
    %5380 = vmatmul.f32.gmra.mxu0 %v5324
    %v5381 = vpop.f32.mrf.mxu0
    %v5382 = vadd.f32 0.0, %v5381
    %5383 = vmatmul.f32.gmra.mxu0 %v5327
    %v5384 = vpop.f32.mrf.mxu0
    %v5385 = vadd.f32 0.0, %v5384
    %5386 = vmatmul.f32.gmra.mxu0 %v5330
    %v5387 = vpop.f32.mrf.mxu0
    %v5388 = vadd.f32 0.0, %v5387
    %5389 = vmatmul.f32.gmra.mxu0 %v5333
    %v5390 = vpop.f32.mrf.mxu0
    %v5391 = vadd.f32 0.0, %v5390
    %5392 = vdwg.mxu0
    %5393 = vmatpush.msra.mxu0 0.0
    %5394 = vmatpush.msra.mxu0 0.0
    %5395 = vmatpush.msra.mxu0 0.0
    %5396 = vmatpush.msra.mxu0 0.0
    %5397 = vmatpush.msra.mxu0 0.0
    %5398 = vmatpush.msra.mxu0 0.0
    %5399 = vmatpush.msra.mxu0 0.0
    %5400 = vmatpush.msra.mxu0 0.0
    %5401 = vmatpush.msra.mxu0 0.0
    %5402 = vmatpush.msra.mxu0 0.0
    %5403 = vmatpush.msra.mxu0 0.0
    %5404 = vmatpush.msra.mxu0 0.0
    %5405 = vmatpush.msra.mxu0 %v5316
    %5406 = vmatpush.msra.mxu0 %v5312
    %5407 = vmatpush.msra.mxu0 %v5308
    %5408 = vmatpush.msra.mxu0 %v5304
    %5409 = vmatmul.f32.gmra.mxu0 %v5324
    %v5410 = vpop.f32.mrf.mxu0
    %v5411 = vadd.f32 0.0, %v5410
    %5412 = vmatmul.f32.gmra.mxu0 %v5327
    %v5413 = vpop.f32.mrf.mxu0
    %v5414 = vadd.f32 0.0, %v5413
    %5415 = vmatmul.f32.gmra.mxu0 %v5330
    %v5416 = vpop.f32.mrf.mxu0
    %v5417 = vadd.f32 0.0, %v5416
    %5418 = vmatmul.f32.gmra.mxu0 %v5333
    %v5419 = vpop.f32.mrf.mxu0
    %v5420 = vadd.f32 0.0, %v5419
    %5421 = vdwg.mxu0
    %5422 = vmatpush.msra.mxu0 0.0
    %5423 = vmatpush.msra.mxu0 0.0
    %5424 = vmatpush.msra.mxu0 0.0
    %5425 = vmatpush.msra.mxu0 0.0
    %5426 = vmatpush.msra.mxu0 0.0
    %5427 = vmatpush.msra.mxu0 0.0
    %5428 = vmatpush.msra.mxu0 0.0
    %5429 = vmatpush.msra.mxu0 0.0
    %5430 = vmatpush.msra.mxu0 0.0
    %5431 = vmatpush.msra.mxu0 0.0
    %5432 = vmatpush.msra.mxu0 0.0
    %5433 = vmatpush.msra.mxu0 0.0
    %5434 = vmatpush.msra.mxu0 %v5317
    %5435 = vmatpush.msra.mxu0 %v5313
    %5436 = vmatpush.msra.mxu0 %v5309
    %5437 = vmatpush.msra.mxu0 %v5305
    %5438 = vmatmul.f32.gmra.mxu0 %v5324
    %v5439 = vpop.f32.mrf.mxu0
    %v5440 = vadd.f32 0.0, %v5439
    %5441 = vmatmul.f32.gmra.mxu0 %v5327
    %v5442 = vpop.f32.mrf.mxu0
    %v5443 = vadd.f32 0.0, %v5442
    %5444 = vmatmul.f32.gmra.mxu0 %v5330
    %v5445 = vpop.f32.mrf.mxu0
    %v5446 = vadd.f32 0.0, %v5445
    %5447 = vmatmul.f32.gmra.mxu0 %v5333
    %v5448 = vpop.f32.mrf.mxu0
    %v5449 = vadd.f32 0.0, %v5448
    %5450 = vdwg.mxu0
    %v5451 = vadd.f32 %v5226, %v5353
    %v5452 = vadd.f32 %v5227, %v5382
    %v5453 = vadd.f32 %v5228, %v5411
    %v5454 = vadd.f32 %v5229, %v5440
    %v5455 = vadd.f32 %v5230, %v5356
    %v5456 = vadd.f32 %v5231, %v5385
    %v5457 = vadd.f32 %v5232, %v5414
    %v5458 = vadd.f32 %v5233, %v5443
    %v5459 = vadd.f32 %v5234, %v5359
    %v5460 = vadd.f32 %v5235, %v5388
    %v5461 = vadd.f32 %v5236, %v5417
    %v5462 = vadd.f32 %v5237, %v5446
    %v5463 = vadd.f32 %v5238, %v5362
    %v5464 = vadd.f32 %v5239, %v5391
    %v5465 = vadd.f32 %v5240, %v5420
    %v5466 = vadd.f32 %v5241, %v5449
    %5467 = vrot.lane.b32.xlu0 %v148, 97
    %v5468 = vpop.permute.xlu0 %5467
    %5469 = vrot.lane.b32.xlu0 %v151, 97
    %v5470 = vpop.permute.xlu0 %5469
    %5471 = vrot.lane.b32.xlu0 %v154, 97
    %v5472 = vpop.permute.xlu0 %5471
    %5473 = vrot.lane.b32.xlu0 %v157, 97
    %v5474 = vpop.permute.xlu0 %5473
    %5475 = vrot.lane.b32.xlu0 %v183, 97
    %v5476 = vpop.permute.xlu0 %5475
    %5477 = vrot.lane.b32.xlu0 %v186, 97
    %v5478 = vpop.permute.xlu0 %5477
    %5479 = vrot.lane.b32.xlu0 %v189, 97
    %v5480 = vpop.permute.xlu0 %5479
    %5481 = vrot.lane.b32.xlu0 %v192, 97
    %v5482 = vpop.permute.xlu0 %5481
    %5483 = vrot.lane.b32.xlu0 %v218, 97
    %v5484 = vpop.permute.xlu0 %5483
    %5485 = vrot.lane.b32.xlu0 %v221, 97
    %v5486 = vpop.permute.xlu0 %5485
    %5487 = vrot.lane.b32.xlu0 %v224, 97
    %v5488 = vpop.permute.xlu0 %5487
    %5489 = vrot.lane.b32.xlu0 %v227, 97
    %v5490 = vpop.permute.xlu0 %5489
    %5491 = vrot.lane.b32.xlu0 %v253, 97
    %v5492 = vpop.permute.xlu0 %5491
    %5493 = vrot.lane.b32.xlu0 %v256, 97
    %v5494 = vpop.permute.xlu0 %5493
    %5495 = vrot.lane.b32.xlu0 %v259, 97
    %v5496 = vpop.permute.xlu0 %5495
    %5497 = vrot.lane.b32.xlu0 %v262, 97
    %v5498 = vpop.permute.xlu0 %5497
    %vm5499 = vcmp.lt.s32.totalorder %v284, 97
    %v5500 = vsel %vm5499, %v5484, %v5492
    %v5501 = vsel %vm5499, %v5486, %v5494
    %v5502 = vsel %vm5499, %v5488, %v5496
    %v5503 = vsel %vm5499, %v5490, %v5498
    %v5504 = vsel %vm5499, %v5476, %v5484
    %v5505 = vsel %vm5499, %v5478, %v5486
    %v5506 = vsel %vm5499, %v5480, %v5488
    %v5507 = vsel %vm5499, %v5482, %v5490
    %v5508 = vsel %vm5499, %v5468, %v5476
    %v5509 = vsel %vm5499, %v5470, %v5478
    %v5510 = vsel %vm5499, %v5472, %v5480
    %v5511 = vsel %vm5499, %v5474, %v5482
    %v5512 = vsel %vm5499, %v5492, %v5468
    %v5513 = vsel %vm5499, %v5494, %v5470
    %v5514 = vsel %vm5499, %v5496, %v5472
    %v5515 = vsel %vm5499, %v5498, %v5474
    %s5516 = scalar_lea.vmem %s4, 69
    %v5517 = vld [vmem:[%s5516] ss:$8 sm:$0xf]
    %v5519 = vperm.slane %v5517, 0
    %v5520 = vperm.slane %v5517, 1
    %v5521 = vperm.slane %v5517, 2
    %v5522 = vperm.slane %v5517, 3
    %v5527 = vmul.f32 %v5508, %v5519
    %v5528 = vmul.f32 %v5504, %v5520
    %v5529 = vmul.f32 %v5500, %v5521
    %v5530 = vmul.f32 %v5512, %v5522
    %v5531 = vmul.f32 %v5509, %v5519
    %v5532 = vmul.f32 %v5505, %v5520
    %v5533 = vmul.f32 %v5501, %v5521
    %v5534 = vmul.f32 %v5513, %v5522
    %v5535 = vmul.f32 %v5510, %v5519
    %v5536 = vmul.f32 %v5506, %v5520
    %v5537 = vmul.f32 %v5502, %v5521
    %v5538 = vmul.f32 %v5514, %v5522
    %v5539 = vmul.f32 %v5511, %v5519
    %v5540 = vmul.f32 %v5507, %v5520
    %v5541 = vmul.f32 %v5503, %v5521
    %v5542 = vmul.f32 %v5515, %v5522
    %s5543 = scalar_lea.vmem [#allocation5], 672
    %v5544 = vld [vmem:[%s5543] sm:$0xff]
    %v5545 = vld [vmem:[%s5543 + $0x8] sm:$0xff]
    %v5546 = vld [vmem:[%s5543 + $0x10] sm:$0xff]
    %v5547 = vld [vmem:[%s5543 + $0x18] sm:$0xff]
    %v5549 = vsel %vm895, %v5544, 0
    %v5552 = vsel %vm895, %v5545, 0
    %v5555 = vsel %vm895, %v5546, 0
    %v5558 = vsel %vm895, %v5547, 0
    %5560 = vmatpush.msra.mxu0 0.0
    %5561 = vmatpush.msra.mxu0 0.0
    %5562 = vmatpush.msra.mxu0 0.0
    %5563 = vmatpush.msra.mxu0 0.0
    %5564 = vmatpush.msra.mxu0 0.0
    %5565 = vmatpush.msra.mxu0 0.0
    %5566 = vmatpush.msra.mxu0 0.0
    %5567 = vmatpush.msra.mxu0 0.0
    %5568 = vmatpush.msra.mxu0 0.0
    %5569 = vmatpush.msra.mxu0 0.0
    %5570 = vmatpush.msra.mxu0 0.0
    %5571 = vmatpush.msra.mxu0 0.0
    %5572 = vmatpush.msra.mxu0 %v5539
    %5573 = vmatpush.msra.mxu0 %v5535
    %5574 = vmatpush.msra.mxu0 %v5531
    %5575 = vmatpush.msra.mxu0 %v5527
    %5576 = vmatmul.f32.gmra.mxu0 %v5549
    %v5577 = vpop.f32.mrf.mxu0
    %v5578 = vadd.f32 0.0, %v5577
    %5579 = vmatmul.f32.gmra.mxu0 %v5552
    %v5580 = vpop.f32.mrf.mxu0
    %v5581 = vadd.f32 0.0, %v5580
    %5582 = vmatmul.f32.gmra.mxu0 %v5555
    %v5583 = vpop.f32.mrf.mxu0
    %v5584 = vadd.f32 0.0, %v5583
    %5585 = vmatmul.f32.gmra.mxu0 %v5558
    %v5586 = vpop.f32.mrf.mxu0
    %v5587 = vadd.f32 0.0, %v5586
    %5588 = vdwg.mxu0
    %5589 = vmatpush.msra.mxu0 0.0
    %5590 = vmatpush.msra.mxu0 0.0
    %5591 = vmatpush.msra.mxu0 0.0
    %5592 = vmatpush.msra.mxu0 0.0
    %5593 = vmatpush.msra.mxu0 0.0
    %5594 = vmatpush.msra.mxu0 0.0
    %5595 = vmatpush.msra.mxu0 0.0
    %5596 = vmatpush.msra.mxu0 0.0
    %5597 = vmatpush.msra.mxu0 0.0
    %5598 = vmatpush.msra.mxu0 0.0
    %5599 = vmatpush.msra.mxu0 0.0
    %5600 = vmatpush.msra.mxu0 0.0
    %5601 = vmatpush.msra.mxu0 %v5540
    %5602 = vmatpush.msra.mxu0 %v5536
    %5603 = vmatpush.msra.mxu0 %v5532
    %5604 = vmatpush.msra.mxu0 %v5528
    %5605 = vmatmul.f32.gmra.mxu0 %v5549
    %v5606 = vpop.f32.mrf.mxu0
    %v5607 = vadd.f32 0.0, %v5606
    %5608 = vmatmul.f32.gmra.mxu0 %v5552
    %v5609 = vpop.f32.mrf.mxu0
    %v5610 = vadd.f32 0.0, %v5609
    %5611 = vmatmul.f32.gmra.mxu0 %v5555
    %v5612 = vpop.f32.mrf.mxu0
    %v5613 = vadd.f32 0.0, %v5612
    %5614 = vmatmul.f32.gmra.mxu0 %v5558
    %v5615 = vpop.f32.mrf.mxu0
    %v5616 = vadd.f32 0.0, %v5615
    %5617 = vdwg.mxu0
    %5618 = vmatpush.msra.mxu0 0.0
    %5619 = vmatpush.msra.mxu0 0.0
    %5620 = vmatpush.msra.mxu0 0.0
    %5621 = vmatpush.msra.mxu0 0.0
    %5622 = vmatpush.msra.mxu0 0.0
    %5623 = vmatpush.msra.mxu0 0.0
    %5624 = vmatpush.msra.mxu0 0.0
    %5625 = vmatpush.msra.mxu0 0.0
    %5626 = vmatpush.msra.mxu0 0.0
    %5627 = vmatpush.msra.mxu0 0.0
    %5628 = vmatpush.msra.mxu0 0.0
    %5629 = vmatpush.msra.mxu0 0.0
    %5630 = vmatpush.msra.mxu0 %v5541
    %5631 = vmatpush.msra.mxu0 %v5537
    %5632 = vmatpush.msra.mxu0 %v5533
    %5633 = vmatpush.msra.mxu0 %v5529
    %5634 = vmatmul.f32.gmra.mxu0 %v5549
    %v5635 = vpop.f32.mrf.mxu0
    %v5636 = vadd.f32 0.0, %v5635
    %5637 = vmatmul.f32.gmra.mxu0 %v5552
    %v5638 = vpop.f32.mrf.mxu0
    %v5639 = vadd.f32 0.0, %v5638
    %5640 = vmatmul.f32.gmra.mxu0 %v5555
    %v5641 = vpop.f32.mrf.mxu0
    %v5642 = vadd.f32 0.0, %v5641
    %5643 = vmatmul.f32.gmra.mxu0 %v5558
    %v5644 = vpop.f32.mrf.mxu0
    %v5645 = vadd.f32 0.0, %v5644
    %5646 = vdwg.mxu0
    %5647 = vmatpush.msra.mxu0 0.0
    %5648 = vmatpush.msra.mxu0 0.0
    %5649 = vmatpush.msra.mxu0 0.0
    %5650 = vmatpush.msra.mxu0 0.0
    %5651 = vmatpush.msra.mxu0 0.0
    %5652 = vmatpush.msra.mxu0 0.0
    %5653 = vmatpush.msra.mxu0 0.0
    %5654 = vmatpush.msra.mxu0 0.0
    %5655 = vmatpush.msra.mxu0 0.0
    %5656 = vmatpush.msra.mxu0 0.0
    %5657 = vmatpush.msra.mxu0 0.0
    %5658 = vmatpush.msra.mxu0 0.0
    %5659 = vmatpush.msra.mxu0 %v5542
    %5660 = vmatpush.msra.mxu0 %v5538
    %5661 = vmatpush.msra.mxu0 %v5534
    %5662 = vmatpush.msra.mxu0 %v5530
    %5663 = vmatmul.f32.gmra.mxu0 %v5549
    %v5664 = vpop.f32.mrf.mxu0
    %v5665 = vadd.f32 0.0, %v5664
    %5666 = vmatmul.f32.gmra.mxu0 %v5552
    %v5667 = vpop.f32.mrf.mxu0
    %v5668 = vadd.f32 0.0, %v5667
    %5669 = vmatmul.f32.gmra.mxu0 %v5555
    %v5670 = vpop.f32.mrf.mxu0
    %v5671 = vadd.f32 0.0, %v5670
    %5672 = vmatmul.f32.gmra.mxu0 %v5558
    %v5673 = vpop.f32.mrf.mxu0
    %v5674 = vadd.f32 0.0, %v5673
    %5675 = vdwg.mxu0
    %v5676 = vadd.f32 %v5451, %v5578
    %v5677 = vadd.f32 %v5452, %v5607
    %v5678 = vadd.f32 %v5453, %v5636
    %v5679 = vadd.f32 %v5454, %v5665
    %v5680 = vadd.f32 %v5455, %v5581
    %v5681 = vadd.f32 %v5456, %v5610
    %v5682 = vadd.f32 %v5457, %v5639
    %v5683 = vadd.f32 %v5458, %v5668
    %v5684 = vadd.f32 %v5459, %v5584
    %v5685 = vadd.f32 %v5460, %v5613
    %v5686 = vadd.f32 %v5461, %v5642
    %v5687 = vadd.f32 %v5462, %v5671
    %v5688 = vadd.f32 %v5463, %v5587
    %v5689 = vadd.f32 %v5464, %v5616
    %v5690 = vadd.f32 %v5465, %v5645
    %v5691 = vadd.f32 %v5466, %v5674
    %5692 = vrot.lane.b32.xlu0 %v148, 96
    %v5693 = vpop.permute.xlu0 %5692
    %5694 = vrot.lane.b32.xlu0 %v151, 96
    %v5695 = vpop.permute.xlu0 %5694
    %5696 = vrot.lane.b32.xlu0 %v154, 96
    %v5697 = vpop.permute.xlu0 %5696
    %5698 = vrot.lane.b32.xlu0 %v157, 96
    %v5699 = vpop.permute.xlu0 %5698
    %5700 = vrot.lane.b32.xlu0 %v183, 96
    %v5701 = vpop.permute.xlu0 %5700
    %5702 = vrot.lane.b32.xlu0 %v186, 96
    %v5703 = vpop.permute.xlu0 %5702
    %5704 = vrot.lane.b32.xlu0 %v189, 96
    %v5705 = vpop.permute.xlu0 %5704
    %5706 = vrot.lane.b32.xlu0 %v192, 96
    %v5707 = vpop.permute.xlu0 %5706
    %5708 = vrot.lane.b32.xlu0 %v218, 96
    %v5709 = vpop.permute.xlu0 %5708
    %5710 = vrot.lane.b32.xlu0 %v221, 96
    %v5711 = vpop.permute.xlu0 %5710
    %5712 = vrot.lane.b32.xlu0 %v224, 96
    %v5713 = vpop.permute.xlu0 %5712
    %5714 = vrot.lane.b32.xlu0 %v227, 96
    %v5715 = vpop.permute.xlu0 %5714
    %5716 = vrot.lane.b32.xlu0 %v253, 96
    %v5717 = vpop.permute.xlu0 %5716
    %5718 = vrot.lane.b32.xlu0 %v256, 96
    %v5719 = vpop.permute.xlu0 %5718
    %5720 = vrot.lane.b32.xlu0 %v259, 96
    %v5721 = vpop.permute.xlu0 %5720
    %5722 = vrot.lane.b32.xlu0 %v262, 96
    %v5723 = vpop.permute.xlu0 %5722
    %vm5724 = vcmp.lt.s32.totalorder %v284, 96
    %v5725 = vsel %vm5724, %v5709, %v5717
    %v5726 = vsel %vm5724, %v5711, %v5719
    %v5727 = vsel %vm5724, %v5713, %v5721
    %v5728 = vsel %vm5724, %v5715, %v5723
    %v5729 = vsel %vm5724, %v5701, %v5709
    %v5730 = vsel %vm5724, %v5703, %v5711
    %v5731 = vsel %vm5724, %v5705, %v5713
    %v5732 = vsel %vm5724, %v5707, %v5715
    %v5733 = vsel %vm5724, %v5693, %v5701
    %v5734 = vsel %vm5724, %v5695, %v5703
    %v5735 = vsel %vm5724, %v5697, %v5705
    %v5736 = vsel %vm5724, %v5699, %v5707
    %v5737 = vsel %vm5724, %v5717, %v5693
    %v5738 = vsel %vm5724, %v5719, %v5695
    %v5739 = vsel %vm5724, %v5721, %v5697
    %v5740 = vsel %vm5724, %v5723, %v5699
    %s5741 = scalar_lea.vmem %s4, 70
    %v5742 = vld [vmem:[%s5741] ss:$8 sm:$0xf]
    %v5744 = vperm.slane %v5742, 0
    %v5745 = vperm.slane %v5742, 1
    %v5746 = vperm.slane %v5742, 2
    %v5747 = vperm.slane %v5742, 3
    %v5752 = vmul.f32 %v5733, %v5744
    %v5753 = vmul.f32 %v5729, %v5745
    %v5754 = vmul.f32 %v5725, %v5746
    %v5755 = vmul.f32 %v5737, %v5747
    %v5756 = vmul.f32 %v5734, %v5744
    %v5757 = vmul.f32 %v5730, %v5745
    %v5758 = vmul.f32 %v5726, %v5746
    %v5759 = vmul.f32 %v5738, %v5747
    %v5760 = vmul.f32 %v5735, %v5744
    %v5761 = vmul.f32 %v5731, %v5745
    %v5762 = vmul.f32 %v5727, %v5746
    %v5763 = vmul.f32 %v5739, %v5747
    %v5764 = vmul.f32 %v5736, %v5744
    %v5765 = vmul.f32 %v5732, %v5745
    %v5766 = vmul.f32 %v5728, %v5746
    %v5767 = vmul.f32 %v5740, %v5747
    %s5768 = scalar_lea.vmem [#allocation5], 704
    %v5769 = vld [vmem:[%s5768] sm:$0xff]
    %v5770 = vld [vmem:[%s5768 + $0x8] sm:$0xff]
    %v5771 = vld [vmem:[%s5768 + $0x10] sm:$0xff]
    %v5772 = vld [vmem:[%s5768 + $0x18] sm:$0xff]
    %v5774 = vsel %vm895, %v5769, 0
    %v5777 = vsel %vm895, %v5770, 0
    %v5780 = vsel %vm895, %v5771, 0
    %v5783 = vsel %vm895, %v5772, 0
    %5785 = vmatpush.msra.mxu0 0.0
    %5786 = vmatpush.msra.mxu0 0.0
    %5787 = vmatpush.msra.mxu0 0.0
    %5788 = vmatpush.msra.mxu0 0.0
    %5789 = vmatpush.msra.mxu0 0.0
    %5790 = vmatpush.msra.mxu0 0.0
    %5791 = vmatpush.msra.mxu0 0.0
    %5792 = vmatpush.msra.mxu0 0.0
    %5793 = vmatpush.msra.mxu0 0.0
    %5794 = vmatpush.msra.mxu0 0.0
    %5795 = vmatpush.msra.mxu0 0.0
    %5796 = vmatpush.msra.mxu0 0.0
    %5797 = vmatpush.msra.mxu0 %v5764
    %5798 = vmatpush.msra.mxu0 %v5760
    %5799 = vmatpush.msra.mxu0 %v5756
    %5800 = vmatpush.msra.mxu0 %v5752
    %5801 = vmatmul.f32.gmra.mxu0 %v5774
    %v5802 = vpop.f32.mrf.mxu0
    %v5803 = vadd.f32 0.0, %v5802
    %5804 = vmatmul.f32.gmra.mxu0 %v5777
    %v5805 = vpop.f32.mrf.mxu0
    %v5806 = vadd.f32 0.0, %v5805
    %5807 = vmatmul.f32.gmra.mxu0 %v5780
    %v5808 = vpop.f32.mrf.mxu0
    %v5809 = vadd.f32 0.0, %v5808
    %5810 = vmatmul.f32.gmra.mxu0 %v5783
    %v5811 = vpop.f32.mrf.mxu0
    %v5812 = vadd.f32 0.0, %v5811
    %5813 = vdwg.mxu0
    %5814 = vmatpush.msra.mxu0 0.0
    %5815 = vmatpush.msra.mxu0 0.0
    %5816 = vmatpush.msra.mxu0 0.0
    %5817 = vmatpush.msra.mxu0 0.0
    %5818 = vmatpush.msra.mxu0 0.0
    %5819 = vmatpush.msra.mxu0 0.0
    %5820 = vmatpush.msra.mxu0 0.0
    %5821 = vmatpush.msra.mxu0 0.0
    %5822 = vmatpush.msra.mxu0 0.0
    %5823 = vmatpush.msra.mxu0 0.0
    %5824 = vmatpush.msra.mxu0 0.0
    %5825 = vmatpush.msra.mxu0 0.0
    %5826 = vmatpush.msra.mxu0 %v5765
    %5827 = vmatpush.msra.mxu0 %v5761
    %5828 = vmatpush.msra.mxu0 %v5757
    %5829 = vmatpush.msra.mxu0 %v5753
    %5830 = vmatmul.f32.gmra.mxu0 %v5774
    %v5831 = vpop.f32.mrf.mxu0
    %v5832 = vadd.f32 0.0, %v5831
    %5833 = vmatmul.f32.gmra.mxu0 %v5777
    %v5834 = vpop.f32.mrf.mxu0
    %v5835 = vadd.f32 0.0, %v5834
    %5836 = vmatmul.f32.gmra.mxu0 %v5780
    %v5837 = vpop.f32.mrf.mxu0
    %v5838 = vadd.f32 0.0, %v5837
    %5839 = vmatmul.f32.gmra.mxu0 %v5783
    %v5840 = vpop.f32.mrf.mxu0
    %v5841 = vadd.f32 0.0, %v5840
    %5842 = vdwg.mxu0
    %5843 = vmatpush.msra.mxu0 0.0
    %5844 = vmatpush.msra.mxu0 0.0
    %5845 = vmatpush.msra.mxu0 0.0
    %5846 = vmatpush.msra.mxu0 0.0
    %5847 = vmatpush.msra.mxu0 0.0
    %5848 = vmatpush.msra.mxu0 0.0
    %5849 = vmatpush.msra.mxu0 0.0
    %5850 = vmatpush.msra.mxu0 0.0
    %5851 = vmatpush.msra.mxu0 0.0
    %5852 = vmatpush.msra.mxu0 0.0
    %5853 = vmatpush.msra.mxu0 0.0
    %5854 = vmatpush.msra.mxu0 0.0
    %5855 = vmatpush.msra.mxu0 %v5766
    %5856 = vmatpush.msra.mxu0 %v5762
    %5857 = vmatpush.msra.mxu0 %v5758
    %5858 = vmatpush.msra.mxu0 %v5754
    %5859 = vmatmul.f32.gmra.mxu0 %v5774
    %v5860 = vpop.f32.mrf.mxu0
    %v5861 = vadd.f32 0.0, %v5860
    %5862 = vmatmul.f32.gmra.mxu0 %v5777
    %v5863 = vpop.f32.mrf.mxu0
    %v5864 = vadd.f32 0.0, %v5863
    %5865 = vmatmul.f32.gmra.mxu0 %v5780
    %v5866 = vpop.f32.mrf.mxu0
    %v5867 = vadd.f32 0.0, %v5866
    %5868 = vmatmul.f32.gmra.mxu0 %v5783
    %v5869 = vpop.f32.mrf.mxu0
    %v5870 = vadd.f32 0.0, %v5869
    %5871 = vdwg.mxu0
    %5872 = vmatpush.msra.mxu0 0.0
    %5873 = vmatpush.msra.mxu0 0.0
    %5874 = vmatpush.msra.mxu0 0.0
    %5875 = vmatpush.msra.mxu0 0.0
    %5876 = vmatpush.msra.mxu0 0.0
    %5877 = vmatpush.msra.mxu0 0.0
    %5878 = vmatpush.msra.mxu0 0.0
    %5879 = vmatpush.msra.mxu0 0.0
    %5880 = vmatpush.msra.mxu0 0.0
    %5881 = vmatpush.msra.mxu0 0.0
    %5882 = vmatpush.msra.mxu0 0.0
    %5883 = vmatpush.msra.mxu0 0.0
    %5884 = vmatpush.msra.mxu0 %v5767
    %5885 = vmatpush.msra.mxu0 %v5763
    %5886 = vmatpush.msra.mxu0 %v5759
    %5887 = vmatpush.msra.mxu0 %v5755
    %5888 = vmatmul.f32.gmra.mxu0 %v5774
    %v5889 = vpop.f32.mrf.mxu0
    %v5890 = vadd.f32 0.0, %v5889
    %5891 = vmatmul.f32.gmra.mxu0 %v5777
    %v5892 = vpop.f32.mrf.mxu0
    %v5893 = vadd.f32 0.0, %v5892
    %5894 = vmatmul.f32.gmra.mxu0 %v5780
    %v5895 = vpop.f32.mrf.mxu0
    %v5896 = vadd.f32 0.0, %v5895
    %5897 = vmatmul.f32.gmra.mxu0 %v5783
    %v5898 = vpop.f32.mrf.mxu0
    %v5899 = vadd.f32 0.0, %v5898
    %5900 = vdwg.mxu0
    %v5901 = vadd.f32 %v5676, %v5803
    %v5902 = vadd.f32 %v5677, %v5832
    %v5903 = vadd.f32 %v5678, %v5861
    %v5904 = vadd.f32 %v5679, %v5890
    %v5905 = vadd.f32 %v5680, %v5806
    %v5906 = vadd.f32 %v5681, %v5835
    %v5907 = vadd.f32 %v5682, %v5864
    %v5908 = vadd.f32 %v5683, %v5893
    %v5909 = vadd.f32 %v5684, %v5809
    %v5910 = vadd.f32 %v5685, %v5838
    %v5911 = vadd.f32 %v5686, %v5867
    %v5912 = vadd.f32 %v5687, %v5896
    %v5913 = vadd.f32 %v5688, %v5812
    %v5914 = vadd.f32 %v5689, %v5841
    %v5915 = vadd.f32 %v5690, %v5870
    %v5916 = vadd.f32 %v5691, %v5899
    %5917 = vrot.lane.b32.xlu0 %v148, 95
    %v5918 = vpop.permute.xlu0 %5917
    %5919 = vrot.lane.b32.xlu0 %v151, 95
    %v5920 = vpop.permute.xlu0 %5919
    %5921 = vrot.lane.b32.xlu0 %v154, 95
    %v5922 = vpop.permute.xlu0 %5921
    %5923 = vrot.lane.b32.xlu0 %v157, 95
    %v5924 = vpop.permute.xlu0 %5923
    %5925 = vrot.lane.b32.xlu0 %v183, 95
    %v5926 = vpop.permute.xlu0 %5925
    %5927 = vrot.lane.b32.xlu0 %v186, 95
    %v5928 = vpop.permute.xlu0 %5927
    %5929 = vrot.lane.b32.xlu0 %v189, 95
    %v5930 = vpop.permute.xlu0 %5929
    %5931 = vrot.lane.b32.xlu0 %v192, 95
    %v5932 = vpop.permute.xlu0 %5931
    %5933 = vrot.lane.b32.xlu0 %v218, 95
    %v5934 = vpop.permute.xlu0 %5933
    %5935 = vrot.lane.b32.xlu0 %v221, 95
    %v5936 = vpop.permute.xlu0 %5935
    %5937 = vrot.lane.b32.xlu0 %v224, 95
    %v5938 = vpop.permute.xlu0 %5937
    %5939 = vrot.lane.b32.xlu0 %v227, 95
    %v5940 = vpop.permute.xlu0 %5939
    %5941 = vrot.lane.b32.xlu0 %v253, 95
    %v5942 = vpop.permute.xlu0 %5941
    %5943 = vrot.lane.b32.xlu0 %v256, 95
    %v5944 = vpop.permute.xlu0 %5943
    %5945 = vrot.lane.b32.xlu0 %v259, 95
    %v5946 = vpop.permute.xlu0 %5945
    %5947 = vrot.lane.b32.xlu0 %v262, 95
    %v5948 = vpop.permute.xlu0 %5947
    %vm5949 = vcmp.lt.s32.totalorder %v284, 95
    %v5950 = vsel %vm5949, %v5934, %v5942
    %v5951 = vsel %vm5949, %v5936, %v5944
    %v5952 = vsel %vm5949, %v5938, %v5946
    %v5953 = vsel %vm5949, %v5940, %v5948
    %v5954 = vsel %vm5949, %v5926, %v5934
    %v5955 = vsel %vm5949, %v5928, %v5936
    %v5956 = vsel %vm5949, %v5930, %v5938
    %v5957 = vsel %vm5949, %v5932, %v5940
    %v5958 = vsel %vm5949, %v5918, %v5926
    %v5959 = vsel %vm5949, %v5920, %v5928
    %v5960 = vsel %vm5949, %v5922, %v5930
    %v5961 = vsel %vm5949, %v5924, %v5932
    %v5962 = vsel %vm5949, %v5942, %v5918
    %v5963 = vsel %vm5949, %v5944, %v5920
    %v5964 = vsel %vm5949, %v5946, %v5922
    %v5965 = vsel %vm5949, %v5948, %v5924
    %s5966 = scalar_lea.vmem %s4, 71
    %v5967 = vld [vmem:[%s5966] ss:$8 sm:$0xf]
    %v5969 = vperm.slane %v5967, 0
    %v5970 = vperm.slane %v5967, 1
    %v5971 = vperm.slane %v5967, 2
    %v5972 = vperm.slane %v5967, 3
    %v5977 = vmul.f32 %v5958, %v5969
    %v5978 = vmul.f32 %v5954, %v5970
    %v5979 = vmul.f32 %v5950, %v5971
    %v5980 = vmul.f32 %v5962, %v5972
    %v5981 = vmul.f32 %v5959, %v5969
    %v5982 = vmul.f32 %v5955, %v5970
    %v5983 = vmul.f32 %v5951, %v5971
    %v5984 = vmul.f32 %v5963, %v5972
    %v5985 = vmul.f32 %v5960, %v5969
    %v5986 = vmul.f32 %v5956, %v5970
    %v5987 = vmul.f32 %v5952, %v5971
    %v5988 = vmul.f32 %v5964, %v5972
    %v5989 = vmul.f32 %v5961, %v5969
    %v5990 = vmul.f32 %v5957, %v5970
    %v5991 = vmul.f32 %v5953, %v5971
    %v5992 = vmul.f32 %v5965, %v5972
    %s5993 = scalar_lea.vmem [#allocation5], 736
    %v5994 = vld [vmem:[%s5993] sm:$0xff]
    %v5995 = vld [vmem:[%s5993 + $0x8] sm:$0xff]
    %v5996 = vld [vmem:[%s5993 + $0x10] sm:$0xff]
    %v5997 = vld [vmem:[%s5993 + $0x18] sm:$0xff]
    %v5999 = vsel %vm895, %v5994, 0
    %v6002 = vsel %vm895, %v5995, 0
    %v6005 = vsel %vm895, %v5996, 0
    %v6008 = vsel %vm895, %v5997, 0
    %6010 = vmatpush.msra.mxu0 0.0
    %6011 = vmatpush.msra.mxu0 0.0
    %6012 = vmatpush.msra.mxu0 0.0
    %6013 = vmatpush.msra.mxu0 0.0
    %6014 = vmatpush.msra.mxu0 0.0
    %6015 = vmatpush.msra.mxu0 0.0
    %6016 = vmatpush.msra.mxu0 0.0
    %6017 = vmatpush.msra.mxu0 0.0
    %6018 = vmatpush.msra.mxu0 0.0
    %6019 = vmatpush.msra.mxu0 0.0
    %6020 = vmatpush.msra.mxu0 0.0
    %6021 = vmatpush.msra.mxu0 0.0
    %6022 = vmatpush.msra.mxu0 %v5989
    %6023 = vmatpush.msra.mxu0 %v5985
    %6024 = vmatpush.msra.mxu0 %v5981
    %6025 = vmatpush.msra.mxu0 %v5977
    %6026 = vmatmul.f32.gmra.mxu0 %v5999
    %v6027 = vpop.f32.mrf.mxu0
    %v6028 = vadd.f32 0.0, %v6027
    %6029 = vmatmul.f32.gmra.mxu0 %v6002
    %v6030 = vpop.f32.mrf.mxu0
    %v6031 = vadd.f32 0.0, %v6030
    %6032 = vmatmul.f32.gmra.mxu0 %v6005
    %v6033 = vpop.f32.mrf.mxu0
    %v6034 = vadd.f32 0.0, %v6033
    %6035 = vmatmul.f32.gmra.mxu0 %v6008
    %v6036 = vpop.f32.mrf.mxu0
    %v6037 = vadd.f32 0.0, %v6036
    %6038 = vdwg.mxu0
    %6039 = vmatpush.msra.mxu0 0.0
    %6040 = vmatpush.msra.mxu0 0.0
    %6041 = vmatpush.msra.mxu0 0.0
    %6042 = vmatpush.msra.mxu0 0.0
    %6043 = vmatpush.msra.mxu0 0.0
    %6044 = vmatpush.msra.mxu0 0.0
    %6045 = vmatpush.msra.mxu0 0.0
    %6046 = vmatpush.msra.mxu0 0.0
    %6047 = vmatpush.msra.mxu0 0.0
    %6048 = vmatpush.msra.mxu0 0.0
    %6049 = vmatpush.msra.mxu0 0.0
    %6050 = vmatpush.msra.mxu0 0.0
    %6051 = vmatpush.msra.mxu0 %v5990
    %6052 = vmatpush.msra.mxu0 %v5986
    %6053 = vmatpush.msra.mxu0 %v5982
    %6054 = vmatpush.msra.mxu0 %v5978
    %6055 = vmatmul.f32.gmra.mxu0 %v5999
    %v6056 = vpop.f32.mrf.mxu0
    %v6057 = vadd.f32 0.0, %v6056
    %6058 = vmatmul.f32.gmra.mxu0 %v6002
    %v6059 = vpop.f32.mrf.mxu0
    %v6060 = vadd.f32 0.0, %v6059
    %6061 = vmatmul.f32.gmra.mxu0 %v6005
    %v6062 = vpop.f32.mrf.mxu0
    %v6063 = vadd.f32 0.0, %v6062
    %6064 = vmatmul.f32.gmra.mxu0 %v6008
    %v6065 = vpop.f32.mrf.mxu0
    %v6066 = vadd.f32 0.0, %v6065
    %6067 = vdwg.mxu0
    %6068 = vmatpush.msra.mxu0 0.0
    %6069 = vmatpush.msra.mxu0 0.0
    %6070 = vmatpush.msra.mxu0 0.0
    %6071 = vmatpush.msra.mxu0 0.0
    %6072 = vmatpush.msra.mxu0 0.0
    %6073 = vmatpush.msra.mxu0 0.0
    %6074 = vmatpush.msra.mxu0 0.0
    %6075 = vmatpush.msra.mxu0 0.0
    %6076 = vmatpush.msra.mxu0 0.0
    %6077 = vmatpush.msra.mxu0 0.0
    %6078 = vmatpush.msra.mxu0 0.0
    %6079 = vmatpush.msra.mxu0 0.0
    %6080 = vmatpush.msra.mxu0 %v5991
    %6081 = vmatpush.msra.mxu0 %v5987
    %6082 = vmatpush.msra.mxu0 %v5983
    %6083 = vmatpush.msra.mxu0 %v5979
    %6084 = vmatmul.f32.gmra.mxu0 %v5999
    %v6085 = vpop.f32.mrf.mxu0
    %v6086 = vadd.f32 0.0, %v6085
    %6087 = vmatmul.f32.gmra.mxu0 %v6002
    %v6088 = vpop.f32.mrf.mxu0
    %v6089 = vadd.f32 0.0, %v6088
    %6090 = vmatmul.f32.gmra.mxu0 %v6005
    %v6091 = vpop.f32.mrf.mxu0
    %v6092 = vadd.f32 0.0, %v6091
    %6093 = vmatmul.f32.gmra.mxu0 %v6008
    %v6094 = vpop.f32.mrf.mxu0
    %v6095 = vadd.f32 0.0, %v6094
    %6096 = vdwg.mxu0
    %6097 = vmatpush.msra.mxu0 0.0
    %6098 = vmatpush.msra.mxu0 0.0
    %6099 = vmatpush.msra.mxu0 0.0
    %6100 = vmatpush.msra.mxu0 0.0
    %6101 = vmatpush.msra.mxu0 0.0
    %6102 = vmatpush.msra.mxu0 0.0
    %6103 = vmatpush.msra.mxu0 0.0
    %6104 = vmatpush.msra.mxu0 0.0
    %6105 = vmatpush.msra.mxu0 0.0
    %6106 = vmatpush.msra.mxu0 0.0
    %6107 = vmatpush.msra.mxu0 0.0
    %6108 = vmatpush.msra.mxu0 0.0
    %6109 = vmatpush.msra.mxu0 %v5992
    %6110 = vmatpush.msra.mxu0 %v5988
    %6111 = vmatpush.msra.mxu0 %v5984
    %6112 = vmatpush.msra.mxu0 %v5980
    %6113 = vmatmul.f32.gmra.mxu0 %v5999
    %v6114 = vpop.f32.mrf.mxu0
    %v6115 = vadd.f32 0.0, %v6114
    %6116 = vmatmul.f32.gmra.mxu0 %v6002
    %v6117 = vpop.f32.mrf.mxu0
    %v6118 = vadd.f32 0.0, %v6117
    %6119 = vmatmul.f32.gmra.mxu0 %v6005
    %v6120 = vpop.f32.mrf.mxu0
    %v6121 = vadd.f32 0.0, %v6120
    %6122 = vmatmul.f32.gmra.mxu0 %v6008
    %v6123 = vpop.f32.mrf.mxu0
    %v6124 = vadd.f32 0.0, %v6123
    %6125 = vdwg.mxu0
    %v6126 = vadd.f32 %v5901, %v6028
    %v6127 = vadd.f32 %v5902, %v6057
    %v6128 = vadd.f32 %v5903, %v6086
    %v6129 = vadd.f32 %v5904, %v6115
    %v6130 = vadd.f32 %v5905, %v6031
    %v6131 = vadd.f32 %v5906, %v6060
    %v6132 = vadd.f32 %v5907, %v6089
    %v6133 = vadd.f32 %v5908, %v6118
    %v6134 = vadd.f32 %v5909, %v6034
    %v6135 = vadd.f32 %v5910, %v6063
    %v6136 = vadd.f32 %v5911, %v6092
    %v6137 = vadd.f32 %v5912, %v6121
    %v6138 = vadd.f32 %v5913, %v6037
    %v6139 = vadd.f32 %v5914, %v6066
    %v6140 = vadd.f32 %v5915, %v6095
    %v6141 = vadd.f32 %v5916, %v6124
    %6142 = vrot.lane.b32.xlu0 %v148, 94
    %v6143 = vpop.permute.xlu0 %6142
    %6144 = vrot.lane.b32.xlu0 %v151, 94
    %v6145 = vpop.permute.xlu0 %6144
    %6146 = vrot.lane.b32.xlu0 %v154, 94
    %v6147 = vpop.permute.xlu0 %6146
    %6148 = vrot.lane.b32.xlu0 %v157, 94
    %v6149 = vpop.permute.xlu0 %6148
    %6150 = vrot.lane.b32.xlu0 %v183, 94
    %v6151 = vpop.permute.xlu0 %6150
    %6152 = vrot.lane.b32.xlu0 %v186, 94
    %v6153 = vpop.permute.xlu0 %6152
    %6154 = vrot.lane.b32.xlu0 %v189, 94
    %v6155 = vpop.permute.xlu0 %6154
    %6156 = vrot.lane.b32.xlu0 %v192, 94
    %v6157 = vpop.permute.xlu0 %6156
    %6158 = vrot.lane.b32.xlu0 %v218, 94
    %v6159 = vpop.permute.xlu0 %6158
    %6160 = vrot.lane.b32.xlu0 %v221, 94
    %v6161 = vpop.permute.xlu0 %6160
    %6162 = vrot.lane.b32.xlu0 %v224, 94
    %v6163 = vpop.permute.xlu0 %6162
    %6164 = vrot.lane.b32.xlu0 %v227, 94
    %v6165 = vpop.permute.xlu0 %6164
    %6166 = vrot.lane.b32.xlu0 %v253, 94
    %v6167 = vpop.permute.xlu0 %6166
    %6168 = vrot.lane.b32.xlu0 %v256, 94
    %v6169 = vpop.permute.xlu0 %6168
    %6170 = vrot.lane.b32.xlu0 %v259, 94
    %v6171 = vpop.permute.xlu0 %6170
    %6172 = vrot.lane.b32.xlu0 %v262, 94
    %v6173 = vpop.permute.xlu0 %6172
    %vm6174 = vcmp.lt.s32.totalorder %v284, 94
    %v6175 = vsel %vm6174, %v6159, %v6167
    %v6176 = vsel %vm6174, %v6161, %v6169
    %v6177 = vsel %vm6174, %v6163, %v6171
    %v6178 = vsel %vm6174, %v6165, %v6173
    %v6179 = vsel %vm6174, %v6151, %v6159
    %v6180 = vsel %vm6174, %v6153, %v6161
    %v6181 = vsel %vm6174, %v6155, %v6163
    %v6182 = vsel %vm6174, %v6157, %v6165
    %v6183 = vsel %vm6174, %v6143, %v6151
    %v6184 = vsel %vm6174, %v6145, %v6153
    %v6185 = vsel %vm6174, %v6147, %v6155
    %v6186 = vsel %vm6174, %v6149, %v6157
    %v6187 = vsel %vm6174, %v6167, %v6143
    %v6188 = vsel %vm6174, %v6169, %v6145
    %v6189 = vsel %vm6174, %v6171, %v6147
    %v6190 = vsel %vm6174, %v6173, %v6149
    %s6191 = scalar_lea.vmem %s4, 96
    %v6192 = vld [vmem:[%s6191] ss:$8 sm:$0xf]
    %v6194 = vperm.slane %v6192, 0
    %v6195 = vperm.slane %v6192, 1
    %v6196 = vperm.slane %v6192, 2
    %v6197 = vperm.slane %v6192, 3
    %v6202 = vmul.f32 %v6183, %v6194
    %v6203 = vmul.f32 %v6179, %v6195
    %v6204 = vmul.f32 %v6175, %v6196
    %v6205 = vmul.f32 %v6187, %v6197
    %v6206 = vmul.f32 %v6184, %v6194
    %v6207 = vmul.f32 %v6180, %v6195
    %v6208 = vmul.f32 %v6176, %v6196
    %v6209 = vmul.f32 %v6188, %v6197
    %v6210 = vmul.f32 %v6185, %v6194
    %v6211 = vmul.f32 %v6181, %v6195
    %v6212 = vmul.f32 %v6177, %v6196
    %v6213 = vmul.f32 %v6189, %v6197
    %v6214 = vmul.f32 %v6186, %v6194
    %v6215 = vmul.f32 %v6182, %v6195
    %v6216 = vmul.f32 %v6178, %v6196
    %v6217 = vmul.f32 %v6190, %v6197
    %s6218 = scalar_lea.vmem [#allocation5], 768
    %v6219 = vld [vmem:[%s6218] sm:$0xff]
    %v6220 = vld [vmem:[%s6218 + $0x8] sm:$0xff]
    %v6221 = vld [vmem:[%s6218 + $0x10] sm:$0xff]
    %v6222 = vld [vmem:[%s6218 + $0x18] sm:$0xff]
    %v6224 = vsel %vm895, %v6219, 0
    %v6227 = vsel %vm895, %v6220, 0
    %v6230 = vsel %vm895, %v6221, 0
    %v6233 = vsel %vm895, %v6222, 0
    %6235 = vmatpush.msra.mxu0 0.0
    %6236 = vmatpush.msra.mxu0 0.0
    %6237 = vmatpush.msra.mxu0 0.0
    %6238 = vmatpush.msra.mxu0 0.0
    %6239 = vmatpush.msra.mxu0 0.0
    %6240 = vmatpush.msra.mxu0 0.0
    %6241 = vmatpush.msra.mxu0 0.0
    %6242 = vmatpush.msra.mxu0 0.0
    %6243 = vmatpush.msra.mxu0 0.0
    %6244 = vmatpush.msra.mxu0 0.0
    %6245 = vmatpush.msra.mxu0 0.0
    %6246 = vmatpush.msra.mxu0 0.0
    %6247 = vmatpush.msra.mxu0 %v6214
    %6248 = vmatpush.msra.mxu0 %v6210
    %6249 = vmatpush.msra.mxu0 %v6206
    %6250 = vmatpush.msra.mxu0 %v6202
    %6251 = vmatmul.f32.gmra.mxu0 %v6224
    %v6252 = vpop.f32.mrf.mxu0
    %v6253 = vadd.f32 0.0, %v6252
    %6254 = vmatmul.f32.gmra.mxu0 %v6227
    %v6255 = vpop.f32.mrf.mxu0
    %v6256 = vadd.f32 0.0, %v6255
    %6257 = vmatmul.f32.gmra.mxu0 %v6230
    %v6258 = vpop.f32.mrf.mxu0
    %v6259 = vadd.f32 0.0, %v6258
    %6260 = vmatmul.f32.gmra.mxu0 %v6233
    %v6261 = vpop.f32.mrf.mxu0
    %v6262 = vadd.f32 0.0, %v6261
    %6263 = vdwg.mxu0
    %6264 = vmatpush.msra.mxu0 0.0
    %6265 = vmatpush.msra.mxu0 0.0
    %6266 = vmatpush.msra.mxu0 0.0
    %6267 = vmatpush.msra.mxu0 0.0
    %6268 = vmatpush.msra.mxu0 0.0
    %6269 = vmatpush.msra.mxu0 0.0
    %6270 = vmatpush.msra.mxu0 0.0
    %6271 = vmatpush.msra.mxu0 0.0
    %6272 = vmatpush.msra.mxu0 0.0
    %6273 = vmatpush.msra.mxu0 0.0
    %6274 = vmatpush.msra.mxu0 0.0
    %6275 = vmatpush.msra.mxu0 0.0
    %6276 = vmatpush.msra.mxu0 %v6215
    %6277 = vmatpush.msra.mxu0 %v6211
    %6278 = vmatpush.msra.mxu0 %v6207
    %6279 = vmatpush.msra.mxu0 %v6203
    %6280 = vmatmul.f32.gmra.mxu0 %v6224
    %v6281 = vpop.f32.mrf.mxu0
    %v6282 = vadd.f32 0.0, %v6281
    %6283 = vmatmul.f32.gmra.mxu0 %v6227
    %v6284 = vpop.f32.mrf.mxu0
    %v6285 = vadd.f32 0.0, %v6284
    %6286 = vmatmul.f32.gmra.mxu0 %v6230
    %v6287 = vpop.f32.mrf.mxu0
    %v6288 = vadd.f32 0.0, %v6287
    %6289 = vmatmul.f32.gmra.mxu0 %v6233
    %v6290 = vpop.f32.mrf.mxu0
    %v6291 = vadd.f32 0.0, %v6290
    %6292 = vdwg.mxu0
    %6293 = vmatpush.msra.mxu0 0.0
    %6294 = vmatpush.msra.mxu0 0.0
    %6295 = vmatpush.msra.mxu0 0.0
    %6296 = vmatpush.msra.mxu0 0.0
    %6297 = vmatpush.msra.mxu0 0.0
    %6298 = vmatpush.msra.mxu0 0.0
    %6299 = vmatpush.msra.mxu0 0.0
    %6300 = vmatpush.msra.mxu0 0.0
    %6301 = vmatpush.msra.mxu0 0.0
    %6302 = vmatpush.msra.mxu0 0.0
    %6303 = vmatpush.msra.mxu0 0.0
    %6304 = vmatpush.msra.mxu0 0.0
    %6305 = vmatpush.msra.mxu0 %v6216
    %6306 = vmatpush.msra.mxu0 %v6212
    %6307 = vmatpush.msra.mxu0 %v6208
    %6308 = vmatpush.msra.mxu0 %v6204
    %6309 = vmatmul.f32.gmra.mxu0 %v6224
    %v6310 = vpop.f32.mrf.mxu0
    %v6311 = vadd.f32 0.0, %v6310
    %6312 = vmatmul.f32.gmra.mxu0 %v6227
    %v6313 = vpop.f32.mrf.mxu0
    %v6314 = vadd.f32 0.0, %v6313
    %6315 = vmatmul.f32.gmra.mxu0 %v6230
    %v6316 = vpop.f32.mrf.mxu0
    %v6317 = vadd.f32 0.0, %v6316
    %6318 = vmatmul.f32.gmra.mxu0 %v6233
    %v6319 = vpop.f32.mrf.mxu0
    %v6320 = vadd.f32 0.0, %v6319
    %6321 = vdwg.mxu0
    %6322 = vmatpush.msra.mxu0 0.0
    %6323 = vmatpush.msra.mxu0 0.0
    %6324 = vmatpush.msra.mxu0 0.0
    %6325 = vmatpush.msra.mxu0 0.0
    %6326 = vmatpush.msra.mxu0 0.0
    %6327 = vmatpush.msra.mxu0 0.0
    %6328 = vmatpush.msra.mxu0 0.0
    %6329 = vmatpush.msra.mxu0 0.0
    %6330 = vmatpush.msra.mxu0 0.0
    %6331 = vmatpush.msra.mxu0 0.0
    %6332 = vmatpush.msra.mxu0 0.0
    %6333 = vmatpush.msra.mxu0 0.0
    %6334 = vmatpush.msra.mxu0 %v6217
    %6335 = vmatpush.msra.mxu0 %v6213
    %6336 = vmatpush.msra.mxu0 %v6209
    %6337 = vmatpush.msra.mxu0 %v6205
    %6338 = vmatmul.f32.gmra.mxu0 %v6224
    %v6339 = vpop.f32.mrf.mxu0
    %v6340 = vadd.f32 0.0, %v6339
    %6341 = vmatmul.f32.gmra.mxu0 %v6227
    %v6342 = vpop.f32.mrf.mxu0
    %v6343 = vadd.f32 0.0, %v6342
    %6344 = vmatmul.f32.gmra.mxu0 %v6230
    %v6345 = vpop.f32.mrf.mxu0
    %v6346 = vadd.f32 0.0, %v6345
    %6347 = vmatmul.f32.gmra.mxu0 %v6233
    %v6348 = vpop.f32.mrf.mxu0
    %v6349 = vadd.f32 0.0, %v6348
    %6350 = vdwg.mxu0
    %v6351 = vadd.f32 %v6126, %v6253
    %v6352 = vadd.f32 %v6127, %v6282
    %v6353 = vadd.f32 %v6128, %v6311
    %v6354 = vadd.f32 %v6129, %v6340
    %v6355 = vadd.f32 %v6130, %v6256
    %v6356 = vadd.f32 %v6131, %v6285
    %v6357 = vadd.f32 %v6132, %v6314
    %v6358 = vadd.f32 %v6133, %v6343
    %v6359 = vadd.f32 %v6134, %v6259
    %v6360 = vadd.f32 %v6135, %v6288
    %v6361 = vadd.f32 %v6136, %v6317
    %v6362 = vadd.f32 %v6137, %v6346
    %v6363 = vadd.f32 %v6138, %v6262
    %v6364 = vadd.f32 %v6139, %v6291
    %v6365 = vadd.f32 %v6140, %v6320
    %v6366 = vadd.f32 %v6141, %v6349
    %v6367 = vadd.f32 %v142, %v177
    %v6368 = vadd.f32 %v6367, %v212
    %v6369 = vadd.f32 %v6368, %v247
    %6370 = vadd.xlane.f32.xlu0 %v6369
    %v6371 = vpop.xlane.xlu0 %6370
    %v6372 = vadd.f32 %v145, %v180
    %v6373 = vadd.f32 %v6372, %v215
    %v6374 = vadd.f32 %v6373, %v250
    %6375 = vadd.xlane.f32.xlu0 %v6374
    %v6376 = vpop.xlane.xlu0 %6375
    %v6377 = vmul.f32 %v142, %v142
    %v6378 = vmul.f32 %v177, %v177
    %v6379 = vmul.f32 %v212, %v212
    %v6380 = vmul.f32 %v247, %v247
    %v6381 = vmul.f32 %v145, %v145
    %v6382 = vmul.f32 %v180, %v180
    %v6383 = vmul.f32 %v215, %v215
    %v6384 = vmul.f32 %v250, %v250
    %v6385 = vadd.f32 %v6377, %v6378
    %v6386 = vadd.f32 %v6385, %v6379
    %v6387 = vadd.f32 %v6386, %v6380
    %6388 = vadd.xlane.f32.xlu0 %v6387
    %v6389 = vpop.xlane.xlu0 %6388
    %v6390 = vadd.f32 %v6381, %v6382
    %v6391 = vadd.f32 %v6390, %v6383
    %v6392 = vadd.f32 %v6391, %v6384
    %6393 = vadd.xlane.f32.xlu0 %v6392
    %v6394 = vpop.xlane.xlu0 %6393
    %v6395 = vadd.f32 %v6351, %v6352
    %v6396 = vadd.f32 %v6395, %v6353
    %v6397 = vadd.f32 %v6396, %v6354
    %6398 = vadd.xlane.f32.xlu0 %v6397
    %v6399 = vpop.xlane.xlu0 %6398
    %v6400 = vadd.f32 %v6355, %v6356
    %v6401 = vadd.f32 %v6400, %v6357
    %v6402 = vadd.f32 %v6401, %v6358
    %6403 = vadd.xlane.f32.xlu0 %v6402
    %v6404 = vpop.xlane.xlu0 %6403
    %v6405 = vadd.f32 %v6359, %v6360
    %v6406 = vadd.f32 %v6405, %v6361
    %v6407 = vadd.f32 %v6406, %v6362
    %6408 = vadd.xlane.f32.xlu0 %v6407
    %v6409 = vpop.xlane.xlu0 %6408
    %v6410 = vadd.f32 %v6363, %v6364
    %v6411 = vadd.f32 %v6410, %v6365
    %v6412 = vadd.f32 %v6411, %v6366
    %6413 = vadd.xlane.f32.xlu0 %v6412
    %v6414 = vpop.xlane.xlu0 %6413
    %v6415 = vmul.f32 %v6351, %v6351
    %v6416 = vmul.f32 %v6352, %v6352
    %v6417 = vmul.f32 %v6353, %v6353
    %v6418 = vmul.f32 %v6354, %v6354
    %v6419 = vmul.f32 %v6355, %v6355
    %v6420 = vmul.f32 %v6356, %v6356
    %v6421 = vmul.f32 %v6357, %v6357
    %v6422 = vmul.f32 %v6358, %v6358
    %v6423 = vmul.f32 %v6359, %v6359
    %v6424 = vmul.f32 %v6360, %v6360
    %v6425 = vmul.f32 %v6361, %v6361
    %v6426 = vmul.f32 %v6362, %v6362
    %v6427 = vmul.f32 %v6363, %v6363
    %v6428 = vmul.f32 %v6364, %v6364
    %v6429 = vmul.f32 %v6365, %v6365
    %v6430 = vmul.f32 %v6366, %v6366
    %v6431 = vadd.f32 %v6415, %v6416
    %v6432 = vadd.f32 %v6431, %v6417
    %v6433 = vadd.f32 %v6432, %v6418
    %6434 = vadd.xlane.f32.xlu0 %v6433
    %v6435 = vpop.xlane.xlu0 %6434
    %v6436 = vadd.f32 %v6419, %v6420
    %v6437 = vadd.f32 %v6436, %v6421
    %v6438 = vadd.f32 %v6437, %v6422
    %6439 = vadd.xlane.f32.xlu0 %v6438
    %v6440 = vpop.xlane.xlu0 %6439
    %v6441 = vadd.f32 %v6423, %v6424
    %v6442 = vadd.f32 %v6441, %v6425
    %v6443 = vadd.f32 %v6442, %v6426
    %6444 = vadd.xlane.f32.xlu0 %v6443
    %v6445 = vpop.xlane.xlu0 %6444
    %v6446 = vadd.f32 %v6427, %v6428
    %v6447 = vadd.f32 %v6446, %v6429
    %v6448 = vadd.f32 %v6447, %v6430
    %6449 = vadd.xlane.f32.xlu0 %v6448
    %v6450 = vpop.xlane.xlu0 %6449
    %v6451 = vadd.f32 %v726, %v749
    %v6452 = vadd.f32 %v6451, %v772
    %v6453 = vadd.f32 %v6452, %v795
    %6454 = vadd.xlane.f32.xlu0 %v6453
    %v6455 = vpop.xlane.xlu0 %6454
    %v6456 = vadd.f32 %v729, %v752
    %v6457 = vadd.f32 %v6456, %v775
    %v6458 = vadd.f32 %v6457, %v798
    %6459 = vadd.xlane.f32.xlu0 %v6458
    %v6460 = vpop.xlane.xlu0 %6459
    %v6461 = vmul.f32 %v726, %v726
    %v6462 = vmul.f32 %v749, %v749
    %v6463 = vmul.f32 %v772, %v772
    %v6464 = vmul.f32 %v795, %v795
    %v6465 = vmul.f32 %v729, %v729
    %v6466 = vmul.f32 %v752, %v752
    %v6467 = vmul.f32 %v775, %v775
    %v6468 = vmul.f32 %v798, %v798
    %v6469 = vadd.f32 %v6461, %v6462
    %v6470 = vadd.f32 %v6469, %v6463
    %v6471 = vadd.f32 %v6470, %v6464
    %6472 = vadd.xlane.f32.xlu0 %v6471
    %v6473 = vpop.xlane.xlu0 %6472
    %v6474 = vadd.f32 %v6465, %v6466
    %v6475 = vadd.f32 %v6474, %v6467
    %v6476 = vadd.f32 %v6475, %v6468
    %6477 = vadd.xlane.f32.xlu0 %v6476
    %v6478 = vpop.xlane.xlu0 %6477
    %v6479 = vmul.f32 %v6371, 0.001953125
    %v6480 = vmul.f32 %v6376, 0.001953125
    %v6481 = vmul.f32 %v6399, 0.001953125
    %v6482 = vmul.f32 %v6404, 0.001953125
    %v6483 = vmul.f32 %v6409, 0.001953125
    %v6484 = vmul.f32 %v6414, 0.001953125
    %v6485 = vmul.f32 %v6455, 0.001953125
    %v6486 = vmul.f32 %v6460, 0.001953125
    %v6487 = vmul.f32 %v6389, 0.001953125
    %v6488 = vmul.f32 %v6394, 0.001953125
    %v6489 = vmul.f32 %v6435, 0.001953125
    %v6490 = vmul.f32 %v6440, 0.001953125
    %v6491 = vmul.f32 %v6445, 0.001953125
    %v6492 = vmul.f32 %v6450, 0.001953125
    %v6493 = vmul.f32 %v6473, 0.001953125
    %v6494 = vmul.f32 %v6478, 0.001953125
    %v6495 = vmul.f32 %v6479, %v6479
    %v6496 = vmul.f32 %v6480, %v6480
    %v6497 = vmul.f32 %v6481, %v6481
    %v6498 = vmul.f32 %v6482, %v6482
    %v6499 = vmul.f32 %v6483, %v6483
    %v6500 = vmul.f32 %v6484, %v6484
    %v6501 = vmul.f32 %v6485, %v6485
    %v6502 = vmul.f32 %v6486, %v6486
    %v6503 = vsub.f32 %v6487, %v6495
    %v6504 = vsub.f32 %v6488, %v6496
    %v6505 = vsub.f32 %v6489, %v6497
    %v6506 = vsub.f32 %v6490, %v6498
    %v6507 = vsub.f32 %v6491, %v6499
    %v6508 = vsub.f32 %v6492, %v6500
    %v6509 = vsub.f32 %v6493, %v6501
    %v6510 = vsub.f32 %v6494, %v6502
    %v6511 = vadd.f32 %v6503, 1e-05
    %v6512 = vadd.f32 %v6504, 1e-05
    %v6513 = vadd.f32 %v6505, 1e-05
    %v6514 = vadd.f32 %v6506, 1e-05
    %v6515 = vadd.f32 %v6507, 1e-05
    %v6516 = vadd.f32 %v6508, 1e-05
    %v6517 = vadd.f32 %v6509, 1e-05
    %v6518 = vadd.f32 %v6510, 1e-05
    %v6519 = vrsqrt.pop %v6511
    %v6520 = vmul.f32 %v6519, %v6511
    %v6521 = vmul.f32 %v6520, %v6519
    %v6522 = vmul.f32 0.5, %v6521
    %v6523 = vsub.f32 1.5, %v6522
    %v6524 = vmul.f32 %v6519, %v6523
    %vm6525 = vweird.f32 %v6511
    %vm6526 = vweird.f32 %v6519
    %vm6527 = vmor %vm6525, %vm6526
    %v6528 = vsel %vm6527, %v6519, %v6524
    %v6529 = vrsqrt.pop %v6512
    %v6530 = vmul.f32 %v6529, %v6512
    %v6531 = vmul.f32 %v6530, %v6529
    %v6532 = vmul.f32 0.5, %v6531
    %v6533 = vsub.f32 1.5, %v6532
    %v6534 = vmul.f32 %v6529, %v6533
    %vm6535 = vweird.f32 %v6512
    %vm6536 = vweird.f32 %v6529
    %vm6537 = vmor %vm6535, %vm6536
    %v6538 = vsel %vm6537, %v6529, %v6534
    %v6539 = vrsqrt.pop %v6513
    %v6540 = vmul.f32 %v6539, %v6513
    %v6541 = vmul.f32 %v6540, %v6539
    %v6542 = vmul.f32 0.5, %v6541
    %v6543 = vsub.f32 1.5, %v6542
    %v6544 = vmul.f32 %v6539, %v6543
    %vm6545 = vweird.f32 %v6513
    %vm6546 = vweird.f32 %v6539
    %vm6547 = vmor %vm6545, %vm6546
    %v6548 = vsel %vm6547, %v6539, %v6544
    %v6549 = vrsqrt.pop %v6514
    %v6550 = vmul.f32 %v6549, %v6514
    %v6551 = vmul.f32 %v6550, %v6549
    %v6552 = vmul.f32 0.5, %v6551
    %v6553 = vsub.f32 1.5, %v6552
    %v6554 = vmul.f32 %v6549, %v6553
    %vm6555 = vweird.f32 %v6514
    %vm6556 = vweird.f32 %v6549
    %vm6557 = vmor %vm6555, %vm6556
    %v6558 = vsel %vm6557, %v6549, %v6554
    %v6559 = vrsqrt.pop %v6515
    %v6560 = vmul.f32 %v6559, %v6515
    %v6561 = vmul.f32 %v6560, %v6559
    %v6562 = vmul.f32 0.5, %v6561
    %v6563 = vsub.f32 1.5, %v6562
    %v6564 = vmul.f32 %v6559, %v6563
    %vm6565 = vweird.f32 %v6515
    %vm6566 = vweird.f32 %v6559
    %vm6567 = vmor %vm6565, %vm6566
    %v6568 = vsel %vm6567, %v6559, %v6564
    %v6569 = vrsqrt.pop %v6516
    %v6570 = vmul.f32 %v6569, %v6516
    %v6571 = vmul.f32 %v6570, %v6569
    %v6572 = vmul.f32 0.5, %v6571
    %v6573 = vsub.f32 1.5, %v6572
    %v6574 = vmul.f32 %v6569, %v6573
    %vm6575 = vweird.f32 %v6516
    %vm6576 = vweird.f32 %v6569
    %vm6577 = vmor %vm6575, %vm6576
    %v6578 = vsel %vm6577, %v6569, %v6574
    %v6579 = vrsqrt.pop %v6517
    %v6580 = vmul.f32 %v6579, %v6517
    %v6581 = vmul.f32 %v6580, %v6579
    %v6582 = vmul.f32 0.5, %v6581
    %v6583 = vsub.f32 1.5, %v6582
    %v6584 = vmul.f32 %v6579, %v6583
    %vm6585 = vweird.f32 %v6517
    %vm6586 = vweird.f32 %v6579
    %vm6587 = vmor %vm6585, %vm6586
    %v6588 = vsel %vm6587, %v6579, %v6584
    %v6589 = vrsqrt.pop %v6518
    %v6590 = vmul.f32 %v6589, %v6518
    %v6591 = vmul.f32 %v6590, %v6589
    %v6592 = vmul.f32 0.5, %v6591
    %v6593 = vsub.f32 1.5, %v6592
    %v6594 = vmul.f32 %v6589, %v6593
    %vm6595 = vweird.f32 %v6518
    %vm6596 = vweird.f32 %v6589
    %vm6597 = vmor %vm6595, %vm6596
    %v6598 = vsel %vm6597, %v6589, %v6594
    %6607 = vrot.lane.b32.xlu0 %v6528, 2
    %v6608 = vpop.permute.xlu0 %6607
    %6609 = vrot.lane.b32.xlu0 %v6538, 2
    %v6610 = vpop.permute.xlu0 %6609
    %6611 = vrot.lane.b32.xlu0 %v6548, 2
    %v6612 = vpop.permute.xlu0 %6611
    %6613 = vrot.lane.b32.xlu0 %v6558, 2
    %v6614 = vpop.permute.xlu0 %6613
    %6615 = vrot.lane.b32.xlu0 %v6568, 2
    %v6616 = vpop.permute.xlu0 %6615
    %6617 = vrot.lane.b32.xlu0 %v6578, 2
    %v6618 = vpop.permute.xlu0 %6617
    %6619 = vrot.lane.b32.xlu0 %v6588, 2
    %v6620 = vpop.permute.xlu0 %6619
    %6621 = vrot.lane.b32.xlu0 %v6598, 2
    %v6622 = vpop.permute.xlu0 %6621
    %v6631 = vmul.f32 %v61, %v6608
    %v6632 = vmul.f32 %v62, %v6610
    %v6633 = vmul.f32 %v63, %v6612
    %v6634 = vmul.f32 %v64, %v6614
    %v6635 = vmul.f32 %v65, %v6616
    %v6636 = vmul.f32 %v66, %v6618
    %v6637 = vmul.f32 %v67, %v6620
    %v6638 = vmul.f32 %v68, %v6622
    %6647 = vrot.lane.b32.xlu0 %v6631, 126
    %v6648 = vpop.permute.xlu0 %6647
    %6649 = vrot.lane.b32.xlu0 %v6632, 126
    %v6650 = vpop.permute.xlu0 %6649
    %6651 = vrot.lane.b32.xlu0 %v6633, 126
    %v6652 = vpop.permute.xlu0 %6651
    %6653 = vrot.lane.b32.xlu0 %v6634, 126
    %v6654 = vpop.permute.xlu0 %6653
    %6655 = vrot.lane.b32.xlu0 %v6635, 126
    %v6656 = vpop.permute.xlu0 %6655
    %6657 = vrot.lane.b32.xlu0 %v6636, 126
    %v6658 = vpop.permute.xlu0 %6657
    %6659 = vrot.lane.b32.xlu0 %v6637, 126
    %v6660 = vpop.permute.xlu0 %6659
    %6661 = vrot.lane.b32.xlu0 %v6638, 126
    %v6662 = vpop.permute.xlu0 %6661
    %v6671 = vmul.f32 %v6479, %v6648
    %v6672 = vmul.f32 %v6480, %v6650
    %v6673 = vmul.f32 %v6481, %v6652
    %v6674 = vmul.f32 %v6482, %v6654
    %v6675 = vmul.f32 %v6483, %v6656
    %v6676 = vmul.f32 %v6484, %v6658
    %v6677 = vmul.f32 %v6485, %v6660
    %v6678 = vmul.f32 %v6486, %v6662
    %6687 = vrot.lane.b32.xlu0 %v6671, 3
    %v6688 = vpop.permute.xlu0 %6687
    %6689 = vrot.lane.b32.xlu0 %v6672, 3
    %v6690 = vpop.permute.xlu0 %6689
    %6691 = vrot.lane.b32.xlu0 %v6673, 3
    %v6692 = vpop.permute.xlu0 %6691
    %6693 = vrot.lane.b32.xlu0 %v6674, 3
    %v6694 = vpop.permute.xlu0 %6693
    %6695 = vrot.lane.b32.xlu0 %v6675, 3
    %v6696 = vpop.permute.xlu0 %6695
    %6697 = vrot.lane.b32.xlu0 %v6676, 3
    %v6698 = vpop.permute.xlu0 %6697
    %6699 = vrot.lane.b32.xlu0 %v6677, 3
    %v6700 = vpop.permute.xlu0 %6699
    %6701 = vrot.lane.b32.xlu0 %v6678, 3
    %v6702 = vpop.permute.xlu0 %6701
    %v6711 = vsub.f32 %v61, %v6688
    %v6712 = vsub.f32 %v62, %v6690
    %v6713 = vsub.f32 %v63, %v6692
    %v6714 = vsub.f32 %v64, %v6694
    %v6715 = vsub.f32 %v65, %v6696
    %v6716 = vsub.f32 %v66, %v6698
    %v6717 = vsub.f32 %v67, %v6700
    %v6718 = vsub.f32 %v68, %v6702
    %6719 = vset.pattern.permute.xlu0 2
    %6720 = vperm.xlu0 %6719, %v6631
    %v6721 = vpop.permute.xlu0 %6720
    %6723 = vset.pattern.permute.xlu0 2
    %6724 = vperm.xlu0 %6723, %v6632
    %v6725 = vpop.permute.xlu0 %6724
    %v6727 = vmul.f32 %v142, %v6721
    %v6728 = vmul.f32 %v177, %v6721
    %v6729 = vmul.f32 %v212, %v6721
    %v6730 = vmul.f32 %v247, %v6721
    %v6731 = vmul.f32 %v145, %v6725
    %v6732 = vmul.f32 %v180, %v6725
    %v6733 = vmul.f32 %v215, %v6725
    %v6734 = vmul.f32 %v250, %v6725
    %6736 = vset.pattern.permute.xlu0 3
    %6737 = vperm.xlu0 %6736, %v6711
    %v6738 = vpop.permute.xlu0 %6737
    %6741 = vset.pattern.permute.xlu0 3
    %6742 = vperm.xlu0 %6741, %v6712
    %v6743 = vpop.permute.xlu0 %6742
    %v6745 = vadd.f32 %v6727, %v6738
    %v6746 = vadd.f32 %v6728, %v6738
    %v6747 = vadd.f32 %v6729, %v6738
    %v6748 = vadd.f32 %v6730, %v6738
    %v6749 = vadd.f32 %v6731, %v6743
    %v6750 = vadd.f32 %v6732, %v6743
    %v6751 = vadd.f32 %v6733, %v6743
    %v6752 = vadd.f32 %v6734, %v6743
    %6753 = vst [vmem:[#allocation7] sm:$0xff] %v6745
    %6754 = vst [vmem:[#allocation7 + $0x8] sm:$0xff] %v6746
    %6755 = vst [vmem:[#allocation7 + $0x10] sm:$0xff] %v6747
    %6756 = vst [vmem:[#allocation7 + $0x18] sm:$0xff] %v6748
    %6757 = vst [vmem:[#allocation7 + $0x20] sm:$0xff] %v6749
    %6758 = vst [vmem:[#allocation7 + $0x28] sm:$0xff] %v6750
    %6759 = vst [vmem:[#allocation7 + $0x30] sm:$0xff] %v6751
    %6760 = vst [vmem:[#allocation7 + $0x38] sm:$0xff] %v6752
    %6761 = vset.pattern.permute.xlu0 2
    %6762 = vperm.xlu0 %6761, %v6633
    %v6763 = vpop.permute.xlu0 %6762
    %6765 = vset.pattern.permute.xlu0 2
    %6766 = vperm.xlu0 %6765, %v6634
    %v6767 = vpop.permute.xlu0 %6766
    %6769 = vset.pattern.permute.xlu0 2
    %6770 = vperm.xlu0 %6769, %v6635
    %v6771 = vpop.permute.xlu0 %6770
    %6773 = vset.pattern.permute.xlu0 2
    %6774 = vperm.xlu0 %6773, %v6636
    %v6775 = vpop.permute.xlu0 %6774
    %v6777 = vmul.f32 %v6351, %v6763
    %v6778 = vmul.f32 %v6352, %v6763
    %v6779 = vmul.f32 %v6353, %v6763
    %v6780 = vmul.f32 %v6354, %v6763
    %v6781 = vmul.f32 %v6355, %v6767
    %v6782 = vmul.f32 %v6356, %v6767
    %v6783 = vmul.f32 %v6357, %v6767
    %v6784 = vmul.f32 %v6358, %v6767
    %v6785 = vmul.f32 %v6359, %v6771
    %v6786 = vmul.f32 %v6360, %v6771
    %v6787 = vmul.f32 %v6361, %v6771
    %v6788 = vmul.f32 %v6362, %v6771
    %v6789 = vmul.f32 %v6363, %v6775
    %v6790 = vmul.f32 %v6364, %v6775
    %v6791 = vmul.f32 %v6365, %v6775
    %v6792 = vmul.f32 %v6366, %v6775
    %6794 = vset.pattern.permute.xlu0 3
    %6795 = vperm.xlu0 %6794, %v6713
    %v6796 = vpop.permute.xlu0 %6795
    %6799 = vset.pattern.permute.xlu0 3
    %6800 = vperm.xlu0 %6799, %v6714
    %v6801 = vpop.permute.xlu0 %6800
    %6804 = vset.pattern.permute.xlu0 3
    %6805 = vperm.xlu0 %6804, %v6715
    %v6806 = vpop.permute.xlu0 %6805
    %6809 = vset.pattern.permute.xlu0 3
    %6810 = vperm.xlu0 %6809, %v6716
    %v6811 = vpop.permute.xlu0 %6810
    %v6813 = vadd.f32 %v6777, %v6796
    %v6814 = vadd.f32 %v6778, %v6796
    %v6815 = vadd.f32 %v6779, %v6796
    %v6816 = vadd.f32 %v6780, %v6796
    %v6817 = vadd.f32 %v6781, %v6801
    %v6818 = vadd.f32 %v6782, %v6801
    %v6819 = vadd.f32 %v6783, %v6801
    %v6820 = vadd.f32 %v6784, %v6801
    %v6821 = vadd.f32 %v6785, %v6806
    %v6822 = vadd.f32 %v6786, %v6806
    %v6823 = vadd.f32 %v6787, %v6806
    %v6824 = vadd.f32 %v6788, %v6806
    %v6825 = vadd.f32 %v6789, %v6811
    %v6826 = vadd.f32 %v6790, %v6811
    %v6827 = vadd.f32 %v6791, %v6811
    %v6828 = vadd.f32 %v6792, %v6811
    %6829 = vst [vmem:[#allocation7 + $0x40] sm:$0xff] %v6813
    %6830 = vst [vmem:[#allocation7 + $0x48] sm:$0xff] %v6814
    %6831 = vst [vmem:[#allocation7 + $0x50] sm:$0xff] %v6815
    %6832 = vst [vmem:[#allocation7 + $0x58] sm:$0xff] %v6816
    %6833 = vst [vmem:[#allocation7 + $0x60] sm:$0xff] %v6817
    %6834 = vst [vmem:[#allocation7 + $0x68] sm:$0xff] %v6818
    %6835 = vst [vmem:[#allocation7 + $0x70] sm:$0xff] %v6819
    %6836 = vst [vmem:[#allocation7 + $0x78] sm:$0xff] %v6820
    %6837 = vst [vmem:[#allocation7 + $0x80] sm:$0xff] %v6821
    %6838 = vst [vmem:[#allocation7 + $0x88] sm:$0xff] %v6822
    %6839 = vst [vmem:[#allocation7 + $0x90] sm:$0xff] %v6823
    %6840 = vst [vmem:[#allocation7 + $0x98] sm:$0xff] %v6824
    %6841 = vst [vmem:[#allocation7 + $0xa0] sm:$0xff] %v6825
    %6842 = vst [vmem:[#allocation7 + $0xa8] sm:$0xff] %v6826
    %6843 = vst [vmem:[#allocation7 + $0xb0] sm:$0xff] %v6827
    %6844 = vst [vmem:[#allocation7 + $0xb8] sm:$0xff] %v6828
    %6845 = vset.pattern.permute.xlu0 2
    %6846 = vperm.xlu0 %6845, %v6637
    %v6847 = vpop.permute.xlu0 %6846
    %6849 = vset.pattern.permute.xlu0 2
    %6850 = vperm.xlu0 %6849, %v6638
    %v6851 = vpop.permute.xlu0 %6850
    %v6853 = vmul.f32 %v726, %v6847
    %v6854 = vmul.f32 %v749, %v6847
    %v6855 = vmul.f32 %v772, %v6847
    %v6856 = vmul.f32 %v795, %v6847
    %v6857 = vmul.f32 %v729, %v6851
    %v6858 = vmul.f32 %v752, %v6851
    %v6859 = vmul.f32 %v775, %v6851
    %v6860 = vmul.f32 %v798, %v6851
    %6862 = vset.pattern.permute.xlu0 3
    %6863 = vperm.xlu0 %6862, %v6717
    %v6864 = vpop.permute.xlu0 %6863
    %6867 = vset.pattern.permute.xlu0 3
    %6868 = vperm.xlu0 %6867, %v6718
    %v6869 = vpop.permute.xlu0 %6868
    %v6871 = vadd.f32 %v6853, %v6864
    %v6872 = vadd.f32 %v6854, %v6864
    %v6873 = vadd.f32 %v6855, %v6864
    %v6874 = vadd.f32 %v6856, %v6864
    %v6875 = vadd.f32 %v6857, %v6869
    %v6876 = vadd.f32 %v6858, %v6869
    %v6877 = vadd.f32 %v6859, %v6869
    %v6878 = vadd.f32 %v6860, %v6869
    %6879 = vst [vmem:[#allocation7 + $0xc0] sm:$0xff] %v6871
    %6880 = vst [vmem:[#allocation7 + $0xc8] sm:$0xff] %v6872
    %6881 = vst [vmem:[#allocation7 + $0xd0] sm:$0xff] %v6873
    %6882 = vst [vmem:[#allocation7 + $0xd8] sm:$0xff] %v6874
    %6883 = vst [vmem:[#allocation7 + $0xe0] sm:$0xff] %v6875
    %6884 = vst [vmem:[#allocation7 + $0xe8] sm:$0xff] %v6876
    %6885 = vst [vmem:[#allocation7 + $0xf0] sm:$0xff] %v6877
    %6886 = vst [vmem:[#allocation7 + $0xf8] sm:$0xff] %v6878
    // Predicated region
    $region30: #{tpu_custom_call.1} parent=1 // pred_check
      _
    $region31: #{tpu_custom_call.1} parent=1 // pred_check_branch
      %6888 = sbr.rel (0) target = $region33
    $region32: #{tpu_custom_call.1} parent=1 // pred_region
      %6890 = vsyncadd [#allocation4], 0
      %s6891 = sshll.u32 [#allocation7], 4
      %s6892 = int_to_ptr.vmem [resolvable:$true] %s6891
      %s6893 = sshll.u32 %s5, 4
      %s6894 = int_to_ptr.hbm [resolvable:$true] %s6893
      %6899 = dma.vmem_to_hbm [thread:$0]  %s6892, 4096, %s6894, [#allocation4], 512, 512, 32
    $region33: #{tpu_custom_call.1} parent=1 // pred_fallthru
      _
    // Predicated region
    $region34: #{tpu_custom_call.1} parent=1 // pred_check
      _
    $region35: #{tpu_custom_call.1} parent=1 // pred_check_branch
      %6901 = sbr.rel (0) target = $region37
    $region36: #{tpu_custom_call.1} parent=1 // pred_region
      %6903 = dma.done [#allocation4], 4096
    $region37: #{tpu_custom_call.1} parent=1 // pred_fallthru
      _
    %6904 = vsyncpa [#allocation3], 1
    %6905 = vsyncpa [#allocation6], 1
    %6906 = vsyncpa [#allocation4], 1

</llo_original>
